<compile_context>
chip_gen: v5e
topology: v5e:2x2
jax: 0.10.0
libtpu: 0.0.40
codegen_flags: <defaults>
</compile_context>

<pallas_src>
import functools
import numpy as np
import jax
import jax.numpy as jnp
from jax.experimental import pallas as pl
from jax.experimental.pallas import tpu as pltpu

_ACT_DTYPE = jnp.bfloat16               # inter-kernel activation dtype
_ROW_TILE_TARGET = 256                  # row-tile target (multiple of 8)


def _vmem_limit():
    # ~75% of physical VMEM: 96 MiB on v5e/v6e (128 MiB), 48 MiB on v7x (64 MiB).
    try:
        cap = getattr(pltpu.get_tpu_info(), "vmem_capacity_bytes", None)
        if cap:
            return min(int(cap * 3 // 4), 100 * 1024 * 1024)
    except Exception:
        pass
    return 48 * 1024 * 1024


_VMEM_LIMIT = _vmem_limit()


def _cparams(n_axes=1):
    return pltpu.CompilerParams(
        dimension_semantics=("parallel",) * n_axes,
        vmem_limit_bytes=_VMEM_LIMIT)


def _row_tile(M, target=_ROW_TILE_TARGET):
    """Multiple-of-8 row tile dividing M, <= target, preferring >=2 grid steps
    so both v7x TensorCores get work."""
    if M <= 8 or M % 8 != 0:
        return M
    divisors = [t for t in range(8, min(target, M) + 1, 8) if M % t == 0]
    if not divisors:
        return M
    two_step = [t for t in divisors if M // t >= 2]
    return max(two_step) if two_step else max(divisors)


def _row_spec(tile_m, width):
    return pl.BlockSpec((tile_m, width), lambda i: (i, 0))


def _const_spec(shape):
    return pl.BlockSpec(shape, lambda i: (0,) * len(shape))


# ----------------------------- kernel helpers ------------------------------

def _ln(x, g, b):
    mean = jnp.mean(x, axis=-1, keepdims=True)
    var = jnp.mean(jnp.square(x - mean), axis=-1, keepdims=True)
    return (x - mean) * jax.lax.rsqrt(var + 1e-5) * g + b


def _mm(x, w):
    # bf16 MXU matmul with f32 accumulation.
    return jnp.dot(x.astype(jnp.bfloat16), w.astype(jnp.bfloat16),
                   preferred_element_type=jnp.float32)


def _erf_approx(x):
    # TODO(synk): exact lax.erf has no guaranteed Mosaic lowering; use the
    # Abramowitz-Stegun 7.1.26 approximation (|err| <= 1.5e-7 ~ f32 eps).
    ax = jnp.abs(x)
    t = 1.0 / (1.0 + 0.3275911 * ax)
    poly = ((((1.061405429 * t - 1.453152027) * t + 1.421413741) * t
             - 0.284496736) * t + 0.254829592) * t
    y = 1.0 - poly * jnp.exp(-ax * ax)
    return jnp.where(x >= 0, y, -y)


def _gelu(x):
    return 0.5 * x * (1.0 + _erf_approx(x * 0.7071067811865476))


# ------------------------------ Pallas kernels ------------------------------

def _ln_kernel(x_ref, g_ref, b_ref, o_ref):
    x = x_ref[...].astype(jnp.float32)
    o_ref[...] = _ln(x, g_ref[...], b_ref[...]).astype(o_ref.dtype)


def _linear_ln_kernel(x_ref, w_ref, b_ref, g_ref, beta_ref, o_ref):
    # patch embed: y = x @ W + b ; out = LN(y)
    y = _mm(x_ref[...], w_ref[...]) + b_ref[...]
    o_ref[...] = _ln(y, g_ref[...], beta_ref[...]).astype(o_ref.dtype)


def _ln_linear_nobias_kernel(x_ref, g_ref, b_ref, w_ref, o_ref):
    # patch merging: out = LN(x) @ W  (bias-free reduction)
    xn = _ln(x_ref[...].astype(jnp.float32), g_ref[...], b_ref[...])
    o_ref[...] = _mm(xn, w_ref[...]).astype(o_ref.dtype)


def _mlp_fused_kernel(s_ref, y_ref, g_ref, b_ref, w1_ref, b1_ref,
                      w2_ref, b2_ref, o_ref):
    # x = shortcut + attn_out ; out = x + fc2(GELU(fc1(LN(x))))
    x = s_ref[...].astype(jnp.float32) + y_ref[...].astype(jnp.float32)
    xn = _ln(x, g_ref[...], b_ref[...])
    h = _gelu(_mm(xn, w1_ref[...]) + b1_ref[...])
    o_ref[...] = (_mm(h, w2_ref[...]) + b2_ref[...] + x).astype(o_ref.dtype)


def _attn_core(x2, bm, qkvw, qkvb, projw, projb, *, nW, N, C,
               num_heads, head_dim, scale):
    # x2: (nW*N, C) f32 tokens (already normed), bm: (nW or 1, nH, N, N) f32.
    qkv = _mm(x2, qkvw) + qkvb                         # (nW*N, 3C) f32
    qkv = qkv.reshape(nW, N, 3 * C)
    acc = jnp.zeros((nW * N, C), jnp.float32)
    for h in range(num_heads):
        lo = h * head_dim
        q = qkv[:, :, lo:lo + head_dim] * scale
        k = qkv[:, :, C + lo:C + lo + head_dim]
        v = qkv[:, :, 2 * C + lo:2 * C + lo + head_dim]
        s = jnp.einsum('wnd,wmd->wnm', q.astype(jnp.bfloat16),
                       k.astype(jnp.bfloat16),
                       preferred_element_type=jnp.float32)
        s = s + bm[:, h]                               # rel-bias (+ shift mask)
        s = s - jnp.max(s, axis=-1, keepdims=True)
        p = jnp.exp(s)
        p = p * pl.reciprocal(jnp.sum(p, axis=-1, keepdims=True), approx=True)
        o = jnp.einsum('wnm,wmd->wnd', p.astype(jnp.bfloat16),
                       v.astype(jnp.bfloat16),
                       preferred_element_type=jnp.float32)
        # fold the output projection in per head: no concatenate, f32 accumulate
        acc = acc + _mm(o.reshape(nW * N, head_dim), projw[lo:lo + head_dim, :])
    return acc + projb


def _attn_fused_norm_kernel(xw_ref, bm_ref, g_ref, b_ref, qkvw_ref, qkvb_ref,
                            projw_ref, projb_ref, o_ref, *, num_heads,
                            head_dim, scale):
    # fused: norm1 + qkv + windowed MSA + proj for all windows of one image
    nW, N, C = xw_ref.shape
    x2 = xw_ref[...].astype(jnp.float32).reshape(nW * N, C)
    x2 = _ln(x2, g_ref[...], b_ref[...])
    out = _attn_core(x2, bm_ref[...], qkvw_ref[...], qkvb_ref[...],
                     projw_ref[...], projb_ref[...], nW=nW, N=N, C=C,
                     num_heads=num_heads, head_dim=head_dim, scale=scale)
    o_ref[...] = out.reshape(nW, N, C).astype(o_ref.dtype)


def _attn_fused_kernel(xw_ref, bm_ref, qkvw_ref, qkvb_ref, projw_ref,
                       projb_ref, o_ref, *, num_heads, head_dim, scale):
    # same as above but the input is already normed (padding path)
    nW, N, C = xw_ref.shape
    x2 = xw_ref[...].astype(jnp.float32).reshape(nW * N, C)
    out = _attn_core(x2, bm_ref[...], qkvw_ref[...], qkvb_ref[...],
                     projw_ref[...], projb_ref[...], nW=nW, N=N, C=C,
                     num_heads=num_heads, head_dim=head_dim, scale=scale)
    o_ref[...] = out.reshape(nW, N, C).astype(o_ref.dtype)


# ------------------------------ kernel wrappers ------------------------------

def layernorm(x, g, b):
    M, C = x.shape
    tm = _row_tile(M)
    return pl.pallas_call(
        _ln_kernel,
        out_shape=jax.ShapeDtypeStruct((M, C), _ACT_DTYPE),
        grid=(pl.cdiv(M, tm),),
        in_specs=[_row_spec(tm, C), _const_spec((1, C)), _const_spec((1, C))],
        out_specs=_row_spec(tm, C),
        compiler_params=_cparams(),
    )(x, g.reshape(1, C), b.reshape(1, C))


def linear_ln(x, w, b, g, beta):
    """Patch embed: LN(x @ W + b)."""
    M, K = x.shape
    N = w.shape[1]
    tm = _row_tile(M)
    return pl.pallas_call(
        _linear_ln_kernel,
        out_shape=jax.ShapeDtypeStruct((M, N), _ACT_DTYPE),
        grid=(pl.cdiv(M, tm),),
        in_specs=[_row_spec(tm, K), _const_spec((K, N)), _const_spec((1, N)),
                  _const_spec((1, N)), _const_spec((1, N))],
        out_specs=_row_spec(tm, N),
        compiler_params=_cparams(),
    )(x, w, b.reshape(1, N), g.reshape(1, N), beta.reshape(1, N))


def ln_linear_nobias(x, g, b, w):
    """Patch merging: LN(x) @ W."""
    M, K = x.shape
    N = w.shape[1]
    tm = _row_tile(M)
    return pl.pallas_call(
        _ln_linear_nobias_kernel,
        out_shape=jax.ShapeDtypeStruct((M, N), _ACT_DTYPE),
        grid=(pl.cdiv(M, tm),),
        in_specs=[_row_spec(tm, K), _const_spec((1, K)), _const_spec((1, K)),
                  _const_spec((K, N))],
        out_specs=_row_spec(tm, N),
        compiler_params=_cparams(),
    )(x, g.reshape(1, K), b.reshape(1, K), w)


def mlp_block(shortcut, y, g, b, w1, b1, w2, b2):
    """Single fused kernel: (shortcut+y) + fc2(gelu(fc1(norm2(shortcut+y))))."""
    M, C = shortcut.shape
    Hd = w1.shape[1]
    tm = _row_tile(M)
    return pl.pallas_call(
        _mlp_fused_kernel,
        out_shape=jax.ShapeDtypeStruct((M, C), _ACT_DTYPE),
        grid=(pl.cdiv(M, tm),),
        in_specs=[_row_spec(tm, C), _row_spec(tm, C),
                  _const_spec((1, C)), _const_spec((1, C)),
                  _const_spec((C, Hd)), _const_spec((1, Hd)),
                  _const_spec((Hd, C)), _const_spec((1, C))],
        out_specs=_row_spec(tm, C),
        compiler_params=_cparams(),
    )(shortcut, y, g.reshape(1, C), b.reshape(1, C),
      w1, b1.reshape(1, Hd), w2, b2.reshape(1, C))


def attention_block(xw, bm, blk, B, nW, nH, C, scale, do_norm):
    """xw: (B*nW, N, C) windowed tokens; bm: (nW or 1, nH, N, N).
    Fused norm1(+opt) + qkv + MSA + proj; grid over images."""
    B_, N, _ = xw.shape
    nWb = bm.shape[0]
    hd = C // nH
    out_shape = jax.ShapeDtypeStruct((B_, N, C), _ACT_DTYPE)
    xw_spec = pl.BlockSpec((nW, N, C), lambda b: (b, 0, 0))
    bm_spec = pl.BlockSpec((nWb, nH, N, N), lambda b: (0, 0, 0, 0))
    o_spec = pl.BlockSpec((nW, N, C), lambda b: (b, 0, 0))
    if do_norm:
        kern = functools.partial(_attn_fused_norm_kernel, num_heads=nH,
                                 head_dim=hd, scale=scale)
        return pl.pallas_call(
            kern, out_shape=out_shape, grid=(B,),
            in_specs=[xw_spec, bm_spec,
                      _const_spec((1, C)), _const_spec((1, C)),
                      _const_spec((C, 3 * C)), _const_spec((1, 3 * C)),
                      _const_spec((C, C)), _const_spec((1, C))],
            out_specs=o_spec, compiler_params=_cparams(),
        )(xw, bm, blk['norm1_g'].reshape(1, C), blk['norm1_b'].reshape(1, C),
          blk['qkv_w'], blk['qkv_b'].reshape(1, 3 * C),
          blk['proj_w'], blk['proj_b'].reshape(1, C))
    kern = functools.partial(_attn_fused_kernel, num_heads=nH,
                             head_dim=hd, scale=scale)
    return pl.pallas_call(
        kern, out_shape=out_shape, grid=(B,),
        in_specs=[xw_spec, bm_spec,
                  _const_spec((C, 3 * C)), _const_spec((1, 3 * C)),
                  _const_spec((C, C)), _const_spec((1, C))],
        out_specs=o_spec, compiler_params=_cparams(),
    )(xw, bm, blk['qkv_w'], blk['qkv_b'].reshape(1, 3 * C),
      blk['proj_w'], blk['proj_b'].reshape(1, C))


# ----------------------------- static helpers -------------------------------

def _relative_position_index(ws):
    coords = np.stack(np.meshgrid(np.arange(ws), np.arange(ws), indexing='ij'))
    cf = coords.reshape(2, -1)
    rel = (cf[:, :, None] - cf[:, None, :]).transpose(1, 2, 0).astype(np.int64)
    rel[..., 0] += ws - 1
    rel[..., 1] += ws - 1
    rel[..., 0] *= 2 * ws - 1
    return rel.sum(-1)                                  # (N, N)


def _rel_bias(table, ws, nH):
    idx = _relative_position_index(ws).reshape(-1)
    bias = table[idx].reshape(ws * ws, ws * ws, nH)
    return jnp.transpose(bias, (2, 0, 1))               # (nH, N, N)


def _attn_mask(H, W, ws, shift):
    Hp = int(np.ceil(H / ws)) * ws
    Wp = int(np.ceil(W / ws)) * ws
    img_mask = np.zeros((1, Hp, Wp, 1), np.float32)
    slices = (slice(0, -ws), slice(-ws, -shift), slice(-shift, None))
    cnt = 0
    for h in slices:
        for w in slices:
            img_mask[:, h, w, :] = cnt
            cnt += 1
    mw = img_mask.reshape(1, Hp // ws, ws, Wp // ws, ws, 1).transpose(0, 1, 3, 2, 4, 5)
    mw = mw.reshape(-1, ws * ws)
    am = mw[:, None, :] - mw[:, :, None]
    am = np.where(am != 0, -100.0, 0.0).astype(np.float32)
    return jnp.asarray(am)                               # (nW, N, N)


def prepare_biasmasks(params, cfg, H, W):
    """Precompute rel-pos-bias (+ shift-mask) tensors once, outside the jit."""
    p, ws = cfg['patch_size'], cfg['window_size']
    depths, num_heads = cfg['depths'], cfg['num_heads']
    Wh = (H + (p - H % p) % p) // p
    Ww = (W + (p - W % p) % p) // p
    bms = []
    for i in range(len(depths)):
        nH = num_heads[i]
        mask = _attn_mask(Wh, Ww, ws, ws // 2)           # (nW, N, N)
        stage = []
        for d in range(depths[i]):
            bias = _rel_bias(params['stages'][i]['blocks'][d]['rpb'], ws, nH)
            if d % 2 == 1:                               # shifted block
                stage.append(bias[None] + mask[:, None])  # (nW, nH, N, N)
            else:
                stage.append(bias[None])                   # (1, nH, N, N)
        bms.append(stage)
        Wh, Ww = (Wh + 1) // 2, (Ww + 1) // 2
    return bms


# ------------------------------- model pieces --------------------------------

def swin_block(x, H, W, C, nH, ws, shift, blk, bm):
    B, L, _ = x.shape
    shortcut = x.reshape(B * L, C)
    pad_b = (ws - H % ws) % ws
    pad_r = (ws - W % ws) % ws
    Hp, Wp = H + pad_b, W + pad_r
    nWh, nWw = Hp // ws, Wp // ws
    nW = nWh * nWw
    N = ws * ws
    scale = float((C // nH) ** -0.5)

    if pad_b or pad_r:
        # norm1 BEFORE padding so padded tokens enter attention as exact zeros
        # (matches the PyTorch forward); attention kernel skips its fused LN.
        xn = layernorm(shortcut, blk['norm1_g'], blk['norm1_b']).reshape(B, H, W, C)
        xn = jnp.pad(xn, ((0, 0), (0, pad_b), (0, pad_r), (0, 0)))
        if shift > 0:
            xn = jnp.roll(xn, (-shift, -shift), axis=(1, 2))
        xw = xn.reshape(B, nWh, ws, nWw, ws, C).transpose(0, 1, 3, 2, 4, 5)
        xw = xw.reshape(B * nW, N, C)
        ao = attention_block(xw, bm, blk, B, nW, nH, C, scale, do_norm=False)
    else:
        # no padding: norm1 commutes with the window permutation -> fuse it
        # into the attention kernel.
        xv = x.reshape(B, H, W, C)
        if shift > 0:
            xv = jnp.roll(xv, (-shift, -shift), axis=(1, 2))
        xw = xv.reshape(B, nWh, ws, nWw, ws, C).transpose(0, 1, 3, 2, 4, 5)
        xw = xw.reshape(B * nW, N, C)
        ao = attention_block(xw, bm, blk, B, nW, nH, C, scale, do_norm=True)

    # window reverse (+ un-shift + crop) back to original token order
    xv = ao.reshape(B, nWh, nWw, ws, ws, C).transpose(0, 1, 3, 2, 4, 5)
    xv = xv.reshape(B, Hp, Wp, C)
    if shift > 0:
        xv = jnp.roll(xv, (shift, shift), axis=(1, 2))
    if pad_b or pad_r:
        xv = xv[:, :H, :W, :]
    y = xv.reshape(B * L, C)

    # single fused kernel: residual + norm2 + fc1 + GELU + fc2 + residual
    out = mlp_block(shortcut, y, blk['norm2_g'], blk['norm2_b'],
                    blk['fc1_w'], blk['fc1_b'], blk['fc2_w'], blk['fc2_b'])
    return out.reshape(B, L, C)


def patch_merging(x, H, W, C, ds):
    B = x.shape[0]
    xv = x.reshape(B, H, W, C)
    if (H % 2) or (W % 2):
        xv = jnp.pad(xv, ((0, 0), (0, H % 2), (0, W % 2), (0, 0)))
    x0 = xv[:, 0::2, 0::2, :]
    x1 = xv[:, 1::2, 0::2, :]
    x2 = xv[:, 0::2, 1::2, :]
    x3 = xv[:, 1::2, 1::2, :]
    Hh, Wh2 = (H + 1) // 2, (W + 1) // 2
    xc = jnp.concatenate([x0, x1, x2, x3], axis=-1).reshape(B * Hh * Wh2, 4 * C)
    xc = ln_linear_nobias(xc, ds['norm_g'], ds['norm_b'], ds['red_w'])
    return xc.reshape(B, Hh * Wh2, 2 * C)


def swin_forward(params, biasmasks, x_nchw, cfg):
    B, Cin, H, W = x_nchw.shape
    p, ws = cfg['patch_size'], cfg['window_size']
    embed_dim, depths, num_heads = cfg['embed_dim'], cfg['depths'], cfg['num_heads']

    # ---- PatchEmbed: stride-p conv == im2col + (fused linear+LN kernel) ----
    pad_w = (p - W % p) % p
    pad_h = (p - H % p) % p
    if pad_w or pad_h:
        x_nchw = jnp.pad(x_nchw, ((0, 0), (0, 0), (0, pad_h), (0, pad_w)))
    Wh, Ww = (H + pad_h) // p, (W + pad_w) // p
    cols = x_nchw.reshape(B, Cin, Wh, p, Ww, p).transpose(0, 2, 4, 1, 3, 5)
    cols = cols.reshape(B * Wh * Ww, Cin * p * p)
    pe = params['patch_embed']
    x = linear_ln(cols, pe['w'], pe['b'], pe['norm_g'], pe['norm_b'])
    x = x.reshape(B, Wh * Ww, embed_dim)
    # pos_drop: rate 0.0 -> identity

    outs = []
    for i in range(len(depths)):
        dim = embed_dim * (2 ** i)
        nH = num_heads[i]
        for d in range(depths[i]):
            shift = 0 if d % 2 == 0 else ws // 2
            blk = params['stages'][i]['blocks'][d]
            x = swin_block(x, Wh, Ww, dim, nH, ws, shift, blk, biasmasks[i][d])
        # out_norm is nn.Identity; emit NCHW f32 like the PyTorch module
        outs.append(jnp.transpose(x.reshape(B, Wh, Ww, dim),
                                  (0, 3, 1, 2)).astype(jnp.float32))
        if i < len(depths) - 1:
            ds = params['stages'][i]['downsample']
            x = patch_merging(x, Wh, Ww, dim, ds)
            Wh, Ww = (Wh + 1) // 2, (Ww + 1) // 2
    return outs


# ------------------------------- params init --------------------------------

def _trunc_normal(key, shape, std=0.02):
    return std * jax.random.truncated_normal(key, -2.0, 2.0, shape, jnp.float32)


def _w_init(key, shape):
    # matmul weights stored bf16 (halves weight DMA); f32 accumulation in _mm
    return _trunc_normal(key, shape).astype(jnp.bfloat16)


def init_params(key, cfg):
    p, cin, ed, ws = cfg['patch_size'], cfg['in_chans'], cfg['embed_dim'], cfg['window_size']
    depths, num_heads, mr = cfg['depths'], cfg['num_heads'], cfg['mlp_ratio']
    kit = iter(jax.random.split(key, 64))
    nk = lambda: next(kit)
    params = {
        'patch_embed': {
            'w': _w_init(nk(), (cin * p * p, ed)),
            'b': jnp.zeros((ed,), jnp.float32),
            'norm_g': jnp.ones((ed,), jnp.float32),
            'norm_b': jnp.zeros((ed,), jnp.float32),
        },
        'stages': [],
    }
    for i in range(len(depths)):
        dim = ed * (2 ** i)
        hidden = int(dim * mr)
        blocks = []
        for _ in range(depths[i]):
            blocks.append({
                'norm1_g': jnp.ones((dim,), jnp.float32),
                'norm1_b': jnp.zeros((dim,), jnp.float32),
                'qkv_w': _w_init(nk(), (dim, 3 * dim)),
                'qkv_b': jnp.zeros((3 * dim,), jnp.float32),
                'rpb': _trunc_normal(nk(), ((2 * ws - 1) ** 2, num_heads[i])),
                'proj_w': _w_init(nk(), (dim, dim)),
                'proj_b': jnp.zeros((dim,), jnp.float32),
                'norm2_g': jnp.ones((dim,), jnp.float32),
                'norm2_b': jnp.zeros((dim,), jnp.float32),
                'fc1_w': _w_init(nk(), (dim, hidden)),
                'fc1_b': jnp.zeros((hidden,), jnp.float32),
                'fc2_w': _w_init(nk(), (hidden, dim)),
                'fc2_b': jnp.zeros((dim,), jnp.float32),
            })
        stage = {'blocks': blocks}
        if i < len(depths) - 1:
            stage['downsample'] = {
                'norm_g': jnp.ones((4 * dim,), jnp.float32),
                'norm_b': jnp.zeros((4 * dim,), jnp.float32),
                'red_w': _w_init(nk(), (4 * dim, 2 * dim)),
            }
        params['stages'].append(stage)
    return params


# ----------------------------------- main ------------------------------------

if __name__ == "__main__":
    cfg = dict(patch_size=4, in_chans=3, embed_dim=32, depths=[2, 2],
               num_heads=[2, 4], window_size=4, mlp_ratio=4.0)
    key = jax.random.PRNGKey(0)
    pkey, xkey = jax.random.split(key)
    params = init_params(pkey, cfg)
    x = jax.random.normal(xkey, (2, 3, 32, 32), jnp.float32)   # NCHW

    # precompute rel-pos bias + shift masks once (outside the jitted forward)
    biasmasks = prepare_biasmasks(params, cfg, 32, 32)

    fwd = jax.jit(functools.partial(swin_forward, cfg=cfg))
    outs = jax.block_until_ready(fwd(params, biasmasks, x))

    assert outs[0].shape == (2, 32, 8, 8)    # stage 0: (B, C0, H/4, W/4)
    assert outs[1].shape == (2, 64, 4, 4)    # stage 1: (B, 2*C0, H/8, W/8)
    assert all(bool(jnp.all(jnp.isfinite(o))) for o in outs)
    print("KERNEL_OK")
</pallas_src>

<mosaic_0001>
module attributes {stable_mosaic.version = 11 : i64} {
  func.func @_linear_ln_kernel(%arg0: i32, %arg1: memref<64x48xf32, #tpu.memory_space<vmem>>, %arg2: memref<48x32xbf16, #tpu.memory_space<vmem>>, %arg3: memref<1x32xf32, #tpu.memory_space<vmem>>, %arg4: memref<1x32xf32, #tpu.memory_space<vmem>>, %arg5: memref<1x32xf32, #tpu.memory_space<vmem>>, %arg6: memref<64x32xbf16, #tpu.memory_space<vmem>>) attributes {dimension_semantics = [#tpu.dimension_semantics<parallel>], iteration_bounds = array<i64: 2>, scalar_prefetch = 0 : i64, scratch_operands = 0 : i64, tpu.core_type = #tpu.core_type<tc>, window_params = [{transform_indices = @transform_0, window_bounds = array<i64: 64, 48>}, {pipeline_mode = #tpu.pipeline_mode<synchronous>, transform_indices = @transform_1, window_bounds = array<i64: 48, 32>}, {pipeline_mode = #tpu.pipeline_mode<synchronous>, transform_indices = @transform_2, window_bounds = array<i64: 1, 32>}, {pipeline_mode = #tpu.pipeline_mode<synchronous>, transform_indices = @transform_3, window_bounds = array<i64: 1, 32>}, {pipeline_mode = #tpu.pipeline_mode<synchronous>, transform_indices = @transform_4, window_bounds = array<i64: 1, 32>}, {transform_indices = @transform_5, window_bounds = array<i64: 64, 32>}]} {
    %c0 = arith.constant 0 : index
    %c0_0 = arith.constant 0 : index
    %0 = vector.load %arg1[%c0, %c0_0] : memref<64x48xf32, #tpu.memory_space<vmem>>, vector<64x48xf32>
    %c0_1 = arith.constant 0 : index
    %c0_2 = arith.constant 0 : index
    %1 = vector.load %arg2[%c0_1, %c0_2] : memref<48x32xbf16, #tpu.memory_space<vmem>>, vector<48x32xbf16>
    %2 = arith.truncf %0 : vector<64x48xf32> to vector<64x48xbf16>
    %cst = arith.constant dense<0.000000e+00> : vector<64x32xf32>
    %3 = tpu.matmul %2, %1, %cst {dimension_numbers = #tpu.dot_dimension_numbers<[1], [0], [0], [1], [0, 0, 1, 1], [], []>} : vector<64x48xbf16>, vector<48x32xbf16>, vector<64x32xf32> -> vector<64x32xf32>
    %c0_3 = arith.constant 0 : index
    %c0_4 = arith.constant 0 : index
    %4 = vector.load %arg3[%c0_3, %c0_4] : memref<1x32xf32, #tpu.memory_space<vmem>>, vector<1x32xf32>
    %5 = vector.broadcast %4 : vector<1x32xf32> to vector<64x32xf32>
    %6 = arith.addf %3, %5 : vector<64x32xf32>
    %c0_5 = arith.constant 0 : index
    %c0_6 = arith.constant 0 : index
    %7 = vector.load %arg4[%c0_5, %c0_6] : memref<1x32xf32, #tpu.memory_space<vmem>>, vector<1x32xf32>
    %c0_7 = arith.constant 0 : index
    %c0_8 = arith.constant 0 : index
    %8 = vector.load %arg5[%c0_7, %c0_8] : memref<1x32xf32, #tpu.memory_space<vmem>>, vector<1x32xf32>
    %cst_9 = arith.constant dense<0.000000e+00> : vector<64xf32>
    %9 = vector.multi_reduction <add>, %6, %cst_9 [1] : vector<64x32xf32> to vector<64xf32>
    %10 = vector.shape_cast %9 : vector<64xf32> to vector<64x1xf32>
    %cst_10 = arith.constant 3.200000e+01 : f32
    %11 = vector.broadcast %cst_10 : f32 to vector<64x1xf32>
    %12 = arith.divf %10, %11 : vector<64x1xf32>
    %13 = vector.broadcast %12 : vector<64x1xf32> to vector<64x32xf32>
    %14 = arith.subf %6, %13 : vector<64x32xf32>
    %15 = arith.mulf %14, %14 : vector<64x32xf32>
    %cst_11 = arith.constant dense<0.000000e+00> : vector<64xf32>
    %16 = vector.multi_reduction <add>, %15, %cst_11 [1] : vector<64x32xf32> to vector<64xf32>
    %17 = vector.shape_cast %16 : vector<64xf32> to vector<64x1xf32>
    %cst_12 = arith.constant 3.200000e+01 : f32
    %18 = vector.broadcast %cst_12 : f32 to vector<64x1xf32>
    %19 = arith.divf %17, %18 : vector<64x1xf32>
    %20 = vector.broadcast %12 : vector<64x1xf32> to vector<64x32xf32>
    %21 = arith.subf %6, %20 : vector<64x32xf32>
    %cst_13 = arith.constant 9.99999974E-6 : f32
    %22 = vector.broadcast %cst_13 : f32 to vector<64x1xf32>
    %23 = arith.addf %19, %22 : vector<64x1xf32>
    %24 = math.rsqrt %23 : vector<64x1xf32>
    %25 = vector.broadcast %24 : vector<64x1xf32> to vector<64x32xf32>
    %26 = arith.mulf %21, %25 : vector<64x32xf32>
    %27 = vector.broadcast %7 : vector<1x32xf32> to vector<64x32xf32>
    %28 = arith.mulf %26, %27 : vector<64x32xf32>
    %29 = vector.broadcast %8 : vector<1x32xf32> to vector<64x32xf32>
    %30 = arith.addf %28, %29 : vector<64x32xf32>
    %31 = arith.truncf %30 : vector<64x32xf32> to vector<64x32xbf16>
    %c0_14 = arith.constant 0 : index
    %c0_15 = arith.constant 0 : index
    %32 = vector.load %arg6[%c0_14, %c0_15] : memref<64x32xbf16, #tpu.memory_space<vmem>>, vector<64x32xbf16>
    tpu.vector_store %arg6[%c0_14, %c0_15], %31 {strides = array<i32>} : memref<64x32xbf16, #tpu.memory_space<vmem>>, vector<64x32xbf16>,
    return
  }
  func.func @transform_0(%arg0: i32) -> (i32, i32) {
    %c0_i32 = arith.constant 0 : i32
    %c0_i32_0 = arith.constant 0 : i32
    return %arg0, %c0_i32 : i32, i32
  }
  func.func @transform_1(%arg0: i32) -> (i32, i32) {
    %c0_i32 = arith.constant 0 : i32
    %c0_i32_0 = arith.constant 0 : i32
    %c0_i32_1 = arith.constant 0 : i32
    return %c0_i32, %c0_i32_0 : i32, i32
  }
  func.func @transform_2(%arg0: i32) -> (i32, i32) {
    %c0_i32 = arith.constant 0 : i32
    %c0_i32_0 = arith.constant 0 : i32
    %c0_i32_1 = arith.constant 0 : i32
    return %c0_i32, %c0_i32_0 : i32, i32
  }
  func.func @transform_3(%arg0: i32) -> (i32, i32) {
    %c0_i32 = arith.constant 0 : i32
    %c0_i32_0 = arith.constant 0 : i32
    %c0_i32_1 = arith.constant 0 : i32
    return %c0_i32, %c0_i32_0 : i32, i32
  }
  func.func @transform_4(%arg0: i32) -> (i32, i32) {
    %c0_i32 = arith.constant 0 : i32
    %c0_i32_0 = arith.constant 0 : i32
    %c0_i32_1 = arith.constant 0 : i32
    return %c0_i32, %c0_i32_0 : i32, i32
  }
  func.func @transform_5(%arg0: i32) -> (i32, i32) {
    %c0_i32 = arith.constant 0 : i32
    %c0_i32_0 = arith.constant 0 : i32
    return %arg0, %c0_i32 : i32, i32
  }
}

module attributes {stable_mosaic.version = 11 : i64} {
  func.func @_attn_fused_norm_kernel(%arg0: i32, %arg1: memref<4x16x32xbf16, #tpu.memory_space<vmem>>, %arg2: memref<1x2x16x16xf32, #tpu.memory_space<vmem>>, %arg3: memref<1x32xf32, #tpu.memory_space<vmem>>, %arg4: memref<1x32xf32, #tpu.memory_space<vmem>>, %arg5: memref<32x96xbf16, #tpu.memory_space<vmem>>, %arg6: memref<1x96xf32, #tpu.memory_space<vmem>>, %arg7: memref<32x32xbf16, #tpu.memory_space<vmem>>, %arg8: memref<1x32xf32, #tpu.memory_space<vmem>>, %arg9: memref<4x16x32xbf16, #tpu.memory_space<vmem>>) attributes {dimension_semantics = [#tpu.dimension_semantics<parallel>], iteration_bounds = array<i64: 2>, scalar_prefetch = 0 : i64, scratch_operands = 0 : i64, tpu.core_type = #tpu.core_type<tc>, window_params = [{transform_indices = @transform_0, window_bounds = array<i64: 4, 16, 32>}, {pipeline_mode = #tpu.pipeline_mode<synchronous>, transform_indices = @transform_1, window_bounds = array<i64: 1, 2, 16, 16>}, {pipeline_mode = #tpu.pipeline_mode<synchronous>, transform_indices = @transform_2, window_bounds = array<i64: 1, 32>}, {pipeline_mode = #tpu.pipeline_mode<synchronous>, transform_indices = @transform_3, window_bounds = array<i64: 1, 32>}, {pipeline_mode = #tpu.pipeline_mode<synchronous>, transform_indices = @transform_4, window_bounds = array<i64: 32, 96>}, {pipeline_mode = #tpu.pipeline_mode<synchronous>, transform_indices = @transform_5, window_bounds = array<i64: 1, 96>}, {pipeline_mode = #tpu.pipeline_mode<synchronous>, transform_indices = @transform_6, window_bounds = array<i64: 32, 32>}, {pipeline_mode = #tpu.pipeline_mode<synchronous>, transform_indices = @transform_7, window_bounds = array<i64: 1, 32>}, {transform_indices = @transform_8, window_bounds = array<i64: 4, 16, 32>}]} {
    %c0 = arith.constant 0 : index
    %c0_0 = arith.constant 0 : index
    %c0_1 = arith.constant 0 : index
    %0 = vector.load %arg1[%c0, %c0_0, %c0_1] : memref<4x16x32xbf16, #tpu.memory_space<vmem>>, vector<4x16x32xbf16>
    %1 = arith.extf %0 : vector<4x16x32xbf16> to vector<4x16x32xf32>
    %2 = vector.shape_cast %1 : vector<4x16x32xf32> to vector<64x32xf32>
    %c0_2 = arith.constant 0 : index
    %c0_3 = arith.constant 0 : index
    %3 = vector.load %arg3[%c0_2, %c0_3] : memref<1x32xf32, #tpu.memory_space<vmem>>, vector<1x32xf32>
    %c0_4 = arith.constant 0 : index
    %c0_5 = arith.constant 0 : index
    %4 = vector.load %arg4[%c0_4, %c0_5] : memref<1x32xf32, #tpu.memory_space<vmem>>, vector<1x32xf32>
    %cst = arith.constant dense<0.000000e+00> : vector<64xf32>
    %5 = vector.multi_reduction <add>, %2, %cst [1] : vector<64x32xf32> to vector<64xf32>
    %6 = vector.shape_cast %5 : vector<64xf32> to vector<64x1xf32>
    %cst_6 = arith.constant 3.200000e+01 : f32
    %7 = vector.broadcast %cst_6 : f32 to vector<64x1xf32>
    %8 = arith.divf %6, %7 : vector<64x1xf32>
    %9 = vector.broadcast %8 : vector<64x1xf32> to vector<64x32xf32>
    %10 = arith.subf %2, %9 : vector<64x32xf32>
    %11 = arith.mulf %10, %10 : vector<64x32xf32>
    %cst_7 = arith.constant dense<0.000000e+00> : vector<64xf32>
    %12 = vector.multi_reduction <add>, %11, %cst_7 [1] : vector<64x32xf32> to vector<64xf32>
    %13 = vector.shape_cast %12 : vector<64xf32> to vector<64x1xf32>
    %cst_8 = arith.constant 3.200000e+01 : f32
    %14 = vector.broadcast %cst_8 : f32 to vector<64x1xf32>
    %15 = arith.divf %13, %14 : vector<64x1xf32>
    %16 = vector.broadcast %8 : vector<64x1xf32> to vector<64x32xf32>
    %17 = arith.subf %2, %16 : vector<64x32xf32>
    %cst_9 = arith.constant 9.99999974E-6 : f32
    %18 = vector.broadcast %cst_9 : f32 to vector<64x1xf32>
    %19 = arith.addf %15, %18 : vector<64x1xf32>
    %20 = math.rsqrt %19 : vector<64x1xf32>
    %21 = vector.broadcast %20 : vector<64x1xf32> to vector<64x32xf32>
    %22 = arith.mulf %17, %21 : vector<64x32xf32>
    %23 = vector.broadcast %3 : vector<1x32xf32> to vector<64x32xf32>
    %24 = arith.mulf %22, %23 : vector<64x32xf32>
    %25 = vector.broadcast %4 : vector<1x32xf32> to vector<64x32xf32>
    %26 = arith.addf %24, %25 : vector<64x32xf32>
    %c0_10 = arith.constant 0 : index
    %c0_11 = arith.constant 0 : index
    %c0_12 = arith.constant 0 : index
    %c0_13 = arith.constant 0 : index
    %27 = vector.load %arg2[%c0_10, %c0_11, %c0_12, %c0_13] : memref<1x2x16x16xf32, #tpu.memory_space<vmem>>, vector<1x2x16x16xf32>
    %c0_14 = arith.constant 0 : index
    %c0_15 = arith.constant 0 : index
    %28 = vector.load %arg5[%c0_14, %c0_15] : memref<32x96xbf16, #tpu.memory_space<vmem>>, vector<32x96xbf16>
    %c0_16 = arith.constant 0 : index
    %c0_17 = arith.constant 0 : index
    %29 = vector.load %arg6[%c0_16, %c0_17] : memref<1x96xf32, #tpu.memory_space<vmem>>, vector<1x96xf32>
    %c0_18 = arith.constant 0 : index
    %c0_19 = arith.constant 0 : index
    %30 = vector.load %arg7[%c0_18, %c0_19] : memref<32x32xbf16, #tpu.memory_space<vmem>>, vector<32x32xbf16>
    %c0_20 = arith.constant 0 : index
    %c0_21 = arith.constant 0 : index
    %31 = vector.load %arg8[%c0_20, %c0_21] : memref<1x32xf32, #tpu.memory_space<vmem>>, vector<1x32xf32>
    %32 = arith.truncf %26 : vector<64x32xf32> to vector<64x32xbf16>
    %cst_22 = arith.constant dense<0.000000e+00> : vector<64x96xf32>
    %33 = tpu.matmul %32, %28, %cst_22 {dimension_numbers = #tpu.dot_dimension_numbers<[1], [0], [0], [1], [0, 0, 1, 1], [], []>} : vector<64x32xbf16>, vector<32x96xbf16>, vector<64x96xf32> -> vector<64x96xf32>
    %34 = vector.broadcast %29 : vector<1x96xf32> to vector<64x96xf32>
    %35 = arith.addf %33, %34 : vector<64x96xf32>
    %36 = vector.shape_cast %35 : vector<64x96xf32> to vector<4x16x96xf32>
    %cst_23 = arith.constant 0.000000e+00 : f32
    %37 = vector.broadcast %cst_23 : f32 to vector<64x32xf32>
    %38 = vector.extract_strided_slice %36 {offsets = [0, 0, 0], sizes = [4, 16, 16], strides = [1, 1, 1]} : vector<4x16x96xf32> to vector<4x16x16xf32>
    %cst_24 = arith.constant 2.500000e-01 : f32
    %39 = vector.broadcast %cst_24 : f32 to vector<4x16x16xf32>
    %40 = arith.mulf %38, %39 : vector<4x16x16xf32>
    %41 = vector.extract_strided_slice %36 {offsets = [0, 0, 32], sizes = [4, 16, 16], strides = [1, 1, 1]} : vector<4x16x96xf32> to vector<4x16x16xf32>
    %42 = vector.extract_strided_slice %36 {offsets = [0, 0, 64], sizes = [4, 16, 16], strides = [1, 1, 1]} : vector<4x16x96xf32> to vector<4x16x16xf32>
    %43 = arith.truncf %40 : vector<4x16x16xf32> to vector<4x16x16xbf16>
    %44 = arith.truncf %41 : vector<4x16x16xf32> to vector<4x16x16xbf16>
    "tpu.trace_start"() <{level = 10 : i32, message = "wnd,wmd->wnm"}> : () -> ()
    %cst_25 = arith.constant dense<0.000000e+00> : vector<4x16x16xf32>
    %45 = tpu.matmul %43, %44, %cst_25 {dimension_numbers = #tpu.dot_dimension_numbers<[2], [2], [1], [1], [0, 0, 0, 1, 1, 1], [0], [0]>} : vector<4x16x16xbf16>, vector<4x16x16xbf16>, vector<4x16x16xf32> -> vector<4x16x16xf32>
    "tpu.trace_stop"() : () -> ()
    %46 = vector.extract_strided_slice %27 {offsets = [0, 0, 0, 0], sizes = [1, 1, 16, 16], strides = [1, 1, 1, 1]} : vector<1x2x16x16xf32> to vector<1x1x16x16xf32>
    %47 = vector.shape_cast %46 : vector<1x1x16x16xf32> to vector<1x16x16xf32>
    %48 = vector.broadcast %47 : vector<1x16x16xf32> to vector<4x16x16xf32>
    %49 = arith.addf %45, %48 : vector<4x16x16xf32>
    %cst_26 = arith.constant dense<0xFF800000> : vector<4x16xf32>
    %50 = vector.multi_reduction <maximumf>, %49, %cst_26 [2] : vector<4x16x16xf32> to vector<4x16xf32>
    %51 = vector.shape_cast %50 : vector<4x16xf32> to vector<4x16x1xf32>
    %52 = vector.broadcast %51 : vector<4x16x1xf32> to vector<4x16x16xf32>
    %53 = arith.subf %49, %52 : vector<4x16x16xf32>
    %54 = math.exp %53 : vector<4x16x16xf32>
    %cst_27 = arith.constant dense<0.000000e+00> : vector<4x16xf32>
    %55 = vector.multi_reduction <add>, %54, %cst_27 [2] : vector<4x16x16xf32> to vector<4x16xf32>
    %56 = vector.shape_cast %55 : vector<4x16xf32> to vector<4x16x1xf32>
    %57 = tpu.reciprocal %56 {approx = true} : vector<4x16x1xf32> -> vector<4x16x1xf32>
    %58 = vector.broadcast %57 : vector<4x16x1xf32> to vector<4x16x16xf32>
    %59 = arith.mulf %54, %58 : vector<4x16x16xf32>
    %60 = arith.truncf %59 : vector<4x16x16xf32> to vector<4x16x16xbf16>
    %61 = arith.truncf %42 : vector<4x16x16xf32> to vector<4x16x16xbf16>
    "tpu.trace_start"() <{level = 10 : i32, message = "wnm,wmd->wnd"}> : () -> ()
    %cst_28 = arith.constant dense<0.000000e+00> : vector<4x16x16xf32>
    %62 = tpu.matmul %60, %61, %cst_28 {dimension_numbers = #tpu.dot_dimension_numbers<[2], [1], [1], [2], [0, 0, 0, 1, 1, 2], [0], [0]>} : vector<4x16x16xbf16>, vector<4x16x16xbf16>, vector<4x16x16xf32> -> vector<4x16x16xf32>
    "tpu.trace_stop"() : () -> ()
    %63 = vector.shape_cast %62 : vector<4x16x16xf32> to vector<64x16xf32>
    %64 = vector.extract_strided_slice %30 {offsets = [0, 0], sizes = [16, 32], strides = [1, 1]} : vector<32x32xbf16> to vector<16x32xbf16>
    %65 = arith.truncf %63 : vector<64x16xf32> to vector<64x16xbf16>
    %cst_29 = arith.constant dense<0.000000e+00> : vector<64x32xf32>
    %66 = tpu.matmul %65, %64, %cst_29 {dimension_numbers = #tpu.dot_dimension_numbers<[1], [0], [0], [1], [0, 0, 1, 1], [], []>} : vector<64x16xbf16>, vector<16x32xbf16>, vector<64x32xf32> -> vector<64x32xf32>
    %67 = arith.addf %37, %66 : vector<64x32xf32>
    %68 = vector.extract_strided_slice %36 {offsets = [0, 0, 16], sizes = [4, 16, 16], strides = [1, 1, 1]} : vector<4x16x96xf32> to vector<4x16x16xf32>
    %cst_30 = arith.constant 2.500000e-01 : f32
    %69 = vector.broadcast %cst_30 : f32 to vector<4x16x16xf32>
    %70 = arith.mulf %68, %69 : vector<4x16x16xf32>
    %71 = vector.extract_strided_slice %36 {offsets = [0, 0, 48], sizes = [4, 16, 16], strides = [1, 1, 1]} : vector<4x16x96xf32> to vector<4x16x16xf32>
    %72 = vector.extract_strided_slice %36 {offsets = [0, 0, 80], sizes = [4, 16, 16], strides = [1, 1, 1]} : vector<4x16x96xf32> to vector<4x16x16xf32>
    %73 = arith.truncf %70 : vector<4x16x16xf32> to vector<4x16x16xbf16>
    %74 = arith.truncf %71 : vector<4x16x16xf32> to vector<4x16x16xbf16>
    "tpu.trace_start"() <{level = 10 : i32, message = "wnd,wmd->wnm"}> : () -> ()
    %cst_31 = arith.constant dense<0.000000e+00> : vector<4x16x16xf32>
    %75 = tpu.matmul %73, %74, %cst_31 {dimension_numbers = #tpu.dot_dimension_numbers<[2], [2], [1], [1], [0, 0, 0, 1, 1, 1], [0], [0]>} : vector<4x16x16xbf16>, vector<4x16x16xbf16>, vector<4x16x16xf32> -> vector<4x16x16xf32>
    "tpu.trace_stop"() : () -> ()
    %76 = vector.extract_strided_slice %27 {offsets = [0, 1, 0, 0], sizes = [1, 1, 16, 16], strides = [1, 1, 1, 1]} : vector<1x2x16x16xf32> to vector<1x1x16x16xf32>
    %77 = vector.shape_cast %76 : vector<1x1x16x16xf32> to vector<1x16x16xf32>
    %78 = vector.broadcast %77 : vector<1x16x16xf32> to vector<4x16x16xf32>
    %79 = arith.addf %75, %78 : vector<4x16x16xf32>
    %cst_32 = arith.constant dense<0xFF800000> : vector<4x16xf32>
    %80 = vector.multi_reduction <maximumf>, %79, %cst_32 [2] : vector<4x16x16xf32> to vector<4x16xf32>
    %81 = vector.shape_cast %80 : vector<4x16xf32> to vector<4x16x1xf32>
    %82 = vector.broadcast %81 : vector<4x16x1xf32> to vector<4x16x16xf32>
    %83 = arith.subf %79, %82 : vector<4x16x16xf32>
    %84 = math.exp %83 : vector<4x16x16xf32>
    %cst_33 = arith.constant dense<0.000000e+00> : vector<4x16xf32>
    %85 = vector.multi_reduction <add>, %84, %cst_33 [2] : vector<4x16x16xf32> to vector<4x16xf32>
    %86 = vector.shape_cast %85 : vector<4x16xf32> to vector<4x16x1xf32>
    %87 = tpu.reciprocal %86 {approx = true} : vector<4x16x1xf32> -> vector<4x16x1xf32>
    %88 = vector.broadcast %87 : vector<4x16x1xf32> to vector<4x16x16xf32>
    %89 = arith.mulf %84, %88 : vector<4x16x16xf32>
    %90 = arith.truncf %89 : vector<4x16x16xf32> to vector<4x16x16xbf16>
    %91 = arith.truncf %72 : vector<4x16x16xf32> to vector<4x16x16xbf16>
    "tpu.trace_start"() <{level = 10 : i32, message = "wnm,wmd->wnd"}> : () -> ()
    %cst_34 = arith.constant dense<0.000000e+00> : vector<4x16x16xf32>
    %92 = tpu.matmul %90, %91, %cst_34 {dimension_numbers = #tpu.dot_dimension_numbers<[2], [1], [1], [2], [0, 0, 0, 1, 1, 2], [0], [0]>} : vector<4x16x16xbf16>, vector<4x16x16xbf16>, vector<4x16x16xf32> -> vector<4x16x16xf32>
    "tpu.trace_stop"() : () -> ()
    %93 = vector.shape_cast %92 : vector<4x16x16xf32> to vector<64x16xf32>
    %94 = vector.extract_strided_slice %30 {offsets = [16, 0], sizes = [16, 32], strides = [1, 1]} : vector<32x32xbf16> to vector<16x32xbf16>
    %95 = arith.truncf %93 : vector<64x16xf32> to vector<64x16xbf16>
    %cst_35 = arith.constant dense<0.000000e+00> : vector<64x32xf32>
    %96 = tpu.matmul %95, %94, %cst_35 {dimension_numbers = #tpu.dot_dimension_numbers<[1], [0], [0], [1], [0, 0, 1, 1], [], []>} : vector<64x16xbf16>, vector<16x32xbf16>, vector<64x32xf32> -> vector<64x32xf32>
    %97 = arith.addf %67, %96 : vector<64x32xf32>
    %98 = vector.broadcast %31 : vector<1x32xf32> to vector<64x32xf32>
    %99 = arith.addf %97, %98 : vector<64x32xf32>
    %100 = vector.shape_cast %99 : vector<64x32xf32> to vector<4x16x32xf32>
    %101 = arith.truncf %100 : vector<4x16x32xf32> to vector<4x16x32xbf16>
    %c0_36 = arith.constant 0 : index
    %c0_37 = arith.constant 0 : index
    %c0_38 = arith.constant 0 : index
    %102 = vector.load %arg9[%c0_36, %c0_37, %c0_38] : memref<4x16x32xbf16, #tpu.memory_space<vmem>>, vector<4x16x32xbf16>
    tpu.vector_store %arg9[%c0_36, %c0_37, %c0_38], %101 {strides = array<i32>} : memref<4x16x32xbf16, #tpu.memory_space<vmem>>, vector<4x16x32xbf16>,
    return
  }
  func.func @transform_0(%arg0: i32) -> (i32, i32, i32) {
    %c0_i32 = arith.constant 0 : i32
    %c0_i32_0 = arith.constant 0 : i32
    %c0_i32_1 = arith.constant 0 : i32
    return %arg0, %c0_i32, %c0_i32_0 : i32, i32, i32
  }
  func.func @transform_1(%arg0: i32) -> (i32, i32, i32, i32) {
    %c0_i32 = arith.constant 0 : i32
    %c0_i32_0 = arith.constant 0 : i32
    %c0_i32_1 = arith.constant 0 : i32
    %c0_i32_2 = arith.constant 0 : i32
    %c0_i32_3 = arith.constant 0 : i32
    return %c0_i32, %c0_i32_0, %c0_i32_1, %c0_i32_2 : i32, i32, i32, i32
  }
  func.func @transform_2(%arg0: i32) -> (i32, i32) {
    %c0_i32 = arith.constant 0 : i32
    %c0_i32_0 = arith.constant 0 : i32
    %c0_i32_1 = arith.constant 0 : i32
    return %c0_i32, %c0_i32_0 : i32, i32
  }
  func.func @transform_3(%arg0: i32) -> (i32, i32) {
    %c0_i32 = arith.constant 0 : i32
    %c0_i32_0 = arith.constant 0 : i32
    %c0_i32_1 = arith.constant 0 : i32
    return %c0_i32, %c0_i32_0 : i32, i32
  }
  func.func @transform_4(%arg0: i32) -> (i32, i32) {
    %c0_i32 = arith.constant 0 : i32
    %c0_i32_0 = arith.constant 0 : i32
    %c0_i32_1 = arith.constant 0 : i32
    return %c0_i32, %c0_i32_0 : i32, i32
  }
  func.func @transform_5(%arg0: i32) -> (i32, i32) {
    %c0_i32 = arith.constant 0 : i32
    %c0_i32_0 = arith.constant 0 : i32
    %c0_i32_1 = arith.constant 0 : i32
    return %c0_i32, %c0_i32_0 : i32, i32
  }
  func.func @transform_6(%arg0: i32) -> (i32, i32) {
    %c0_i32 = arith.constant 0 : i32
    %c0_i32_0 = arith.constant 0 : i32
    %c0_i32_1 = arith.constant 0 : i32
    return %c0_i32, %c0_i32_0 : i32, i32
  }
  func.func @transform_7(%arg0: i32) -> (i32, i32) {
    %c0_i32 = arith.constant 0 : i32
    %c0_i32_0 = arith.constant 0 : i32
    %c0_i32_1 = arith.constant 0 : i32
    return %c0_i32, %c0_i32_0 : i32, i32
  }
  func.func @transform_8(%arg0: i32) -> (i32, i32, i32) {
    %c0_i32 = arith.constant 0 : i32
    %c0_i32_0 = arith.constant 0 : i32
    %c0_i32_1 = arith.constant 0 : i32
    return %arg0, %c0_i32, %c0_i32_0 : i32, i32, i32
  }
}

module attributes {stable_mosaic.version = 11 : i64} {
  func.func @_mlp_fused_kernel(%arg0: i32, %arg1: memref<64x32xbf16, #tpu.memory_space<vmem>>, %arg2: memref<64x32xbf16, #tpu.memory_space<vmem>>, %arg3: memref<1x32xf32, #tpu.memory_space<vmem>>, %arg4: memref<1x32xf32, #tpu.memory_space<vmem>>, %arg5: memref<32x128xbf16, #tpu.memory_space<vmem>>, %arg6: memref<1x128xf32, #tpu.memory_space<vmem>>, %arg7: memref<128x32xbf16, #tpu.memory_space<vmem>>, %arg8: memref<1x32xf32, #tpu.memory_space<vmem>>, %arg9: memref<64x32xbf16, #tpu.memory_space<vmem>>) attributes {dimension_semantics = [#tpu.dimension_semantics<parallel>], iteration_bounds = array<i64: 2>, scalar_prefetch = 0 : i64, scratch_operands = 0 : i64, tpu.core_type = #tpu.core_type<tc>, window_params = [{transform_indices = @transform_0, window_bounds = array<i64: 64, 32>}, {transform_indices = @transform_1, window_bounds = array<i64: 64, 32>}, {pipeline_mode = #tpu.pipeline_mode<synchronous>, transform_indices = @transform_2, window_bounds = array<i64: 1, 32>}, {pipeline_mode = #tpu.pipeline_mode<synchronous>, transform_indices = @transform_3, window_bounds = array<i64: 1, 32>}, {pipeline_mode = #tpu.pipeline_mode<synchronous>, transform_indices = @transform_4, window_bounds = array<i64: 32, 128>}, {pipeline_mode = #tpu.pipeline_mode<synchronous>, transform_indices = @transform_5, window_bounds = array<i64: 1, 128>}, {pipeline_mode = #tpu.pipeline_mode<synchronous>, transform_indices = @transform_6, window_bounds = array<i64: 128, 32>}, {pipeline_mode = #tpu.pipeline_mode<synchronous>, transform_indices = @transform_7, window_bounds = array<i64: 1, 32>}, {transform_indices = @transform_8, window_bounds = array<i64: 64, 32>}]} {
    %c0 = arith.constant 0 : index
    %c0_0 = arith.constant 0 : index
    %0 = vector.load %arg1[%c0, %c0_0] : memref<64x32xbf16, #tpu.memory_space<vmem>>, vector<64x32xbf16>
    %1 = arith.extf %0 : vector<64x32xbf16> to vector<64x32xf32>
    %c0_1 = arith.constant 0 : index
    %c0_2 = arith.constant 0 : index
    %2 = vector.load %arg2[%c0_1, %c0_2] : memref<64x32xbf16, #tpu.memory_space<vmem>>, vector<64x32xbf16>
    %3 = arith.extf %2 : vector<64x32xbf16> to vector<64x32xf32>
    %4 = arith.addf %1, %3 : vector<64x32xf32>
    %c0_3 = arith.constant 0 : index
    %c0_4 = arith.constant 0 : index
    %5 = vector.load %arg3[%c0_3, %c0_4] : memref<1x32xf32, #tpu.memory_space<vmem>>, vector<1x32xf32>
    %c0_5 = arith.constant 0 : index
    %c0_6 = arith.constant 0 : index
    %6 = vector.load %arg4[%c0_5, %c0_6] : memref<1x32xf32, #tpu.memory_space<vmem>>, vector<1x32xf32>
    %cst = arith.constant dense<0.000000e+00> : vector<64xf32>
    %7 = vector.multi_reduction <add>, %4, %cst [1] : vector<64x32xf32> to vector<64xf32>
    %8 = vector.shape_cast %7 : vector<64xf32> to vector<64x1xf32>
    %cst_7 = arith.constant 3.200000e+01 : f32
    %9 = vector.broadcast %cst_7 : f32 to vector<64x1xf32>
    %10 = arith.divf %8, %9 : vector<64x1xf32>
    %11 = vector.broadcast %10 : vector<64x1xf32> to vector<64x32xf32>
    %12 = arith.subf %4, %11 : vector<64x32xf32>
    %13 = arith.mulf %12, %12 : vector<64x32xf32>
    %cst_8 = arith.constant dense<0.000000e+00> : vector<64xf32>
    %14 = vector.multi_reduction <add>, %13, %cst_8 [1] : vector<64x32xf32> to vector<64xf32>
    %15 = vector.shape_cast %14 : vector<64xf32> to vector<64x1xf32>
    %cst_9 = arith.constant 3.200000e+01 : f32
    %16 = vector.broadcast %cst_9 : f32 to vector<64x1xf32>
    %17 = arith.divf %15, %16 : vector<64x1xf32>
    %18 = vector.broadcast %10 : vector<64x1xf32> to vector<64x32xf32>
    %19 = arith.subf %4, %18 : vector<64x32xf32>
    %cst_10 = arith.constant 9.99999974E-6 : f32
    %20 = vector.broadcast %cst_10 : f32 to vector<64x1xf32>
    %21 = arith.addf %17, %20 : vector<64x1xf32>
    %22 = math.rsqrt %21 : vector<64x1xf32>
    %23 = vector.broadcast %22 : vector<64x1xf32> to vector<64x32xf32>
    %24 = arith.mulf %19, %23 : vector<64x32xf32>
    %25 = vector.broadcast %5 : vector<1x32xf32> to vector<64x32xf32>
    %26 = arith.mulf %24, %25 : vector<64x32xf32>
    %27 = vector.broadcast %6 : vector<1x32xf32> to vector<64x32xf32>
    %28 = arith.addf %26, %27 : vector<64x32xf32>
    %c0_11 = arith.constant 0 : index
    %c0_12 = arith.constant 0 : index
    %29 = vector.load %arg5[%c0_11, %c0_12] : memref<32x128xbf16, #tpu.memory_space<vmem>>, vector<32x128xbf16>
    %30 = arith.truncf %28 : vector<64x32xf32> to vector<64x32xbf16>
    %cst_13 = arith.constant dense<0.000000e+00> : vector<64x128xf32>
    %31 = tpu.matmul %30, %29, %cst_13 {dimension_numbers = #tpu.dot_dimension_numbers<[1], [0], [0], [1], [0, 0, 1, 1], [], []>} : vector<64x32xbf16>, vector<32x128xbf16>, vector<64x128xf32> -> vector<64x128xf32>
    %c0_14 = arith.constant 0 : index
    %c0_15 = arith.constant 0 : index
    %32 = vector.load %arg6[%c0_14, %c0_15] : memref<1x128xf32, #tpu.memory_space<vmem>>, vector<1x128xf32>
    %33 = vector.broadcast %32 : vector<1x128xf32> to vector<64x128xf32>
    %34 = arith.addf %31, %33 : vector<64x128xf32>
    %cst_16 = arith.constant 5.000000e-01 : f32
    %35 = vector.broadcast %cst_16 : f32 to vector<64x128xf32>
    %36 = arith.mulf %35, %34 : vector<64x128xf32>
    %cst_17 = arith.constant 0.707106769 : f32
    %37 = vector.broadcast %cst_17 : f32 to vector<64x128xf32>
    %38 = arith.mulf %34, %37 : vector<64x128xf32>
    %39 = math.absf %38 : vector<64x128xf32>
    %cst_18 = arith.constant 0.327591091 : f32
    %40 = vector.broadcast %cst_18 : f32 to vector<64x128xf32>
    %41 = arith.mulf %40, %39 : vector<64x128xf32>
    %cst_19 = arith.constant 1.000000e+00 : f32
    %42 = vector.broadcast %cst_19 : f32 to vector<64x128xf32>
    %43 = arith.addf %42, %41 : vector<64x128xf32>
    %cst_20 = arith.constant 1.000000e+00 : f32
    %44 = vector.broadcast %cst_20 : f32 to vector<64x128xf32>
    %45 = arith.divf %44, %43 : vector<64x128xf32>
    %cst_21 = arith.constant 1.06140542 : f32
    %46 = vector.broadcast %cst_21 : f32 to vector<64x128xf32>
    %47 = arith.mulf %46, %45 : vector<64x128xf32>
    %cst_22 = arith.constant 1.45315206 : f32
    %48 = vector.broadcast %cst_22 : f32 to vector<64x128xf32>
    %49 = arith.subf %47, %48 : vector<64x128xf32>
    %50 = arith.mulf %49, %45 : vector<64x128xf32>
    %cst_23 = arith.constant 1.42141378 : f32
    %51 = vector.broadcast %cst_23 : f32 to vector<64x128xf32>
    %52 = arith.addf %50, %51 : vector<64x128xf32>
    %53 = arith.mulf %52, %45 : vector<64x128xf32>
    %cst_24 = arith.constant 0.284496725 : f32
    %54 = vector.broadcast %cst_24 : f32 to vector<64x128xf32>
    %55 = arith.subf %53, %54 : vector<64x128xf32>
    %56 = arith.mulf %55, %45 : vector<64x128xf32>
    %cst_25 = arith.constant 0.254829586 : f32
    %57 = vector.broadcast %cst_25 : f32 to vector<64x128xf32>
    %58 = arith.addf %56, %57 : vector<64x128xf32>
    %59 = arith.mulf %58, %45 : vector<64x128xf32>
    %cst_26 = arith.constant 0.000000e+00 : f32
    %60 = vector.broadcast %cst_26 : f32 to vector<64x128xf32>
    %61 = arith.subf %60, %39 : vector<64x128xf32>
    %62 = arith.mulf %61, %39 : vector<64x128xf32>
    %63 = math.exp %62 : vector<64x128xf32>
    %64 = arith.mulf %59, %63 : vector<64x128xf32>
    %cst_27 = arith.constant 1.000000e+00 : f32
    %65 = vector.broadcast %cst_27 : f32 to vector<64x128xf32>
    %66 = arith.subf %65, %64 : vector<64x128xf32>
    %cst_28 = arith.constant 0.000000e+00 : f32
    %67 = vector.broadcast %cst_28 : f32 to vector<64x128xf32>
    %68 = arith.cmpf oge, %38, %67 : vector<64x128xf32>
    %cst_29 = arith.constant 0.000000e+00 : f32
    %69 = vector.broadcast %cst_29 : f32 to vector<64x128xf32>
    %70 = arith.subf %69, %66 : vector<64x128xf32>
    %71 = arith.select %68, %66, %70 : vector<64x128xi1>, vector<64x128xf32>
    %cst_30 = arith.constant 1.000000e+00 : f32
    %72 = vector.broadcast %cst_30 : f32 to vector<64x128xf32>
    %73 = arith.addf %72, %71 : vector<64x128xf32>
    %74 = arith.mulf %36, %73 : vector<64x128xf32>
    %c0_31 = arith.constant 0 : index
    %c0_32 = arith.constant 0 : index
    %75 = vector.load %arg7[%c0_31, %c0_32] : memref<128x32xbf16, #tpu.memory_space<vmem>>, vector<128x32xbf16>
    %76 = arith.truncf %74 : vector<64x128xf32> to vector<64x128xbf16>
    %cst_33 = arith.constant dense<0.000000e+00> : vector<64x32xf32>
    %77 = tpu.matmul %76, %75, %cst_33 {dimension_numbers = #tpu.dot_dimension_numbers<[1], [0], [0], [1], [0, 0, 1, 1], [], []>} : vector<64x128xbf16>, vector<128x32xbf16>, vector<64x32xf32> -> vector<64x32xf32>
    %c0_34 = arith.constant 0 : index
    %c0_35 = arith.constant 0 : index
    %78 = vector.load %arg8[%c0_34, %c0_35] : memref<1x32xf32, #tpu.memory_space<vmem>>, vector<1x32xf32>
    %79 = vector.broadcast %78 : vector<1x32xf32> to vector<64x32xf32>
    %80 = arith.addf %77, %79 : vector<64x32xf32>
    %81 = arith.addf %80, %4 : vector<64x32xf32>
    %82 = arith.truncf %81 : vector<64x32xf32> to vector<64x32xbf16>
    %c0_36 = arith.constant 0 : index
    %c0_37 = arith.constant 0 : index
    %83 = vector.load %arg9[%c0_36, %c0_37] : memref<64x32xbf16, #tpu.memory_space<vmem>>, vector<64x32xbf16>
    tpu.vector_store %arg9[%c0_36, %c0_37], %82 {strides = array<i32>} : memref<64x32xbf16, #tpu.memory_space<vmem>>, vector<64x32xbf16>,
    return
  }
  func.func @transform_0(%arg0: i32) -> (i32, i32) {
    %c0_i32 = arith.constant 0 : i32
    %c0_i32_0 = arith.constant 0 : i32
    return %arg0, %c0_i32 : i32, i32
  }
  func.func @transform_1(%arg0: i32) -> (i32, i32) {
    %c0_i32 = arith.constant 0 : i32
    %c0_i32_0 = arith.constant 0 : i32
    return %arg0, %c0_i32 : i32, i32
  }
  func.func @transform_2(%arg0: i32) -> (i32, i32) {
    %c0_i32 = arith.constant 0 : i32
    %c0_i32_0 = arith.constant 0 : i32
    %c0_i32_1 = arith.constant 0 : i32
    return %c0_i32, %c0_i32_0 : i32, i32
  }
  func.func @transform_3(%arg0: i32) -> (i32, i32) {
    %c0_i32 = arith.constant 0 : i32
    %c0_i32_0 = arith.constant 0 : i32
    %c0_i32_1 = arith.constant 0 : i32
    return %c0_i32, %c0_i32_0 : i32, i32
  }
  func.func @transform_4(%arg0: i32) -> (i32, i32) {
    %c0_i32 = arith.constant 0 : i32
    %c0_i32_0 = arith.constant 0 : i32
    %c0_i32_1 = arith.constant 0 : i32
    return %c0_i32, %c0_i32_0 : i32, i32
  }
  func.func @transform_5(%arg0: i32) -> (i32, i32) {
    %c0_i32 = arith.constant 0 : i32
    %c0_i32_0 = arith.constant 0 : i32
    %c0_i32_1 = arith.constant 0 : i32
    return %c0_i32, %c0_i32_0 : i32, i32
  }
  func.func @transform_6(%arg0: i32) -> (i32, i32) {
    %c0_i32 = arith.constant 0 : i32
    %c0_i32_0 = arith.constant 0 : i32
    %c0_i32_1 = arith.constant 0 : i32
    return %c0_i32, %c0_i32_0 : i32, i32
  }
  func.func @transform_7(%arg0: i32) -> (i32, i32) {
    %c0_i32 = arith.constant 0 : i32
    %c0_i32_0 = arith.constant 0 : i32
    %c0_i32_1 = arith.constant 0 : i32
    return %c0_i32, %c0_i32_0 : i32, i32
  }
  func.func @transform_8(%arg0: i32) -> (i32, i32) {
    %c0_i32 = arith.constant 0 : i32
    %c0_i32_0 = arith.constant 0 : i32
    return %arg0, %c0_i32 : i32, i32
  }
}

module attributes {stable_mosaic.version = 11 : i64} {
  func.func @_attn_fused_norm_kernel(%arg0: i32, %arg1: memref<4x16x32xbf16, #tpu.memory_space<vmem>>, %arg2: memref<4x2x16x16xf32, #tpu.memory_space<vmem>>, %arg3: memref<1x32xf32, #tpu.memory_space<vmem>>, %arg4: memref<1x32xf32, #tpu.memory_space<vmem>>, %arg5: memref<32x96xbf16, #tpu.memory_space<vmem>>, %arg6: memref<1x96xf32, #tpu.memory_space<vmem>>, %arg7: memref<32x32xbf16, #tpu.memory_space<vmem>>, %arg8: memref<1x32xf32, #tpu.memory_space<vmem>>, %arg9: memref<4x16x32xbf16, #tpu.memory_space<vmem>>) attributes {dimension_semantics = [#tpu.dimension_semantics<parallel>], iteration_bounds = array<i64: 2>, scalar_prefetch = 0 : i64, scratch_operands = 0 : i64, tpu.core_type = #tpu.core_type<tc>, window_params = [{transform_indices = @transform_0, window_bounds = array<i64: 4, 16, 32>}, {pipeline_mode = #tpu.pipeline_mode<synchronous>, transform_indices = @transform_1, window_bounds = array<i64: 4, 2, 16, 16>}, {pipeline_mode = #tpu.pipeline_mode<synchronous>, transform_indices = @transform_2, window_bounds = array<i64: 1, 32>}, {pipeline_mode = #tpu.pipeline_mode<synchronous>, transform_indices = @transform_3, window_bounds = array<i64: 1, 32>}, {pipeline_mode = #tpu.pipeline_mode<synchronous>, transform_indices = @transform_4, window_bounds = array<i64: 32, 96>}, {pipeline_mode = #tpu.pipeline_mode<synchronous>, transform_indices = @transform_5, window_bounds = array<i64: 1, 96>}, {pipeline_mode = #tpu.pipeline_mode<synchronous>, transform_indices = @transform_6, window_bounds = array<i64: 32, 32>}, {pipeline_mode = #tpu.pipeline_mode<synchronous>, transform_indices = @transform_7, window_bounds = array<i64: 1, 32>}, {transform_indices = @transform_8, window_bounds = array<i64: 4, 16, 32>}]} {
    %c0 = arith.constant 0 : index
    %c0_0 = arith.constant 0 : index
    %c0_1 = arith.constant 0 : index
    %0 = vector.load %arg1[%c0, %c0_0, %c0_1] : memref<4x16x32xbf16, #tpu.memory_space<vmem>>, vector<4x16x32xbf16>
    %1 = arith.extf %0 : vector<4x16x32xbf16> to vector<4x16x32xf32>
    %2 = vector.shape_cast %1 : vector<4x16x32xf32> to vector<64x32xf32>
    %c0_2 = arith.constant 0 : index
    %c0_3 = arith.constant 0 : index
    %3 = vector.load %arg3[%c0_2, %c0_3] : memref<1x32xf32, #tpu.memory_space<vmem>>, vector<1x32xf32>
    %c0_4 = arith.constant 0 : index
    %c0_5 = arith.constant 0 : index
    %4 = vector.load %arg4[%c0_4, %c0_5] : memref<1x32xf32, #tpu.memory_space<vmem>>, vector<1x32xf32>
    %cst = arith.constant dense<0.000000e+00> : vector<64xf32>
    %5 = vector.multi_reduction <add>, %2, %cst [1] : vector<64x32xf32> to vector<64xf32>
    %6 = vector.shape_cast %5 : vector<64xf32> to vector<64x1xf32>
    %cst_6 = arith.constant 3.200000e+01 : f32
    %7 = vector.broadcast %cst_6 : f32 to vector<64x1xf32>
    %8 = arith.divf %6, %7 : vector<64x1xf32>
    %9 = vector.broadcast %8 : vector<64x1xf32> to vector<64x32xf32>
    %10 = arith.subf %2, %9 : vector<64x32xf32>
    %11 = arith.mulf %10, %10 : vector<64x32xf32>
    %cst_7 = arith.constant dense<0.000000e+00> : vector<64xf32>
    %12 = vector.multi_reduction <add>, %11, %cst_7 [1] : vector<64x32xf32> to vector<64xf32>
    %13 = vector.shape_cast %12 : vector<64xf32> to vector<64x1xf32>
    %cst_8 = arith.constant 3.200000e+01 : f32
    %14 = vector.broadcast %cst_8 : f32 to vector<64x1xf32>
    %15 = arith.divf %13, %14 : vector<64x1xf32>
    %16 = vector.broadcast %8 : vector<64x1xf32> to vector<64x32xf32>
    %17 = arith.subf %2, %16 : vector<64x32xf32>
    %cst_9 = arith.constant 9.99999974E-6 : f32
    %18 = vector.broadcast %cst_9 : f32 to vector<64x1xf32>
    %19 = arith.addf %15, %18 : vector<64x1xf32>
    %20 = math.rsqrt %19 : vector<64x1xf32>
    %21 = vector.broadcast %20 : vector<64x1xf32> to vector<64x32xf32>
    %22 = arith.mulf %17, %21 : vector<64x32xf32>
    %23 = vector.broadcast %3 : vector<1x32xf32> to vector<64x32xf32>
    %24 = arith.mulf %22, %23 : vector<64x32xf32>
    %25 = vector.broadcast %4 : vector<1x32xf32> to vector<64x32xf32>
    %26 = arith.addf %24, %25 : vector<64x32xf32>
    %c0_10 = arith.constant 0 : index
    %c0_11 = arith.constant 0 : index
    %c0_12 = arith.constant 0 : index
    %c0_13 = arith.constant 0 : index
    %27 = vector.load %arg2[%c0_10, %c0_11, %c0_12, %c0_13] : memref<4x2x16x16xf32, #tpu.memory_space<vmem>>, vector<4x2x16x16xf32>
    %c0_14 = arith.constant 0 : index
    %c0_15 = arith.constant 0 : index
    %28 = vector.load %arg5[%c0_14, %c0_15] : memref<32x96xbf16, #tpu.memory_space<vmem>>, vector<32x96xbf16>
    %c0_16 = arith.constant 0 : index
    %c0_17 = arith.constant 0 : index
    %29 = vector.load %arg6[%c0_16, %c0_17] : memref<1x96xf32, #tpu.memory_space<vmem>>, vector<1x96xf32>
    %c0_18 = arith.constant 0 : index
    %c0_19 = arith.constant 0 : index
    %30 = vector.load %arg7[%c0_18, %c0_19] : memref<32x32xbf16, #tpu.memory_space<vmem>>, vector<32x32xbf16>
    %c0_20 = arith.constant 0 : index
    %c0_21 = arith.constant 0 : index
    %31 = vector.load %arg8[%c0_20, %c0_21] : memref<1x32xf32, #tpu.memory_space<vmem>>, vector<1x32xf32>
    %32 = arith.truncf %26 : vector<64x32xf32> to vector<64x32xbf16>
    %cst_22 = arith.constant dense<0.000000e+00> : vector<64x96xf32>
    %33 = tpu.matmul %32, %28, %cst_22 {dimension_numbers = #tpu.dot_dimension_numbers<[1], [0], [0], [1], [0, 0, 1, 1], [], []>} : vector<64x32xbf16>, vector<32x96xbf16>, vector<64x96xf32> -> vector<64x96xf32>
    %34 = vector.broadcast %29 : vector<1x96xf32> to vector<64x96xf32>
    %35 = arith.addf %33, %34 : vector<64x96xf32>
    %36 = vector.shape_cast %35 : vector<64x96xf32> to vector<4x16x96xf32>
    %cst_23 = arith.constant 0.000000e+00 : f32
    %37 = vector.broadcast %cst_23 : f32 to vector<64x32xf32>
    %38 = vector.extract_strided_slice %36 {offsets = [0, 0, 0], sizes = [4, 16, 16], strides = [1, 1, 1]} : vector<4x16x96xf32> to vector<4x16x16xf32>
    %cst_24 = arith.constant 2.500000e-01 : f32
    %39 = vector.broadcast %cst_24 : f32 to vector<4x16x16xf32>
    %40 = arith.mulf %38, %39 : vector<4x16x16xf32>
    %41 = vector.extract_strided_slice %36 {offsets = [0, 0, 32], sizes = [4, 16, 16], strides = [1, 1, 1]} : vector<4x16x96xf32> to vector<4x16x16xf32>
    %42 = vector.extract_strided_slice %36 {offsets = [0, 0, 64], sizes = [4, 16, 16], strides = [1, 1, 1]} : vector<4x16x96xf32> to vector<4x16x16xf32>
    %43 = arith.truncf %40 : vector<4x16x16xf32> to vector<4x16x16xbf16>
    %44 = arith.truncf %41 : vector<4x16x16xf32> to vector<4x16x16xbf16>
    "tpu.trace_start"() <{level = 10 : i32, message = "wnd,wmd->wnm"}> : () -> ()
    %cst_25 = arith.constant dense<0.000000e+00> : vector<4x16x16xf32>
    %45 = tpu.matmul %43, %44, %cst_25 {dimension_numbers = #tpu.dot_dimension_numbers<[2], [2], [1], [1], [0, 0, 0, 1, 1, 1], [0], [0]>} : vector<4x16x16xbf16>, vector<4x16x16xbf16>, vector<4x16x16xf32> -> vector<4x16x16xf32>
    "tpu.trace_stop"() : () -> ()
    %46 = vector.extract_strided_slice %27 {offsets = [0, 0, 0, 0], sizes = [4, 1, 16, 16], strides = [1, 1, 1, 1]} : vector<4x2x16x16xf32> to vector<4x1x16x16xf32>
    %47 = vector.shape_cast %46 : vector<4x1x16x16xf32> to vector<4x16x16xf32>
    %48 = arith.addf %45, %47 : vector<4x16x16xf32>
    %cst_26 = arith.constant dense<0xFF800000> : vector<4x16xf32>
    %49 = vector.multi_reduction <maximumf>, %48, %cst_26 [2] : vector<4x16x16xf32> to vector<4x16xf32>
    %50 = vector.shape_cast %49 : vector<4x16xf32> to vector<4x16x1xf32>
    %51 = vector.broadcast %50 : vector<4x16x1xf32> to vector<4x16x16xf32>
    %52 = arith.subf %48, %51 : vector<4x16x16xf32>
    %53 = math.exp %52 : vector<4x16x16xf32>
    %cst_27 = arith.constant dense<0.000000e+00> : vector<4x16xf32>
    %54 = vector.multi_reduction <add>, %53, %cst_27 [2] : vector<4x16x16xf32> to vector<4x16xf32>
    %55 = vector.shape_cast %54 : vector<4x16xf32> to vector<4x16x1xf32>
    %56 = tpu.reciprocal %55 {approx = true} : vector<4x16x1xf32> -> vector<4x16x1xf32>
    %57 = vector.broadcast %56 : vector<4x16x1xf32> to vector<4x16x16xf32>
    %58 = arith.mulf %53, %57 : vector<4x16x16xf32>
    %59 = arith.truncf %58 : vector<4x16x16xf32> to vector<4x16x16xbf16>
    %60 = arith.truncf %42 : vector<4x16x16xf32> to vector<4x16x16xbf16>
    "tpu.trace_start"() <{level = 10 : i32, message = "wnm,wmd->wnd"}> : () -> ()
    %cst_28 = arith.constant dense<0.000000e+00> : vector<4x16x16xf32>
    %61 = tpu.matmul %59, %60, %cst_28 {dimension_numbers = #tpu.dot_dimension_numbers<[2], [1], [1], [2], [0, 0, 0, 1, 1, 2], [0], [0]>} : vector<4x16x16xbf16>, vector<4x16x16xbf16>, vector<4x16x16xf32> -> vector<4x16x16xf32>
    "tpu.trace_stop"() : () -> ()
    %62 = vector.shape_cast %61 : vector<4x16x16xf32> to vector<64x16xf32>
    %63 = vector.extract_strided_slice %30 {offsets = [0, 0], sizes = [16, 32], strides = [1, 1]} : vector<32x32xbf16> to vector<16x32xbf16>
    %64 = arith.truncf %62 : vector<64x16xf32> to vector<64x16xbf16>
    %cst_29 = arith.constant dense<0.000000e+00> : vector<64x32xf32>
    %65 = tpu.matmul %64, %63, %cst_29 {dimension_numbers = #tpu.dot_dimension_numbers<[1], [0], [0], [1], [0, 0, 1, 1], [], []>} : vector<64x16xbf16>, vector<16x32xbf16>, vector<64x32xf32> -> vector<64x32xf32>
    %66 = arith.addf %37, %65 : vector<64x32xf32>
    %67 = vector.extract_strided_slice %36 {offsets = [0, 0, 16], sizes = [4, 16, 16], strides = [1, 1, 1]} : vector<4x16x96xf32> to vector<4x16x16xf32>
    %cst_30 = arith.constant 2.500000e-01 : f32
    %68 = vector.broadcast %cst_30 : f32 to vector<4x16x16xf32>
    %69 = arith.mulf %67, %68 : vector<4x16x16xf32>
    %70 = vector.extract_strided_slice %36 {offsets = [0, 0, 48], sizes = [4, 16, 16], strides = [1, 1, 1]} : vector<4x16x96xf32> to vector<4x16x16xf32>
    %71 = vector.extract_strided_slice %36 {offsets = [0, 0, 80], sizes = [4, 16, 16], strides = [1, 1, 1]} : vector<4x16x96xf32> to vector<4x16x16xf32>
    %72 = arith.truncf %69 : vector<4x16x16xf32> to vector<4x16x16xbf16>
    %73 = arith.truncf %70 : vector<4x16x16xf32> to vector<4x16x16xbf16>
    "tpu.trace_start"() <{level = 10 : i32, message = "wnd,wmd->wnm"}> : () -> ()
    %cst_31 = arith.constant dense<0.000000e+00> : vector<4x16x16xf32>
    %74 = tpu.matmul %72, %73, %cst_31 {dimension_numbers = #tpu.dot_dimension_numbers<[2], [2], [1], [1], [0, 0, 0, 1, 1, 1], [0], [0]>} : vector<4x16x16xbf16>, vector<4x16x16xbf16>, vector<4x16x16xf32> -> vector<4x16x16xf32>
    "tpu.trace_stop"() : () -> ()
    %75 = vector.extract_strided_slice %27 {offsets = [0, 1, 0, 0], sizes = [4, 1, 16, 16], strides = [1, 1, 1, 1]} : vector<4x2x16x16xf32> to vector<4x1x16x16xf32>
    %76 = vector.shape_cast %75 : vector<4x1x16x16xf32> to vector<4x16x16xf32>
    %77 = arith.addf %74, %76 : vector<4x16x16xf32>
    %cst_32 = arith.constant dense<0xFF800000> : vector<4x16xf32>
    %78 = vector.multi_reduction <maximumf>, %77, %cst_32 [2] : vector<4x16x16xf32> to vector<4x16xf32>
    %79 = vector.shape_cast %78 : vector<4x16xf32> to vector<4x16x1xf32>
    %80 = vector.broadcast %79 : vector<4x16x1xf32> to vector<4x16x16xf32>
    %81 = arith.subf %77, %80 : vector<4x16x16xf32>
    %82 = math.exp %81 : vector<4x16x16xf32>
    %cst_33 = arith.constant dense<0.000000e+00> : vector<4x16xf32>
    %83 = vector.multi_reduction <add>, %82, %cst_33 [2] : vector<4x16x16xf32> to vector<4x16xf32>
    %84 = vector.shape_cast %83 : vector<4x16xf32> to vector<4x16x1xf32>
    %85 = tpu.reciprocal %84 {approx = true} : vector<4x16x1xf32> -> vector<4x16x1xf32>
    %86 = vector.broadcast %85 : vector<4x16x1xf32> to vector<4x16x16xf32>
    %87 = arith.mulf %82, %86 : vector<4x16x16xf32>
    %88 = arith.truncf %87 : vector<4x16x16xf32> to vector<4x16x16xbf16>
    %89 = arith.truncf %71 : vector<4x16x16xf32> to vector<4x16x16xbf16>
    "tpu.trace_start"() <{level = 10 : i32, message = "wnm,wmd->wnd"}> : () -> ()
    %cst_34 = arith.constant dense<0.000000e+00> : vector<4x16x16xf32>
    %90 = tpu.matmul %88, %89, %cst_34 {dimension_numbers = #tpu.dot_dimension_numbers<[2], [1], [1], [2], [0, 0, 0, 1, 1, 2], [0], [0]>} : vector<4x16x16xbf16>, vector<4x16x16xbf16>, vector<4x16x16xf32> -> vector<4x16x16xf32>
    "tpu.trace_stop"() : () -> ()
    %91 = vector.shape_cast %90 : vector<4x16x16xf32> to vector<64x16xf32>
    %92 = vector.extract_strided_slice %30 {offsets = [16, 0], sizes = [16, 32], strides = [1, 1]} : vector<32x32xbf16> to vector<16x32xbf16>
    %93 = arith.truncf %91 : vector<64x16xf32> to vector<64x16xbf16>
    %cst_35 = arith.constant dense<0.000000e+00> : vector<64x32xf32>
    %94 = tpu.matmul %93, %92, %cst_35 {dimension_numbers = #tpu.dot_dimension_numbers<[1], [0], [0], [1], [0, 0, 1, 1], [], []>} : vector<64x16xbf16>, vector<16x32xbf16>, vector<64x32xf32> -> vector<64x32xf32>
    %95 = arith.addf %66, %94 : vector<64x32xf32>
    %96 = vector.broadcast %31 : vector<1x32xf32> to vector<64x32xf32>
    %97 = arith.addf %95, %96 : vector<64x32xf32>
    %98 = vector.shape_cast %97 : vector<64x32xf32> to vector<4x16x32xf32>
    %99 = arith.truncf %98 : vector<4x16x32xf32> to vector<4x16x32xbf16>
    %c0_36 = arith.constant 0 : index
    %c0_37 = arith.constant 0 : index
    %c0_38 = arith.constant 0 : index
    %100 = vector.load %arg9[%c0_36, %c0_37, %c0_38] : memref<4x16x32xbf16, #tpu.memory_space<vmem>>, vector<4x16x32xbf16>
    tpu.vector_store %arg9[%c0_36, %c0_37, %c0_38], %99 {strides = array<i32>} : memref<4x16x32xbf16, #tpu.memory_space<vmem>>, vector<4x16x32xbf16>,
    return
  }
  func.func @transform_0(%arg0: i32) -> (i32, i32, i32) {
    %c0_i32 = arith.constant 0 : i32
    %c0_i32_0 = arith.constant 0 : i32
    %c0_i32_1 = arith.constant 0 : i32
    return %arg0, %c0_i32, %c0_i32_0 : i32, i32, i32
  }
  func.func @transform_1(%arg0: i32) -> (i32, i32, i32, i32) {
    %c0_i32 = arith.constant 0 : i32
    %c0_i32_0 = arith.constant 0 : i32
    %c0_i32_1 = arith.constant 0 : i32
    %c0_i32_2 = arith.constant 0 : i32
    %c0_i32_3 = arith.constant 0 : i32
    return %c0_i32, %c0_i32_0, %c0_i32_1, %c0_i32_2 : i32, i32, i32, i32
  }
  func.func @transform_2(%arg0: i32) -> (i32, i32) {
    %c0_i32 = arith.constant 0 : i32
    %c0_i32_0 = arith.constant 0 : i32
    %c0_i32_1 = arith.constant 0 : i32
    return %c0_i32, %c0_i32_0 : i32, i32
  }
  func.func @transform_3(%arg0: i32) -> (i32, i32) {
    %c0_i32 = arith.constant 0 : i32
    %c0_i32_0 = arith.constant 0 : i32
    %c0_i32_1 = arith.constant 0 : i32
    return %c0_i32, %c0_i32_0 : i32, i32
  }
  func.func @transform_4(%arg0: i32) -> (i32, i32) {
    %c0_i32 = arith.constant 0 : i32
    %c0_i32_0 = arith.constant 0 : i32
    %c0_i32_1 = arith.constant 0 : i32
    return %c0_i32, %c0_i32_0 : i32, i32
  }
  func.func @transform_5(%arg0: i32) -> (i32, i32) {
    %c0_i32 = arith.constant 0 : i32
    %c0_i32_0 = arith.constant 0 : i32
    %c0_i32_1 = arith.constant 0 : i32
    return %c0_i32, %c0_i32_0 : i32, i32
  }
  func.func @transform_6(%arg0: i32) -> (i32, i32) {
    %c0_i32 = arith.constant 0 : i32
    %c0_i32_0 = arith.constant 0 : i32
    %c0_i32_1 = arith.constant 0 : i32
    return %c0_i32, %c0_i32_0 : i32, i32
  }
  func.func @transform_7(%arg0: i32) -> (i32, i32) {
    %c0_i32 = arith.constant 0 : i32
    %c0_i32_0 = arith.constant 0 : i32
    %c0_i32_1 = arith.constant 0 : i32
    return %c0_i32, %c0_i32_0 : i32, i32
  }
  func.func @transform_8(%arg0: i32) -> (i32, i32, i32) {
    %c0_i32 = arith.constant 0 : i32
    %c0_i32_0 = arith.constant 0 : i32
    %c0_i32_1 = arith.constant 0 : i32
    return %arg0, %c0_i32, %c0_i32_0 : i32, i32, i32
  }
}

module attributes {stable_mosaic.version = 11 : i64} {
  func.func @_ln_linear_nobias_kernel(%arg0: i32, %arg1: memref<16x128xbf16, #tpu.memory_space<vmem>>, %arg2: memref<1x128xf32, #tpu.memory_space<vmem>>, %arg3: memref<1x128xf32, #tpu.memory_space<vmem>>, %arg4: memref<128x64xbf16, #tpu.memory_space<vmem>>, %arg5: memref<16x64xbf16, #tpu.memory_space<vmem>>) attributes {dimension_semantics = [#tpu.dimension_semantics<parallel>], iteration_bounds = array<i64: 2>, scalar_prefetch = 0 : i64, scratch_operands = 0 : i64, tpu.core_type = #tpu.core_type<tc>, window_params = [{transform_indices = @transform_0, window_bounds = array<i64: 16, 128>}, {pipeline_mode = #tpu.pipeline_mode<synchronous>, transform_indices = @transform_1, window_bounds = array<i64: 1, 128>}, {pipeline_mode = #tpu.pipeline_mode<synchronous>, transform_indices = @transform_2, window_bounds = array<i64: 1, 128>}, {pipeline_mode = #tpu.pipeline_mode<synchronous>, transform_indices = @transform_3, window_bounds = array<i64: 128, 64>}, {transform_indices = @transform_4, window_bounds = array<i64: 16, 64>}]} {
    %c0 = arith.constant 0 : index
    %c0_0 = arith.constant 0 : index
    %0 = vector.load %arg1[%c0, %c0_0] : memref<16x128xbf16, #tpu.memory_space<vmem>>, vector<16x128xbf16>
    %1 = arith.extf %0 : vector<16x128xbf16> to vector<16x128xf32>
    %c0_1 = arith.constant 0 : index
    %c0_2 = arith.constant 0 : index
    %2 = vector.load %arg2[%c0_1, %c0_2] : memref<1x128xf32, #tpu.memory_space<vmem>>, vector<1x128xf32>
    %c0_3 = arith.constant 0 : index
    %c0_4 = arith.constant 0 : index
    %3 = vector.load %arg3[%c0_3, %c0_4] : memref<1x128xf32, #tpu.memory_space<vmem>>, vector<1x128xf32>
    %cst = arith.constant dense<0.000000e+00> : vector<16xf32>
    %4 = vector.multi_reduction <add>, %1, %cst [1] : vector<16x128xf32> to vector<16xf32>
    %5 = vector.shape_cast %4 : vector<16xf32> to vector<16x1xf32>
    %cst_5 = arith.constant 1.280000e+02 : f32
    %6 = vector.broadcast %cst_5 : f32 to vector<16x1xf32>
    %7 = arith.divf %5, %6 : vector<16x1xf32>
    %8 = vector.broadcast %7 : vector<16x1xf32> to vector<16x128xf32>
    %9 = arith.subf %1, %8 : vector<16x128xf32>
    %10 = arith.mulf %9, %9 : vector<16x128xf32>
    %cst_6 = arith.constant dense<0.000000e+00> : vector<16xf32>
    %11 = vector.multi_reduction <add>, %10, %cst_6 [1] : vector<16x128xf32> to vector<16xf32>
    %12 = vector.shape_cast %11 : vector<16xf32> to vector<16x1xf32>
    %cst_7 = arith.constant 1.280000e+02 : f32
    %13 = vector.broadcast %cst_7 : f32 to vector<16x1xf32>
    %14 = arith.divf %12, %13 : vector<16x1xf32>
    %15 = vector.broadcast %7 : vector<16x1xf32> to vector<16x128xf32>
    %16 = arith.subf %1, %15 : vector<16x128xf32>
    %cst_8 = arith.constant 9.99999974E-6 : f32
    %17 = vector.broadcast %cst_8 : f32 to vector<16x1xf32>
    %18 = arith.addf %14, %17 : vector<16x1xf32>
    %19 = math.rsqrt %18 : vector<16x1xf32>
    %20 = vector.broadcast %19 : vector<16x1xf32> to vector<16x128xf32>
    %21 = arith.mulf %16, %20 : vector<16x128xf32>
    %22 = vector.broadcast %2 : vector<1x128xf32> to vector<16x128xf32>
    %23 = arith.mulf %21, %22 : vector<16x128xf32>
    %24 = vector.broadcast %3 : vector<1x128xf32> to vector<16x128xf32>
    %25 = arith.addf %23, %24 : vector<16x128xf32>
    %c0_9 = arith.constant 0 : index
    %c0_10 = arith.constant 0 : index
    %26 = vector.load %arg4[%c0_9, %c0_10] : memref<128x64xbf16, #tpu.memory_space<vmem>>, vector<128x64xbf16>
    %27 = arith.truncf %25 : vector<16x128xf32> to vector<16x128xbf16>
    %cst_11 = arith.constant dense<0.000000e+00> : vector<16x64xf32>
    %28 = tpu.matmul %27, %26, %cst_11 {dimension_numbers = #tpu.dot_dimension_numbers<[1], [0], [0], [1], [0, 0, 1, 1], [], []>} : vector<16x128xbf16>, vector<128x64xbf16>, vector<16x64xf32> -> vector<16x64xf32>
    %29 = arith.truncf %28 : vector<16x64xf32> to vector<16x64xbf16>
    %c0_12 = arith.constant 0 : index
    %c0_13 = arith.constant 0 : index
    %30 = vector.load %arg5[%c0_12, %c0_13] : memref<16x64xbf16, #tpu.memory_space<vmem>>, vector<16x64xbf16>
    tpu.vector_store %arg5[%c0_12, %c0_13], %29 {strides = array<i32>} : memref<16x64xbf16, #tpu.memory_space<vmem>>, vector<16x64xbf16>,
    return
  }
  func.func @transform_0(%arg0: i32) -> (i32, i32) {
    %c0_i32 = arith.constant 0 : i32
    %c0_i32_0 = arith.constant 0 : i32
    return %arg0, %c0_i32 : i32, i32
  }
  func.func @transform_1(%arg0: i32) -> (i32, i32) {
    %c0_i32 = arith.constant 0 : i32
    %c0_i32_0 = arith.constant 0 : i32
    %c0_i32_1 = arith.constant 0 : i32
    return %c0_i32, %c0_i32_0 : i32, i32
  }
  func.func @transform_2(%arg0: i32) -> (i32, i32) {
    %c0_i32 = arith.constant 0 : i32
    %c0_i32_0 = arith.constant 0 : i32
    %c0_i32_1 = arith.constant 0 : i32
    return %c0_i32, %c0_i32_0 : i32, i32
  }
  func.func @transform_3(%arg0: i32) -> (i32, i32) {
    %c0_i32 = arith.constant 0 : i32
    %c0_i32_0 = arith.constant 0 : i32
    %c0_i32_1 = arith.constant 0 : i32
    return %c0_i32, %c0_i32_0 : i32, i32
  }
  func.func @transform_4(%arg0: i32) -> (i32, i32) {
    %c0_i32 = arith.constant 0 : i32
    %c0_i32_0 = arith.constant 0 : i32
    return %arg0, %c0_i32 : i32, i32
  }
}

module attributes {stable_mosaic.version = 11 : i64} {
  func.func @_attn_fused_norm_kernel(%arg0: i32, %arg1: memref<1x16x64xbf16, #tpu.memory_space<vmem>>, %arg2: memref<1x4x16x16xf32, #tpu.memory_space<vmem>>, %arg3: memref<1x64xf32, #tpu.memory_space<vmem>>, %arg4: memref<1x64xf32, #tpu.memory_space<vmem>>, %arg5: memref<64x192xbf16, #tpu.memory_space<vmem>>, %arg6: memref<1x192xf32, #tpu.memory_space<vmem>>, %arg7: memref<64x64xbf16, #tpu.memory_space<vmem>>, %arg8: memref<1x64xf32, #tpu.memory_space<vmem>>, %arg9: memref<1x16x64xbf16, #tpu.memory_space<vmem>>) attributes {dimension_semantics = [#tpu.dimension_semantics<parallel>], iteration_bounds = array<i64: 2>, scalar_prefetch = 0 : i64, scratch_operands = 0 : i64, tpu.core_type = #tpu.core_type<tc>, window_params = [{transform_indices = @transform_0, window_bounds = array<i64: 1, 16, 64>}, {pipeline_mode = #tpu.pipeline_mode<synchronous>, transform_indices = @transform_1, window_bounds = array<i64: 1, 4, 16, 16>}, {pipeline_mode = #tpu.pipeline_mode<synchronous>, transform_indices = @transform_2, window_bounds = array<i64: 1, 64>}, {pipeline_mode = #tpu.pipeline_mode<synchronous>, transform_indices = @transform_3, window_bounds = array<i64: 1, 64>}, {pipeline_mode = #tpu.pipeline_mode<synchronous>, transform_indices = @transform_4, window_bounds = array<i64: 64, 192>}, {pipeline_mode = #tpu.pipeline_mode<synchronous>, transform_indices = @transform_5, window_bounds = array<i64: 1, 192>}, {pipeline_mode = #tpu.pipeline_mode<synchronous>, transform_indices = @transform_6, window_bounds = array<i64: 64, 64>}, {pipeline_mode = #tpu.pipeline_mode<synchronous>, transform_indices = @transform_7, window_bounds = array<i64: 1, 64>}, {transform_indices = @transform_8, window_bounds = array<i64: 1, 16, 64>}]} {
    %c0 = arith.constant 0 : index
    %c0_0 = arith.constant 0 : index
    %c0_1 = arith.constant 0 : index
    %0 = vector.load %arg1[%c0, %c0_0, %c0_1] : memref<1x16x64xbf16, #tpu.memory_space<vmem>>, vector<1x16x64xbf16>
    %1 = arith.extf %0 : vector<1x16x64xbf16> to vector<1x16x64xf32>
    %2 = vector.shape_cast %1 : vector<1x16x64xf32> to vector<16x64xf32>
    %c0_2 = arith.constant 0 : index
    %c0_3 = arith.constant 0 : index
    %3 = vector.load %arg3[%c0_2, %c0_3] : memref<1x64xf32, #tpu.memory_space<vmem>>, vector<1x64xf32>
    %c0_4 = arith.constant 0 : index
    %c0_5 = arith.constant 0 : index
    %4 = vector.load %arg4[%c0_4, %c0_5] : memref<1x64xf32, #tpu.memory_space<vmem>>, vector<1x64xf32>
    %cst = arith.constant dense<0.000000e+00> : vector<16xf32>
    %5 = vector.multi_reduction <add>, %2, %cst [1] : vector<16x64xf32> to vector<16xf32>
    %6 = vector.shape_cast %5 : vector<16xf32> to vector<16x1xf32>
    %cst_6 = arith.constant 6.400000e+01 : f32
    %7 = vector.broadcast %cst_6 : f32 to vector<16x1xf32>
    %8 = arith.divf %6, %7 : vector<16x1xf32>
    %9 = vector.broadcast %8 : vector<16x1xf32> to vector<16x64xf32>
    %10 = arith.subf %2, %9 : vector<16x64xf32>
    %11 = arith.mulf %10, %10 : vector<16x64xf32>
    %cst_7 = arith.constant dense<0.000000e+00> : vector<16xf32>
    %12 = vector.multi_reduction <add>, %11, %cst_7 [1] : vector<16x64xf32> to vector<16xf32>
    %13 = vector.shape_cast %12 : vector<16xf32> to vector<16x1xf32>
    %cst_8 = arith.constant 6.400000e+01 : f32
    %14 = vector.broadcast %cst_8 : f32 to vector<16x1xf32>
    %15 = arith.divf %13, %14 : vector<16x1xf32>
    %16 = vector.broadcast %8 : vector<16x1xf32> to vector<16x64xf32>
    %17 = arith.subf %2, %16 : vector<16x64xf32>
    %cst_9 = arith.constant 9.99999974E-6 : f32
    %18 = vector.broadcast %cst_9 : f32 to vector<16x1xf32>
    %19 = arith.addf %15, %18 : vector<16x1xf32>
    %20 = math.rsqrt %19 : vector<16x1xf32>
    %21 = vector.broadcast %20 : vector<16x1xf32> to vector<16x64xf32>
    %22 = arith.mulf %17, %21 : vector<16x64xf32>
    %23 = vector.broadcast %3 : vector<1x64xf32> to vector<16x64xf32>
    %24 = arith.mulf %22, %23 : vector<16x64xf32>
    %25 = vector.broadcast %4 : vector<1x64xf32> to vector<16x64xf32>
    %26 = arith.addf %24, %25 : vector<16x64xf32>
    %c0_10 = arith.constant 0 : index
    %c0_11 = arith.constant 0 : index
    %c0_12 = arith.constant 0 : index
    %c0_13 = arith.constant 0 : index
    %27 = vector.load %arg2[%c0_10, %c0_11, %c0_12, %c0_13] : memref<1x4x16x16xf32, #tpu.memory_space<vmem>>, vector<1x4x16x16xf32>
    %c0_14 = arith.constant 0 : index
    %c0_15 = arith.constant 0 : index
    %28 = vector.load %arg5[%c0_14, %c0_15] : memref<64x192xbf16, #tpu.memory_space<vmem>>, vector<64x192xbf16>
    %c0_16 = arith.constant 0 : index
    %c0_17 = arith.constant 0 : index
    %29 = vector.load %arg6[%c0_16, %c0_17] : memref<1x192xf32, #tpu.memory_space<vmem>>, vector<1x192xf32>
    %c0_18 = arith.constant 0 : index
    %c0_19 = arith.constant 0 : index
    %30 = vector.load %arg7[%c0_18, %c0_19] : memref<64x64xbf16, #tpu.memory_space<vmem>>, vector<64x64xbf16>
    %c0_20 = arith.constant 0 : index
    %c0_21 = arith.constant 0 : index
    %31 = vector.load %arg8[%c0_20, %c0_21] : memref<1x64xf32, #tpu.memory_space<vmem>>, vector<1x64xf32>
    %32 = arith.truncf %26 : vector<16x64xf32> to vector<16x64xbf16>
    %cst_22 = arith.constant dense<0.000000e+00> : vector<16x192xf32>
    %33 = tpu.matmul %32, %28, %cst_22 {dimension_numbers = #tpu.dot_dimension_numbers<[1], [0], [0], [1], [0, 0, 1, 1], [], []>} : vector<16x64xbf16>, vector<64x192xbf16>, vector<16x192xf32> -> vector<16x192xf32>
    %34 = vector.broadcast %29 : vector<1x192xf32> to vector<16x192xf32>
    %35 = arith.addf %33, %34 : vector<16x192xf32>
    %36 = vector.shape_cast %35 : vector<16x192xf32> to vector<1x16x192xf32>
    %cst_23 = arith.constant 0.000000e+00 : f32
    %37 = vector.broadcast %cst_23 : f32 to vector<16x64xf32>
    %38 = vector.extract_strided_slice %36 {offsets = [0, 0, 0], sizes = [1, 16, 16], strides = [1, 1, 1]} : vector<1x16x192xf32> to vector<1x16x16xf32>
    %cst_24 = arith.constant 2.500000e-01 : f32
    %39 = vector.broadcast %cst_24 : f32 to vector<1x16x16xf32>
    %40 = arith.mulf %38, %39 : vector<1x16x16xf32>
    %41 = vector.extract_strided_slice %36 {offsets = [0, 0, 64], sizes = [1, 16, 16], strides = [1, 1, 1]} : vector<1x16x192xf32> to vector<1x16x16xf32>
    %42 = vector.extract_strided_slice %36 {offsets = [0, 0, 128], sizes = [1, 16, 16], strides = [1, 1, 1]} : vector<1x16x192xf32> to vector<1x16x16xf32>
    %43 = arith.truncf %40 : vector<1x16x16xf32> to vector<1x16x16xbf16>
    %44 = arith.truncf %41 : vector<1x16x16xf32> to vector<1x16x16xbf16>
    "tpu.trace_start"() <{level = 10 : i32, message = "wnd,wmd->wnm"}> : () -> ()
    %cst_25 = arith.constant dense<0.000000e+00> : vector<1x16x16xf32>
    %45 = tpu.matmul %43, %44, %cst_25 {dimension_numbers = #tpu.dot_dimension_numbers<[2], [2], [1], [1], [0, 0, 0, 1, 1, 1], [0], [0]>} : vector<1x16x16xbf16>, vector<1x16x16xbf16>, vector<1x16x16xf32> -> vector<1x16x16xf32>
    "tpu.trace_stop"() : () -> ()
    %46 = vector.extract_strided_slice %27 {offsets = [0, 0, 0, 0], sizes = [1, 1, 16, 16], strides = [1, 1, 1, 1]} : vector<1x4x16x16xf32> to vector<1x1x16x16xf32>
    %47 = vector.shape_cast %46 : vector<1x1x16x16xf32> to vector<1x16x16xf32>
    %48 = arith.addf %45, %47 : vector<1x16x16xf32>
    %cst_26 = arith.constant dense<0xFF800000> : vector<1x16xf32>
    %49 = vector.multi_reduction <maximumf>, %48, %cst_26 [2] : vector<1x16x16xf32> to vector<1x16xf32>
    %50 = vector.shape_cast %49 : vector<1x16xf32> to vector<1x16x1xf32>
    %51 = vector.broadcast %50 : vector<1x16x1xf32> to vector<1x16x16xf32>
    %52 = arith.subf %48, %51 : vector<1x16x16xf32>
    %53 = math.exp %52 : vector<1x16x16xf32>
    %cst_27 = arith.constant dense<0.000000e+00> : vector<1x16xf32>
    %54 = vector.multi_reduction <add>, %53, %cst_27 [2] : vector<1x16x16xf32> to vector<1x16xf32>
    %55 = vector.shape_cast %54 : vector<1x16xf32> to vector<1x16x1xf32>
    %56 = tpu.reciprocal %55 {approx = true} : vector<1x16x1xf32> -> vector<1x16x1xf32>
    %57 = vector.broadcast %56 : vector<1x16x1xf32> to vector<1x16x16xf32>
    %58 = arith.mulf %53, %57 : vector<1x16x16xf32>
    %59 = arith.truncf %58 : vector<1x16x16xf32> to vector<1x16x16xbf16>
    %60 = arith.truncf %42 : vector<1x16x16xf32> to vector<1x16x16xbf16>
    "tpu.trace_start"() <{level = 10 : i32, message = "wnm,wmd->wnd"}> : () -> ()
    %cst_28 = arith.constant dense<0.000000e+00> : vector<1x16x16xf32>
    %61 = tpu.matmul %59, %60, %cst_28 {dimension_numbers = #tpu.dot_dimension_numbers<[2], [1], [1], [2], [0, 0, 0, 1, 1, 2], [0], [0]>} : vector<1x16x16xbf16>, vector<1x16x16xbf16>, vector<1x16x16xf32> -> vector<1x16x16xf32>
    "tpu.trace_stop"() : () -> ()
    %62 = vector.shape_cast %61 : vector<1x16x16xf32> to vector<16x16xf32>
    %63 = vector.extract_strided_slice %30 {offsets = [0, 0], sizes = [16, 64], strides = [1, 1]} : vector<64x64xbf16> to vector<16x64xbf16>
    %64 = arith.truncf %62 : vector<16x16xf32> to vector<16x16xbf16>
    %cst_29 = arith.constant dense<0.000000e+00> : vector<16x64xf32>
    %65 = tpu.matmul %64, %63, %cst_29 {dimension_numbers = #tpu.dot_dimension_numbers<[1], [0], [0], [1], [0, 0, 1, 1], [], []>} : vector<16x16xbf16>, vector<16x64xbf16>, vector<16x64xf32> -> vector<16x64xf32>
    %66 = arith.addf %37, %65 : vector<16x64xf32>
    %67 = vector.extract_strided_slice %36 {offsets = [0, 0, 16], sizes = [1, 16, 16], strides = [1, 1, 1]} : vector<1x16x192xf32> to vector<1x16x16xf32>
    %cst_30 = arith.constant 2.500000e-01 : f32
    %68 = vector.broadcast %cst_30 : f32 to vector<1x16x16xf32>
    %69 = arith.mulf %67, %68 : vector<1x16x16xf32>
    %70 = vector.extract_strided_slice %36 {offsets = [0, 0, 80], sizes = [1, 16, 16], strides = [1, 1, 1]} : vector<1x16x192xf32> to vector<1x16x16xf32>
    %71 = vector.extract_strided_slice %36 {offsets = [0, 0, 144], sizes = [1, 16, 16], strides = [1, 1, 1]} : vector<1x16x192xf32> to vector<1x16x16xf32>
    %72 = arith.truncf %69 : vector<1x16x16xf32> to vector<1x16x16xbf16>
    %73 = arith.truncf %70 : vector<1x16x16xf32> to vector<1x16x16xbf16>
    "tpu.trace_start"() <{level = 10 : i32, message = "wnd,wmd->wnm"}> : () -> ()
    %cst_31 = arith.constant dense<0.000000e+00> : vector<1x16x16xf32>
    %74 = tpu.matmul %72, %73, %cst_31 {dimension_numbers = #tpu.dot_dimension_numbers<[2], [2], [1], [1], [0, 0, 0, 1, 1, 1], [0], [0]>} : vector<1x16x16xbf16>, vector<1x16x16xbf16>, vector<1x16x16xf32> -> vector<1x16x16xf32>
    "tpu.trace_stop"() : () -> ()
    %75 = vector.extract_strided_slice %27 {offsets = [0, 1, 0, 0], sizes = [1, 1, 16, 16], strides = [1, 1, 1, 1]} : vector<1x4x16x16xf32> to vector<1x1x16x16xf32>
    %76 = vector.shape_cast %75 : vector<1x1x16x16xf32> to vector<1x16x16xf32>
    %77 = arith.addf %74, %76 : vector<1x16x16xf32>
    %cst_32 = arith.constant dense<0xFF800000> : vector<1x16xf32>
    %78 = vector.multi_reduction <maximumf>, %77, %cst_32 [2] : vector<1x16x16xf32> to vector<1x16xf32>
    %79 = vector.shape_cast %78 : vector<1x16xf32> to vector<1x16x1xf32>
    %80 = vector.broadcast %79 : vector<1x16x1xf32> to vector<1x16x16xf32>
    %81 = arith.subf %77, %80 : vector<1x16x16xf32>
    %82 = math.exp %81 : vector<1x16x16xf32>
    %cst_33 = arith.constant dense<0.000000e+00> : vector<1x16xf32>
    %83 = vector.multi_reduction <add>, %82, %cst_33 [2] : vector<1x16x16xf32> to vector<1x16xf32>
    %84 = vector.shape_cast %83 : vector<1x16xf32> to vector<1x16x1xf32>
    %85 = tpu.reciprocal %84 {approx = true} : vector<1x16x1xf32> -> vector<1x16x1xf32>
    %86 = vector.broadcast %85 : vector<1x16x1xf32> to vector<1x16x16xf32>
    %87 = arith.mulf %82, %86 : vector<1x16x16xf32>
    %88 = arith.truncf %87 : vector<1x16x16xf32> to vector<1x16x16xbf16>
    %89 = arith.truncf %71 : vector<1x16x16xf32> to vector<1x16x16xbf16>
    "tpu.trace_start"() <{level = 10 : i32, message = "wnm,wmd->wnd"}> : () -> ()
    %cst_34 = arith.constant dense<0.000000e+00> : vector<1x16x16xf32>
    %90 = tpu.matmul %88, %89, %cst_34 {dimension_numbers = #tpu.dot_dimension_numbers<[2], [1], [1], [2], [0, 0, 0, 1, 1, 2], [0], [0]>} : vector<1x16x16xbf16>, vector<1x16x16xbf16>, vector<1x16x16xf32> -> vector<1x16x16xf32>
    "tpu.trace_stop"() : () -> ()
    %91 = vector.shape_cast %90 : vector<1x16x16xf32> to vector<16x16xf32>
    %92 = vector.extract_strided_slice %30 {offsets = [16, 0], sizes = [16, 64], strides = [1, 1]} : vector<64x64xbf16> to vector<16x64xbf16>
    %93 = arith.truncf %91 : vector<16x16xf32> to vector<16x16xbf16>
    %cst_35 = arith.constant dense<0.000000e+00> : vector<16x64xf32>
    %94 = tpu.matmul %93, %92, %cst_35 {dimension_numbers = #tpu.dot_dimension_numbers<[1], [0], [0], [1], [0, 0, 1, 1], [], []>} : vector<16x16xbf16>, vector<16x64xbf16>, vector<16x64xf32> -> vector<16x64xf32>
    %95 = arith.addf %66, %94 : vector<16x64xf32>
    %96 = vector.extract_strided_slice %36 {offsets = [0, 0, 32], sizes = [1, 16, 16], strides = [1, 1, 1]} : vector<1x16x192xf32> to vector<1x16x16xf32>
    %cst_36 = arith.constant 2.500000e-01 : f32
    %97 = vector.broadcast %cst_36 : f32 to vector<1x16x16xf32>
    %98 = arith.mulf %96, %97 : vector<1x16x16xf32>
    %99 = vector.extract_strided_slice %36 {offsets = [0, 0, 96], sizes = [1, 16, 16], strides = [1, 1, 1]} : vector<1x16x192xf32> to vector<1x16x16xf32>
    %100 = vector.extract_strided_slice %36 {offsets = [0, 0, 160], sizes = [1, 16, 16], strides = [1, 1, 1]} : vector<1x16x192xf32> to vector<1x16x16xf32>
    %101 = arith.truncf %98 : vector<1x16x16xf32> to vector<1x16x16xbf16>
    %102 = arith.truncf %99 : vector<1x16x16xf32> to vector<1x16x16xbf16>
    "tpu.trace_start"() <{level = 10 : i32, message = "wnd,wmd->wnm"}> : () -> ()
    %cst_37 = arith.constant dense<0.000000e+00> : vector<1x16x16xf32>
    %103 = tpu.matmul %101, %102, %cst_37 {dimension_numbers = #tpu.dot_dimension_numbers<[2], [2], [1], [1], [0, 0, 0, 1, 1, 1], [0], [0]>} : vector<1x16x16xbf16>, vector<1x16x16xbf16>, vector<1x16x16xf32> -> vector<1x16x16xf32>
    "tpu.trace_stop"() : () -> ()
    %104 = vector.extract_strided_slice %27 {offsets = [0, 2, 0, 0], sizes = [1, 1, 16, 16], strides = [1, 1, 1, 1]} : vector<1x4x16x16xf32> to vector<1x1x16x16xf32>
    %105 = vector.shape_cast %104 : vector<1x1x16x16xf32> to vector<1x16x16xf32>
    %106 = arith.addf %103, %105 : vector<1x16x16xf32>
    %cst_38 = arith.constant dense<0xFF800000> : vector<1x16xf32>
    %107 = vector.multi_reduction <maximumf>, %106, %cst_38 [2] : vector<1x16x16xf32> to vector<1x16xf32>
    %108 = vector.shape_cast %107 : vector<1x16xf32> to vector<1x16x1xf32>
    %109 = vector.broadcast %108 : vector<1x16x1xf32> to vector<1x16x16xf32>
    %110 = arith.subf %106, %109 : vector<1x16x16xf32>
    %111 = math.exp %110 : vector<1x16x16xf32>
    %cst_39 = arith.constant dense<0.000000e+00> : vector<1x16xf32>
    %112 = vector.multi_reduction <add>, %111, %cst_39 [2] : vector<1x16x16xf32> to vector<1x16xf32>
    %113 = vector.shape_cast %112 : vector<1x16xf32> to vector<1x16x1xf32>
    %114 = tpu.reciprocal %113 {approx = true} : vector<1x16x1xf32> -> vector<1x16x1xf32>
    %115 = vector.broadcast %114 : vector<1x16x1xf32> to vector<1x16x16xf32>
    %116 = arith.mulf %111, %115 : vector<1x16x16xf32>
    %117 = arith.truncf %116 : vector<1x16x16xf32> to vector<1x16x16xbf16>
    %118 = arith.truncf %100 : vector<1x16x16xf32> to vector<1x16x16xbf16>
    "tpu.trace_start"() <{level = 10 : i32, message = "wnm,wmd->wnd"}> : () -> ()
    %cst_40 = arith.constant dense<0.000000e+00> : vector<1x16x16xf32>
    %119 = tpu.matmul %117, %118, %cst_40 {dimension_numbers = #tpu.dot_dimension_numbers<[2], [1], [1], [2], [0, 0, 0, 1, 1, 2], [0], [0]>} : vector<1x16x16xbf16>, vector<1x16x16xbf16>, vector<1x16x16xf32> -> vector<1x16x16xf32>
    "tpu.trace_stop"() : () -> ()
    %120 = vector.shape_cast %119 : vector<1x16x16xf32> to vector<16x16xf32>
    %121 = vector.extract_strided_slice %30 {offsets = [32, 0], sizes = [16, 64], strides = [1, 1]} : vector<64x64xbf16> to vector<16x64xbf16>
    %122 = arith.truncf %120 : vector<16x16xf32> to vector<16x16xbf16>
    %cst_41 = arith.constant dense<0.000000e+00> : vector<16x64xf32>
    %123 = tpu.matmul %122, %121, %cst_41 {dimension_numbers = #tpu.dot_dimension_numbers<[1], [0], [0], [1], [0, 0, 1, 1], [], []>} : vector<16x16xbf16>, vector<16x64xbf16>, vector<16x64xf32> -> vector<16x64xf32>
    %124 = arith.addf %95, %123 : vector<16x64xf32>
    %125 = vector.extract_strided_slice %36 {offsets = [0, 0, 48], sizes = [1, 16, 16], strides = [1, 1, 1]} : vector<1x16x192xf32> to vector<1x16x16xf32>
    %cst_42 = arith.constant 2.500000e-01 : f32
    %126 = vector.broadcast %cst_42 : f32 to vector<1x16x16xf32>
    %127 = arith.mulf %125, %126 : vector<1x16x16xf32>
    %128 = vector.extract_strided_slice %36 {offsets = [0, 0, 112], sizes = [1, 16, 16], strides = [1, 1, 1]} : vector<1x16x192xf32> to vector<1x16x16xf32>
    %129 = vector.extract_strided_slice %36 {offsets = [0, 0, 176], sizes = [1, 16, 16], strides = [1, 1, 1]} : vector<1x16x192xf32> to vector<1x16x16xf32>
    %130 = arith.truncf %127 : vector<1x16x16xf32> to vector<1x16x16xbf16>
    %131 = arith.truncf %128 : vector<1x16x16xf32> to vector<1x16x16xbf16>
    "tpu.trace_start"() <{level = 10 : i32, message = "wnd,wmd->wnm"}> : () -> ()
    %cst_43 = arith.constant dense<0.000000e+00> : vector<1x16x16xf32>
    %132 = tpu.matmul %130, %131, %cst_43 {dimension_numbers = #tpu.dot_dimension_numbers<[2], [2], [1], [1], [0, 0, 0, 1, 1, 1], [0], [0]>} : vector<1x16x16xbf16>, vector<1x16x16xbf16>, vector<1x16x16xf32> -> vector<1x16x16xf32>
    "tpu.trace_stop"() : () -> ()
    %133 = vector.extract_strided_slice %27 {offsets = [0, 3, 0, 0], sizes = [1, 1, 16, 16], strides = [1, 1, 1, 1]} : vector<1x4x16x16xf32> to vector<1x1x16x16xf32>
    %134 = vector.shape_cast %133 : vector<1x1x16x16xf32> to vector<1x16x16xf32>
    %135 = arith.addf %132, %134 : vector<1x16x16xf32>
    %cst_44 = arith.constant dense<0xFF800000> : vector<1x16xf32>
    %136 = vector.multi_reduction <maximumf>, %135, %cst_44 [2] : vector<1x16x16xf32> to vector<1x16xf32>
    %137 = vector.shape_cast %136 : vector<1x16xf32> to vector<1x16x1xf32>
    %138 = vector.broadcast %137 : vector<1x16x1xf32> to vector<1x16x16xf32>
    %139 = arith.subf %135, %138 : vector<1x16x16xf32>
    %140 = math.exp %139 : vector<1x16x16xf32>
    %cst_45 = arith.constant dense<0.000000e+00> : vector<1x16xf32>
    %141 = vector.multi_reduction <add>, %140, %cst_45 [2] : vector<1x16x16xf32> to vector<1x16xf32>
    %142 = vector.shape_cast %141 : vector<1x16xf32> to vector<1x16x1xf32>
    %143 = tpu.reciprocal %142 {approx = true} : vector<1x16x1xf32> -> vector<1x16x1xf32>
    %144 = vector.broadcast %143 : vector<1x16x1xf32> to vector<1x16x16xf32>
    %145 = arith.mulf %140, %144 : vector<1x16x16xf32>
    %146 = arith.truncf %145 : vector<1x16x16xf32> to vector<1x16x16xbf16>
    %147 = arith.truncf %129 : vector<1x16x16xf32> to vector<1x16x16xbf16>
    "tpu.trace_start"() <{level = 10 : i32, message = "wnm,wmd->wnd"}> : () -> ()
    %cst_46 = arith.constant dense<0.000000e+00> : vector<1x16x16xf32>
    %148 = tpu.matmul %146, %147, %cst_46 {dimension_numbers = #tpu.dot_dimension_numbers<[2], [1], [1], [2], [0, 0, 0, 1, 1, 2], [0], [0]>} : vector<1x16x16xbf16>, vector<1x16x16xbf16>, vector<1x16x16xf32> -> vector<1x16x16xf32>
    "tpu.trace_stop"() : () -> ()
    %149 = vector.shape_cast %148 : vector<1x16x16xf32> to vector<16x16xf32>
    %150 = vector.extract_strided_slice %30 {offsets = [48, 0], sizes = [16, 64], strides = [1, 1]} : vector<64x64xbf16> to vector<16x64xbf16>
    %151 = arith.truncf %149 : vector<16x16xf32> to vector<16x16xbf16>
    %cst_47 = arith.constant dense<0.000000e+00> : vector<16x64xf32>
    %152 = tpu.matmul %151, %150, %cst_47 {dimension_numbers = #tpu.dot_dimension_numbers<[1], [0], [0], [1], [0, 0, 1, 1], [], []>} : vector<16x16xbf16>, vector<16x64xbf16>, vector<16x64xf32> -> vector<16x64xf32>
    %153 = arith.addf %124, %152 : vector<16x64xf32>
    %154 = vector.broadcast %31 : vector<1x64xf32> to vector<16x64xf32>
    %155 = arith.addf %153, %154 : vector<16x64xf32>
    %156 = vector.shape_cast %155 : vector<16x64xf32> to vector<1x16x64xf32>
    %157 = arith.truncf %156 : vector<1x16x64xf32> to vector<1x16x64xbf16>
    %c0_48 = arith.constant 0 : index
    %c0_49 = arith.constant 0 : index
    %c0_50 = arith.constant 0 : index
    %158 = vector.load %arg9[%c0_48, %c0_49, %c0_50] : memref<1x16x64xbf16, #tpu.memory_space<vmem>>, vector<1x16x64xbf16>
    tpu.vector_store %arg9[%c0_48, %c0_49, %c0_50], %157 {strides = array<i32>} : memref<1x16x64xbf16, #tpu.memory_space<vmem>>, vector<1x16x64xbf16>,
    return
  }
  func.func @transform_0(%arg0: i32) -> (i32, i32, i32) {
    %c0_i32 = arith.constant 0 : i32
    %c0_i32_0 = arith.constant 0 : i32
    %c0_i32_1 = arith.constant 0 : i32
    return %arg0, %c0_i32, %c0_i32_0 : i32, i32, i32
  }
  func.func @transform_1(%arg0: i32) -> (i32, i32, i32, i32) {
    %c0_i32 = arith.constant 0 : i32
    %c0_i32_0 = arith.constant 0 : i32
    %c0_i32_1 = arith.constant 0 : i32
    %c0_i32_2 = arith.constant 0 : i32
    %c0_i32_3 = arith.constant 0 : i32
    return %c0_i32, %c0_i32_0, %c0_i32_1, %c0_i32_2 : i32, i32, i32, i32
  }
  func.func @transform_2(%arg0: i32) -> (i32, i32) {
    %c0_i32 = arith.constant 0 : i32
    %c0_i32_0 = arith.constant 0 : i32
    %c0_i32_1 = arith.constant 0 : i32
    return %c0_i32, %c0_i32_0 : i32, i32
  }
  func.func @transform_3(%arg0: i32) -> (i32, i32) {
    %c0_i32 = arith.constant 0 : i32
    %c0_i32_0 = arith.constant 0 : i32
    %c0_i32_1 = arith.constant 0 : i32
    return %c0_i32, %c0_i32_0 : i32, i32
  }
  func.func @transform_4(%arg0: i32) -> (i32, i32) {
    %c0_i32 = arith.constant 0 : i32
    %c0_i32_0 = arith.constant 0 : i32
    %c0_i32_1 = arith.constant 0 : i32
    return %c0_i32, %c0_i32_0 : i32, i32
  }
  func.func @transform_5(%arg0: i32) -> (i32, i32) {
    %c0_i32 = arith.constant 0 : i32
    %c0_i32_0 = arith.constant 0 : i32
    %c0_i32_1 = arith.constant 0 : i32
    return %c0_i32, %c0_i32_0 : i32, i32
  }
  func.func @transform_6(%arg0: i32) -> (i32, i32) {
    %c0_i32 = arith.constant 0 : i32
    %c0_i32_0 = arith.constant 0 : i32
    %c0_i32_1 = arith.constant 0 : i32
    return %c0_i32, %c0_i32_0 : i32, i32
  }
  func.func @transform_7(%arg0: i32) -> (i32, i32) {
    %c0_i32 = arith.constant 0 : i32
    %c0_i32_0 = arith.constant 0 : i32
    %c0_i32_1 = arith.constant 0 : i32
    return %c0_i32, %c0_i32_0 : i32, i32
  }
  func.func @transform_8(%arg0: i32) -> (i32, i32, i32) {
    %c0_i32 = arith.constant 0 : i32
    %c0_i32_0 = arith.constant 0 : i32
    %c0_i32_1 = arith.constant 0 : i32
    return %arg0, %c0_i32, %c0_i32_0 : i32, i32, i32
  }
}

module attributes {stable_mosaic.version = 11 : i64} {
  func.func @_mlp_fused_kernel(%arg0: i32, %arg1: memref<16x64xbf16, #tpu.memory_space<vmem>>, %arg2: memref<16x64xbf16, #tpu.memory_space<vmem>>, %arg3: memref<1x64xf32, #tpu.memory_space<vmem>>, %arg4: memref<1x64xf32, #tpu.memory_space<vmem>>, %arg5: memref<64x256xbf16, #tpu.memory_space<vmem>>, %arg6: memref<1x256xf32, #tpu.memory_space<vmem>>, %arg7: memref<256x64xbf16, #tpu.memory_space<vmem>>, %arg8: memref<1x64xf32, #tpu.memory_space<vmem>>, %arg9: memref<16x64xbf16, #tpu.memory_space<vmem>>) attributes {dimension_semantics = [#tpu.dimension_semantics<parallel>], iteration_bounds = array<i64: 2>, scalar_prefetch = 0 : i64, scratch_operands = 0 : i64, tpu.core_type = #tpu.core_type<tc>, window_params = [{transform_indices = @transform_0, window_bounds = array<i64: 16, 64>}, {transform_indices = @transform_1, window_bounds = array<i64: 16, 64>}, {pipeline_mode = #tpu.pipeline_mode<synchronous>, transform_indices = @transform_2, window_bounds = array<i64: 1, 64>}, {pipeline_mode = #tpu.pipeline_mode<synchronous>, transform_indices = @transform_3, window_bounds = array<i64: 1, 64>}, {pipeline_mode = #tpu.pipeline_mode<synchronous>, transform_indices = @transform_4, window_bounds = array<i64: 64, 256>}, {pipeline_mode = #tpu.pipeline_mode<synchronous>, transform_indices = @transform_5, window_bounds = array<i64: 1, 256>}, {pipeline_mode = #tpu.pipeline_mode<synchronous>, transform_indices = @transform_6, window_bounds = array<i64: 256, 64>}, {pipeline_mode = #tpu.pipeline_mode<synchronous>, transform_indices = @transform_7, window_bounds = array<i64: 1, 64>}, {transform_indices = @transform_8, window_bounds = array<i64: 16, 64>}]} {
    %c0 = arith.constant 0 : index
    %c0_0 = arith.constant 0 : index
    %0 = vector.load %arg1[%c0, %c0_0] : memref<16x64xbf16, #tpu.memory_space<vmem>>, vector<16x64xbf16>
    %1 = arith.extf %0 : vector<16x64xbf16> to vector<16x64xf32>
    %c0_1 = arith.constant 0 : index
    %c0_2 = arith.constant 0 : index
    %2 = vector.load %arg2[%c0_1, %c0_2] : memref<16x64xbf16, #tpu.memory_space<vmem>>, vector<16x64xbf16>
    %3 = arith.extf %2 : vector<16x64xbf16> to vector<16x64xf32>
    %4 = arith.addf %1, %3 : vector<16x64xf32>
    %c0_3 = arith.constant 0 : index
    %c0_4 = arith.constant 0 : index
    %5 = vector.load %arg3[%c0_3, %c0_4] : memref<1x64xf32, #tpu.memory_space<vmem>>, vector<1x64xf32>
    %c0_5 = arith.constant 0 : index
    %c0_6 = arith.constant 0 : index
    %6 = vector.load %arg4[%c0_5, %c0_6] : memref<1x64xf32, #tpu.memory_space<vmem>>, vector<1x64xf32>
    %cst = arith.constant dense<0.000000e+00> : vector<16xf32>
    %7 = vector.multi_reduction <add>, %4, %cst [1] : vector<16x64xf32> to vector<16xf32>
    %8 = vector.shape_cast %7 : vector<16xf32> to vector<16x1xf32>
    %cst_7 = arith.constant 6.400000e+01 : f32
    %9 = vector.broadcast %cst_7 : f32 to vector<16x1xf32>
    %10 = arith.divf %8, %9 : vector<16x1xf32>
    %11 = vector.broadcast %10 : vector<16x1xf32> to vector<16x64xf32>
    %12 = arith.subf %4, %11 : vector<16x64xf32>
    %13 = arith.mulf %12, %12 : vector<16x64xf32>
    %cst_8 = arith.constant dense<0.000000e+00> : vector<16xf32>
    %14 = vector.multi_reduction <add>, %13, %cst_8 [1] : vector<16x64xf32> to vector<16xf32>
    %15 = vector.shape_cast %14 : vector<16xf32> to vector<16x1xf32>
    %cst_9 = arith.constant 6.400000e+01 : f32
    %16 = vector.broadcast %cst_9 : f32 to vector<16x1xf32>
    %17 = arith.divf %15, %16 : vector<16x1xf32>
    %18 = vector.broadcast %10 : vector<16x1xf32> to vector<16x64xf32>
    %19 = arith.subf %4, %18 : vector<16x64xf32>
    %cst_10 = arith.constant 9.99999974E-6 : f32
    %20 = vector.broadcast %cst_10 : f32 to vector<16x1xf32>
    %21 = arith.addf %17, %20 : vector<16x1xf32>
    %22 = math.rsqrt %21 : vector<16x1xf32>
    %23 = vector.broadcast %22 : vector<16x1xf32> to vector<16x64xf32>
    %24 = arith.mulf %19, %23 : vector<16x64xf32>
    %25 = vector.broadcast %5 : vector<1x64xf32> to vector<16x64xf32>
    %26 = arith.mulf %24, %25 : vector<16x64xf32>
    %27 = vector.broadcast %6 : vector<1x64xf32> to vector<16x64xf32>
    %28 = arith.addf %26, %27 : vector<16x64xf32>
    %c0_11 = arith.constant 0 : index
    %c0_12 = arith.constant 0 : index
    %29 = vector.load %arg5[%c0_11, %c0_12] : memref<64x256xbf16, #tpu.memory_space<vmem>>, vector<64x256xbf16>
    %30 = arith.truncf %28 : vector<16x64xf32> to vector<16x64xbf16>
    %cst_13 = arith.constant dense<0.000000e+00> : vector<16x256xf32>
    %31 = tpu.matmul %30, %29, %cst_13 {dimension_numbers = #tpu.dot_dimension_numbers<[1], [0], [0], [1], [0, 0, 1, 1], [], []>} : vector<16x64xbf16>, vector<64x256xbf16>, vector<16x256xf32> -> vector<16x256xf32>
    %c0_14 = arith.constant 0 : index
    %c0_15 = arith.constant 0 : index
    %32 = vector.load %arg6[%c0_14, %c0_15] : memref<1x256xf32, #tpu.memory_space<vmem>>, vector<1x256xf32>
    %33 = vector.broadcast %32 : vector<1x256xf32> to vector<16x256xf32>
    %34 = arith.addf %31, %33 : vector<16x256xf32>
    %cst_16 = arith.constant 5.000000e-01 : f32
    %35 = vector.broadcast %cst_16 : f32 to vector<16x256xf32>
    %36 = arith.mulf %35, %34 : vector<16x256xf32>
    %cst_17 = arith.constant 0.707106769 : f32
    %37 = vector.broadcast %cst_17 : f32 to vector<16x256xf32>
    %38 = arith.mulf %34, %37 : vector<16x256xf32>
    %39 = math.absf %38 : vector<16x256xf32>
    %cst_18 = arith.constant 0.327591091 : f32
    %40 = vector.broadcast %cst_18 : f32 to vector<16x256xf32>
    %41 = arith.mulf %40, %39 : vector<16x256xf32>
    %cst_19 = arith.constant 1.000000e+00 : f32
    %42 = vector.broadcast %cst_19 : f32 to vector<16x256xf32>
    %43 = arith.addf %42, %41 : vector<16x256xf32>
    %cst_20 = arith.constant 1.000000e+00 : f32
    %44 = vector.broadcast %cst_20 : f32 to vector<16x256xf32>
    %45 = arith.divf %44, %43 : vector<16x256xf32>
    %cst_21 = arith.constant 1.06140542 : f32
    %46 = vector.broadcast %cst_21 : f32 to vector<16x256xf32>
    %47 = arith.mulf %46, %45 : vector<16x256xf32>
    %cst_22 = arith.constant 1.45315206 : f32
    %48 = vector.broadcast %cst_22 : f32 to vector<16x256xf32>
    %49 = arith.subf %47, %48 : vector<16x256xf32>
    %50 = arith.mulf %49, %45 : vector<16x256xf32>
    %cst_23 = arith.constant 1.42141378 : f32
    %51 = vector.broadcast %cst_23 : f32 to vector<16x256xf32>
    %52 = arith.addf %50, %51 : vector<16x256xf32>
    %53 = arith.mulf %52, %45 : vector<16x256xf32>
    %cst_24 = arith.constant 0.284496725 : f32
    %54 = vector.broadcast %cst_24 : f32 to vector<16x256xf32>
    %55 = arith.subf %53, %54 : vector<16x256xf32>
    %56 = arith.mulf %55, %45 : vector<16x256xf32>
    %cst_25 = arith.constant 0.254829586 : f32
    %57 = vector.broadcast %cst_25 : f32 to vector<16x256xf32>
    %58 = arith.addf %56, %57 : vector<16x256xf32>
    %59 = arith.mulf %58, %45 : vector<16x256xf32>
    %cst_26 = arith.constant 0.000000e+00 : f32
    %60 = vector.broadcast %cst_26 : f32 to vector<16x256xf32>
    %61 = arith.subf %60, %39 : vector<16x256xf32>
    %62 = arith.mulf %61, %39 : vector<16x256xf32>
    %63 = math.exp %62 : vector<16x256xf32>
    %64 = arith.mulf %59, %63 : vector<16x256xf32>
    %cst_27 = arith.constant 1.000000e+00 : f32
    %65 = vector.broadcast %cst_27 : f32 to vector<16x256xf32>
    %66 = arith.subf %65, %64 : vector<16x256xf32>
    %cst_28 = arith.constant 0.000000e+00 : f32
    %67 = vector.broadcast %cst_28 : f32 to vector<16x256xf32>
    %68 = arith.cmpf oge, %38, %67 : vector<16x256xf32>
    %cst_29 = arith.constant 0.000000e+00 : f32
    %69 = vector.broadcast %cst_29 : f32 to vector<16x256xf32>
    %70 = arith.subf %69, %66 : vector<16x256xf32>
    %71 = arith.select %68, %66, %70 : vector<16x256xi1>, vector<16x256xf32>
    %cst_30 = arith.constant 1.000000e+00 : f32
    %72 = vector.broadcast %cst_30 : f32 to vector<16x256xf32>
    %73 = arith.addf %72, %71 : vector<16x256xf32>
    %74 = arith.mulf %36, %73 : vector<16x256xf32>
    %c0_31 = arith.constant 0 : index
    %c0_32 = arith.constant 0 : index
    %75 = vector.load %arg7[%c0_31, %c0_32] : memref<256x64xbf16, #tpu.memory_space<vmem>>, vector<256x64xbf16>
    %76 = arith.truncf %74 : vector<16x256xf32> to vector<16x256xbf16>
    %cst_33 = arith.constant dense<0.000000e+00> : vector<16x64xf32>
    %77 = tpu.matmul %76, %75, %cst_33 {dimension_numbers = #tpu.dot_dimension_numbers<[1], [0], [0], [1], [0, 0, 1, 1], [], []>} : vector<16x256xbf16>, vector<256x64xbf16>, vector<16x64xf32> -> vector<16x64xf32>
    %c0_34 = arith.constant 0 : index
    %c0_35 = arith.constant 0 : index
    %78 = vector.load %arg8[%c0_34, %c0_35] : memref<1x64xf32, #tpu.memory_space<vmem>>, vector<1x64xf32>
    %79 = vector.broadcast %78 : vector<1x64xf32> to vector<16x64xf32>
    %80 = arith.addf %77, %79 : vector<16x64xf32>
    %81 = arith.addf %80, %4 : vector<16x64xf32>
    %82 = arith.truncf %81 : vector<16x64xf32> to vector<16x64xbf16>
    %c0_36 = arith.constant 0 : index
    %c0_37 = arith.constant 0 : index
    %83 = vector.load %arg9[%c0_36, %c0_37] : memref<16x64xbf16, #tpu.memory_space<vmem>>, vector<16x64xbf16>
    tpu.vector_store %arg9[%c0_36, %c0_37], %82 {strides = array<i32>} : memref<16x64xbf16, #tpu.memory_space<vmem>>, vector<16x64xbf16>,
    return
  }
  func.func @transform_0(%arg0: i32) -> (i32, i32) {
    %c0_i32 = arith.constant 0 : i32
    %c0_i32_0 = arith.constant 0 : i32
    return %arg0, %c0_i32 : i32, i32
  }
  func.func @transform_1(%arg0: i32) -> (i32, i32) {
    %c0_i32 = arith.constant 0 : i32
    %c0_i32_0 = arith.constant 0 : i32
    return %arg0, %c0_i32 : i32, i32
  }
  func.func @transform_2(%arg0: i32) -> (i32, i32) {
    %c0_i32 = arith.constant 0 : i32
    %c0_i32_0 = arith.constant 0 : i32
    %c0_i32_1 = arith.constant 0 : i32
    return %c0_i32, %c0_i32_0 : i32, i32
  }
  func.func @transform_3(%arg0: i32) -> (i32, i32) {
    %c0_i32 = arith.constant 0 : i32
    %c0_i32_0 = arith.constant 0 : i32
    %c0_i32_1 = arith.constant 0 : i32
    return %c0_i32, %c0_i32_0 : i32, i32
  }
  func.func @transform_4(%arg0: i32) -> (i32, i32) {
    %c0_i32 = arith.constant 0 : i32
    %c0_i32_0 = arith.constant 0 : i32
    %c0_i32_1 = arith.constant 0 : i32
    return %c0_i32, %c0_i32_0 : i32, i32
  }
  func.func @transform_5(%arg0: i32) -> (i32, i32) {
    %c0_i32 = arith.constant 0 : i32
    %c0_i32_0 = arith.constant 0 : i32
    %c0_i32_1 = arith.constant 0 : i32
    return %c0_i32, %c0_i32_0 : i32, i32
  }
  func.func @transform_6(%arg0: i32) -> (i32, i32) {
    %c0_i32 = arith.constant 0 : i32
    %c0_i32_0 = arith.constant 0 : i32
    %c0_i32_1 = arith.constant 0 : i32
    return %c0_i32, %c0_i32_0 : i32, i32
  }
  func.func @transform_7(%arg0: i32) -> (i32, i32) {
    %c0_i32 = arith.constant 0 : i32
    %c0_i32_0 = arith.constant 0 : i32
    %c0_i32_1 = arith.constant 0 : i32
    return %c0_i32, %c0_i32_0 : i32, i32
  }
  func.func @transform_8(%arg0: i32) -> (i32, i32) {
    %c0_i32 = arith.constant 0 : i32
    %c0_i32_0 = arith.constant 0 : i32
    return %arg0, %c0_i32 : i32, i32
  }
}

</mosaic_0001>

<llo_original>
// kernel: swin_forward.10
$region0: #{swin_forward.10}
  #allocation0 [shape = 'u32[]', space=smem, size = 0x4, offset = 0x4, fixed_abs, tag = 'smem constant byte address 0x4 - core index']
  #allocation1 [shape = 'u32[72,128]{1,0:T(1,128)}', space=vmem, size = 0x9000, scoped, tag = 'internal scratch']
  %s0 = inlined_call_operand.vmem [shape: f32[128,48], index: 0, kind: input, shape index: {}]
  %s1 = inlined_call_operand.vmem [shape: bf16[48,32], index: 1, kind: input, shape index: {}]
  %s2 = inlined_call_operand.vmem [shape: f32[1,32], index: 2, kind: input, shape index: {}]
  %s3 = inlined_call_operand.vmem [shape: f32[1,32], index: 3, kind: input, shape index: {}]
  %s4 = inlined_call_operand.vmem [shape: f32[1,32], index: 4, kind: input, shape index: {}]
  %s5 = inlined_call_operand.vmem [shape: bf16[128,32], index: 5, kind: output, shape index: {}]
  %s6 = sld [smem:[#allocation0]]
  $region53: #{swin_forward.10} parent=0
    _
  %s8 = ssub.s32 1, %s6
  %s9 = scalar_select 0, %s8, %s6
  loop: start=0, step=1, limit=4
  $region2: #{swin_forward.10} parent=0 // loop_pre_header
    _
  $region3: #{swin_forward.10} parent=0 // loop_header
    %s11 = sphi 0, %s15
    %p12 = scmp.ge.s32.totalorder %s11, 4
    %s21 = sphi 0, %s23
    %s24 = sphi 0, %s21
    %s25 = sphi 0, %s24
    %s41 = sphi 0, %s25
    %s45 = sphi 0, %s45
    %s47 = sphi 0, %s45
    %s48 = sphi 0, %s47
    %s62 = sphi 0, %s48
    %s66 = sphi 0, %s66
    %s68 = sphi 0, %s66
    %s69 = sphi 0, %s68
    %s83 = sphi 0, %s69
    %s87 = sphi 0, %s87
    %s89 = sphi 0, %s87
    %s90 = sphi 0, %s89
    %s104 = sphi 0, %s90
    %s108 = sphi 0, %s108
    %s110 = sphi 0, %s108
    %s111 = sphi 0, %s110
    %s125 = sphi 0, %s111
    %s131 = sphi 0, %s133
    %s134 = sphi 0, %s131
    %s135 = sphi 0, %s134
    %s151 = sphi 0, %s135
  $region4: #{swin_forward.10} parent=0 // loop_header_branch
    %14 = sbr.rel (%p12) target = $region8
  $region5: #{swin_forward.10} parent=0 // loop_body
    %s16 = ssub.s32 %s11, 1
    %s17 = ssub.s32 %s11, 2
    %s18 = sadd.s32 %s11, 1
    %s19 = ssub.s32 %s11, %s18
    %p20 = scmp.eq.s32.totalorder %s19, 0
    %s22 = sadd.s32 %s21, 1
    %s23 = scalar_select %p20, %s21, %s22
    %p26 = pneg %p20
    %p27 = scmp.eq.s32.totalorder %s11, 1
    %p28 = por %p26, %p27
    %p29 = scmp.ne.s32.totalorder %s21, %s24
    %p30 = scmp.eq.s32.totalorder %s11, 0
    %p31 = por %p29, %p30
    %p32 = scmp.ne.s32.totalorder %s21, %s24
    %p33 = scmp.eq.s32.totalorder %s16, 1
    %p34 = por %p32, %p33
    %p35 = scmp.ne.s32.totalorder %s24, %s25
    %p36 = scmp.eq.s32.totalorder %s16, 0
    %p37 = por %p35, %p36
    %p38 = scmp.ne.s32.totalorder %s24, %s25
    %p39 = scmp.eq.s32.totalorder %s17, 1
    %p40 = por %p38, %p39
    %p42 = scmp.ne.s32.totalorder %s25, %s41
    %p43 = scmp.eq.s32.totalorder %s17, 0
    %p44 = por %p42, %p43
    %s46 = sadd.s32 %s45, 1
    %p49 = scmp.eq.s32.totalorder %s11, 1
    %p50 = scmp.ne.s32.totalorder %s45, %s47
    %p51 = scmp.eq.s32.totalorder %s11, 0
    %p52 = por %p50, %p51
    %p53 = scmp.ne.s32.totalorder %s45, %s47
    %p54 = scmp.eq.s32.totalorder %s16, 1
    %p55 = por %p53, %p54
    %p56 = scmp.ne.s32.totalorder %s47, %s48
    %p57 = scmp.eq.s32.totalorder %s16, 0
    %p58 = por %p56, %p57
    %p59 = scmp.ne.s32.totalorder %s47, %s48
    %p60 = scmp.eq.s32.totalorder %s17, 1
    %p61 = por %p59, %p60
    %p63 = scmp.ne.s32.totalorder %s48, %s62
    %p64 = scmp.eq.s32.totalorder %s17, 0
    %p65 = por %p63, %p64
    %s67 = sadd.s32 %s66, 1
    %p70 = scmp.eq.s32.totalorder %s11, 1
    %p71 = scmp.ne.s32.totalorder %s66, %s68
    %p72 = scmp.eq.s32.totalorder %s11, 0
    %p73 = por %p71, %p72
    %p74 = scmp.ne.s32.totalorder %s66, %s68
    %p75 = scmp.eq.s32.totalorder %s16, 1
    %p76 = por %p74, %p75
    %p77 = scmp.ne.s32.totalorder %s68, %s69
    %p78 = scmp.eq.s32.totalorder %s16, 0
    %p79 = por %p77, %p78
    %p80 = scmp.ne.s32.totalorder %s68, %s69
    %p81 = scmp.eq.s32.totalorder %s17, 1
    %p82 = por %p80, %p81
    %p84 = scmp.ne.s32.totalorder %s69, %s83
    %p85 = scmp.eq.s32.totalorder %s17, 0
    %p86 = por %p84, %p85
    %s88 = sadd.s32 %s87, 1
    %p91 = scmp.eq.s32.totalorder %s11, 1
    %p92 = scmp.ne.s32.totalorder %s87, %s89
    %p93 = scmp.eq.s32.totalorder %s11, 0
    %p94 = por %p92, %p93
    %p95 = scmp.ne.s32.totalorder %s87, %s89
    %p96 = scmp.eq.s32.totalorder %s16, 1
    %p97 = por %p95, %p96
    %p98 = scmp.ne.s32.totalorder %s89, %s90
    %p99 = scmp.eq.s32.totalorder %s16, 0
    %p100 = por %p98, %p99
    %p101 = scmp.ne.s32.totalorder %s89, %s90
    %p102 = scmp.eq.s32.totalorder %s17, 1
    %p103 = por %p101, %p102
    %p105 = scmp.ne.s32.totalorder %s90, %s104
    %p106 = scmp.eq.s32.totalorder %s17, 0
    %p107 = por %p105, %p106
    %s109 = sadd.s32 %s108, 1
    %p112 = scmp.eq.s32.totalorder %s11, 1
    %p113 = scmp.ne.s32.totalorder %s108, %s110
    %p114 = scmp.eq.s32.totalorder %s11, 0
    %p115 = por %p113, %p114
    %p116 = scmp.ne.s32.totalorder %s108, %s110
    %p117 = scmp.eq.s32.totalorder %s16, 1
    %p118 = por %p116, %p117
    %p119 = scmp.ne.s32.totalorder %s110, %s111
    %p120 = scmp.eq.s32.totalorder %s16, 0
    %p121 = por %p119, %p120
    %p122 = scmp.ne.s32.totalorder %s110, %s111
    %p123 = scmp.eq.s32.totalorder %s17, 1
    %p124 = por %p122, %p123
    %p126 = scmp.ne.s32.totalorder %s111, %s125
    %p127 = scmp.eq.s32.totalorder %s17, 0
    %p128 = por %p126, %p127
    %s129 = ssub.s32 %s11, %s18
    %p130 = scmp.eq.s32.totalorder %s129, 0
    %s132 = sadd.s32 %s131, 1
    %s133 = scalar_select %p130, %s131, %s132
    %p136 = pneg %p130
    %p137 = scmp.eq.s32.totalorder %s11, 1
    %p138 = por %p136, %p137
    %p139 = scmp.ne.s32.totalorder %s131, %s134
    %p140 = scmp.eq.s32.totalorder %s11, 0
    %p141 = por %p139, %p140
    %p142 = scmp.ne.s32.totalorder %s131, %s134
    %p143 = scmp.eq.s32.totalorder %s16, 1
    %p144 = por %p142, %p143
    %p145 = scmp.ne.s32.totalorder %s134, %s135
    %p146 = scmp.eq.s32.totalorder %s16, 0
    %p147 = por %p145, %p146
    %p148 = scmp.ne.s32.totalorder %s134, %s135
    %p149 = scmp.eq.s32.totalorder %s17, 1
    %p150 = por %p148, %p149
    %p152 = scmp.ne.s32.totalorder %s135, %s151
    %p153 = scmp.eq.s32.totalorder %s17, 0
    %p154 = por %p152, %p153
    %p155 = scmp.le.s32.totalorder 1, %s11
    %p156 = scmp.lt.s32.totalorder %s11, 3
    %p157 = pnand %p155, %p156
    %p158 = pneg %p157
    // Predicated region
    $region9: #{swin_forward.10} parent=5 // pred_check
      _
    $region10: #{swin_forward.10} parent=5 // pred_check_branch
      %160 = sbr.rel (%p157) target = $region12
    $region11: #{swin_forward.10} parent=5 // pred_region
      %s161 = ssub.s32 %s11, 1
      // Predicated region
      $region13: #{swin_forward.10} parent=11 // pred_check
        %p162 = pneg %p58
      $region14: #{swin_forward.10} parent=11 // pred_check_branch
        %164 = sbr.rel (%p162) target = $region16
      $region15: #{swin_forward.10} parent=11 // pred_region
        _
      $region16: #{swin_forward.10} parent=11 // pred_fallthru
        _
      // Predicated region
      $region17: #{swin_forward.10} parent=11 // pred_check
        %p165 = pneg %p79
      $region18: #{swin_forward.10} parent=11 // pred_check_branch
        %167 = sbr.rel (%p165) target = $region20
      $region19: #{swin_forward.10} parent=11 // pred_region
        _
      $region20: #{swin_forward.10} parent=11 // pred_fallthru
        _
      // Predicated region
      $region21: #{swin_forward.10} parent=11 // pred_check
        %p168 = pneg %p100
      $region22: #{swin_forward.10} parent=11 // pred_check_branch
        %170 = sbr.rel (%p168) target = $region24
      $region23: #{swin_forward.10} parent=11 // pred_region
        _
      $region24: #{swin_forward.10} parent=11 // pred_fallthru
        _
      // Predicated region
      $region25: #{swin_forward.10} parent=11 // pred_check
        %p171 = pneg %p121
      $region26: #{swin_forward.10} parent=11 // pred_check_branch
        %173 = sbr.rel (%p171) target = $region28
      $region27: #{swin_forward.10} parent=11 // pred_region
        _
      $region28: #{swin_forward.10} parent=11 // pred_fallthru
        _
    $region12: #{swin_forward.10} parent=5 // pred_fallthru
      _
    %p174 = scmp.lt.s32.totalorder %s11, 2
    // Predicated region
    $region29: #{swin_forward.10} parent=5 // pred_check
      %p175 = pneg %p174
    $region30: #{swin_forward.10} parent=5 // pred_check_branch
      %177 = sbr.rel (%p175) target = $region32
    $region31: #{swin_forward.10} parent=5 // pred_region
      // Predicated region
      $region33: #{swin_forward.10} parent=31 // pred_check
        %p178 = pneg %p31
      $region34: #{swin_forward.10} parent=31 // pred_check_branch
        %180 = sbr.rel (%p178) target = $region36
      $region35: #{swin_forward.10} parent=31 // pred_region
        %s181 = smul.u32 8, %s11
        %p182 = scmp.lt.s32.totalorder %s181, 15
        %s183 = scalar_select %p182, %s181, 15
        %s184 = smul.addr %s183, 8
        %s185 = scalar_lea.vmem %s0, %s184
        %s186 = smul.u32 8, %s11
      $region36: #{swin_forward.10} parent=31 // pred_fallthru
        _
    $region32: #{swin_forward.10} parent=5 // pred_fallthru
      _
    %p187 = scmp.le.s32.totalorder 1, %s11
    %p188 = scmp.lt.s32.totalorder %s11, 3
    %p189 = pnand %p187, %p188
    %p190 = pneg %p189
    // Predicated region
    $region37: #{swin_forward.10} parent=5 // pred_check
      _
    $region38: #{swin_forward.10} parent=5 // pred_check_branch
      %192 = sbr.rel (%p189) target = $region40
    $region39: #{swin_forward.10} parent=5 // pred_region
      %s193 = ssub.s32 %s11, 1
      %s194 = smul.u32 8, %s16
      %p195 = scmp.lt.s32.totalorder %s194, 15
      %s196 = scalar_select %p195, %s194, 15
      %s197 = smul.addr %s196, 8
      %s198 = scalar_lea.vmem %s0, %s197
      %p199 = pneg %p37
      %p200 = pneg %p34
      %p201 = pneg %p58
      %p202 = pneg %p55
      %p203 = pneg %p79
      %p204 = pneg %p76
      %p205 = pneg %p100
      %p206 = pneg %p97
      %p207 = pneg %p121
      %p208 = pneg %p118
      %p209 = pneg %p147
      %p210 = pneg %p144
      %s211 = smul.u32 8, %s16
      %p212 = scmp.lt.s32.totalorder %s211, 15
      %s213 = scalar_select %p212, %s211, 15
      %s214 = smul.addr %s213, 4
      %s215 = scalar_lea.vmem %s5, %s214
      %s216 = smul.u32 8, %s16
      %p217 = scmp.lt.s32.totalorder %s216, 15
      %s218 = scalar_select %p217, %s216, 15
      %s219 = smul.addr %s218, 8
      %s220 = scalar_lea.vmem %s0, %s219
      %s221 = smul.u32 8, %s16
      %s222 = smul.u32 8, %s16
      %p223 = scmp.lt.s32.totalorder %s222, 15
      %s224 = scalar_select %p223, %s222, 15
      %s225 = smul.addr %s224, 4
      %s226 = scalar_lea.vmem %s5, %s225
      %s227 = smul.u32 8, %s16
      %v229 = vld [vmem:[%s220] sm:$0xff]
      %v230 = vld [vmem:[%s220 + $0x8] sm:$0xff]
      %v231 = vld [vmem:[%s220 + $0x10] sm:$0xff]
      %v232 = vld [vmem:[%s220 + $0x18] sm:$0xff]
      %v233 = vld [vmem:[%s220 + $0x20] sm:$0xff]
      %v234 = vld [vmem:[%s220 + $0x28] sm:$0xff]
      %v235 = vld [vmem:[%s220 + $0x30] sm:$0xff]
      %v236 = vld [vmem:[%s220 + $0x38] sm:$0xff]
      %v237 = vld [vmem:[%s1] sm:$0xf]
      %v238 = vld [vmem:[%s1 + $0x4] sm:$0xf]
      %v239 = vld [vmem:[%s1 + $0x8] sm:$0xf]
      %v240 = vld [vmem:[%s1 + $0xc] sm:$0xf]
      %v241 = vld [vmem:[%s1 + $0x10] sm:$0xf]
      %v242 = vld [vmem:[%s1 + $0x14] sm:$0xf]
      %v243 = vpack.c.bf16 %v230, %v229
      %v244 = vpack.c.bf16 %v232, %v231
      %v245 = vpack.c.bf16 %v234, %v233
      %v246 = vpack.c.bf16 %v236, %v235
      %v247 = vld [vmem:[%s2] sm:$0x1]
      %v249 = vperm.slane %v247, 0
      %v257 = vunpack.c.l.b16 %v237
      %v258 = vunpack.c.l.b16 %v238
      %v259 = vunpack.c.l.b16 %v239
      %v260 = vunpack.c.l.b16 %v240
      %v261 = vunpack.c.l.b16 %v241
      %v262 = vunpack.c.l.b16 %v242
      %v263 = vpack.c.b16 %v258, %v257
      %v264 = vpack.c.b16 %v260, %v259
      %v265 = vpack.c.b16 %v262, %v261
      %vm269 = vcmask 392192
      %v271 = vsel %vm269, %v243, 0
      %v274 = vsel %vm269, %v244, 0
      %v277 = vsel %vm269, %v245, 0
      %v280 = vsel %vm269, %v246, 0
      %282 = vmatpush.bf16.msra.mxu0 0
      %283 = vmatpush.bf16.msra.mxu0 0
      %284 = vmatpush.bf16.msra.mxu0 0
      %285 = vmatpush.bf16.msra.mxu0 0
      %286 = vmatpush.bf16.msra.mxu0 0
      %287 = vmatpush.bf16.msra.mxu0 %v265
      %288 = vmatpush.bf16.msra.mxu0 %v264
      %289 = vmatpush.bf16.msra.mxu0 %v263
      %290 = vmatmul.bf16.gmra.mxu0 %v271
      %v291 = vpop.f32.mrf.mxu0
      %v292 = vadd.f32 %v249, %v291
      %v293 = vpop.f32.mrf.mxu0
      %v294 = vadd.f32 %v249, %v293
      %295 = vmatmul.bf16.gmra.mxu0 %v274
      %v296 = vpop.f32.mrf.mxu0
      %v297 = vadd.f32 %v249, %v296
      %v298 = vpop.f32.mrf.mxu0
      %v299 = vadd.f32 %v249, %v298
      %300 = vmatmul.bf16.gmra.mxu0 %v277
      %v301 = vpop.f32.mrf.mxu0
      %v302 = vadd.f32 %v249, %v301
      %v303 = vpop.f32.mrf.mxu0
      %v304 = vadd.f32 %v249, %v303
      %305 = vmatmul.bf16.gmra.mxu0 %v280
      %v306 = vpop.f32.mrf.mxu0
      %v307 = vadd.f32 %v249, %v306
      %v308 = vpop.f32.mrf.mxu0
      %v309 = vadd.f32 %v249, %v308
      %310 = vdwg.mxu0
      %v311 = vld [vmem:[%s3] sm:$0x1]
      %v312 = vld [vmem:[%s4] sm:$0x1]
      %vm313 = vcmask 261120
      %v314 = vsel %vm313, %v292, 0.0
      %315 = vadd.xlane.f32.xlu0 %v314
      %v316 = vpop.xlane.xlu0 %315
      %v317 = vsel %vm313, %v294, 0.0
      %318 = vadd.xlane.f32.xlu0 %v317
      %v319 = vpop.xlane.xlu0 %318
      %v320 = vsel %vm313, %v297, 0.0
      %321 = vadd.xlane.f32.xlu0 %v320
      %v322 = vpop.xlane.xlu0 %321
      %v323 = vsel %vm313, %v299, 0.0
      %324 = vadd.xlane.f32.xlu0 %v323
      %v325 = vpop.xlane.xlu0 %324
      %v326 = vsel %vm313, %v302, 0.0
      %327 = vadd.xlane.f32.xlu0 %v326
      %v328 = vpop.xlane.xlu0 %327
      %v329 = vsel %vm313, %v304, 0.0
      %330 = vadd.xlane.f32.xlu0 %v329
      %v331 = vpop.xlane.xlu0 %330
      %v332 = vsel %vm313, %v307, 0.0
      %333 = vadd.xlane.f32.xlu0 %v332
      %v334 = vpop.xlane.xlu0 %333
      %v335 = vsel %vm313, %v309, 0.0
      %336 = vadd.xlane.f32.xlu0 %v335
      %v337 = vpop.xlane.xlu0 %336
      %v338 = vrcp.pop 32.0
      %v339 = vmul.f32 32.0, %v338
      %v340 = vsub.f32 1.0, %v339
      %v341 = vmul.f32 %v338, %v340
      %v342 = vadd.f32 %v338, %v341
      %vm343 = vweird.f32 %v338
      %v344 = vsel %vm343, %v338, %v342
      %v345 = vmul.f32 %v316, %v344
      %v346 = vmul.f32 %v319, %v344
      %v347 = vmul.f32 %v322, %v344
      %v348 = vmul.f32 %v325, %v344
      %v349 = vmul.f32 %v328, %v344
      %v350 = vmul.f32 %v331, %v344
      %v351 = vmul.f32 %v334, %v344
      %v352 = vmul.f32 %v337, %v344
      %v353 = vsub.f32 %v292, %v345
      %v354 = vsub.f32 %v294, %v346
      %v355 = vsub.f32 %v297, %v347
      %v356 = vsub.f32 %v299, %v348
      %v357 = vsub.f32 %v302, %v349
      %v358 = vsub.f32 %v304, %v350
      %v359 = vsub.f32 %v307, %v351
      %v360 = vsub.f32 %v309, %v352
      %v361 = vmul.f32 %v353, %v353
      %v362 = vmul.f32 %v354, %v354
      %v363 = vmul.f32 %v355, %v355
      %v364 = vmul.f32 %v356, %v356
      %v365 = vmul.f32 %v357, %v357
      %v366 = vmul.f32 %v358, %v358
      %v367 = vmul.f32 %v359, %v359
      %v368 = vmul.f32 %v360, %v360
      %v369 = vsel %vm313, %v361, 0.0
      %370 = vadd.xlane.f32.xlu0 %v369
      %v371 = vpop.xlane.xlu0 %370
      %v372 = vsel %vm313, %v362, 0.0
      %373 = vadd.xlane.f32.xlu0 %v372
      %v374 = vpop.xlane.xlu0 %373
      %v375 = vsel %vm313, %v363, 0.0
      %376 = vadd.xlane.f32.xlu0 %v375
      %v377 = vpop.xlane.xlu0 %376
      %v378 = vsel %vm313, %v364, 0.0
      %379 = vadd.xlane.f32.xlu0 %v378
      %v380 = vpop.xlane.xlu0 %379
      %v381 = vsel %vm313, %v365, 0.0
      %382 = vadd.xlane.f32.xlu0 %v381
      %v383 = vpop.xlane.xlu0 %382
      %v384 = vsel %vm313, %v366, 0.0
      %385 = vadd.xlane.f32.xlu0 %v384
      %v386 = vpop.xlane.xlu0 %385
      %v387 = vsel %vm313, %v367, 0.0
      %388 = vadd.xlane.f32.xlu0 %v387
      %v389 = vpop.xlane.xlu0 %388
      %v390 = vsel %vm313, %v368, 0.0
      %391 = vadd.xlane.f32.xlu0 %v390
      %v392 = vpop.xlane.xlu0 %391
      %v393 = vmul.f32 %v371, %v344
      %v394 = vmul.f32 %v374, %v344
      %v395 = vmul.f32 %v377, %v344
      %v396 = vmul.f32 %v380, %v344
      %v397 = vmul.f32 %v383, %v344
      %v398 = vmul.f32 %v386, %v344
      %v399 = vmul.f32 %v389, %v344
      %v400 = vmul.f32 %v392, %v344
      %v401 = vadd.f32 %v393, 1e-05
      %v402 = vadd.f32 %v394, 1e-05
      %v403 = vadd.f32 %v395, 1e-05
      %v404 = vadd.f32 %v396, 1e-05
      %v405 = vadd.f32 %v397, 1e-05
      %v406 = vadd.f32 %v398, 1e-05
      %v407 = vadd.f32 %v399, 1e-05
      %v408 = vadd.f32 %v400, 1e-05
      %v409 = vrsqrt.pop %v401
      %v410 = vmul.f32 %v409, %v401
      %v411 = vmul.f32 %v410, %v409
      %v412 = vmul.f32 0.5, %v411
      %v413 = vsub.f32 1.5, %v412
      %v414 = vmul.f32 %v409, %v413
      %vm415 = vweird.f32 %v401
      %vm416 = vweird.f32 %v409
      %vm417 = vmor %vm415, %vm416
      %v418 = vsel %vm417, %v409, %v414
      %v419 = vrsqrt.pop %v402
      %v420 = vmul.f32 %v419, %v402
      %v421 = vmul.f32 %v420, %v419
      %v422 = vmul.f32 0.5, %v421
      %v423 = vsub.f32 1.5, %v422
      %v424 = vmul.f32 %v419, %v423
      %vm425 = vweird.f32 %v402
      %vm426 = vweird.f32 %v419
      %vm427 = vmor %vm425, %vm426
      %v428 = vsel %vm427, %v419, %v424
      %v429 = vrsqrt.pop %v403
      %v430 = vmul.f32 %v429, %v403
      %v431 = vmul.f32 %v430, %v429
      %v432 = vmul.f32 0.5, %v431
      %v433 = vsub.f32 1.5, %v432
      %v434 = vmul.f32 %v429, %v433
      %vm435 = vweird.f32 %v403
      %vm436 = vweird.f32 %v429
      %vm437 = vmor %vm435, %vm436
      %v438 = vsel %vm437, %v429, %v434
      %v439 = vrsqrt.pop %v404
      %v440 = vmul.f32 %v439, %v404
      %v441 = vmul.f32 %v440, %v439
      %v442 = vmul.f32 0.5, %v441
      %v443 = vsub.f32 1.5, %v442
      %v444 = vmul.f32 %v439, %v443
      %vm445 = vweird.f32 %v404
      %vm446 = vweird.f32 %v439
      %vm447 = vmor %vm445, %vm446
      %v448 = vsel %vm447, %v439, %v444
      %v449 = vrsqrt.pop %v405
      %v450 = vmul.f32 %v449, %v405
      %v451 = vmul.f32 %v450, %v449
      %v452 = vmul.f32 0.5, %v451
      %v453 = vsub.f32 1.5, %v452
      %v454 = vmul.f32 %v449, %v453
      %vm455 = vweird.f32 %v405
      %vm456 = vweird.f32 %v449
      %vm457 = vmor %vm455, %vm456
      %v458 = vsel %vm457, %v449, %v454
      %v459 = vrsqrt.pop %v406
      %v460 = vmul.f32 %v459, %v406
      %v461 = vmul.f32 %v460, %v459
      %v462 = vmul.f32 0.5, %v461
      %v463 = vsub.f32 1.5, %v462
      %v464 = vmul.f32 %v459, %v463
      %vm465 = vweird.f32 %v406
      %vm466 = vweird.f32 %v459
      %vm467 = vmor %vm465, %vm466
      %v468 = vsel %vm467, %v459, %v464
      %v469 = vrsqrt.pop %v407
      %v470 = vmul.f32 %v469, %v407
      %v471 = vmul.f32 %v470, %v469
      %v472 = vmul.f32 0.5, %v471
      %v473 = vsub.f32 1.5, %v472
      %v474 = vmul.f32 %v469, %v473
      %vm475 = vweird.f32 %v407
      %vm476 = vweird.f32 %v469
      %vm477 = vmor %vm475, %vm476
      %v478 = vsel %vm477, %v469, %v474
      %v479 = vrsqrt.pop %v408
      %v480 = vmul.f32 %v479, %v408
      %v481 = vmul.f32 %v480, %v479
      %v482 = vmul.f32 0.5, %v481
      %v483 = vsub.f32 1.5, %v482
      %v484 = vmul.f32 %v479, %v483
      %vm485 = vweird.f32 %v408
      %vm486 = vweird.f32 %v479
      %vm487 = vmor %vm485, %vm486
      %v488 = vsel %vm487, %v479, %v484
      %v489 = vmul.f32 %v353, %v418
      %v490 = vmul.f32 %v354, %v428
      %v491 = vmul.f32 %v355, %v438
      %v492 = vmul.f32 %v356, %v448
      %v493 = vmul.f32 %v357, %v458
      %v494 = vmul.f32 %v358, %v468
      %v495 = vmul.f32 %v359, %v478
      %v496 = vmul.f32 %v360, %v488
      %v498 = vperm.slane %v311, 0
      %v500 = vmul.f32 %v489, %v498
      %v501 = vmul.f32 %v490, %v498
      %v502 = vmul.f32 %v491, %v498
      %v503 = vmul.f32 %v492, %v498
      %v504 = vmul.f32 %v493, %v498
      %v505 = vmul.f32 %v494, %v498
      %v506 = vmul.f32 %v495, %v498
      %v507 = vmul.f32 %v496, %v498
      %v509 = vperm.slane %v312, 0
      %v511 = vadd.f32 %v500, %v509
      %v512 = vadd.f32 %v501, %v509
      %v513 = vadd.f32 %v502, %v509
      %v514 = vadd.f32 %v503, %v509
      %v515 = vadd.f32 %v504, %v509
      %v516 = vadd.f32 %v505, %v509
      %v517 = vadd.f32 %v506, %v509
      %v518 = vadd.f32 %v507, %v509
      %v519 = vpack.c.bf16 %v511, %v511
      %v520 = vpack.c.bf16 %v512, %v512
      %v521 = vpack.c.bf16 %v513, %v513
      %v522 = vpack.c.bf16 %v514, %v514
      %v523 = vpack.c.bf16 %v515, %v515
      %v524 = vpack.c.bf16 %v516, %v516
      %v525 = vpack.c.bf16 %v517, %v517
      %v526 = vpack.c.bf16 %v518, %v518
      %vm527 = vcmask 257024
      %528 = vst.msk [vmem:[%s226] sm:$0xf] %vm527, %v519
      %529 = vst.msk [vmem:[%s226 + $0x4] sm:$0xf] %vm527, %v520
      %530 = vst.msk [vmem:[%s226 + $0x8] sm:$0xf] %vm527, %v521
      %531 = vst.msk [vmem:[%s226 + $0xc] sm:$0xf] %vm527, %v522
      %532 = vst.msk [vmem:[%s226 + $0x10] sm:$0xf] %vm527, %v523
      %533 = vst.msk [vmem:[%s226 + $0x14] sm:$0xf] %vm527, %v524
      %534 = vst.msk [vmem:[%s226 + $0x18] sm:$0xf] %vm527, %v525
      %535 = vst.msk [vmem:[%s226 + $0x1c] sm:$0xf] %vm527, %v526
      %s536 = smul.u32 8, %s16
      %p537 = scmp.lt.s32.totalorder %s536, 15
      %s538 = scalar_select %p537, %s536, 15
      %s539 = smul.addr %s538, 4
      %s540 = scalar_lea.vmem %s5, %s539
      // Predicated region
      $region41: #{swin_forward.10} parent=39 // pred_check
        %p541 = pneg %p144
      $region42: #{swin_forward.10} parent=39 // pred_check_branch
        %543 = sbr.rel (%p541) target = $region44
      $region43: #{swin_forward.10} parent=39 // pred_region
        %s544 = smul.u32 8, %s16
      $region44: #{swin_forward.10} parent=39 // pred_fallthru
        _
    $region40: #{swin_forward.10} parent=5 // pred_fallthru
      _
    %p545 = scmp.le.s32.totalorder 2, %s11
    // Predicated region
    $region45: #{swin_forward.10} parent=5 // pred_check
      %p546 = pneg %p545
    $region46: #{swin_forward.10} parent=5 // pred_check_branch
      %548 = sbr.rel (%p546) target = $region48
    $region47: #{swin_forward.10} parent=5 // pred_region
      %s549 = ssub.s32 %s11, 2
      // Predicated region
      $region49: #{swin_forward.10} parent=47 // pred_check
        %p550 = pneg %p150
      $region50: #{swin_forward.10} parent=47 // pred_check_branch
        %552 = sbr.rel (%p550) target = $region52
      $region51: #{swin_forward.10} parent=47 // pred_region
        %s553 = smul.u32 8, %s17
        %p554 = scmp.lt.s32.totalorder %s553, 15
        %s555 = scalar_select %p554, %s553, 15
        %s556 = smul.addr %s555, 4
        %s557 = scalar_lea.vmem %s5, %s556
      $region52: #{swin_forward.10} parent=47 // pred_fallthru
        _
    $region48: #{swin_forward.10} parent=5 // pred_fallthru
      _
  $region6: #{swin_forward.10} parent=0 // loop_footer
    %s15 = sadd.s32 1, %s11
  $region7: #{swin_forward.10} parent=0 // loop_footer_branch
    %10 = sbr.rel target = $region3
  $region8: #{swin_forward.10} parent=0 // loop_exit
    _

// kernel: swin_forward.12
$region0: #{swin_forward.12}
  #allocation0 [shape = 'u32[]', space=smem, size = 0x4, offset = 0x4, fixed_abs, tag = 'smem constant byte address 0x4 - core index']
  #allocation1 [shape = 'u32[72,128]{1,0:T(1,128)}', space=vmem, size = 0x9000, scoped, tag = 'internal scratch']
  %s0 = inlined_call_operand.vmem [shape: bf16[128,32], index: 0, kind: input, shape index: {}]
  %s1 = inlined_call_operand.vmem [shape: bf16[128,32], index: 1, kind: input, shape index: {}]
  %s2 = inlined_call_operand.vmem [shape: f32[1,32], index: 2, kind: input, shape index: {}]
  %s3 = inlined_call_operand.vmem [shape: f32[1,32], index: 3, kind: input, shape index: {}]
  %s4 = inlined_call_operand.vmem [shape: bf16[32,128], index: 4, kind: input, shape index: {}]
  %s5 = inlined_call_operand.vmem [shape: f32[1,128], index: 5, kind: input, shape index: {}]
  %s6 = inlined_call_operand.vmem [shape: bf16[128,32], index: 6, kind: input, shape index: {}]
  %s7 = inlined_call_operand.vmem [shape: f32[1,32], index: 7, kind: input, shape index: {}]
  %s8 = inlined_call_operand.vmem [shape: bf16[128,32], index: 8, kind: output, shape index: {}]
  %s9 = sld [smem:[#allocation0]]
  $region65: #{swin_forward.12} parent=0
    _
  %s11 = ssub.s32 1, %s9
  %s12 = scalar_select 0, %s11, %s9
  loop: start=0, step=1, limit=4
  $region2: #{swin_forward.12} parent=0 // loop_pre_header
    _
  $region3: #{swin_forward.12} parent=0 // loop_header
    %s14 = sphi 0, %s18
    %p15 = scmp.ge.s32.totalorder %s14, 4
    %s24 = sphi 0, %s26
    %s27 = sphi 0, %s24
    %s28 = sphi 0, %s27
    %s44 = sphi 0, %s28
    %s50 = sphi 0, %s52
    %s53 = sphi 0, %s50
    %s54 = sphi 0, %s53
    %s70 = sphi 0, %s54
    %s74 = sphi 0, %s74
    %s76 = sphi 0, %s74
    %s77 = sphi 0, %s76
    %s91 = sphi 0, %s77
    %s95 = sphi 0, %s95
    %s97 = sphi 0, %s95
    %s98 = sphi 0, %s97
    %s112 = sphi 0, %s98
    %s116 = sphi 0, %s116
    %s118 = sphi 0, %s116
    %s119 = sphi 0, %s118
    %s133 = sphi 0, %s119
    %s137 = sphi 0, %s137
    %s139 = sphi 0, %s137
    %s140 = sphi 0, %s139
    %s154 = sphi 0, %s140
    %s158 = sphi 0, %s158
    %s160 = sphi 0, %s158
    %s161 = sphi 0, %s160
    %s175 = sphi 0, %s161
    %s179 = sphi 0, %s179
    %s181 = sphi 0, %s179
    %s182 = sphi 0, %s181
    %s196 = sphi 0, %s182
    %s202 = sphi 0, %s204
    %s205 = sphi 0, %s202
    %s206 = sphi 0, %s205
    %s222 = sphi 0, %s206
  $region4: #{swin_forward.12} parent=0 // loop_header_branch
    %17 = sbr.rel (%p15) target = $region8
  $region5: #{swin_forward.12} parent=0 // loop_body
    %s19 = ssub.s32 %s14, 1
    %s20 = ssub.s32 %s14, 2
    %s21 = sadd.s32 %s14, 1
    %s22 = ssub.s32 %s14, %s21
    %p23 = scmp.eq.s32.totalorder %s22, 0
    %s25 = sadd.s32 %s24, 1
    %s26 = scalar_select %p23, %s24, %s25
    %p29 = pneg %p23
    %p30 = scmp.eq.s32.totalorder %s14, 1
    %p31 = por %p29, %p30
    %p32 = scmp.ne.s32.totalorder %s24, %s27
    %p33 = scmp.eq.s32.totalorder %s14, 0
    %p34 = por %p32, %p33
    %p35 = scmp.ne.s32.totalorder %s24, %s27
    %p36 = scmp.eq.s32.totalorder %s19, 1
    %p37 = por %p35, %p36
    %p38 = scmp.ne.s32.totalorder %s27, %s28
    %p39 = scmp.eq.s32.totalorder %s19, 0
    %p40 = por %p38, %p39
    %p41 = scmp.ne.s32.totalorder %s27, %s28
    %p42 = scmp.eq.s32.totalorder %s20, 1
    %p43 = por %p41, %p42
    %p45 = scmp.ne.s32.totalorder %s28, %s44
    %p46 = scmp.eq.s32.totalorder %s20, 0
    %p47 = por %p45, %p46
    %s48 = ssub.s32 %s14, %s21
    %p49 = scmp.eq.s32.totalorder %s48, 0
    %s51 = sadd.s32 %s50, 1
    %s52 = scalar_select %p49, %s50, %s51
    %p55 = pneg %p49
    %p56 = scmp.eq.s32.totalorder %s14, 1
    %p57 = por %p55, %p56
    %p58 = scmp.ne.s32.totalorder %s50, %s53
    %p59 = scmp.eq.s32.totalorder %s14, 0
    %p60 = por %p58, %p59
    %p61 = scmp.ne.s32.totalorder %s50, %s53
    %p62 = scmp.eq.s32.totalorder %s19, 1
    %p63 = por %p61, %p62
    %p64 = scmp.ne.s32.totalorder %s53, %s54
    %p65 = scmp.eq.s32.totalorder %s19, 0
    %p66 = por %p64, %p65
    %p67 = scmp.ne.s32.totalorder %s53, %s54
    %p68 = scmp.eq.s32.totalorder %s20, 1
    %p69 = por %p67, %p68
    %p71 = scmp.ne.s32.totalorder %s54, %s70
    %p72 = scmp.eq.s32.totalorder %s20, 0
    %p73 = por %p71, %p72
    %s75 = sadd.s32 %s74, 1
    %p78 = scmp.eq.s32.totalorder %s14, 1
    %p79 = scmp.ne.s32.totalorder %s74, %s76
    %p80 = scmp.eq.s32.totalorder %s14, 0
    %p81 = por %p79, %p80
    %p82 = scmp.ne.s32.totalorder %s74, %s76
    %p83 = scmp.eq.s32.totalorder %s19, 1
    %p84 = por %p82, %p83
    %p85 = scmp.ne.s32.totalorder %s76, %s77
    %p86 = scmp.eq.s32.totalorder %s19, 0
    %p87 = por %p85, %p86
    %p88 = scmp.ne.s32.totalorder %s76, %s77
    %p89 = scmp.eq.s32.totalorder %s20, 1
    %p90 = por %p88, %p89
    %p92 = scmp.ne.s32.totalorder %s77, %s91
    %p93 = scmp.eq.s32.totalorder %s20, 0
    %p94 = por %p92, %p93
    %s96 = sadd.s32 %s95, 1
    %p99 = scmp.eq.s32.totalorder %s14, 1
    %p100 = scmp.ne.s32.totalorder %s95, %s97
    %p101 = scmp.eq.s32.totalorder %s14, 0
    %p102 = por %p100, %p101
    %p103 = scmp.ne.s32.totalorder %s95, %s97
    %p104 = scmp.eq.s32.totalorder %s19, 1
    %p105 = por %p103, %p104
    %p106 = scmp.ne.s32.totalorder %s97, %s98
    %p107 = scmp.eq.s32.totalorder %s19, 0
    %p108 = por %p106, %p107
    %p109 = scmp.ne.s32.totalorder %s97, %s98
    %p110 = scmp.eq.s32.totalorder %s20, 1
    %p111 = por %p109, %p110
    %p113 = scmp.ne.s32.totalorder %s98, %s112
    %p114 = scmp.eq.s32.totalorder %s20, 0
    %p115 = por %p113, %p114
    %s117 = sadd.s32 %s116, 1
    %p120 = scmp.eq.s32.totalorder %s14, 1
    %p121 = scmp.ne.s32.totalorder %s116, %s118
    %p122 = scmp.eq.s32.totalorder %s14, 0
    %p123 = por %p121, %p122
    %p124 = scmp.ne.s32.totalorder %s116, %s118
    %p125 = scmp.eq.s32.totalorder %s19, 1
    %p126 = por %p124, %p125
    %p127 = scmp.ne.s32.totalorder %s118, %s119
    %p128 = scmp.eq.s32.totalorder %s19, 0
    %p129 = por %p127, %p128
    %p130 = scmp.ne.s32.totalorder %s118, %s119
    %p131 = scmp.eq.s32.totalorder %s20, 1
    %p132 = por %p130, %p131
    %p134 = scmp.ne.s32.totalorder %s119, %s133
    %p135 = scmp.eq.s32.totalorder %s20, 0
    %p136 = por %p134, %p135
    %s138 = sadd.s32 %s137, 1
    %p141 = scmp.eq.s32.totalorder %s14, 1
    %p142 = scmp.ne.s32.totalorder %s137, %s139
    %p143 = scmp.eq.s32.totalorder %s14, 0
    %p144 = por %p142, %p143
    %p145 = scmp.ne.s32.totalorder %s137, %s139
    %p146 = scmp.eq.s32.totalorder %s19, 1
    %p147 = por %p145, %p146
    %p148 = scmp.ne.s32.totalorder %s139, %s140
    %p149 = scmp.eq.s32.totalorder %s19, 0
    %p150 = por %p148, %p149
    %p151 = scmp.ne.s32.totalorder %s139, %s140
    %p152 = scmp.eq.s32.totalorder %s20, 1
    %p153 = por %p151, %p152
    %p155 = scmp.ne.s32.totalorder %s140, %s154
    %p156 = scmp.eq.s32.totalorder %s20, 0
    %p157 = por %p155, %p156
    %s159 = sadd.s32 %s158, 1
    %p162 = scmp.eq.s32.totalorder %s14, 1
    %p163 = scmp.ne.s32.totalorder %s158, %s160
    %p164 = scmp.eq.s32.totalorder %s14, 0
    %p165 = por %p163, %p164
    %p166 = scmp.ne.s32.totalorder %s158, %s160
    %p167 = scmp.eq.s32.totalorder %s19, 1
    %p168 = por %p166, %p167
    %p169 = scmp.ne.s32.totalorder %s160, %s161
    %p170 = scmp.eq.s32.totalorder %s19, 0
    %p171 = por %p169, %p170
    %p172 = scmp.ne.s32.totalorder %s160, %s161
    %p173 = scmp.eq.s32.totalorder %s20, 1
    %p174 = por %p172, %p173
    %p176 = scmp.ne.s32.totalorder %s161, %s175
    %p177 = scmp.eq.s32.totalorder %s20, 0
    %p178 = por %p176, %p177
    %s180 = sadd.s32 %s179, 1
    %p183 = scmp.eq.s32.totalorder %s14, 1
    %p184 = scmp.ne.s32.totalorder %s179, %s181
    %p185 = scmp.eq.s32.totalorder %s14, 0
    %p186 = por %p184, %p185
    %p187 = scmp.ne.s32.totalorder %s179, %s181
    %p188 = scmp.eq.s32.totalorder %s19, 1
    %p189 = por %p187, %p188
    %p190 = scmp.ne.s32.totalorder %s181, %s182
    %p191 = scmp.eq.s32.totalorder %s19, 0
    %p192 = por %p190, %p191
    %p193 = scmp.ne.s32.totalorder %s181, %s182
    %p194 = scmp.eq.s32.totalorder %s20, 1
    %p195 = por %p193, %p194
    %p197 = scmp.ne.s32.totalorder %s182, %s196
    %p198 = scmp.eq.s32.totalorder %s20, 0
    %p199 = por %p197, %p198
    %s200 = ssub.s32 %s14, %s21
    %p201 = scmp.eq.s32.totalorder %s200, 0
    %s203 = sadd.s32 %s202, 1
    %s204 = scalar_select %p201, %s202, %s203
    %p207 = pneg %p201
    %p208 = scmp.eq.s32.totalorder %s14, 1
    %p209 = por %p207, %p208
    %p210 = scmp.ne.s32.totalorder %s202, %s205
    %p211 = scmp.eq.s32.totalorder %s14, 0
    %p212 = por %p210, %p211
    %p213 = scmp.ne.s32.totalorder %s202, %s205
    %p214 = scmp.eq.s32.totalorder %s19, 1
    %p215 = por %p213, %p214
    %p216 = scmp.ne.s32.totalorder %s205, %s206
    %p217 = scmp.eq.s32.totalorder %s19, 0
    %p218 = por %p216, %p217
    %p219 = scmp.ne.s32.totalorder %s205, %s206
    %p220 = scmp.eq.s32.totalorder %s20, 1
    %p221 = por %p219, %p220
    %p223 = scmp.ne.s32.totalorder %s206, %s222
    %p224 = scmp.eq.s32.totalorder %s20, 0
    %p225 = por %p223, %p224
    %p226 = scmp.le.s32.totalorder 1, %s14
    %p227 = scmp.lt.s32.totalorder %s14, 3
    %p228 = pnand %p226, %p227
    %p229 = pneg %p228
    // Predicated region
    $region9: #{swin_forward.12} parent=5 // pred_check
      _
    $region10: #{swin_forward.12} parent=5 // pred_check_branch
      %231 = sbr.rel (%p228) target = $region12
    $region11: #{swin_forward.12} parent=5 // pred_region
      %s232 = ssub.s32 %s14, 1
      // Predicated region
      $region13: #{swin_forward.12} parent=11 // pred_check
        %p233 = pneg %p87
      $region14: #{swin_forward.12} parent=11 // pred_check_branch
        %235 = sbr.rel (%p233) target = $region16
      $region15: #{swin_forward.12} parent=11 // pred_region
        _
      $region16: #{swin_forward.12} parent=11 // pred_fallthru
        _
      // Predicated region
      $region17: #{swin_forward.12} parent=11 // pred_check
        %p236 = pneg %p108
      $region18: #{swin_forward.12} parent=11 // pred_check_branch
        %238 = sbr.rel (%p236) target = $region20
      $region19: #{swin_forward.12} parent=11 // pred_region
        _
      $region20: #{swin_forward.12} parent=11 // pred_fallthru
        _
      // Predicated region
      $region21: #{swin_forward.12} parent=11 // pred_check
        %p239 = pneg %p129
      $region22: #{swin_forward.12} parent=11 // pred_check_branch
        %241 = sbr.rel (%p239) target = $region24
      $region23: #{swin_forward.12} parent=11 // pred_region
        _
      $region24: #{swin_forward.12} parent=11 // pred_fallthru
        _
      // Predicated region
      $region25: #{swin_forward.12} parent=11 // pred_check
        %p242 = pneg %p150
      $region26: #{swin_forward.12} parent=11 // pred_check_branch
        %244 = sbr.rel (%p242) target = $region28
      $region27: #{swin_forward.12} parent=11 // pred_region
        _
      $region28: #{swin_forward.12} parent=11 // pred_fallthru
        _
      // Predicated region
      $region29: #{swin_forward.12} parent=11 // pred_check
        %p245 = pneg %p171
      $region30: #{swin_forward.12} parent=11 // pred_check_branch
        %247 = sbr.rel (%p245) target = $region32
      $region31: #{swin_forward.12} parent=11 // pred_region
        _
      $region32: #{swin_forward.12} parent=11 // pred_fallthru
        _
      // Predicated region
      $region33: #{swin_forward.12} parent=11 // pred_check
        %p248 = pneg %p192
      $region34: #{swin_forward.12} parent=11 // pred_check_branch
        %250 = sbr.rel (%p248) target = $region36
      $region35: #{swin_forward.12} parent=11 // pred_region
        _
      $region36: #{swin_forward.12} parent=11 // pred_fallthru
        _
    $region12: #{swin_forward.12} parent=5 // pred_fallthru
      _
    %p251 = scmp.lt.s32.totalorder %s14, 2
    // Predicated region
    $region37: #{swin_forward.12} parent=5 // pred_check
      %p252 = pneg %p251
    $region38: #{swin_forward.12} parent=5 // pred_check_branch
      %254 = sbr.rel (%p252) target = $region40
    $region39: #{swin_forward.12} parent=5 // pred_region
      // Predicated region
      $region41: #{swin_forward.12} parent=39 // pred_check
        %p255 = pneg %p34
      $region42: #{swin_forward.12} parent=39 // pred_check_branch
        %257 = sbr.rel (%p255) target = $region44
      $region43: #{swin_forward.12} parent=39 // pred_region
        %s258 = smul.u32 8, %s14
        %p259 = scmp.lt.s32.totalorder %s258, 15
        %s260 = scalar_select %p259, %s258, 15
        %s261 = smul.addr %s260, 4
        %s262 = scalar_lea.vmem %s0, %s261
        %s263 = smul.u32 8, %s14
      $region44: #{swin_forward.12} parent=39 // pred_fallthru
        _
      // Predicated region
      $region45: #{swin_forward.12} parent=39 // pred_check
        %p264 = pneg %p60
      $region46: #{swin_forward.12} parent=39 // pred_check_branch
        %266 = sbr.rel (%p264) target = $region48
      $region47: #{swin_forward.12} parent=39 // pred_region
        %s267 = smul.u32 8, %s14
        %p268 = scmp.lt.s32.totalorder %s267, 15
        %s269 = scalar_select %p268, %s267, 15
        %s270 = smul.addr %s269, 4
        %s271 = scalar_lea.vmem %s1, %s270
        %s272 = smul.u32 8, %s14
      $region48: #{swin_forward.12} parent=39 // pred_fallthru
        _
    $region40: #{swin_forward.12} parent=5 // pred_fallthru
      _
    %p273 = scmp.le.s32.totalorder 1, %s14
    %p274 = scmp.lt.s32.totalorder %s14, 3
    %p275 = pnand %p273, %p274
    %p276 = pneg %p275
    // Predicated region
    $region49: #{swin_forward.12} parent=5 // pred_check
      _
    $region50: #{swin_forward.12} parent=5 // pred_check_branch
      %278 = sbr.rel (%p275) target = $region52
    $region51: #{swin_forward.12} parent=5 // pred_region
      %s279 = ssub.s32 %s14, 1
      %s280 = smul.u32 8, %s19
      %p281 = scmp.lt.s32.totalorder %s280, 15
      %s282 = scalar_select %p281, %s280, 15
      %s283 = smul.addr %s282, 4
      %s284 = scalar_lea.vmem %s0, %s283
      %p285 = pneg %p40
      %p286 = pneg %p37
      %s287 = smul.u32 8, %s19
      %p288 = scmp.lt.s32.totalorder %s287, 15
      %s289 = scalar_select %p288, %s287, 15
      %s290 = smul.addr %s289, 4
      %s291 = scalar_lea.vmem %s1, %s290
      %p292 = pneg %p66
      %p293 = pneg %p63
      %p294 = pneg %p87
      %p295 = pneg %p84
      %p296 = pneg %p108
      %p297 = pneg %p105
      %p298 = pneg %p129
      %p299 = pneg %p126
      %p300 = pneg %p150
      %p301 = pneg %p147
      %p302 = pneg %p171
      %p303 = pneg %p168
      %p304 = pneg %p192
      %p305 = pneg %p189
      %p306 = pneg %p218
      %p307 = pneg %p215
      %s308 = smul.u32 8, %s19
      %p309 = scmp.lt.s32.totalorder %s308, 15
      %s310 = scalar_select %p309, %s308, 15
      %s311 = smul.addr %s310, 4
      %s312 = scalar_lea.vmem %s8, %s311
      %s313 = smul.u32 8, %s19
      %p314 = scmp.lt.s32.totalorder %s313, 15
      %s315 = scalar_select %p314, %s313, 15
      %s316 = smul.addr %s315, 4
      %s317 = scalar_lea.vmem %s0, %s316
      %s318 = smul.u32 8, %s19
      %s319 = smul.u32 8, %s19
      %p320 = scmp.lt.s32.totalorder %s319, 15
      %s321 = scalar_select %p320, %s319, 15
      %s322 = smul.addr %s321, 4
      %s323 = scalar_lea.vmem %s1, %s322
      %s324 = smul.u32 8, %s19
      %s325 = smul.u32 8, %s19
      %p326 = scmp.lt.s32.totalorder %s325, 15
      %s327 = scalar_select %p326, %s325, 15
      %s328 = smul.addr %s327, 4
      %s329 = scalar_lea.vmem %s8, %s328
      %s330 = smul.u32 8, %s19
      %v332 = vld [vmem:[%s317] sm:$0xf]
      %v333 = vld [vmem:[%s317 + $0x4] sm:$0xf]
      %v334 = vld [vmem:[%s317 + $0x8] sm:$0xf]
      %v335 = vld [vmem:[%s317 + $0xc] sm:$0xf]
      %v336 = vld [vmem:[%s317 + $0x10] sm:$0xf]
      %v337 = vld [vmem:[%s317 + $0x14] sm:$0xf]
      %v338 = vld [vmem:[%s317 + $0x18] sm:$0xf]
      %v339 = vld [vmem:[%s317 + $0x1c] sm:$0xf]
      %v340 = vunpack.c.l.bf16 %v332
      %v341 = vunpack.c.l.bf16 %v333
      %v342 = vunpack.c.l.bf16 %v334
      %v343 = vunpack.c.l.bf16 %v335
      %v344 = vunpack.c.l.bf16 %v336
      %v345 = vunpack.c.l.bf16 %v337
      %v346 = vunpack.c.l.bf16 %v338
      %v347 = vunpack.c.l.bf16 %v339
      %v348 = vld [vmem:[%s323] sm:$0xf]
      %v349 = vld [vmem:[%s323 + $0x4] sm:$0xf]
      %v350 = vld [vmem:[%s323 + $0x8] sm:$0xf]
      %v351 = vld [vmem:[%s323 + $0xc] sm:$0xf]
      %v352 = vld [vmem:[%s323 + $0x10] sm:$0xf]
      %v353 = vld [vmem:[%s323 + $0x14] sm:$0xf]
      %v354 = vld [vmem:[%s323 + $0x18] sm:$0xf]
      %v355 = vld [vmem:[%s323 + $0x1c] sm:$0xf]
      %v356 = vunpack.c.l.bf16 %v348
      %v357 = vunpack.c.l.bf16 %v349
      %v358 = vunpack.c.l.bf16 %v350
      %v359 = vunpack.c.l.bf16 %v351
      %v360 = vunpack.c.l.bf16 %v352
      %v361 = vunpack.c.l.bf16 %v353
      %v362 = vunpack.c.l.bf16 %v354
      %v363 = vunpack.c.l.bf16 %v355
      %v364 = vadd.f32 %v340, %v356
      %v365 = vadd.f32 %v341, %v357
      %v366 = vadd.f32 %v342, %v358
      %v367 = vadd.f32 %v343, %v359
      %v368 = vadd.f32 %v344, %v360
      %v369 = vadd.f32 %v345, %v361
      %v370 = vadd.f32 %v346, %v362
      %v371 = vadd.f32 %v347, %v363
      %v372 = vld [vmem:[%s2] sm:$0x1]
      %v373 = vld [vmem:[%s3] sm:$0x1]
      %vm374 = vcmask 261120
      %v375 = vsel %vm374, %v364, 0.0
      %376 = vadd.xlane.f32.xlu0 %v375
      %v377 = vpop.xlane.xlu0 %376
      %v378 = vsel %vm374, %v365, 0.0
      %379 = vadd.xlane.f32.xlu0 %v378
      %v380 = vpop.xlane.xlu0 %379
      %v381 = vsel %vm374, %v366, 0.0
      %382 = vadd.xlane.f32.xlu0 %v381
      %v383 = vpop.xlane.xlu0 %382
      %v384 = vsel %vm374, %v367, 0.0
      %385 = vadd.xlane.f32.xlu0 %v384
      %v386 = vpop.xlane.xlu0 %385
      %v387 = vsel %vm374, %v368, 0.0
      %388 = vadd.xlane.f32.xlu0 %v387
      %v389 = vpop.xlane.xlu0 %388
      %v390 = vsel %vm374, %v369, 0.0
      %391 = vadd.xlane.f32.xlu0 %v390
      %v392 = vpop.xlane.xlu0 %391
      %v393 = vsel %vm374, %v370, 0.0
      %394 = vadd.xlane.f32.xlu0 %v393
      %v395 = vpop.xlane.xlu0 %394
      %v396 = vsel %vm374, %v371, 0.0
      %397 = vadd.xlane.f32.xlu0 %v396
      %v398 = vpop.xlane.xlu0 %397
      %v399 = vrcp.pop 32.0
      %v400 = vmul.f32 32.0, %v399
      %v401 = vsub.f32 1.0, %v400
      %v402 = vmul.f32 %v399, %v401
      %v403 = vadd.f32 %v399, %v402
      %vm404 = vweird.f32 %v399
      %v405 = vsel %vm404, %v399, %v403
      %v406 = vmul.f32 %v377, %v405
      %v407 = vmul.f32 %v380, %v405
      %v408 = vmul.f32 %v383, %v405
      %v409 = vmul.f32 %v386, %v405
      %v410 = vmul.f32 %v389, %v405
      %v411 = vmul.f32 %v392, %v405
      %v412 = vmul.f32 %v395, %v405
      %v413 = vmul.f32 %v398, %v405
      %v414 = vsub.f32 %v364, %v406
      %v415 = vsub.f32 %v365, %v407
      %v416 = vsub.f32 %v366, %v408
      %v417 = vsub.f32 %v367, %v409
      %v418 = vsub.f32 %v368, %v410
      %v419 = vsub.f32 %v369, %v411
      %v420 = vsub.f32 %v370, %v412
      %v421 = vsub.f32 %v371, %v413
      %v422 = vmul.f32 %v414, %v414
      %v423 = vmul.f32 %v415, %v415
      %v424 = vmul.f32 %v416, %v416
      %v425 = vmul.f32 %v417, %v417
      %v426 = vmul.f32 %v418, %v418
      %v427 = vmul.f32 %v419, %v419
      %v428 = vmul.f32 %v420, %v420
      %v429 = vmul.f32 %v421, %v421
      %v430 = vsel %vm374, %v422, 0.0
      %431 = vadd.xlane.f32.xlu0 %v430
      %v432 = vpop.xlane.xlu0 %431
      %v433 = vsel %vm374, %v423, 0.0
      %434 = vadd.xlane.f32.xlu0 %v433
      %v435 = vpop.xlane.xlu0 %434
      %v436 = vsel %vm374, %v424, 0.0
      %437 = vadd.xlane.f32.xlu0 %v436
      %v438 = vpop.xlane.xlu0 %437
      %v439 = vsel %vm374, %v425, 0.0
      %440 = vadd.xlane.f32.xlu0 %v439
      %v441 = vpop.xlane.xlu0 %440
      %v442 = vsel %vm374, %v426, 0.0
      %443 = vadd.xlane.f32.xlu0 %v442
      %v444 = vpop.xlane.xlu0 %443
      %v445 = vsel %vm374, %v427, 0.0
      %446 = vadd.xlane.f32.xlu0 %v445
      %v447 = vpop.xlane.xlu0 %446
      %v448 = vsel %vm374, %v428, 0.0
      %449 = vadd.xlane.f32.xlu0 %v448
      %v450 = vpop.xlane.xlu0 %449
      %v451 = vsel %vm374, %v429, 0.0
      %452 = vadd.xlane.f32.xlu0 %v451
      %v453 = vpop.xlane.xlu0 %452
      %v454 = vmul.f32 %v432, %v405
      %v455 = vmul.f32 %v435, %v405
      %v456 = vmul.f32 %v438, %v405
      %v457 = vmul.f32 %v441, %v405
      %v458 = vmul.f32 %v444, %v405
      %v459 = vmul.f32 %v447, %v405
      %v460 = vmul.f32 %v450, %v405
      %v461 = vmul.f32 %v453, %v405
      %v462 = vadd.f32 %v454, 1e-05
      %v463 = vadd.f32 %v455, 1e-05
      %v464 = vadd.f32 %v456, 1e-05
      %v465 = vadd.f32 %v457, 1e-05
      %v466 = vadd.f32 %v458, 1e-05
      %v467 = vadd.f32 %v459, 1e-05
      %v468 = vadd.f32 %v460, 1e-05
      %v469 = vadd.f32 %v461, 1e-05
      %v470 = vrsqrt.pop %v462
      %v471 = vmul.f32 %v470, %v462
      %v472 = vmul.f32 %v471, %v470
      %v473 = vmul.f32 0.5, %v472
      %v474 = vsub.f32 1.5, %v473
      %v475 = vmul.f32 %v470, %v474
      %vm476 = vweird.f32 %v462
      %vm477 = vweird.f32 %v470
      %vm478 = vmor %vm476, %vm477
      %v479 = vsel %vm478, %v470, %v475
      %v480 = vrsqrt.pop %v463
      %v481 = vmul.f32 %v480, %v463
      %v482 = vmul.f32 %v481, %v480
      %v483 = vmul.f32 0.5, %v482
      %v484 = vsub.f32 1.5, %v483
      %v485 = vmul.f32 %v480, %v484
      %vm486 = vweird.f32 %v463
      %vm487 = vweird.f32 %v480
      %vm488 = vmor %vm486, %vm487
      %v489 = vsel %vm488, %v480, %v485
      %v490 = vrsqrt.pop %v464
      %v491 = vmul.f32 %v490, %v464
      %v492 = vmul.f32 %v491, %v490
      %v493 = vmul.f32 0.5, %v492
      %v494 = vsub.f32 1.5, %v493
      %v495 = vmul.f32 %v490, %v494
      %vm496 = vweird.f32 %v464
      %vm497 = vweird.f32 %v490
      %vm498 = vmor %vm496, %vm497
      %v499 = vsel %vm498, %v490, %v495
      %v500 = vrsqrt.pop %v465
      %v501 = vmul.f32 %v500, %v465
      %v502 = vmul.f32 %v501, %v500
      %v503 = vmul.f32 0.5, %v502
      %v504 = vsub.f32 1.5, %v503
      %v505 = vmul.f32 %v500, %v504
      %vm506 = vweird.f32 %v465
      %vm507 = vweird.f32 %v500
      %vm508 = vmor %vm506, %vm507
      %v509 = vsel %vm508, %v500, %v505
      %v510 = vrsqrt.pop %v466
      %v511 = vmul.f32 %v510, %v466
      %v512 = vmul.f32 %v511, %v510
      %v513 = vmul.f32 0.5, %v512
      %v514 = vsub.f32 1.5, %v513
      %v515 = vmul.f32 %v510, %v514
      %vm516 = vweird.f32 %v466
      %vm517 = vweird.f32 %v510
      %vm518 = vmor %vm516, %vm517
      %v519 = vsel %vm518, %v510, %v515
      %v520 = vrsqrt.pop %v467
      %v521 = vmul.f32 %v520, %v467
      %v522 = vmul.f32 %v521, %v520
      %v523 = vmul.f32 0.5, %v522
      %v524 = vsub.f32 1.5, %v523
      %v525 = vmul.f32 %v520, %v524
      %vm526 = vweird.f32 %v467
      %vm527 = vweird.f32 %v520
      %vm528 = vmor %vm526, %vm527
      %v529 = vsel %vm528, %v520, %v525
      %v530 = vrsqrt.pop %v468
      %v531 = vmul.f32 %v530, %v468
      %v532 = vmul.f32 %v531, %v530
      %v533 = vmul.f32 0.5, %v532
      %v534 = vsub.f32 1.5, %v533
      %v535 = vmul.f32 %v530, %v534
      %vm536 = vweird.f32 %v468
      %vm537 = vweird.f32 %v530
      %vm538 = vmor %vm536, %vm537
      %v539 = vsel %vm538, %v530, %v535
      %v540 = vrsqrt.pop %v469
      %v541 = vmul.f32 %v540, %v469
      %v542 = vmul.f32 %v541, %v540
      %v543 = vmul.f32 0.5, %v542
      %v544 = vsub.f32 1.5, %v543
      %v545 = vmul.f32 %v540, %v544
      %vm546 = vweird.f32 %v469
      %vm547 = vweird.f32 %v540
      %vm548 = vmor %vm546, %vm547
      %v549 = vsel %vm548, %v540, %v545
      %v550 = vmul.f32 %v414, %v479
      %v551 = vmul.f32 %v415, %v489
      %v552 = vmul.f32 %v416, %v499
      %v553 = vmul.f32 %v417, %v509
      %v554 = vmul.f32 %v418, %v519
      %v555 = vmul.f32 %v419, %v529
      %v556 = vmul.f32 %v420, %v539
      %v557 = vmul.f32 %v421, %v549
      %v559 = vperm.slane %v372, 0
      %v561 = vmul.f32 %v550, %v559
      %v562 = vmul.f32 %v551, %v559
      %v563 = vmul.f32 %v552, %v559
      %v564 = vmul.f32 %v553, %v559
      %v565 = vmul.f32 %v554, %v559
      %v566 = vmul.f32 %v555, %v559
      %v567 = vmul.f32 %v556, %v559
      %v568 = vmul.f32 %v557, %v559
      %v570 = vperm.slane %v373, 0
      %v572 = vadd.f32 %v561, %v570
      %v573 = vadd.f32 %v562, %v570
      %v574 = vadd.f32 %v563, %v570
      %v575 = vadd.f32 %v564, %v570
      %v576 = vadd.f32 %v565, %v570
      %v577 = vadd.f32 %v566, %v570
      %v578 = vadd.f32 %v567, %v570
      %v579 = vadd.f32 %v568, %v570
      %v580 = vld [vmem:[%s4] sm:$0xf]
      %v581 = vld [vmem:[%s4 + $0x4] sm:$0xf]
      %v582 = vld [vmem:[%s4 + $0x8] sm:$0xf]
      %v583 = vld [vmem:[%s4 + $0xc] sm:$0xf]
      %v584 = vpack.c.bf16 %v573, %v572
      %v585 = vpack.c.bf16 %v575, %v574
      %v586 = vpack.c.bf16 %v577, %v576
      %v587 = vpack.c.bf16 %v579, %v578
      %v588 = vld [vmem:[%s5] sm:$0x1]
      %v590 = vperm.slane %v588, 0
      %v596 = vunpack.c.l.b16 %v580
      %v597 = vunpack.c.l.b16 %v581
      %v598 = vunpack.c.l.b16 %v582
      %v599 = vunpack.c.l.b16 %v583
      %v600 = vpack.c.b16 %v597, %v596
      %v601 = vpack.c.b16 %v599, %v598
      %v605 = vsel %vm374, %v584, 0
      %v608 = vsel %vm374, %v585, 0
      %v611 = vsel %vm374, %v586, 0
      %v614 = vsel %vm374, %v587, 0
      %616 = vmatpush.bf16.msra.mxu0 0
      %617 = vmatpush.bf16.msra.mxu0 0
      %618 = vmatpush.bf16.msra.mxu0 0
      %619 = vmatpush.bf16.msra.mxu0 0
      %620 = vmatpush.bf16.msra.mxu0 0
      %621 = vmatpush.bf16.msra.mxu0 0
      %622 = vmatpush.bf16.msra.mxu0 %v601
      %623 = vmatpush.bf16.msra.mxu0 %v600
      %624 = vmatmul.bf16.gmra.mxu0 %v605
      %v625 = vpop.f32.mrf.mxu0
      %v626 = vadd.f32 %v590, %v625
      %v627 = vpop.f32.mrf.mxu0
      %v628 = vadd.f32 %v590, %v627
      %629 = vmatmul.bf16.gmra.mxu0 %v608
      %v630 = vpop.f32.mrf.mxu0
      %v631 = vadd.f32 %v590, %v630
      %v632 = vpop.f32.mrf.mxu0
      %v633 = vadd.f32 %v590, %v632
      %634 = vmatmul.bf16.gmra.mxu0 %v611
      %v635 = vpop.f32.mrf.mxu0
      %v636 = vadd.f32 %v590, %v635
      %v637 = vpop.f32.mrf.mxu0
      %v638 = vadd.f32 %v590, %v637
      %639 = vmatmul.bf16.gmra.mxu0 %v614
      %v640 = vpop.f32.mrf.mxu0
      %v641 = vadd.f32 %v590, %v640
      %v642 = vpop.f32.mrf.mxu0
      %v643 = vadd.f32 %v590, %v642
      %644 = vdwg.mxu0
      %v645 = vmul.f32 %v626, 0.5
      %v646 = vmul.f32 %v628, 0.5
      %v647 = vmul.f32 %v631, 0.5
      %v648 = vmul.f32 %v633, 0.5
      %v649 = vmul.f32 %v636, 0.5
      %v650 = vmul.f32 %v638, 0.5
      %v651 = vmul.f32 %v641, 0.5
      %v652 = vmul.f32 %v643, 0.5
      %v653 = vmul.f32 %v626, 0.70710677
      %v654 = vmul.f32 %v628, 0.70710677
      %v655 = vmul.f32 %v631, 0.70710677
      %v656 = vmul.f32 %v633, 0.70710677
      %v657 = vmul.f32 %v636, 0.70710677
      %v658 = vmul.f32 %v638, 0.70710677
      %v659 = vmul.f32 %v641, 0.70710677
      %v660 = vmul.f32 %v643, 0.70710677
      %v661 = vand.u32 2147483647, %v653
      %v662 = vand.u32 2147483647, %v654
      %v663 = vand.u32 2147483647, %v655
      %v664 = vand.u32 2147483647, %v656
      %v665 = vand.u32 2147483647, %v657
      %v666 = vand.u32 2147483647, %v658
      %v667 = vand.u32 2147483647, %v659
      %v668 = vand.u32 2147483647, %v660
      %v669 = vmul.f32 %v661, 0.3275911
      %v670 = vmul.f32 %v662, 0.3275911
      %v671 = vmul.f32 %v663, 0.3275911
      %v672 = vmul.f32 %v664, 0.3275911
      %v673 = vmul.f32 %v665, 0.3275911
      %v674 = vmul.f32 %v666, 0.3275911
      %v675 = vmul.f32 %v667, 0.3275911
      %v676 = vmul.f32 %v668, 0.3275911
      %v677 = vadd.f32 %v669, 1.0
      %v678 = vadd.f32 %v670, 1.0
      %v679 = vadd.f32 %v671, 1.0
      %v680 = vadd.f32 %v672, 1.0
      %v681 = vadd.f32 %v673, 1.0
      %v682 = vadd.f32 %v674, 1.0
      %v683 = vadd.f32 %v675, 1.0
      %v684 = vadd.f32 %v676, 1.0
      %v685 = vrcp.pop %v677
      %v686 = vmul.f32 %v677, %v685
      %v687 = vsub.f32 1.0, %v686
      %v688 = vmul.f32 %v685, %v687
      %v689 = vadd.f32 %v685, %v688
      %vm690 = vweird.f32 %v677
      %vm691 = vweird.f32 %v685
      %vm692 = vmor %vm690, %vm691
      %v693 = vsel %vm692, %v685, %v689
      %v694 = vand.u32 2147483647, %v677
      %vm695 = vcmp.eq.f32.partialorder %v694, 8.507059e+37
      %v696 = vand.u32 %v677, 2147483648
      %v697 = vor.u32 1.1754944e-38, %v696
      %v698 = vsel %vm695, %v697, %v693
      %v699 = vmul.f32 1.0, %v698
      %v700 = vrcp.pop %v678
      %v701 = vmul.f32 %v678, %v700
      %v702 = vsub.f32 1.0, %v701
      %v703 = vmul.f32 %v700, %v702
      %v704 = vadd.f32 %v700, %v703
      %vm705 = vweird.f32 %v678
      %vm706 = vweird.f32 %v700
      %vm707 = vmor %vm705, %vm706
      %v708 = vsel %vm707, %v700, %v704
      %v709 = vand.u32 2147483647, %v678
      %vm710 = vcmp.eq.f32.partialorder %v709, 8.507059e+37
      %v711 = vand.u32 %v678, 2147483648
      %v712 = vor.u32 1.1754944e-38, %v711
      %v713 = vsel %vm710, %v712, %v708
      %v714 = vmul.f32 1.0, %v713
      %v715 = vrcp.pop %v679
      %v716 = vmul.f32 %v679, %v715
      %v717 = vsub.f32 1.0, %v716
      %v718 = vmul.f32 %v715, %v717
      %v719 = vadd.f32 %v715, %v718
      %vm720 = vweird.f32 %v679
      %vm721 = vweird.f32 %v715
      %vm722 = vmor %vm720, %vm721
      %v723 = vsel %vm722, %v715, %v719
      %v724 = vand.u32 2147483647, %v679
      %vm725 = vcmp.eq.f32.partialorder %v724, 8.507059e+37
      %v726 = vand.u32 %v679, 2147483648
      %v727 = vor.u32 1.1754944e-38, %v726
      %v728 = vsel %vm725, %v727, %v723
      %v729 = vmul.f32 1.0, %v728
      %v730 = vrcp.pop %v680
      %v731 = vmul.f32 %v680, %v730
      %v732 = vsub.f32 1.0, %v731
      %v733 = vmul.f32 %v730, %v732
      %v734 = vadd.f32 %v730, %v733
      %vm735 = vweird.f32 %v680
      %vm736 = vweird.f32 %v730
      %vm737 = vmor %vm735, %vm736
      %v738 = vsel %vm737, %v730, %v734
      %v739 = vand.u32 2147483647, %v680
      %vm740 = vcmp.eq.f32.partialorder %v739, 8.507059e+37
      %v741 = vand.u32 %v680, 2147483648
      %v742 = vor.u32 1.1754944e-38, %v741
      %v743 = vsel %vm740, %v742, %v738
      %v744 = vmul.f32 1.0, %v743
      %v745 = vrcp.pop %v681
      %v746 = vmul.f32 %v681, %v745
      %v747 = vsub.f32 1.0, %v746
      %v748 = vmul.f32 %v745, %v747
      %v749 = vadd.f32 %v745, %v748
      %vm750 = vweird.f32 %v681
      %vm751 = vweird.f32 %v745
      %vm752 = vmor %vm750, %vm751
      %v753 = vsel %vm752, %v745, %v749
      %v754 = vand.u32 2147483647, %v681
      %vm755 = vcmp.eq.f32.partialorder %v754, 8.507059e+37
      %v756 = vand.u32 %v681, 2147483648
      %v757 = vor.u32 1.1754944e-38, %v756
      %v758 = vsel %vm755, %v757, %v753
      %v759 = vmul.f32 1.0, %v758
      %v760 = vrcp.pop %v682
      %v761 = vmul.f32 %v682, %v760
      %v762 = vsub.f32 1.0, %v761
      %v763 = vmul.f32 %v760, %v762
      %v764 = vadd.f32 %v760, %v763
      %vm765 = vweird.f32 %v682
      %vm766 = vweird.f32 %v760
      %vm767 = vmor %vm765, %vm766
      %v768 = vsel %vm767, %v760, %v764
      %v769 = vand.u32 2147483647, %v682
      %vm770 = vcmp.eq.f32.partialorder %v769, 8.507059e+37
      %v771 = vand.u32 %v682, 2147483648
      %v772 = vor.u32 1.1754944e-38, %v771
      %v773 = vsel %vm770, %v772, %v768
      %v774 = vmul.f32 1.0, %v773
      %v775 = vrcp.pop %v683
      %v776 = vmul.f32 %v683, %v775
      %v777 = vsub.f32 1.0, %v776
      %v778 = vmul.f32 %v775, %v777
      %v779 = vadd.f32 %v775, %v778
      %vm780 = vweird.f32 %v683
      %vm781 = vweird.f32 %v775
      %vm782 = vmor %vm780, %vm781
      %v783 = vsel %vm782, %v775, %v779
      %v784 = vand.u32 2147483647, %v683
      %vm785 = vcmp.eq.f32.partialorder %v784, 8.507059e+37
      %v786 = vand.u32 %v683, 2147483648
      %v787 = vor.u32 1.1754944e-38, %v786
      %v788 = vsel %vm785, %v787, %v783
      %v789 = vmul.f32 1.0, %v788
      %v790 = vrcp.pop %v684
      %v791 = vmul.f32 %v684, %v790
      %v792 = vsub.f32 1.0, %v791
      %v793 = vmul.f32 %v790, %v792
      %v794 = vadd.f32 %v790, %v793
      %vm795 = vweird.f32 %v684
      %vm796 = vweird.f32 %v790
      %vm797 = vmor %vm795, %vm796
      %v798 = vsel %vm797, %v790, %v794
      %v799 = vand.u32 2147483647, %v684
      %vm800 = vcmp.eq.f32.partialorder %v799, 8.507059e+37
      %v801 = vand.u32 %v684, 2147483648
      %v802 = vor.u32 1.1754944e-38, %v801
      %v803 = vsel %vm800, %v802, %v798
      %v804 = vmul.f32 1.0, %v803
      %v805 = vmul.f32 %v699, 1.0614054
      %v806 = vmul.f32 %v714, 1.0614054
      %v807 = vmul.f32 %v729, 1.0614054
      %v808 = vmul.f32 %v744, 1.0614054
      %v809 = vmul.f32 %v759, 1.0614054
      %v810 = vmul.f32 %v774, 1.0614054
      %v811 = vmul.f32 %v789, 1.0614054
      %v812 = vmul.f32 %v804, 1.0614054
      %v813 = vsub.f32 %v805, 1.4531521
      %v814 = vsub.f32 %v806, 1.4531521
      %v815 = vsub.f32 %v807, 1.4531521
      %v816 = vsub.f32 %v808, 1.4531521
      %v817 = vsub.f32 %v809, 1.4531521
      %v818 = vsub.f32 %v810, 1.4531521
      %v819 = vsub.f32 %v811, 1.4531521
      %v820 = vsub.f32 %v812, 1.4531521
      %v821 = vmul.f32 %v813, %v699
      %v822 = vmul.f32 %v814, %v714
      %v823 = vmul.f32 %v815, %v729
      %v824 = vmul.f32 %v816, %v744
      %v825 = vmul.f32 %v817, %v759
      %v826 = vmul.f32 %v818, %v774
      %v827 = vmul.f32 %v819, %v789
      %v828 = vmul.f32 %v820, %v804
      %v829 = vadd.f32 %v821, 1.4214138
      %v830 = vadd.f32 %v822, 1.4214138
      %v831 = vadd.f32 %v823, 1.4214138
      %v832 = vadd.f32 %v824, 1.4214138
      %v833 = vadd.f32 %v825, 1.4214138
      %v834 = vadd.f32 %v826, 1.4214138
      %v835 = vadd.f32 %v827, 1.4214138
      %v836 = vadd.f32 %v828, 1.4214138
      %v837 = vmul.f32 %v829, %v699
      %v838 = vmul.f32 %v830, %v714
      %v839 = vmul.f32 %v831, %v729
      %v840 = vmul.f32 %v832, %v744
      %v841 = vmul.f32 %v833, %v759
      %v842 = vmul.f32 %v834, %v774
      %v843 = vmul.f32 %v835, %v789
      %v844 = vmul.f32 %v836, %v804
      %v845 = vsub.f32 %v837, 0.28449672
      %v846 = vsub.f32 %v838, 0.28449672
      %v847 = vsub.f32 %v839, 0.28449672
      %v848 = vsub.f32 %v840, 0.28449672
      %v849 = vsub.f32 %v841, 0.28449672
      %v850 = vsub.f32 %v842, 0.28449672
      %v851 = vsub.f32 %v843, 0.28449672
      %v852 = vsub.f32 %v844, 0.28449672
      %v853 = vmul.f32 %v845, %v699
      %v854 = vmul.f32 %v846, %v714
      %v855 = vmul.f32 %v847, %v729
      %v856 = vmul.f32 %v848, %v744
      %v857 = vmul.f32 %v849, %v759
      %v858 = vmul.f32 %v850, %v774
      %v859 = vmul.f32 %v851, %v789
      %v860 = vmul.f32 %v852, %v804
      %v861 = vadd.f32 %v853, 0.2548296
      %v862 = vadd.f32 %v854, 0.2548296
      %v863 = vadd.f32 %v855, 0.2548296
      %v864 = vadd.f32 %v856, 0.2548296
      %v865 = vadd.f32 %v857, 0.2548296
      %v866 = vadd.f32 %v858, 0.2548296
      %v867 = vadd.f32 %v859, 0.2548296
      %v868 = vadd.f32 %v860, 0.2548296
      %v869 = vmul.f32 %v861, %v699
      %v870 = vmul.f32 %v862, %v714
      %v871 = vmul.f32 %v863, %v729
      %v872 = vmul.f32 %v864, %v744
      %v873 = vmul.f32 %v865, %v759
      %v874 = vmul.f32 %v866, %v774
      %v875 = vmul.f32 %v867, %v789
      %v876 = vmul.f32 %v868, %v804
      %v877 = vsub.f32 0.0, %v661
      %v878 = vsub.f32 0.0, %v662
      %v879 = vsub.f32 0.0, %v663
      %v880 = vsub.f32 0.0, %v664
      %v881 = vsub.f32 0.0, %v665
      %v882 = vsub.f32 0.0, %v666
      %v883 = vsub.f32 0.0, %v667
      %v884 = vsub.f32 0.0, %v668
      %v885 = vmul.f32 %v877, %v661
      %v886 = vmul.f32 %v878, %v662
      %v887 = vmul.f32 %v879, %v663
      %v888 = vmul.f32 %v880, %v664
      %v889 = vmul.f32 %v881, %v665
      %v890 = vmul.f32 %v882, %v666
      %v891 = vmul.f32 %v883, %v667
      %v892 = vmul.f32 %v884, %v668
      %v893 = vmul.f32 %v885, 1.442695
      %v894 = vpow.pop %v893
      %v895 = vmul.f32 %v886, 1.442695
      %v896 = vpow.pop %v895
      %v897 = vmul.f32 %v887, 1.442695
      %v898 = vpow.pop %v897
      %v899 = vmul.f32 %v888, 1.442695
      %v900 = vpow.pop %v899
      %v901 = vmul.f32 %v889, 1.442695
      %v902 = vpow.pop %v901
      %v903 = vmul.f32 %v890, 1.442695
      %v904 = vpow.pop %v903
      %v905 = vmul.f32 %v891, 1.442695
      %v906 = vpow.pop %v905
      %v907 = vmul.f32 %v892, 1.442695
      %v908 = vpow.pop %v907
      %v909 = vmul.f32 %v869, %v894
      %v910 = vmul.f32 %v870, %v896
      %v911 = vmul.f32 %v871, %v898
      %v912 = vmul.f32 %v872, %v900
      %v913 = vmul.f32 %v873, %v902
      %v914 = vmul.f32 %v874, %v904
      %v915 = vmul.f32 %v875, %v906
      %v916 = vmul.f32 %v876, %v908
      %v917 = vsub.f32 1.0, %v909
      %v918 = vsub.f32 1.0, %v910
      %v919 = vsub.f32 1.0, %v911
      %v920 = vsub.f32 1.0, %v912
      %v921 = vsub.f32 1.0, %v913
      %v922 = vsub.f32 1.0, %v914
      %v923 = vsub.f32 1.0, %v915
      %v924 = vsub.f32 1.0, %v916
      %vm925 = vcmp.ge.f32.partialorder %v653, 0.0
      %vm926 = vcmp.ge.f32.partialorder %v654, 0.0
      %vm927 = vcmp.ge.f32.partialorder %v655, 0.0
      %vm928 = vcmp.ge.f32.partialorder %v656, 0.0
      %vm929 = vcmp.ge.f32.partialorder %v657, 0.0
      %vm930 = vcmp.ge.f32.partialorder %v658, 0.0
      %vm931 = vcmp.ge.f32.partialorder %v659, 0.0
      %vm932 = vcmp.ge.f32.partialorder %v660, 0.0
      %v933 = vsub.f32 0.0, %v917
      %v934 = vsub.f32 0.0, %v918
      %v935 = vsub.f32 0.0, %v919
      %v936 = vsub.f32 0.0, %v920
      %v937 = vsub.f32 0.0, %v921
      %v938 = vsub.f32 0.0, %v922
      %v939 = vsub.f32 0.0, %v923
      %v940 = vsub.f32 0.0, %v924
      %v941 = vsel %vm925, %v917, %v933
      %v942 = vsel %vm926, %v918, %v934
      %v943 = vsel %vm927, %v919, %v935
      %v944 = vsel %vm928, %v920, %v936
      %v945 = vsel %vm929, %v921, %v937
      %v946 = vsel %vm930, %v922, %v938
      %v947 = vsel %vm931, %v923, %v939
      %v948 = vsel %vm932, %v924, %v940
      %v949 = vadd.f32 %v941, 1.0
      %v950 = vadd.f32 %v942, 1.0
      %v951 = vadd.f32 %v943, 1.0
      %v952 = vadd.f32 %v944, 1.0
      %v953 = vadd.f32 %v945, 1.0
      %v954 = vadd.f32 %v946, 1.0
      %v955 = vadd.f32 %v947, 1.0
      %v956 = vadd.f32 %v948, 1.0
      %v957 = vmul.f32 %v645, %v949
      %v958 = vmul.f32 %v646, %v950
      %v959 = vmul.f32 %v647, %v951
      %v960 = vmul.f32 %v648, %v952
      %v961 = vmul.f32 %v649, %v953
      %v962 = vmul.f32 %v650, %v954
      %v963 = vmul.f32 %v651, %v955
      %v964 = vmul.f32 %v652, %v956
      %v965 = vld [vmem:[%s6] sm:$0xf]
      %v966 = vld [vmem:[%s6 + $0x4] sm:$0xf]
      %v967 = vld [vmem:[%s6 + $0x8] sm:$0xf]
      %v968 = vld [vmem:[%s6 + $0xc] sm:$0xf]
      %v969 = vld [vmem:[%s6 + $0x10] sm:$0xf]
      %v970 = vld [vmem:[%s6 + $0x14] sm:$0xf]
      %v971 = vld [vmem:[%s6 + $0x18] sm:$0xf]
      %v972 = vld [vmem:[%s6 + $0x1c] sm:$0xf]
      %v973 = vld [vmem:[%s6 + $0x20] sm:$0xf]
      %v974 = vld [vmem:[%s6 + $0x24] sm:$0xf]
      %v975 = vld [vmem:[%s6 + $0x28] sm:$0xf]
      %v976 = vld [vmem:[%s6 + $0x2c] sm:$0xf]
      %v977 = vld [vmem:[%s6 + $0x30] sm:$0xf]
      %v978 = vld [vmem:[%s6 + $0x34] sm:$0xf]
      %v979 = vld [vmem:[%s6 + $0x38] sm:$0xf]
      %v980 = vld [vmem:[%s6 + $0x3c] sm:$0xf]
      %v981 = vpack.c.bf16 %v958, %v957
      %v982 = vpack.c.bf16 %v960, %v959
      %v983 = vpack.c.bf16 %v962, %v961
      %v984 = vpack.c.bf16 %v964, %v963
      %v985 = vld [vmem:[%s7] sm:$0x1]
      %v987 = vperm.slane %v985, 0
      %v1005 = vunpack.c.l.b16 %v965
      %v1006 = vunpack.c.l.b16 %v966
      %v1007 = vunpack.c.l.b16 %v967
      %v1008 = vunpack.c.l.b16 %v968
      %v1009 = vunpack.c.l.b16 %v969
      %v1010 = vunpack.c.l.b16 %v970
      %v1011 = vunpack.c.l.b16 %v971
      %v1012 = vunpack.c.l.b16 %v972
      %v1013 = vunpack.c.l.b16 %v973
      %v1014 = vunpack.c.l.b16 %v974
      %v1015 = vunpack.c.l.b16 %v975
      %v1016 = vunpack.c.l.b16 %v976
      %v1017 = vunpack.c.l.b16 %v977
      %v1018 = vunpack.c.l.b16 %v978
      %v1019 = vunpack.c.l.b16 %v979
      %v1020 = vunpack.c.l.b16 %v980
      %v1021 = vpack.c.b16 %v1006, %v1005
      %v1022 = vpack.c.b16 %v1008, %v1007
      %v1023 = vpack.c.b16 %v1010, %v1009
      %v1024 = vpack.c.b16 %v1012, %v1011
      %v1025 = vpack.c.b16 %v1014, %v1013
      %v1026 = vpack.c.b16 %v1016, %v1015
      %v1027 = vpack.c.b16 %v1018, %v1017
      %v1028 = vpack.c.b16 %v1020, %v1019
      %1037 = vmatpush.bf16.msra.mxu0 %v1028
      %1038 = vmatpush.bf16.msra.mxu0 %v1027
      %1039 = vmatpush.bf16.msra.mxu0 %v1026
      %1040 = vmatpush.bf16.msra.mxu0 %v1025
      %1041 = vmatpush.bf16.msra.mxu0 %v1024
      %1042 = vmatpush.bf16.msra.mxu0 %v1023
      %1043 = vmatpush.bf16.msra.mxu0 %v1022
      %1044 = vmatpush.bf16.msra.mxu0 %v1021
      %1045 = vmatmul.bf16.gmra.mxu0 %v981
      %v1046 = vpop.f32.mrf.mxu0
      %v1047 = vadd.f32 %v987, %v1046
      %v1048 = vpop.f32.mrf.mxu0
      %v1049 = vadd.f32 %v987, %v1048
      %1050 = vmatmul.bf16.gmra.mxu0 %v982
      %v1051 = vpop.f32.mrf.mxu0
      %v1052 = vadd.f32 %v987, %v1051
      %v1053 = vpop.f32.mrf.mxu0
      %v1054 = vadd.f32 %v987, %v1053
      %1055 = vmatmul.bf16.gmra.mxu0 %v983
      %v1056 = vpop.f32.mrf.mxu0
      %v1057 = vadd.f32 %v987, %v1056
      %v1058 = vpop.f32.mrf.mxu0
      %v1059 = vadd.f32 %v987, %v1058
      %1060 = vmatmul.bf16.gmra.mxu0 %v984
      %v1061 = vpop.f32.mrf.mxu0
      %v1062 = vadd.f32 %v987, %v1061
      %v1063 = vpop.f32.mrf.mxu0
      %v1064 = vadd.f32 %v987, %v1063
      %1065 = vdwg.mxu0
      %v1066 = vadd.f32 %v1047, %v364
      %v1067 = vadd.f32 %v1049, %v365
      %v1068 = vadd.f32 %v1052, %v366
      %v1069 = vadd.f32 %v1054, %v367
      %v1070 = vadd.f32 %v1057, %v368
      %v1071 = vadd.f32 %v1059, %v369
      %v1072 = vadd.f32 %v1062, %v370
      %v1073 = vadd.f32 %v1064, %v371
      %v1074 = vpack.c.bf16 %v1066, %v1066
      %v1075 = vpack.c.bf16 %v1067, %v1067
      %v1076 = vpack.c.bf16 %v1068, %v1068
      %v1077 = vpack.c.bf16 %v1069, %v1069
      %v1078 = vpack.c.bf16 %v1070, %v1070
      %v1079 = vpack.c.bf16 %v1071, %v1071
      %v1080 = vpack.c.bf16 %v1072, %v1072
      %v1081 = vpack.c.bf16 %v1073, %v1073
      %vm1082 = vcmask 257024
      %1083 = vst.msk [vmem:[%s329] sm:$0xf] %vm1082, %v1074
      %1084 = vst.msk [vmem:[%s329 + $0x4] sm:$0xf] %vm1082, %v1075
      %1085 = vst.msk [vmem:[%s329 + $0x8] sm:$0xf] %vm1082, %v1076
      %1086 = vst.msk [vmem:[%s329 + $0xc] sm:$0xf] %vm1082, %v1077
      %1087 = vst.msk [vmem:[%s329 + $0x10] sm:$0xf] %vm1082, %v1078
      %1088 = vst.msk [vmem:[%s329 + $0x14] sm:$0xf] %vm1082, %v1079
      %1089 = vst.msk [vmem:[%s329 + $0x18] sm:$0xf] %vm1082, %v1080
      %1090 = vst.msk [vmem:[%s329 + $0x1c] sm:$0xf] %vm1082, %v1081
      %s1091 = smul.u32 8, %s19
      %p1092 = scmp.lt.s32.totalorder %s1091, 15
      %s1093 = scalar_select %p1092, %s1091, 15
      %s1094 = smul.addr %s1093, 4
      %s1095 = scalar_lea.vmem %s8, %s1094
      // Predicated region
      $region53: #{swin_forward.12} parent=51 // pred_check
        %p1096 = pneg %p215
      $region54: #{swin_forward.12} parent=51 // pred_check_branch
        %1098 = sbr.rel (%p1096) target = $region56
      $region55: #{swin_forward.12} parent=51 // pred_region
        %s1099 = smul.u32 8, %s19
      $region56: #{swin_forward.12} parent=51 // pred_fallthru
        _
    $region52: #{swin_forward.12} parent=5 // pred_fallthru
      _
    %p1100 = scmp.le.s32.totalorder 2, %s14
    // Predicated region
    $region57: #{swin_forward.12} parent=5 // pred_check
      %p1101 = pneg %p1100
    $region58: #{swin_forward.12} parent=5 // pred_check_branch
      %1103 = sbr.rel (%p1101) target = $region60
    $region59: #{swin_forward.12} parent=5 // pred_region
      %s1104 = ssub.s32 %s14, 2
      // Predicated region
      $region61: #{swin_forward.12} parent=59 // pred_check
        %p1105 = pneg %p221
      $region62: #{swin_forward.12} parent=59 // pred_check_branch
        %1107 = sbr.rel (%p1105) target = $region64
      $region63: #{swin_forward.12} parent=59 // pred_region
        %s1108 = smul.u32 8, %s20
        %p1109 = scmp.lt.s32.totalorder %s1108, 15
        %s1110 = scalar_select %p1109, %s1108, 15
        %s1111 = smul.addr %s1110, 4
        %s1112 = scalar_lea.vmem %s8, %s1111
      $region64: #{swin_forward.12} parent=59 // pred_fallthru
        _
    $region60: #{swin_forward.12} parent=5 // pred_fallthru
      _
  $region6: #{swin_forward.12} parent=0 // loop_footer
    %s18 = sadd.s32 1, %s14
  $region7: #{swin_forward.12} parent=0 // loop_footer_branch
    %13 = sbr.rel target = $region3
  $region8: #{swin_forward.12} parent=0 // loop_exit
    _

// kernel: swin_forward.11
$region0: #{swin_forward.11}
  #allocation0 [shape = 'u32[]', space=smem, size = 0x4, offset = 0x4, fixed_abs, tag = 'smem constant byte address 0x4 - core index']
  #allocation1 [shape = 'u32[72,128]{1,0:T(1,128)}', space=vmem, size = 0x9000, scoped, tag = 'internal scratch']
  %s0 = inlined_call_operand.vmem [shape: bf16[8,16,32], index: 0, kind: input, shape index: {}]
  %s1 = inlined_call_operand.vmem [shape: f32[1,2,16,16], index: 1, kind: input, shape index: {}]
  %s2 = inlined_call_operand.vmem [shape: f32[1,32], index: 2, kind: input, shape index: {}]
  %s3 = inlined_call_operand.vmem [shape: f32[1,32], index: 3, kind: input, shape index: {}]
  %s4 = inlined_call_operand.vmem [shape: bf16[32,96], index: 4, kind: input, shape index: {}]
  %s5 = inlined_call_operand.vmem [shape: f32[1,96], index: 5, kind: input, shape index: {}]
  %s6 = inlined_call_operand.vmem [shape: bf16[32,32], index: 6, kind: input, shape index: {}]
  %s7 = inlined_call_operand.vmem [shape: f32[1,32], index: 7, kind: input, shape index: {}]
  %s8 = inlined_call_operand.vmem [shape: bf16[8,16,32], index: 8, kind: output, shape index: {}]
  %s9 = sld [smem:[#allocation0]]
  $region65: #{swin_forward.11} parent=0
    _
  %s11 = ssub.s32 1, %s9
  %s12 = scalar_select 0, %s11, %s9
  loop: start=0, step=1, limit=4
  $region2: #{swin_forward.11} parent=0 // loop_pre_header
    _
  $region3: #{swin_forward.11} parent=0 // loop_header
    %s14 = sphi 0, %s18
    %p15 = scmp.ge.s32.totalorder %s14, 4
    %s24 = sphi 0, %s26
    %s27 = sphi 0, %s24
    %s28 = sphi 0, %s27
    %s44 = sphi 0, %s28
    %s48 = sphi 0, %s48
    %s50 = sphi 0, %s48
    %s51 = sphi 0, %s50
    %s65 = sphi 0, %s51
    %s69 = sphi 0, %s69
    %s71 = sphi 0, %s69
    %s72 = sphi 0, %s71
    %s86 = sphi 0, %s72
    %s90 = sphi 0, %s90
    %s92 = sphi 0, %s90
    %s93 = sphi 0, %s92
    %s107 = sphi 0, %s93
    %s111 = sphi 0, %s111
    %s113 = sphi 0, %s111
    %s114 = sphi 0, %s113
    %s128 = sphi 0, %s114
    %s132 = sphi 0, %s132
    %s134 = sphi 0, %s132
    %s135 = sphi 0, %s134
    %s149 = sphi 0, %s135
    %s153 = sphi 0, %s153
    %s155 = sphi 0, %s153
    %s156 = sphi 0, %s155
    %s170 = sphi 0, %s156
    %s174 = sphi 0, %s174
    %s176 = sphi 0, %s174
    %s177 = sphi 0, %s176
    %s191 = sphi 0, %s177
    %s197 = sphi 0, %s199
    %s200 = sphi 0, %s197
    %s201 = sphi 0, %s200
    %s217 = sphi 0, %s201
  $region4: #{swin_forward.11} parent=0 // loop_header_branch
    %17 = sbr.rel (%p15) target = $region8
  $region5: #{swin_forward.11} parent=0 // loop_body
    %s19 = ssub.s32 %s14, 1
    %s20 = ssub.s32 %s14, 2
    %s21 = sadd.s32 %s14, 1
    %s22 = ssub.s32 %s14, %s21
    %p23 = scmp.eq.s32.totalorder %s22, 0
    %s25 = sadd.s32 %s24, 1
    %s26 = scalar_select %p23, %s24, %s25
    %p29 = pneg %p23
    %p30 = scmp.eq.s32.totalorder %s14, 1
    %p31 = por %p29, %p30
    %p32 = scmp.ne.s32.totalorder %s24, %s27
    %p33 = scmp.eq.s32.totalorder %s14, 0
    %p34 = por %p32, %p33
    %p35 = scmp.ne.s32.totalorder %s24, %s27
    %p36 = scmp.eq.s32.totalorder %s19, 1
    %p37 = por %p35, %p36
    %p38 = scmp.ne.s32.totalorder %s27, %s28
    %p39 = scmp.eq.s32.totalorder %s19, 0
    %p40 = por %p38, %p39
    %p41 = scmp.ne.s32.totalorder %s27, %s28
    %p42 = scmp.eq.s32.totalorder %s20, 1
    %p43 = por %p41, %p42
    %p45 = scmp.ne.s32.totalorder %s28, %s44
    %p46 = scmp.eq.s32.totalorder %s20, 0
    %p47 = por %p45, %p46
    %s49 = sadd.s32 %s48, 1
    %p52 = scmp.eq.s32.totalorder %s14, 1
    %p53 = scmp.ne.s32.totalorder %s48, %s50
    %p54 = scmp.eq.s32.totalorder %s14, 0
    %p55 = por %p53, %p54
    %p56 = scmp.ne.s32.totalorder %s48, %s50
    %p57 = scmp.eq.s32.totalorder %s19, 1
    %p58 = por %p56, %p57
    %p59 = scmp.ne.s32.totalorder %s50, %s51
    %p60 = scmp.eq.s32.totalorder %s19, 0
    %p61 = por %p59, %p60
    %p62 = scmp.ne.s32.totalorder %s50, %s51
    %p63 = scmp.eq.s32.totalorder %s20, 1
    %p64 = por %p62, %p63
    %p66 = scmp.ne.s32.totalorder %s51, %s65
    %p67 = scmp.eq.s32.totalorder %s20, 0
    %p68 = por %p66, %p67
    %s70 = sadd.s32 %s69, 1
    %p73 = scmp.eq.s32.totalorder %s14, 1
    %p74 = scmp.ne.s32.totalorder %s69, %s71
    %p75 = scmp.eq.s32.totalorder %s14, 0
    %p76 = por %p74, %p75
    %p77 = scmp.ne.s32.totalorder %s69, %s71
    %p78 = scmp.eq.s32.totalorder %s19, 1
    %p79 = por %p77, %p78
    %p80 = scmp.ne.s32.totalorder %s71, %s72
    %p81 = scmp.eq.s32.totalorder %s19, 0
    %p82 = por %p80, %p81
    %p83 = scmp.ne.s32.totalorder %s71, %s72
    %p84 = scmp.eq.s32.totalorder %s20, 1
    %p85 = por %p83, %p84
    %p87 = scmp.ne.s32.totalorder %s72, %s86
    %p88 = scmp.eq.s32.totalorder %s20, 0
    %p89 = por %p87, %p88
    %s91 = sadd.s32 %s90, 1
    %p94 = scmp.eq.s32.totalorder %s14, 1
    %p95 = scmp.ne.s32.totalorder %s90, %s92
    %p96 = scmp.eq.s32.totalorder %s14, 0
    %p97 = por %p95, %p96
    %p98 = scmp.ne.s32.totalorder %s90, %s92
    %p99 = scmp.eq.s32.totalorder %s19, 1
    %p100 = por %p98, %p99
    %p101 = scmp.ne.s32.totalorder %s92, %s93
    %p102 = scmp.eq.s32.totalorder %s19, 0
    %p103 = por %p101, %p102
    %p104 = scmp.ne.s32.totalorder %s92, %s93
    %p105 = scmp.eq.s32.totalorder %s20, 1
    %p106 = por %p104, %p105
    %p108 = scmp.ne.s32.totalorder %s93, %s107
    %p109 = scmp.eq.s32.totalorder %s20, 0
    %p110 = por %p108, %p109
    %s112 = sadd.s32 %s111, 1
    %p115 = scmp.eq.s32.totalorder %s14, 1
    %p116 = scmp.ne.s32.totalorder %s111, %s113
    %p117 = scmp.eq.s32.totalorder %s14, 0
    %p118 = por %p116, %p117
    %p119 = scmp.ne.s32.totalorder %s111, %s113
    %p120 = scmp.eq.s32.totalorder %s19, 1
    %p121 = por %p119, %p120
    %p122 = scmp.ne.s32.totalorder %s113, %s114
    %p123 = scmp.eq.s32.totalorder %s19, 0
    %p124 = por %p122, %p123
    %p125 = scmp.ne.s32.totalorder %s113, %s114
    %p126 = scmp.eq.s32.totalorder %s20, 1
    %p127 = por %p125, %p126
    %p129 = scmp.ne.s32.totalorder %s114, %s128
    %p130 = scmp.eq.s32.totalorder %s20, 0
    %p131 = por %p129, %p130
    %s133 = sadd.s32 %s132, 1
    %p136 = scmp.eq.s32.totalorder %s14, 1
    %p137 = scmp.ne.s32.totalorder %s132, %s134
    %p138 = scmp.eq.s32.totalorder %s14, 0
    %p139 = por %p137, %p138
    %p140 = scmp.ne.s32.totalorder %s132, %s134
    %p141 = scmp.eq.s32.totalorder %s19, 1
    %p142 = por %p140, %p141
    %p143 = scmp.ne.s32.totalorder %s134, %s135
    %p144 = scmp.eq.s32.totalorder %s19, 0
    %p145 = por %p143, %p144
    %p146 = scmp.ne.s32.totalorder %s134, %s135
    %p147 = scmp.eq.s32.totalorder %s20, 1
    %p148 = por %p146, %p147
    %p150 = scmp.ne.s32.totalorder %s135, %s149
    %p151 = scmp.eq.s32.totalorder %s20, 0
    %p152 = por %p150, %p151
    %s154 = sadd.s32 %s153, 1
    %p157 = scmp.eq.s32.totalorder %s14, 1
    %p158 = scmp.ne.s32.totalorder %s153, %s155
    %p159 = scmp.eq.s32.totalorder %s14, 0
    %p160 = por %p158, %p159
    %p161 = scmp.ne.s32.totalorder %s153, %s155
    %p162 = scmp.eq.s32.totalorder %s19, 1
    %p163 = por %p161, %p162
    %p164 = scmp.ne.s32.totalorder %s155, %s156
    %p165 = scmp.eq.s32.totalorder %s19, 0
    %p166 = por %p164, %p165
    %p167 = scmp.ne.s32.totalorder %s155, %s156
    %p168 = scmp.eq.s32.totalorder %s20, 1
    %p169 = por %p167, %p168
    %p171 = scmp.ne.s32.totalorder %s156, %s170
    %p172 = scmp.eq.s32.totalorder %s20, 0
    %p173 = por %p171, %p172
    %s175 = sadd.s32 %s174, 1
    %p178 = scmp.eq.s32.totalorder %s14, 1
    %p179 = scmp.ne.s32.totalorder %s174, %s176
    %p180 = scmp.eq.s32.totalorder %s14, 0
    %p181 = por %p179, %p180
    %p182 = scmp.ne.s32.totalorder %s174, %s176
    %p183 = scmp.eq.s32.totalorder %s19, 1
    %p184 = por %p182, %p183
    %p185 = scmp.ne.s32.totalorder %s176, %s177
    %p186 = scmp.eq.s32.totalorder %s19, 0
    %p187 = por %p185, %p186
    %p188 = scmp.ne.s32.totalorder %s176, %s177
    %p189 = scmp.eq.s32.totalorder %s20, 1
    %p190 = por %p188, %p189
    %p192 = scmp.ne.s32.totalorder %s177, %s191
    %p193 = scmp.eq.s32.totalorder %s20, 0
    %p194 = por %p192, %p193
    %s195 = ssub.s32 %s14, %s21
    %p196 = scmp.eq.s32.totalorder %s195, 0
    %s198 = sadd.s32 %s197, 1
    %s199 = scalar_select %p196, %s197, %s198
    %p202 = pneg %p196
    %p203 = scmp.eq.s32.totalorder %s14, 1
    %p204 = por %p202, %p203
    %p205 = scmp.ne.s32.totalorder %s197, %s200
    %p206 = scmp.eq.s32.totalorder %s14, 0
    %p207 = por %p205, %p206
    %p208 = scmp.ne.s32.totalorder %s197, %s200
    %p209 = scmp.eq.s32.totalorder %s19, 1
    %p210 = por %p208, %p209
    %p211 = scmp.ne.s32.totalorder %s200, %s201
    %p212 = scmp.eq.s32.totalorder %s19, 0
    %p213 = por %p211, %p212
    %p214 = scmp.ne.s32.totalorder %s200, %s201
    %p215 = scmp.eq.s32.totalorder %s20, 1
    %p216 = por %p214, %p215
    %p218 = scmp.ne.s32.totalorder %s201, %s217
    %p219 = scmp.eq.s32.totalorder %s20, 0
    %p220 = por %p218, %p219
    %p221 = scmp.le.s32.totalorder 1, %s14
    %p222 = scmp.lt.s32.totalorder %s14, 3
    %p223 = pnand %p221, %p222
    %p224 = pneg %p223
    // Predicated region
    $region9: #{swin_forward.11} parent=5 // pred_check
      _
    $region10: #{swin_forward.11} parent=5 // pred_check_branch
      %226 = sbr.rel (%p223) target = $region12
    $region11: #{swin_forward.11} parent=5 // pred_region
      %s227 = ssub.s32 %s14, 1
      // Predicated region
      $region13: #{swin_forward.11} parent=11 // pred_check
        %p228 = pneg %p61
      $region14: #{swin_forward.11} parent=11 // pred_check_branch
        %230 = sbr.rel (%p228) target = $region16
      $region15: #{swin_forward.11} parent=11 // pred_region
        _
      $region16: #{swin_forward.11} parent=11 // pred_fallthru
        _
      // Predicated region
      $region17: #{swin_forward.11} parent=11 // pred_check
        %p231 = pneg %p82
      $region18: #{swin_forward.11} parent=11 // pred_check_branch
        %233 = sbr.rel (%p231) target = $region20
      $region19: #{swin_forward.11} parent=11 // pred_region
        _
      $region20: #{swin_forward.11} parent=11 // pred_fallthru
        _
      // Predicated region
      $region21: #{swin_forward.11} parent=11 // pred_check
        %p234 = pneg %p103
      $region22: #{swin_forward.11} parent=11 // pred_check_branch
        %236 = sbr.rel (%p234) target = $region24
      $region23: #{swin_forward.11} parent=11 // pred_region
        _
      $region24: #{swin_forward.11} parent=11 // pred_fallthru
        _
      // Predicated region
      $region25: #{swin_forward.11} parent=11 // pred_check
        %p237 = pneg %p124
      $region26: #{swin_forward.11} parent=11 // pred_check_branch
        %239 = sbr.rel (%p237) target = $region28
      $region27: #{swin_forward.11} parent=11 // pred_region
        _
      $region28: #{swin_forward.11} parent=11 // pred_fallthru
        _
      // Predicated region
      $region29: #{swin_forward.11} parent=11 // pred_check
        %p240 = pneg %p145
      $region30: #{swin_forward.11} parent=11 // pred_check_branch
        %242 = sbr.rel (%p240) target = $region32
      $region31: #{swin_forward.11} parent=11 // pred_region
        _
      $region32: #{swin_forward.11} parent=11 // pred_fallthru
        _
      // Predicated region
      $region33: #{swin_forward.11} parent=11 // pred_check
        %p243 = pneg %p166
      $region34: #{swin_forward.11} parent=11 // pred_check_branch
        %245 = sbr.rel (%p243) target = $region36
      $region35: #{swin_forward.11} parent=11 // pred_region
        _
      $region36: #{swin_forward.11} parent=11 // pred_fallthru
        _
      // Predicated region
      $region37: #{swin_forward.11} parent=11 // pred_check
        %p246 = pneg %p187
      $region38: #{swin_forward.11} parent=11 // pred_check_branch
        %248 = sbr.rel (%p246) target = $region40
      $region39: #{swin_forward.11} parent=11 // pred_region
        _
      $region40: #{swin_forward.11} parent=11 // pred_fallthru
        _
    $region12: #{swin_forward.11} parent=5 // pred_fallthru
      _
    %p249 = scmp.lt.s32.totalorder %s14, 2
    // Predicated region
    $region41: #{swin_forward.11} parent=5 // pred_check
      %p250 = pneg %p249
    $region42: #{swin_forward.11} parent=5 // pred_check_branch
      %252 = sbr.rel (%p250) target = $region44
    $region43: #{swin_forward.11} parent=5 // pred_region
      // Predicated region
      $region45: #{swin_forward.11} parent=43 // pred_check
        %p253 = pneg %p34
      $region46: #{swin_forward.11} parent=43 // pred_check_branch
        %255 = sbr.rel (%p253) target = $region48
      $region47: #{swin_forward.11} parent=43 // pred_region
        %s256 = smul.u32 4, %s14
        %p257 = scmp.lt.s32.totalorder %s256, 7
        %s258 = scalar_select %p257, %s256, 7
        %s259 = smul.addr %s258, 2
        %s260 = smul.addr %s259, 4
        %s261 = scalar_lea.vmem %s0, %s260
        %s262 = smul.u32 4, %s14
      $region48: #{swin_forward.11} parent=43 // pred_fallthru
        _
    $region44: #{swin_forward.11} parent=5 // pred_fallthru
      _
    %p263 = scmp.le.s32.totalorder 1, %s14
    %p264 = scmp.lt.s32.totalorder %s14, 3
    %p265 = pnand %p263, %p264
    %p266 = pneg %p265
    // Predicated region
    $region49: #{swin_forward.11} parent=5 // pred_check
      _
    $region50: #{swin_forward.11} parent=5 // pred_check_branch
      %268 = sbr.rel (%p265) target = $region52
    $region51: #{swin_forward.11} parent=5 // pred_region
      %s269 = ssub.s32 %s14, 1
      %s270 = smul.u32 4, %s19
      %p271 = scmp.lt.s32.totalorder %s270, 7
      %s272 = scalar_select %p271, %s270, 7
      %s273 = smul.addr %s272, 2
      %s274 = smul.addr %s273, 4
      %s275 = scalar_lea.vmem %s0, %s274
      %p276 = pneg %p40
      %p277 = pneg %p37
      %p278 = pneg %p61
      %p279 = pneg %p58
      %p280 = pneg %p82
      %p281 = pneg %p79
      %p282 = pneg %p103
      %p283 = pneg %p100
      %p284 = pneg %p124
      %p285 = pneg %p121
      %p286 = pneg %p145
      %p287 = pneg %p142
      %p288 = pneg %p166
      %p289 = pneg %p163
      %p290 = pneg %p187
      %p291 = pneg %p184
      %p292 = pneg %p213
      %p293 = pneg %p210
      %s294 = smul.u32 4, %s19
      %p295 = scmp.lt.s32.totalorder %s294, 7
      %s296 = scalar_select %p295, %s294, 7
      %s297 = smul.addr %s296, 2
      %s298 = smul.addr %s297, 4
      %s299 = scalar_lea.vmem %s8, %s298
      %s300 = smul.u32 4, %s19
      %p301 = scmp.lt.s32.totalorder %s300, 7
      %s302 = scalar_select %p301, %s300, 7
      %s303 = smul.addr %s302, 2
      %s304 = smul.addr %s303, 4
      %s305 = scalar_lea.vmem %s0, %s304
      %s306 = smul.u32 4, %s19
      %s307 = smul.u32 4, %s19
      %p308 = scmp.lt.s32.totalorder %s307, 7
      %s309 = scalar_select %p308, %s307, 7
      %s310 = smul.addr %s309, 2
      %s311 = smul.addr %s310, 4
      %s312 = scalar_lea.vmem %s8, %s311
      %s313 = smul.u32 4, %s19
      %v315 = vld [vmem:[%s305] sm:$0xf]
      %v316 = vld [vmem:[%s305 + $0x4] sm:$0xf]
      %v317 = vld [vmem:[%s305 + $0x8] sm:$0xf]
      %v318 = vld [vmem:[%s305 + $0xc] sm:$0xf]
      %v319 = vld [vmem:[%s305 + $0x10] sm:$0xf]
      %v320 = vld [vmem:[%s305 + $0x14] sm:$0xf]
      %v321 = vld [vmem:[%s305 + $0x18] sm:$0xf]
      %v322 = vld [vmem:[%s305 + $0x1c] sm:$0xf]
      %v323 = vunpack.c.l.bf16 %v315
      %v324 = vunpack.c.l.bf16 %v316
      %v325 = vunpack.c.l.bf16 %v317
      %v326 = vunpack.c.l.bf16 %v318
      %v327 = vunpack.c.l.bf16 %v319
      %v328 = vunpack.c.l.bf16 %v320
      %v329 = vunpack.c.l.bf16 %v321
      %v330 = vunpack.c.l.bf16 %v322
      %v331 = vld [vmem:[%s2] sm:$0x1]
      %v332 = vld [vmem:[%s3] sm:$0x1]
      %vm333 = vcmask 261120
      %v334 = vsel %vm333, %v323, 0.0
      %335 = vadd.xlane.f32.xlu0 %v334
      %v336 = vpop.xlane.xlu0 %335
      %v337 = vsel %vm333, %v324, 0.0
      %338 = vadd.xlane.f32.xlu0 %v337
      %v339 = vpop.xlane.xlu0 %338
      %v340 = vsel %vm333, %v325, 0.0
      %341 = vadd.xlane.f32.xlu0 %v340
      %v342 = vpop.xlane.xlu0 %341
      %v343 = vsel %vm333, %v326, 0.0
      %344 = vadd.xlane.f32.xlu0 %v343
      %v345 = vpop.xlane.xlu0 %344
      %v346 = vsel %vm333, %v327, 0.0
      %347 = vadd.xlane.f32.xlu0 %v346
      %v348 = vpop.xlane.xlu0 %347
      %v349 = vsel %vm333, %v328, 0.0
      %350 = vadd.xlane.f32.xlu0 %v349
      %v351 = vpop.xlane.xlu0 %350
      %v352 = vsel %vm333, %v329, 0.0
      %353 = vadd.xlane.f32.xlu0 %v352
      %v354 = vpop.xlane.xlu0 %353
      %v355 = vsel %vm333, %v330, 0.0
      %356 = vadd.xlane.f32.xlu0 %v355
      %v357 = vpop.xlane.xlu0 %356
      %v358 = vrcp.pop 32.0
      %v359 = vmul.f32 32.0, %v358
      %v360 = vsub.f32 1.0, %v359
      %v361 = vmul.f32 %v358, %v360
      %v362 = vadd.f32 %v358, %v361
      %vm363 = vweird.f32 %v358
      %v364 = vsel %vm363, %v358, %v362
      %v365 = vmul.f32 %v336, %v364
      %v366 = vmul.f32 %v339, %v364
      %v367 = vmul.f32 %v342, %v364
      %v368 = vmul.f32 %v345, %v364
      %v369 = vmul.f32 %v348, %v364
      %v370 = vmul.f32 %v351, %v364
      %v371 = vmul.f32 %v354, %v364
      %v372 = vmul.f32 %v357, %v364
      %v373 = vsub.f32 %v323, %v365
      %v374 = vsub.f32 %v324, %v366
      %v375 = vsub.f32 %v325, %v367
      %v376 = vsub.f32 %v326, %v368
      %v377 = vsub.f32 %v327, %v369
      %v378 = vsub.f32 %v328, %v370
      %v379 = vsub.f32 %v329, %v371
      %v380 = vsub.f32 %v330, %v372
      %v381 = vmul.f32 %v373, %v373
      %v382 = vmul.f32 %v374, %v374
      %v383 = vmul.f32 %v375, %v375
      %v384 = vmul.f32 %v376, %v376
      %v385 = vmul.f32 %v377, %v377
      %v386 = vmul.f32 %v378, %v378
      %v387 = vmul.f32 %v379, %v379
      %v388 = vmul.f32 %v380, %v380
      %v389 = vsel %vm333, %v381, 0.0
      %390 = vadd.xlane.f32.xlu0 %v389
      %v391 = vpop.xlane.xlu0 %390
      %v392 = vsel %vm333, %v382, 0.0
      %393 = vadd.xlane.f32.xlu0 %v392
      %v394 = vpop.xlane.xlu0 %393
      %v395 = vsel %vm333, %v383, 0.0
      %396 = vadd.xlane.f32.xlu0 %v395
      %v397 = vpop.xlane.xlu0 %396
      %v398 = vsel %vm333, %v384, 0.0
      %399 = vadd.xlane.f32.xlu0 %v398
      %v400 = vpop.xlane.xlu0 %399
      %v401 = vsel %vm333, %v385, 0.0
      %402 = vadd.xlane.f32.xlu0 %v401
      %v403 = vpop.xlane.xlu0 %402
      %v404 = vsel %vm333, %v386, 0.0
      %405 = vadd.xlane.f32.xlu0 %v404
      %v406 = vpop.xlane.xlu0 %405
      %v407 = vsel %vm333, %v387, 0.0
      %408 = vadd.xlane.f32.xlu0 %v407
      %v409 = vpop.xlane.xlu0 %408
      %v410 = vsel %vm333, %v388, 0.0
      %411 = vadd.xlane.f32.xlu0 %v410
      %v412 = vpop.xlane.xlu0 %411
      %v413 = vmul.f32 %v391, %v364
      %v414 = vmul.f32 %v394, %v364
      %v415 = vmul.f32 %v397, %v364
      %v416 = vmul.f32 %v400, %v364
      %v417 = vmul.f32 %v403, %v364
      %v418 = vmul.f32 %v406, %v364
      %v419 = vmul.f32 %v409, %v364
      %v420 = vmul.f32 %v412, %v364
      %v421 = vadd.f32 %v413, 1e-05
      %v422 = vadd.f32 %v414, 1e-05
      %v423 = vadd.f32 %v415, 1e-05
      %v424 = vadd.f32 %v416, 1e-05
      %v425 = vadd.f32 %v417, 1e-05
      %v426 = vadd.f32 %v418, 1e-05
      %v427 = vadd.f32 %v419, 1e-05
      %v428 = vadd.f32 %v420, 1e-05
      %v429 = vrsqrt.pop %v421
      %v430 = vmul.f32 %v429, %v421
      %v431 = vmul.f32 %v430, %v429
      %v432 = vmul.f32 0.5, %v431
      %v433 = vsub.f32 1.5, %v432
      %v434 = vmul.f32 %v429, %v433
      %vm435 = vweird.f32 %v421
      %vm436 = vweird.f32 %v429
      %vm437 = vmor %vm435, %vm436
      %v438 = vsel %vm437, %v429, %v434
      %v439 = vrsqrt.pop %v422
      %v440 = vmul.f32 %v439, %v422
      %v441 = vmul.f32 %v440, %v439
      %v442 = vmul.f32 0.5, %v441
      %v443 = vsub.f32 1.5, %v442
      %v444 = vmul.f32 %v439, %v443
      %vm445 = vweird.f32 %v422
      %vm446 = vweird.f32 %v439
      %vm447 = vmor %vm445, %vm446
      %v448 = vsel %vm447, %v439, %v444
      %v449 = vrsqrt.pop %v423
      %v450 = vmul.f32 %v449, %v423
      %v451 = vmul.f32 %v450, %v449
      %v452 = vmul.f32 0.5, %v451
      %v453 = vsub.f32 1.5, %v452
      %v454 = vmul.f32 %v449, %v453
      %vm455 = vweird.f32 %v423
      %vm456 = vweird.f32 %v449
      %vm457 = vmor %vm455, %vm456
      %v458 = vsel %vm457, %v449, %v454
      %v459 = vrsqrt.pop %v424
      %v460 = vmul.f32 %v459, %v424
      %v461 = vmul.f32 %v460, %v459
      %v462 = vmul.f32 0.5, %v461
      %v463 = vsub.f32 1.5, %v462
      %v464 = vmul.f32 %v459, %v463
      %vm465 = vweird.f32 %v424
      %vm466 = vweird.f32 %v459
      %vm467 = vmor %vm465, %vm466
      %v468 = vsel %vm467, %v459, %v464
      %v469 = vrsqrt.pop %v425
      %v470 = vmul.f32 %v469, %v425
      %v471 = vmul.f32 %v470, %v469
      %v472 = vmul.f32 0.5, %v471
      %v473 = vsub.f32 1.5, %v472
      %v474 = vmul.f32 %v469, %v473
      %vm475 = vweird.f32 %v425
      %vm476 = vweird.f32 %v469
      %vm477 = vmor %vm475, %vm476
      %v478 = vsel %vm477, %v469, %v474
      %v479 = vrsqrt.pop %v426
      %v480 = vmul.f32 %v479, %v426
      %v481 = vmul.f32 %v480, %v479
      %v482 = vmul.f32 0.5, %v481
      %v483 = vsub.f32 1.5, %v482
      %v484 = vmul.f32 %v479, %v483
      %vm485 = vweird.f32 %v426
      %vm486 = vweird.f32 %v479
      %vm487 = vmor %vm485, %vm486
      %v488 = vsel %vm487, %v479, %v484
      %v489 = vrsqrt.pop %v427
      %v490 = vmul.f32 %v489, %v427
      %v491 = vmul.f32 %v490, %v489
      %v492 = vmul.f32 0.5, %v491
      %v493 = vsub.f32 1.5, %v492
      %v494 = vmul.f32 %v489, %v493
      %vm495 = vweird.f32 %v427
      %vm496 = vweird.f32 %v489
      %vm497 = vmor %vm495, %vm496
      %v498 = vsel %vm497, %v489, %v494
      %v499 = vrsqrt.pop %v428
      %v500 = vmul.f32 %v499, %v428
      %v501 = vmul.f32 %v500, %v499
      %v502 = vmul.f32 0.5, %v501
      %v503 = vsub.f32 1.5, %v502
      %v504 = vmul.f32 %v499, %v503
      %vm505 = vweird.f32 %v428
      %vm506 = vweird.f32 %v499
      %vm507 = vmor %vm505, %vm506
      %v508 = vsel %vm507, %v499, %v504
      %v509 = vmul.f32 %v373, %v438
      %v510 = vmul.f32 %v374, %v448
      %v511 = vmul.f32 %v375, %v458
      %v512 = vmul.f32 %v376, %v468
      %v513 = vmul.f32 %v377, %v478
      %v514 = vmul.f32 %v378, %v488
      %v515 = vmul.f32 %v379, %v498
      %v516 = vmul.f32 %v380, %v508
      %v518 = vperm.slane %v331, 0
      %v520 = vmul.f32 %v509, %v518
      %v521 = vmul.f32 %v510, %v518
      %v522 = vmul.f32 %v511, %v518
      %v523 = vmul.f32 %v512, %v518
      %v524 = vmul.f32 %v513, %v518
      %v525 = vmul.f32 %v514, %v518
      %v526 = vmul.f32 %v515, %v518
      %v527 = vmul.f32 %v516, %v518
      %v529 = vperm.slane %v332, 0
      %v531 = vadd.f32 %v520, %v529
      %v532 = vadd.f32 %v521, %v529
      %v533 = vadd.f32 %v522, %v529
      %v534 = vadd.f32 %v523, %v529
      %v535 = vadd.f32 %v524, %v529
      %v536 = vadd.f32 %v525, %v529
      %v537 = vadd.f32 %v526, %v529
      %v538 = vadd.f32 %v527, %v529
      %v539 = vld [vmem:[%s1] sm:$0xff]
      %v540 = vld [vmem:[%s1 + $0x8] sm:$0xff]
      %v541 = vld [vmem:[%s1 + $0x10] sm:$0xff]
      %v542 = vld [vmem:[%s1 + $0x18] sm:$0xff]
      %v543 = vld [vmem:[%s4] sm:$0xf]
      %v544 = vld [vmem:[%s4 + $0x4] sm:$0xf]
      %v545 = vld [vmem:[%s4 + $0x8] sm:$0xf]
      %v546 = vld [vmem:[%s4 + $0xc] sm:$0xf]
      %v547 = vld [vmem:[%s5] sm:$0x1]
      %v548 = vld [vmem:[%s6] sm:$0xf]
      %v549 = vld [vmem:[%s6 + $0x4] sm:$0xf]
      %v550 = vld [vmem:[%s6 + $0x8] sm:$0xf]
      %v551 = vld [vmem:[%s6 + $0xc] sm:$0xf]
      %v552 = vld [vmem:[%s7] sm:$0x1]
      %v553 = vpack.c.bf16 %v532, %v531
      %v554 = vpack.c.bf16 %v534, %v533
      %v555 = vpack.c.bf16 %v536, %v535
      %v556 = vpack.c.bf16 %v538, %v537
      %v558 = vperm.slane %v547, 0
      %v564 = vunpack.c.l.b16 %v543
      %v565 = vunpack.c.l.b16 %v544
      %v566 = vunpack.c.l.b16 %v545
      %v567 = vunpack.c.l.b16 %v546
      %v568 = vpack.c.b16 %v565, %v564
      %v569 = vpack.c.b16 %v567, %v566
      %v573 = vsel %vm333, %v553, 0
      %v576 = vsel %vm333, %v554, 0
      %v579 = vsel %vm333, %v555, 0
      %v582 = vsel %vm333, %v556, 0
      %584 = vmatpush.bf16.msra.mxu0 0
      %585 = vmatpush.bf16.msra.mxu0 0
      %586 = vmatpush.bf16.msra.mxu0 0
      %587 = vmatpush.bf16.msra.mxu0 0
      %588 = vmatpush.bf16.msra.mxu0 0
      %589 = vmatpush.bf16.msra.mxu0 0
      %590 = vmatpush.bf16.msra.mxu0 %v569
      %591 = vmatpush.bf16.msra.mxu0 %v568
      %592 = vmatmul.bf16.gmra.mxu0 %v573
      %v593 = vpop.f32.mrf.mxu0
      %v594 = vadd.f32 %v558, %v593
      %v595 = vpop.f32.mrf.mxu0
      %v596 = vadd.f32 %v558, %v595
      %597 = vmatmul.bf16.gmra.mxu0 %v576
      %v598 = vpop.f32.mrf.mxu0
      %v599 = vadd.f32 %v558, %v598
      %v600 = vpop.f32.mrf.mxu0
      %v601 = vadd.f32 %v558, %v600
      %602 = vmatmul.bf16.gmra.mxu0 %v579
      %v603 = vpop.f32.mrf.mxu0
      %v604 = vadd.f32 %v558, %v603
      %v605 = vpop.f32.mrf.mxu0
      %v606 = vadd.f32 %v558, %v605
      %607 = vmatmul.bf16.gmra.mxu0 %v582
      %v608 = vpop.f32.mrf.mxu0
      %v609 = vadd.f32 %v558, %v608
      %v610 = vpop.f32.mrf.mxu0
      %v611 = vadd.f32 %v558, %v610
      %612 = vdwg.mxu0
      %v613 = vmul.f32 %v594, 0.25
      %v614 = vmul.f32 %v596, 0.25
      %v615 = vmul.f32 %v599, 0.25
      %v616 = vmul.f32 %v601, 0.25
      %v617 = vmul.f32 %v604, 0.25
      %v618 = vmul.f32 %v606, 0.25
      %v619 = vmul.f32 %v609, 0.25
      %v620 = vmul.f32 %v611, 0.25
      %v621 = vpack.c.bf16 %v613, %v613
      %v622 = vpack.c.bf16 %v614, %v614
      %v623 = vpack.c.bf16 %v615, %v615
      %v624 = vpack.c.bf16 %v616, %v616
      %v625 = vpack.c.bf16 %v617, %v617
      %v626 = vpack.c.bf16 %v618, %v618
      %v627 = vpack.c.bf16 %v619, %v619
      %v628 = vpack.c.bf16 %v620, %v620
      %v629 = vpack.c.bf16 %v594, %v594
      %v630 = vpack.c.bf16 %v596, %v596
      %v631 = vpack.c.bf16 %v599, %v599
      %v632 = vpack.c.bf16 %v601, %v601
      %v633 = vpack.c.bf16 %v604, %v604
      %v634 = vpack.c.bf16 %v606, %v606
      %v635 = vpack.c.bf16 %v609, %v609
      %v636 = vpack.c.bf16 %v611, %v611
      %v639 = vunpack.c.l.b16 %v621
      %v640 = vunpack.c.l.b16 %v622
      %v641 = vpack.c.b16 %v640, %v639
      %v644 = vunpack.c.l.b16 %v629
      %v645 = vunpack.c.l.b16 %v630
      %v646 = vpack.c.b16 %v645, %v644
      %647 = vrot.lane.b32.xlu0 %v646, 96
      %v648 = vpop.permute.xlu0 %647
      %vm649 = vcmask 130048
      %v651 = vsel %vm649, %v641, 0
      %v654 = vsel %vm649, %v648, 0
      %656 = vmatpush.bf16.xpose.msra.mxu0 0
      %657 = vmatpush.bf16.xpose.msra.mxu0 0
      %658 = vmatpush.bf16.xpose.msra.mxu0 0
      %659 = vmatpush.bf16.xpose.msra.mxu0 0
      %660 = vmatpush.bf16.xpose.msra.mxu0 0
      %661 = vmatpush.bf16.xpose.msra.mxu0 0
      %662 = vmatpush.bf16.xpose.msra.mxu0 0
      %663 = vmatpush.bf16.xpose.msra.mxu0 %v654
      %664 = vmatmul.bf16.gmra.mxu0 %v651
      %v665 = vpop.f32.mrf.mxu0
      %v666 = vadd.f32 %v539, %v665
      %v667 = vpop.f32.mrf.mxu0
      %v668 = vadd.f32 %v540, %v667
      %669 = vdwg.mxu0
      %v672 = vunpack.c.l.b16 %v623
      %v673 = vunpack.c.l.b16 %v624
      %v674 = vpack.c.b16 %v673, %v672
      %v677 = vunpack.c.l.b16 %v631
      %v678 = vunpack.c.l.b16 %v632
      %v679 = vpack.c.b16 %v678, %v677
      %680 = vrot.lane.b32.xlu0 %v679, 96
      %v681 = vpop.permute.xlu0 %680
      %v683 = vsel %vm649, %v674, 0
      %v686 = vsel %vm649, %v681, 0
      %688 = vmatpush.bf16.xpose.msra.mxu0 0
      %689 = vmatpush.bf16.xpose.msra.mxu0 0
      %690 = vmatpush.bf16.xpose.msra.mxu0 0
      %691 = vmatpush.bf16.xpose.msra.mxu0 0
      %692 = vmatpush.bf16.xpose.msra.mxu0 0
      %693 = vmatpush.bf16.xpose.msra.mxu0 0
      %694 = vmatpush.bf16.xpose.msra.mxu0 0
      %695 = vmatpush.bf16.xpose.msra.mxu0 %v686
      %696 = vmatmul.bf16.gmra.mxu0 %v683
      %v697 = vpop.f32.mrf.mxu0
      %v698 = vadd.f32 %v539, %v697
      %v699 = vpop.f32.mrf.mxu0
      %v700 = vadd.f32 %v540, %v699
      %701 = vdwg.mxu0
      %v704 = vunpack.c.l.b16 %v625
      %v705 = vunpack.c.l.b16 %v626
      %v706 = vpack.c.b16 %v705, %v704
      %v709 = vunpack.c.l.b16 %v633
      %v710 = vunpack.c.l.b16 %v634
      %v711 = vpack.c.b16 %v710, %v709
      %712 = vrot.lane.b32.xlu0 %v711, 96
      %v713 = vpop.permute.xlu0 %712
      %v715 = vsel %vm649, %v706, 0
      %v718 = vsel %vm649, %v713, 0
      %720 = vmatpush.bf16.xpose.msra.mxu0 0
      %721 = vmatpush.bf16.xpose.msra.mxu0 0
      %722 = vmatpush.bf16.xpose.msra.mxu0 0
      %723 = vmatpush.bf16.xpose.msra.mxu0 0
      %724 = vmatpush.bf16.xpose.msra.mxu0 0
      %725 = vmatpush.bf16.xpose.msra.mxu0 0
      %726 = vmatpush.bf16.xpose.msra.mxu0 0
      %727 = vmatpush.bf16.xpose.msra.mxu0 %v718
      %728 = vmatmul.bf16.gmra.mxu0 %v715
      %v729 = vpop.f32.mrf.mxu0
      %v730 = vadd.f32 %v539, %v729
      %v731 = vpop.f32.mrf.mxu0
      %v732 = vadd.f32 %v540, %v731
      %733 = vdwg.mxu0
      %v736 = vunpack.c.l.b16 %v627
      %v737 = vunpack.c.l.b16 %v628
      %v738 = vpack.c.b16 %v737, %v736
      %v741 = vunpack.c.l.b16 %v635
      %v742 = vunpack.c.l.b16 %v636
      %v743 = vpack.c.b16 %v742, %v741
      %744 = vrot.lane.b32.xlu0 %v743, 96
      %v745 = vpop.permute.xlu0 %744
      %v747 = vsel %vm649, %v738, 0
      %v750 = vsel %vm649, %v745, 0
      %752 = vmatpush.bf16.xpose.msra.mxu0 0
      %753 = vmatpush.bf16.xpose.msra.mxu0 0
      %754 = vmatpush.bf16.xpose.msra.mxu0 0
      %755 = vmatpush.bf16.xpose.msra.mxu0 0
      %756 = vmatpush.bf16.xpose.msra.mxu0 0
      %757 = vmatpush.bf16.xpose.msra.mxu0 0
      %758 = vmatpush.bf16.xpose.msra.mxu0 0
      %759 = vmatpush.bf16.xpose.msra.mxu0 %v750
      %760 = vmatmul.bf16.gmra.mxu0 %v747
      %v761 = vpop.f32.mrf.mxu0
      %v762 = vadd.f32 %v539, %v761
      %v763 = vpop.f32.mrf.mxu0
      %v764 = vadd.f32 %v540, %v763
      %765 = vdwg.mxu0
      %v766 = vsel %vm649, %v666, -inf
      %767 = vmax.xlane.f32.xlu0 %v766
      %v768 = vpop.xlane.xlu0 %767
      %v769 = vsel %vm649, %v668, -inf
      %770 = vmax.xlane.f32.xlu0 %v769
      %v771 = vpop.xlane.xlu0 %770
      %v772 = vsel %vm649, %v698, -inf
      %773 = vmax.xlane.f32.xlu0 %v772
      %v774 = vpop.xlane.xlu0 %773
      %v775 = vsel %vm649, %v700, -inf
      %776 = vmax.xlane.f32.xlu0 %v775
      %v777 = vpop.xlane.xlu0 %776
      %v778 = vsel %vm649, %v730, -inf
      %779 = vmax.xlane.f32.xlu0 %v778
      %v780 = vpop.xlane.xlu0 %779
      %v781 = vsel %vm649, %v732, -inf
      %782 = vmax.xlane.f32.xlu0 %v781
      %v783 = vpop.xlane.xlu0 %782
      %v784 = vsel %vm649, %v762, -inf
      %785 = vmax.xlane.f32.xlu0 %v784
      %v786 = vpop.xlane.xlu0 %785
      %v787 = vsel %vm649, %v764, -inf
      %788 = vmax.xlane.f32.xlu0 %v787
      %v789 = vpop.xlane.xlu0 %788
      %v790 = vsub.f32 %v666, %v768
      %v791 = vsub.f32 %v668, %v771
      %v792 = vsub.f32 %v698, %v774
      %v793 = vsub.f32 %v700, %v777
      %v794 = vsub.f32 %v730, %v780
      %v795 = vsub.f32 %v732, %v783
      %v796 = vsub.f32 %v762, %v786
      %v797 = vsub.f32 %v764, %v789
      %v798 = vmul.f32 %v790, 1.442695
      %v799 = vpow.pop %v798
      %v800 = vmul.f32 %v791, 1.442695
      %v801 = vpow.pop %v800
      %v802 = vmul.f32 %v792, 1.442695
      %v803 = vpow.pop %v802
      %v804 = vmul.f32 %v793, 1.442695
      %v805 = vpow.pop %v804
      %v806 = vmul.f32 %v794, 1.442695
      %v807 = vpow.pop %v806
      %v808 = vmul.f32 %v795, 1.442695
      %v809 = vpow.pop %v808
      %v810 = vmul.f32 %v796, 1.442695
      %v811 = vpow.pop %v810
      %v812 = vmul.f32 %v797, 1.442695
      %v813 = vpow.pop %v812
      %v814 = vsel %vm649, %v799, 0.0
      %815 = vadd.xlane.f32.xlu0 %v814
      %v816 = vpop.xlane.xlu0 %815
      %v817 = vsel %vm649, %v801, 0.0
      %818 = vadd.xlane.f32.xlu0 %v817
      %v819 = vpop.xlane.xlu0 %818
      %v820 = vsel %vm649, %v803, 0.0
      %821 = vadd.xlane.f32.xlu0 %v820
      %v822 = vpop.xlane.xlu0 %821
      %v823 = vsel %vm649, %v805, 0.0
      %824 = vadd.xlane.f32.xlu0 %v823
      %v825 = vpop.xlane.xlu0 %824
      %v826 = vsel %vm649, %v807, 0.0
      %827 = vadd.xlane.f32.xlu0 %v826
      %v828 = vpop.xlane.xlu0 %827
      %v829 = vsel %vm649, %v809, 0.0
      %830 = vadd.xlane.f32.xlu0 %v829
      %v831 = vpop.xlane.xlu0 %830
      %v832 = vsel %vm649, %v811, 0.0
      %833 = vadd.xlane.f32.xlu0 %v832
      %v834 = vpop.xlane.xlu0 %833
      %v835 = vsel %vm649, %v813, 0.0
      %836 = vadd.xlane.f32.xlu0 %v835
      %v837 = vpop.xlane.xlu0 %836
      %v838 = vrcp.pop %v816
      %v839 = vrcp.pop %v819
      %v840 = vrcp.pop %v822
      %v841 = vrcp.pop %v825
      %v842 = vrcp.pop %v828
      %v843 = vrcp.pop %v831
      %v844 = vrcp.pop %v834
      %v845 = vrcp.pop %v837
      %v846 = vmul.f32 %v799, %v838
      %v847 = vmul.f32 %v801, %v839
      %v848 = vmul.f32 %v803, %v840
      %v849 = vmul.f32 %v805, %v841
      %v850 = vmul.f32 %v807, %v842
      %v851 = vmul.f32 %v809, %v843
      %v852 = vmul.f32 %v811, %v844
      %v853 = vmul.f32 %v813, %v845
      %v854 = vpack.c.bf16 %v846, %v846
      %v855 = vpack.c.bf16 %v847, %v847
      %v856 = vpack.c.bf16 %v848, %v848
      %v857 = vpack.c.bf16 %v849, %v849
      %v858 = vpack.c.bf16 %v850, %v850
      %v859 = vpack.c.bf16 %v851, %v851
      %v860 = vpack.c.bf16 %v852, %v852
      %v861 = vpack.c.bf16 %v853, %v853
      %v864 = vunpack.c.l.b16 %v854
      %v865 = vunpack.c.l.b16 %v855
      %v866 = vpack.c.b16 %v865, %v864
      %867 = vrot.lane.b32.xlu0 %v646, 64
      %v868 = vpop.permute.xlu0 %867
      %v871 = vsel %vm649, %v866, 0
      %873 = vmatpush.bf16.msra.mxu0 0
      %874 = vmatpush.bf16.msra.mxu0 0
      %875 = vmatpush.bf16.msra.mxu0 0
      %876 = vmatpush.bf16.msra.mxu0 0
      %877 = vmatpush.bf16.msra.mxu0 0
      %878 = vmatpush.bf16.msra.mxu0 0
      %879 = vmatpush.bf16.msra.mxu0 0
      %880 = vmatpush.bf16.msra.mxu0 %v868
      %881 = vmatmul.bf16.gmra.mxu0 %v871
      %v882 = vpop.f32.mrf.mxu0
      %v883 = vadd.f32 0.0, %v882
      %v884 = vpop.f32.mrf.mxu0
      %v885 = vadd.f32 0.0, %v884
      %886 = vdwg.mxu0
      %v889 = vunpack.c.l.b16 %v856
      %v890 = vunpack.c.l.b16 %v857
      %v891 = vpack.c.b16 %v890, %v889
      %892 = vrot.lane.b32.xlu0 %v679, 64
      %v893 = vpop.permute.xlu0 %892
      %v896 = vsel %vm649, %v891, 0
      %898 = vmatpush.bf16.msra.mxu0 0
      %899 = vmatpush.bf16.msra.mxu0 0
      %900 = vmatpush.bf16.msra.mxu0 0
      %901 = vmatpush.bf16.msra.mxu0 0
      %902 = vmatpush.bf16.msra.mxu0 0
      %903 = vmatpush.bf16.msra.mxu0 0
      %904 = vmatpush.bf16.msra.mxu0 0
      %905 = vmatpush.bf16.msra.mxu0 %v893
      %906 = vmatmul.bf16.gmra.mxu0 %v896
      %v907 = vpop.f32.mrf.mxu0
      %v908 = vadd.f32 0.0, %v907
      %v909 = vpop.f32.mrf.mxu0
      %v910 = vadd.f32 0.0, %v909
      %911 = vdwg.mxu0
      %v914 = vunpack.c.l.b16 %v858
      %v915 = vunpack.c.l.b16 %v859
      %v916 = vpack.c.b16 %v915, %v914
      %917 = vrot.lane.b32.xlu0 %v711, 64
      %v918 = vpop.permute.xlu0 %917
      %v921 = vsel %vm649, %v916, 0
      %923 = vmatpush.bf16.msra.mxu0 0
      %924 = vmatpush.bf16.msra.mxu0 0
      %925 = vmatpush.bf16.msra.mxu0 0
      %926 = vmatpush.bf16.msra.mxu0 0
      %927 = vmatpush.bf16.msra.mxu0 0
      %928 = vmatpush.bf16.msra.mxu0 0
      %929 = vmatpush.bf16.msra.mxu0 0
      %930 = vmatpush.bf16.msra.mxu0 %v918
      %931 = vmatmul.bf16.gmra.mxu0 %v921
      %v932 = vpop.f32.mrf.mxu0
      %v933 = vadd.f32 0.0, %v932
      %v934 = vpop.f32.mrf.mxu0
      %v935 = vadd.f32 0.0, %v934
      %936 = vdwg.mxu0
      %v939 = vunpack.c.l.b16 %v860
      %v940 = vunpack.c.l.b16 %v861
      %v941 = vpack.c.b16 %v940, %v939
      %942 = vrot.lane.b32.xlu0 %v743, 64
      %v943 = vpop.permute.xlu0 %942
      %v946 = vsel %vm649, %v941, 0
      %948 = vmatpush.bf16.msra.mxu0 0
      %949 = vmatpush.bf16.msra.mxu0 0
      %950 = vmatpush.bf16.msra.mxu0 0
      %951 = vmatpush.bf16.msra.mxu0 0
      %952 = vmatpush.bf16.msra.mxu0 0
      %953 = vmatpush.bf16.msra.mxu0 0
      %954 = vmatpush.bf16.msra.mxu0 0
      %955 = vmatpush.bf16.msra.mxu0 %v943
      %956 = vmatmul.bf16.gmra.mxu0 %v946
      %v957 = vpop.f32.mrf.mxu0
      %v958 = vadd.f32 0.0, %v957
      %v959 = vpop.f32.mrf.mxu0
      %v960 = vadd.f32 0.0, %v959
      %961 = vdwg.mxu0
      %v962 = vpack.c.bf16 %v885, %v883
      %v963 = vpack.c.bf16 %v910, %v908
      %v964 = vpack.c.bf16 %v935, %v933
      %v965 = vpack.c.bf16 %v960, %v958
      %966 = vrot.lane.b32.xlu0 %v641, 112
      %v967 = vpop.permute.xlu0 %966
      %968 = vrot.lane.b32.xlu0 %v646, 80
      %v969 = vpop.permute.xlu0 %968
      %v971 = vsel %vm649, %v967, 0
      %v974 = vsel %vm649, %v969, 0
      %976 = vmatpush.bf16.xpose.msra.mxu0 0
      %977 = vmatpush.bf16.xpose.msra.mxu0 0
      %978 = vmatpush.bf16.xpose.msra.mxu0 0
      %979 = vmatpush.bf16.xpose.msra.mxu0 0
      %980 = vmatpush.bf16.xpose.msra.mxu0 0
      %981 = vmatpush.bf16.xpose.msra.mxu0 0
      %982 = vmatpush.bf16.xpose.msra.mxu0 0
      %983 = vmatpush.bf16.xpose.msra.mxu0 %v974
      %984 = vmatmul.bf16.gmra.mxu0 %v971
      %v985 = vpop.f32.mrf.mxu0
      %v986 = vadd.f32 %v541, %v985
      %v987 = vpop.f32.mrf.mxu0
      %v988 = vadd.f32 %v542, %v987
      %989 = vdwg.mxu0
      %990 = vrot.lane.b32.xlu0 %v674, 112
      %v991 = vpop.permute.xlu0 %990
      %992 = vrot.lane.b32.xlu0 %v679, 80
      %v993 = vpop.permute.xlu0 %992
      %v995 = vsel %vm649, %v991, 0
      %v998 = vsel %vm649, %v993, 0
      %1000 = vmatpush.bf16.xpose.msra.mxu0 0
      %1001 = vmatpush.bf16.xpose.msra.mxu0 0
      %1002 = vmatpush.bf16.xpose.msra.mxu0 0
      %1003 = vmatpush.bf16.xpose.msra.mxu0 0
      %1004 = vmatpush.bf16.xpose.msra.mxu0 0
      %1005 = vmatpush.bf16.xpose.msra.mxu0 0
      %1006 = vmatpush.bf16.xpose.msra.mxu0 0
      %1007 = vmatpush.bf16.xpose.msra.mxu0 %v998
      %1008 = vmatmul.bf16.gmra.mxu0 %v995
      %v1009 = vpop.f32.mrf.mxu0
      %v1010 = vadd.f32 %v541, %v1009
      %v1011 = vpop.f32.mrf.mxu0
      %v1012 = vadd.f32 %v542, %v1011
      %1013 = vdwg.mxu0
      %1014 = vrot.lane.b32.xlu0 %v706, 112
      %v1015 = vpop.permute.xlu0 %1014
      %1016 = vrot.lane.b32.xlu0 %v711, 80
      %v1017 = vpop.permute.xlu0 %1016
      %v1019 = vsel %vm649, %v1015, 0
      %v1022 = vsel %vm649, %v1017, 0
      %1024 = vmatpush.bf16.xpose.msra.mxu0 0
      %1025 = vmatpush.bf16.xpose.msra.mxu0 0
      %1026 = vmatpush.bf16.xpose.msra.mxu0 0
      %1027 = vmatpush.bf16.xpose.msra.mxu0 0
      %1028 = vmatpush.bf16.xpose.msra.mxu0 0
      %1029 = vmatpush.bf16.xpose.msra.mxu0 0
      %1030 = vmatpush.bf16.xpose.msra.mxu0 0
      %1031 = vmatpush.bf16.xpose.msra.mxu0 %v1022
      %1032 = vmatmul.bf16.gmra.mxu0 %v1019
      %v1033 = vpop.f32.mrf.mxu0
      %v1034 = vadd.f32 %v541, %v1033
      %v1035 = vpop.f32.mrf.mxu0
      %v1036 = vadd.f32 %v542, %v1035
      %1037 = vdwg.mxu0
      %1038 = vrot.lane.b32.xlu0 %v738, 112
      %v1039 = vpop.permute.xlu0 %1038
      %1040 = vrot.lane.b32.xlu0 %v743, 80
      %v1041 = vpop.permute.xlu0 %1040
      %v1043 = vsel %vm649, %v1039, 0
      %v1046 = vsel %vm649, %v1041, 0
      %1048 = vmatpush.bf16.xpose.msra.mxu0 0
      %1049 = vmatpush.bf16.xpose.msra.mxu0 0
      %1050 = vmatpush.bf16.xpose.msra.mxu0 0
      %1051 = vmatpush.bf16.xpose.msra.mxu0 0
      %1052 = vmatpush.bf16.xpose.msra.mxu0 0
      %1053 = vmatpush.bf16.xpose.msra.mxu0 0
      %1054 = vmatpush.bf16.xpose.msra.mxu0 0
      %1055 = vmatpush.bf16.xpose.msra.mxu0 %v1046
      %1056 = vmatmul.bf16.gmra.mxu0 %v1043
      %v1057 = vpop.f32.mrf.mxu0
      %v1058 = vadd.f32 %v541, %v1057
      %v1059 = vpop.f32.mrf.mxu0
      %v1060 = vadd.f32 %v542, %v1059
      %1061 = vdwg.mxu0
      %v1062 = vsel %vm649, %v986, -inf
      %1063 = vmax.xlane.f32.xlu0 %v1062
      %v1064 = vpop.xlane.xlu0 %1063
      %v1065 = vsel %vm649, %v988, -inf
      %1066 = vmax.xlane.f32.xlu0 %v1065
      %v1067 = vpop.xlane.xlu0 %1066
      %v1068 = vsel %vm649, %v1010, -inf
      %1069 = vmax.xlane.f32.xlu0 %v1068
      %v1070 = vpop.xlane.xlu0 %1069
      %v1071 = vsel %vm649, %v1012, -inf
      %1072 = vmax.xlane.f32.xlu0 %v1071
      %v1073 = vpop.xlane.xlu0 %1072
      %v1074 = vsel %vm649, %v1034, -inf
      %1075 = vmax.xlane.f32.xlu0 %v1074
      %v1076 = vpop.xlane.xlu0 %1075
      %v1077 = vsel %vm649, %v1036, -inf
      %1078 = vmax.xlane.f32.xlu0 %v1077
      %v1079 = vpop.xlane.xlu0 %1078
      %v1080 = vsel %vm649, %v1058, -inf
      %1081 = vmax.xlane.f32.xlu0 %v1080
      %v1082 = vpop.xlane.xlu0 %1081
      %v1083 = vsel %vm649, %v1060, -inf
      %1084 = vmax.xlane.f32.xlu0 %v1083
      %v1085 = vpop.xlane.xlu0 %1084
      %v1086 = vsub.f32 %v986, %v1064
      %v1087 = vsub.f32 %v988, %v1067
      %v1088 = vsub.f32 %v1010, %v1070
      %v1089 = vsub.f32 %v1012, %v1073
      %v1090 = vsub.f32 %v1034, %v1076
      %v1091 = vsub.f32 %v1036, %v1079
      %v1092 = vsub.f32 %v1058, %v1082
      %v1093 = vsub.f32 %v1060, %v1085
      %v1094 = vmul.f32 %v1086, 1.442695
      %v1095 = vpow.pop %v1094
      %v1096 = vmul.f32 %v1087, 1.442695
      %v1097 = vpow.pop %v1096
      %v1098 = vmul.f32 %v1088, 1.442695
      %v1099 = vpow.pop %v1098
      %v1100 = vmul.f32 %v1089, 1.442695
      %v1101 = vpow.pop %v1100
      %v1102 = vmul.f32 %v1090, 1.442695
      %v1103 = vpow.pop %v1102
      %v1104 = vmul.f32 %v1091, 1.442695
      %v1105 = vpow.pop %v1104
      %v1106 = vmul.f32 %v1092, 1.442695
      %v1107 = vpow.pop %v1106
      %v1108 = vmul.f32 %v1093, 1.442695
      %v1109 = vpow.pop %v1108
      %v1110 = vsel %vm649, %v1095, 0.0
      %1111 = vadd.xlane.f32.xlu0 %v1110
      %v1112 = vpop.xlane.xlu0 %1111
      %v1113 = vsel %vm649, %v1097, 0.0
      %1114 = vadd.xlane.f32.xlu0 %v1113
      %v1115 = vpop.xlane.xlu0 %1114
      %v1116 = vsel %vm649, %v1099, 0.0
      %1117 = vadd.xlane.f32.xlu0 %v1116
      %v1118 = vpop.xlane.xlu0 %1117
      %v1119 = vsel %vm649, %v1101, 0.0
      %1120 = vadd.xlane.f32.xlu0 %v1119
      %v1121 = vpop.xlane.xlu0 %1120
      %v1122 = vsel %vm649, %v1103, 0.0
      %1123 = vadd.xlane.f32.xlu0 %v1122
      %v1124 = vpop.xlane.xlu0 %1123
      %v1125 = vsel %vm649, %v1105, 0.0
      %1126 = vadd.xlane.f32.xlu0 %v1125
      %v1127 = vpop.xlane.xlu0 %1126
      %v1128 = vsel %vm649, %v1107, 0.0
      %1129 = vadd.xlane.f32.xlu0 %v1128
      %v1130 = vpop.xlane.xlu0 %1129
      %v1131 = vsel %vm649, %v1109, 0.0
      %1132 = vadd.xlane.f32.xlu0 %v1131
      %v1133 = vpop.xlane.xlu0 %1132
      %v1134 = vrcp.pop %v1112
      %v1135 = vrcp.pop %v1115
      %v1136 = vrcp.pop %v1118
      %v1137 = vrcp.pop %v1121
      %v1138 = vrcp.pop %v1124
      %v1139 = vrcp.pop %v1127
      %v1140 = vrcp.pop %v1130
      %v1141 = vrcp.pop %v1133
      %v1142 = vmul.f32 %v1095, %v1134
      %v1143 = vmul.f32 %v1097, %v1135
      %v1144 = vmul.f32 %v1099, %v1136
      %v1145 = vmul.f32 %v1101, %v1137
      %v1146 = vmul.f32 %v1103, %v1138
      %v1147 = vmul.f32 %v1105, %v1139
      %v1148 = vmul.f32 %v1107, %v1140
      %v1149 = vmul.f32 %v1109, %v1141
      %v1150 = vpack.c.bf16 %v1142, %v1142
      %v1151 = vpack.c.bf16 %v1143, %v1143
      %v1152 = vpack.c.bf16 %v1144, %v1144
      %v1153 = vpack.c.bf16 %v1145, %v1145
      %v1154 = vpack.c.bf16 %v1146, %v1146
      %v1155 = vpack.c.bf16 %v1147, %v1147
      %v1156 = vpack.c.bf16 %v1148, %v1148
      %v1157 = vpack.c.bf16 %v1149, %v1149
      %v1160 = vunpack.c.l.b16 %v1150
      %v1161 = vunpack.c.l.b16 %v1151
      %v1162 = vpack.c.b16 %v1161, %v1160
      %1163 = vrot.lane.b32.xlu0 %v646, 48
      %v1164 = vpop.permute.xlu0 %1163
      %v1167 = vsel %vm649, %v1162, 0
      %1169 = vmatpush.bf16.msra.mxu0 0
      %1170 = vmatpush.bf16.msra.mxu0 0
      %1171 = vmatpush.bf16.msra.mxu0 0
      %1172 = vmatpush.bf16.msra.mxu0 0
      %1173 = vmatpush.bf16.msra.mxu0 0
      %1174 = vmatpush.bf16.msra.mxu0 0
      %1175 = vmatpush.bf16.msra.mxu0 0
      %1176 = vmatpush.bf16.msra.mxu0 %v1164
      %1177 = vmatmul.bf16.gmra.mxu0 %v1167
      %v1178 = vpop.f32.mrf.mxu0
      %v1179 = vadd.f32 0.0, %v1178
      %v1180 = vpop.f32.mrf.mxu0
      %v1181 = vadd.f32 0.0, %v1180
      %1182 = vdwg.mxu0
      %v1185 = vunpack.c.l.b16 %v1152
      %v1186 = vunpack.c.l.b16 %v1153
      %v1187 = vpack.c.b16 %v1186, %v1185
      %1188 = vrot.lane.b32.xlu0 %v679, 48
      %v1189 = vpop.permute.xlu0 %1188
      %v1192 = vsel %vm649, %v1187, 0
      %1194 = vmatpush.bf16.msra.mxu0 0
      %1195 = vmatpush.bf16.msra.mxu0 0
      %1196 = vmatpush.bf16.msra.mxu0 0
      %1197 = vmatpush.bf16.msra.mxu0 0
      %1198 = vmatpush.bf16.msra.mxu0 0
      %1199 = vmatpush.bf16.msra.mxu0 0
      %1200 = vmatpush.bf16.msra.mxu0 0
      %1201 = vmatpush.bf16.msra.mxu0 %v1189
      %1202 = vmatmul.bf16.gmra.mxu0 %v1192
      %v1203 = vpop.f32.mrf.mxu0
      %v1204 = vadd.f32 0.0, %v1203
      %v1205 = vpop.f32.mrf.mxu0
      %v1206 = vadd.f32 0.0, %v1205
      %1207 = vdwg.mxu0
      %v1210 = vunpack.c.l.b16 %v1154
      %v1211 = vunpack.c.l.b16 %v1155
      %v1212 = vpack.c.b16 %v1211, %v1210
      %1213 = vrot.lane.b32.xlu0 %v711, 48
      %v1214 = vpop.permute.xlu0 %1213
      %v1217 = vsel %vm649, %v1212, 0
      %1219 = vmatpush.bf16.msra.mxu0 0
      %1220 = vmatpush.bf16.msra.mxu0 0
      %1221 = vmatpush.bf16.msra.mxu0 0
      %1222 = vmatpush.bf16.msra.mxu0 0
      %1223 = vmatpush.bf16.msra.mxu0 0
      %1224 = vmatpush.bf16.msra.mxu0 0
      %1225 = vmatpush.bf16.msra.mxu0 0
      %1226 = vmatpush.bf16.msra.mxu0 %v1214
      %1227 = vmatmul.bf16.gmra.mxu0 %v1217
      %v1228 = vpop.f32.mrf.mxu0
      %v1229 = vadd.f32 0.0, %v1228
      %v1230 = vpop.f32.mrf.mxu0
      %v1231 = vadd.f32 0.0, %v1230
      %1232 = vdwg.mxu0
      %v1235 = vunpack.c.l.b16 %v1156
      %v1236 = vunpack.c.l.b16 %v1157
      %v1237 = vpack.c.b16 %v1236, %v1235
      %1238 = vrot.lane.b32.xlu0 %v743, 48
      %v1239 = vpop.permute.xlu0 %1238
      %v1242 = vsel %vm649, %v1237, 0
      %1244 = vmatpush.bf16.msra.mxu0 0
      %1245 = vmatpush.bf16.msra.mxu0 0
      %1246 = vmatpush.bf16.msra.mxu0 0
      %1247 = vmatpush.bf16.msra.mxu0 0
      %1248 = vmatpush.bf16.msra.mxu0 0
      %1249 = vmatpush.bf16.msra.mxu0 0
      %1250 = vmatpush.bf16.msra.mxu0 0
      %1251 = vmatpush.bf16.msra.mxu0 %v1239
      %1252 = vmatmul.bf16.gmra.mxu0 %v1242
      %v1253 = vpop.f32.mrf.mxu0
      %v1254 = vadd.f32 0.0, %v1253
      %v1255 = vpop.f32.mrf.mxu0
      %v1256 = vadd.f32 0.0, %v1255
      %1257 = vdwg.mxu0
      %v1258 = vpack.c.bf16 %v1181, %v1179
      %v1259 = vpack.c.bf16 %v1206, %v1204
      %v1260 = vpack.c.bf16 %v1231, %v1229
      %v1261 = vpack.c.bf16 %v1256, %v1254
      %v1264 = vunpack.c.l.b16 %v550
      %v1265 = vunpack.c.l.b16 %v551
      %v1266 = vpack.c.b16 %v1265, %v1264
      %v1269 = vsel %vm649, %v1258, 0
      %v1272 = vsel %vm649, %v1259, 0
      %v1275 = vsel %vm649, %v1260, 0
      %v1278 = vsel %vm649, %v1261, 0
      %1280 = vmatpush.bf16.msra.mxu0 0
      %1281 = vmatpush.bf16.msra.mxu0 0
      %1282 = vmatpush.bf16.msra.mxu0 0
      %1283 = vmatpush.bf16.msra.mxu0 0
      %1284 = vmatpush.bf16.msra.mxu0 0
      %1285 = vmatpush.bf16.msra.mxu0 0
      %1286 = vmatpush.bf16.msra.mxu0 0
      %1287 = vmatpush.bf16.msra.mxu0 %v1266
      %1288 = vmatmul.bf16.gmra.mxu0 %v1269
      %v1289 = vpop.f32.mrf.mxu0
      %v1290 = vadd.f32 0.0, %v1289
      %v1291 = vpop.f32.mrf.mxu0
      %v1292 = vadd.f32 0.0, %v1291
      %1293 = vmatmul.bf16.gmra.mxu0 %v1272
      %v1294 = vpop.f32.mrf.mxu0
      %v1295 = vadd.f32 0.0, %v1294
      %v1296 = vpop.f32.mrf.mxu0
      %v1297 = vadd.f32 0.0, %v1296
      %1298 = vmatmul.bf16.gmra.mxu0 %v1275
      %v1299 = vpop.f32.mrf.mxu0
      %v1300 = vadd.f32 0.0, %v1299
      %v1301 = vpop.f32.mrf.mxu0
      %v1302 = vadd.f32 0.0, %v1301
      %1303 = vmatmul.bf16.gmra.mxu0 %v1278
      %v1304 = vpop.f32.mrf.mxu0
      %v1305 = vadd.f32 0.0, %v1304
      %v1306 = vpop.f32.mrf.mxu0
      %v1307 = vadd.f32 0.0, %v1306
      %1308 = vdwg.mxu0
      %v1311 = vunpack.c.l.b16 %v548
      %v1312 = vunpack.c.l.b16 %v549
      %v1313 = vpack.c.b16 %v1312, %v1311
      %v1316 = vsel %vm649, %v962, 0
      %v1319 = vsel %vm649, %v963, 0
      %v1322 = vsel %vm649, %v964, 0
      %v1325 = vsel %vm649, %v965, 0
      %1327 = vmatpush.bf16.msra.mxu0 0
      %1328 = vmatpush.bf16.msra.mxu0 0
      %1329 = vmatpush.bf16.msra.mxu0 0
      %1330 = vmatpush.bf16.msra.mxu0 0
      %1331 = vmatpush.bf16.msra.mxu0 0
      %1332 = vmatpush.bf16.msra.mxu0 0
      %1333 = vmatpush.bf16.msra.mxu0 0
      %1334 = vmatpush.bf16.msra.mxu0 %v1313
      %1335 = vmatmul.bf16.gmra.mxu0 %v1316
      %v1336 = vpop.f32.mrf.mxu0
      %v1337 = vadd.f32 %v1290, %v1336
      %v1338 = vpop.f32.mrf.mxu0
      %v1339 = vadd.f32 %v1292, %v1338
      %1340 = vmatmul.bf16.gmra.mxu0 %v1319
      %v1341 = vpop.f32.mrf.mxu0
      %v1342 = vadd.f32 %v1295, %v1341
      %v1343 = vpop.f32.mrf.mxu0
      %v1344 = vadd.f32 %v1297, %v1343
      %1345 = vmatmul.bf16.gmra.mxu0 %v1322
      %v1346 = vpop.f32.mrf.mxu0
      %v1347 = vadd.f32 %v1300, %v1346
      %v1348 = vpop.f32.mrf.mxu0
      %v1349 = vadd.f32 %v1302, %v1348
      %1350 = vmatmul.bf16.gmra.mxu0 %v1325
      %v1351 = vpop.f32.mrf.mxu0
      %v1352 = vadd.f32 %v1305, %v1351
      %v1353 = vpop.f32.mrf.mxu0
      %v1354 = vadd.f32 %v1307, %v1353
      %1355 = vdwg.mxu0
      %v1357 = vperm.slane %v552, 0
      %v1359 = vadd.f32 %v1337, %v1357
      %v1360 = vadd.f32 %v1339, %v1357
      %v1361 = vadd.f32 %v1342, %v1357
      %v1362 = vadd.f32 %v1344, %v1357
      %v1363 = vadd.f32 %v1347, %v1357
      %v1364 = vadd.f32 %v1349, %v1357
      %v1365 = vadd.f32 %v1352, %v1357
      %v1366 = vadd.f32 %v1354, %v1357
      %v1367 = vpack.c.bf16 %v1359, %v1359
      %v1368 = vpack.c.bf16 %v1360, %v1360
      %v1369 = vpack.c.bf16 %v1361, %v1361
      %v1370 = vpack.c.bf16 %v1362, %v1362
      %v1371 = vpack.c.bf16 %v1363, %v1363
      %v1372 = vpack.c.bf16 %v1364, %v1364
      %v1373 = vpack.c.bf16 %v1365, %v1365
      %v1374 = vpack.c.bf16 %v1366, %v1366
      %vm1375 = vcmask 257024
      %1376 = vst.msk [vmem:[%s312] sm:$0xf] %vm1375, %v1367
      %1377 = vst.msk [vmem:[%s312 + $0x4] sm:$0xf] %vm1375, %v1368
      %1378 = vst.msk [vmem:[%s312 + $0x8] sm:$0xf] %vm1375, %v1369
      %1379 = vst.msk [vmem:[%s312 + $0xc] sm:$0xf] %vm1375, %v1370
      %1380 = vst.msk [vmem:[%s312 + $0x10] sm:$0xf] %vm1375, %v1371
      %1381 = vst.msk [vmem:[%s312 + $0x14] sm:$0xf] %vm1375, %v1372
      %1382 = vst.msk [vmem:[%s312 + $0x18] sm:$0xf] %vm1375, %v1373
      %1383 = vst.msk [vmem:[%s312 + $0x1c] sm:$0xf] %vm1375, %v1374
      %s1384 = smul.u32 4, %s19
      %p1385 = scmp.lt.s32.totalorder %s1384, 7
      %s1386 = scalar_select %p1385, %s1384, 7
      %s1387 = smul.addr %s1386, 2
      %s1388 = smul.addr %s1387, 4
      %s1389 = scalar_lea.vmem %s8, %s1388
      // Predicated region
      $region53: #{swin_forward.11} parent=51 // pred_check
        %p1390 = pneg %p210
      $region54: #{swin_forward.11} parent=51 // pred_check_branch
        %1392 = sbr.rel (%p1390) target = $region56
      $region55: #{swin_forward.11} parent=51 // pred_region
        %s1393 = smul.u32 4, %s19
      $region56: #{swin_forward.11} parent=51 // pred_fallthru
        _
    $region52: #{swin_forward.11} parent=5 // pred_fallthru
      _
    %p1394 = scmp.le.s32.totalorder 2, %s14
    // Predicated region
    $region57: #{swin_forward.11} parent=5 // pred_check
      %p1395 = pneg %p1394
    $region58: #{swin_forward.11} parent=5 // pred_check_branch
      %1397 = sbr.rel (%p1395) target = $region60
    $region59: #{swin_forward.11} parent=5 // pred_region
      %s1398 = ssub.s32 %s14, 2
      // Predicated region
      $region61: #{swin_forward.11} parent=59 // pred_check
        %p1399 = pneg %p216
      $region62: #{swin_forward.11} parent=59 // pred_check_branch
        %1401 = sbr.rel (%p1399) target = $region64
      $region63: #{swin_forward.11} parent=59 // pred_region
        %s1402 = smul.u32 4, %s20
        %p1403 = scmp.lt.s32.totalorder %s1402, 7
        %s1404 = scalar_select %p1403, %s1402, 7
        %s1405 = smul.addr %s1404, 2
        %s1406 = smul.addr %s1405, 4
        %s1407 = scalar_lea.vmem %s8, %s1406
      $region64: #{swin_forward.11} parent=59 // pred_fallthru
        _
    $region60: #{swin_forward.11} parent=5 // pred_fallthru
      _
  $region6: #{swin_forward.11} parent=0 // loop_footer
    %s18 = sadd.s32 1, %s14
  $region7: #{swin_forward.11} parent=0 // loop_footer_branch
    %13 = sbr.rel target = $region3
  $region8: #{swin_forward.11} parent=0 // loop_exit
    _

// kernel: swin_forward.13
$region0: #{swin_forward.13}
  #allocation0 [shape = 'u32[]', space=smem, size = 0x4, offset = 0x4, fixed_abs, tag = 'smem constant byte address 0x4 - core index']
  #allocation1 [shape = 'u32[72,128]{1,0:T(1,128)}', space=vmem, size = 0x9000, scoped, tag = 'internal scratch']
  %s0 = inlined_call_operand.vmem [shape: bf16[8,16,32], index: 0, kind: input, shape index: {}]
  %s1 = inlined_call_operand.vmem [shape: f32[4,2,16,16], index: 1, kind: input, shape index: {}]
  %s2 = inlined_call_operand.vmem [shape: f32[1,32], index: 2, kind: input, shape index: {}]
  %s3 = inlined_call_operand.vmem [shape: f32[1,32], index: 3, kind: input, shape index: {}]
  %s4 = inlined_call_operand.vmem [shape: bf16[32,96], index: 4, kind: input, shape index: {}]
  %s5 = inlined_call_operand.vmem [shape: f32[1,96], index: 5, kind: input, shape index: {}]
  %s6 = inlined_call_operand.vmem [shape: bf16[32,32], index: 6, kind: input, shape index: {}]
  %s7 = inlined_call_operand.vmem [shape: f32[1,32], index: 7, kind: input, shape index: {}]
  %s8 = inlined_call_operand.vmem [shape: bf16[8,16,32], index: 8, kind: output, shape index: {}]
  %s9 = sld [smem:[#allocation0]]
  $region65: #{swin_forward.13} parent=0
    _
  %s11 = ssub.s32 1, %s9
  %s12 = scalar_select 0, %s11, %s9
  loop: start=0, step=1, limit=4
  $region2: #{swin_forward.13} parent=0 // loop_pre_header
    _
  $region3: #{swin_forward.13} parent=0 // loop_header
    %s14 = sphi 0, %s18
    %p15 = scmp.ge.s32.totalorder %s14, 4
    %s24 = sphi 0, %s26
    %s27 = sphi 0, %s24
    %s28 = sphi 0, %s27
    %s44 = sphi 0, %s28
    %s48 = sphi 0, %s48
    %s50 = sphi 0, %s48
    %s51 = sphi 0, %s50
    %s65 = sphi 0, %s51
    %s69 = sphi 0, %s69
    %s71 = sphi 0, %s69
    %s72 = sphi 0, %s71
    %s86 = sphi 0, %s72
    %s90 = sphi 0, %s90
    %s92 = sphi 0, %s90
    %s93 = sphi 0, %s92
    %s107 = sphi 0, %s93
    %s111 = sphi 0, %s111
    %s113 = sphi 0, %s111
    %s114 = sphi 0, %s113
    %s128 = sphi 0, %s114
    %s132 = sphi 0, %s132
    %s134 = sphi 0, %s132
    %s135 = sphi 0, %s134
    %s149 = sphi 0, %s135
    %s153 = sphi 0, %s153
    %s155 = sphi 0, %s153
    %s156 = sphi 0, %s155
    %s170 = sphi 0, %s156
    %s174 = sphi 0, %s174
    %s176 = sphi 0, %s174
    %s177 = sphi 0, %s176
    %s191 = sphi 0, %s177
    %s197 = sphi 0, %s199
    %s200 = sphi 0, %s197
    %s201 = sphi 0, %s200
    %s217 = sphi 0, %s201
  $region4: #{swin_forward.13} parent=0 // loop_header_branch
    %17 = sbr.rel (%p15) target = $region8
  $region5: #{swin_forward.13} parent=0 // loop_body
    %s19 = ssub.s32 %s14, 1
    %s20 = ssub.s32 %s14, 2
    %s21 = sadd.s32 %s14, 1
    %s22 = ssub.s32 %s14, %s21
    %p23 = scmp.eq.s32.totalorder %s22, 0
    %s25 = sadd.s32 %s24, 1
    %s26 = scalar_select %p23, %s24, %s25
    %p29 = pneg %p23
    %p30 = scmp.eq.s32.totalorder %s14, 1
    %p31 = por %p29, %p30
    %p32 = scmp.ne.s32.totalorder %s24, %s27
    %p33 = scmp.eq.s32.totalorder %s14, 0
    %p34 = por %p32, %p33
    %p35 = scmp.ne.s32.totalorder %s24, %s27
    %p36 = scmp.eq.s32.totalorder %s19, 1
    %p37 = por %p35, %p36
    %p38 = scmp.ne.s32.totalorder %s27, %s28
    %p39 = scmp.eq.s32.totalorder %s19, 0
    %p40 = por %p38, %p39
    %p41 = scmp.ne.s32.totalorder %s27, %s28
    %p42 = scmp.eq.s32.totalorder %s20, 1
    %p43 = por %p41, %p42
    %p45 = scmp.ne.s32.totalorder %s28, %s44
    %p46 = scmp.eq.s32.totalorder %s20, 0
    %p47 = por %p45, %p46
    %s49 = sadd.s32 %s48, 1
    %p52 = scmp.eq.s32.totalorder %s14, 1
    %p53 = scmp.ne.s32.totalorder %s48, %s50
    %p54 = scmp.eq.s32.totalorder %s14, 0
    %p55 = por %p53, %p54
    %p56 = scmp.ne.s32.totalorder %s48, %s50
    %p57 = scmp.eq.s32.totalorder %s19, 1
    %p58 = por %p56, %p57
    %p59 = scmp.ne.s32.totalorder %s50, %s51
    %p60 = scmp.eq.s32.totalorder %s19, 0
    %p61 = por %p59, %p60
    %p62 = scmp.ne.s32.totalorder %s50, %s51
    %p63 = scmp.eq.s32.totalorder %s20, 1
    %p64 = por %p62, %p63
    %p66 = scmp.ne.s32.totalorder %s51, %s65
    %p67 = scmp.eq.s32.totalorder %s20, 0
    %p68 = por %p66, %p67
    %s70 = sadd.s32 %s69, 1
    %p73 = scmp.eq.s32.totalorder %s14, 1
    %p74 = scmp.ne.s32.totalorder %s69, %s71
    %p75 = scmp.eq.s32.totalorder %s14, 0
    %p76 = por %p74, %p75
    %p77 = scmp.ne.s32.totalorder %s69, %s71
    %p78 = scmp.eq.s32.totalorder %s19, 1
    %p79 = por %p77, %p78
    %p80 = scmp.ne.s32.totalorder %s71, %s72
    %p81 = scmp.eq.s32.totalorder %s19, 0
    %p82 = por %p80, %p81
    %p83 = scmp.ne.s32.totalorder %s71, %s72
    %p84 = scmp.eq.s32.totalorder %s20, 1
    %p85 = por %p83, %p84
    %p87 = scmp.ne.s32.totalorder %s72, %s86
    %p88 = scmp.eq.s32.totalorder %s20, 0
    %p89 = por %p87, %p88
    %s91 = sadd.s32 %s90, 1
    %p94 = scmp.eq.s32.totalorder %s14, 1
    %p95 = scmp.ne.s32.totalorder %s90, %s92
    %p96 = scmp.eq.s32.totalorder %s14, 0
    %p97 = por %p95, %p96
    %p98 = scmp.ne.s32.totalorder %s90, %s92
    %p99 = scmp.eq.s32.totalorder %s19, 1
    %p100 = por %p98, %p99
    %p101 = scmp.ne.s32.totalorder %s92, %s93
    %p102 = scmp.eq.s32.totalorder %s19, 0
    %p103 = por %p101, %p102
    %p104 = scmp.ne.s32.totalorder %s92, %s93
    %p105 = scmp.eq.s32.totalorder %s20, 1
    %p106 = por %p104, %p105
    %p108 = scmp.ne.s32.totalorder %s93, %s107
    %p109 = scmp.eq.s32.totalorder %s20, 0
    %p110 = por %p108, %p109
    %s112 = sadd.s32 %s111, 1
    %p115 = scmp.eq.s32.totalorder %s14, 1
    %p116 = scmp.ne.s32.totalorder %s111, %s113
    %p117 = scmp.eq.s32.totalorder %s14, 0
    %p118 = por %p116, %p117
    %p119 = scmp.ne.s32.totalorder %s111, %s113
    %p120 = scmp.eq.s32.totalorder %s19, 1
    %p121 = por %p119, %p120
    %p122 = scmp.ne.s32.totalorder %s113, %s114
    %p123 = scmp.eq.s32.totalorder %s19, 0
    %p124 = por %p122, %p123
    %p125 = scmp.ne.s32.totalorder %s113, %s114
    %p126 = scmp.eq.s32.totalorder %s20, 1
    %p127 = por %p125, %p126
    %p129 = scmp.ne.s32.totalorder %s114, %s128
    %p130 = scmp.eq.s32.totalorder %s20, 0
    %p131 = por %p129, %p130
    %s133 = sadd.s32 %s132, 1
    %p136 = scmp.eq.s32.totalorder %s14, 1
    %p137 = scmp.ne.s32.totalorder %s132, %s134
    %p138 = scmp.eq.s32.totalorder %s14, 0
    %p139 = por %p137, %p138
    %p140 = scmp.ne.s32.totalorder %s132, %s134
    %p141 = scmp.eq.s32.totalorder %s19, 1
    %p142 = por %p140, %p141
    %p143 = scmp.ne.s32.totalorder %s134, %s135
    %p144 = scmp.eq.s32.totalorder %s19, 0
    %p145 = por %p143, %p144
    %p146 = scmp.ne.s32.totalorder %s134, %s135
    %p147 = scmp.eq.s32.totalorder %s20, 1
    %p148 = por %p146, %p147
    %p150 = scmp.ne.s32.totalorder %s135, %s149
    %p151 = scmp.eq.s32.totalorder %s20, 0
    %p152 = por %p150, %p151
    %s154 = sadd.s32 %s153, 1
    %p157 = scmp.eq.s32.totalorder %s14, 1
    %p158 = scmp.ne.s32.totalorder %s153, %s155
    %p159 = scmp.eq.s32.totalorder %s14, 0
    %p160 = por %p158, %p159
    %p161 = scmp.ne.s32.totalorder %s153, %s155
    %p162 = scmp.eq.s32.totalorder %s19, 1
    %p163 = por %p161, %p162
    %p164 = scmp.ne.s32.totalorder %s155, %s156
    %p165 = scmp.eq.s32.totalorder %s19, 0
    %p166 = por %p164, %p165
    %p167 = scmp.ne.s32.totalorder %s155, %s156
    %p168 = scmp.eq.s32.totalorder %s20, 1
    %p169 = por %p167, %p168
    %p171 = scmp.ne.s32.totalorder %s156, %s170
    %p172 = scmp.eq.s32.totalorder %s20, 0
    %p173 = por %p171, %p172
    %s175 = sadd.s32 %s174, 1
    %p178 = scmp.eq.s32.totalorder %s14, 1
    %p179 = scmp.ne.s32.totalorder %s174, %s176
    %p180 = scmp.eq.s32.totalorder %s14, 0
    %p181 = por %p179, %p180
    %p182 = scmp.ne.s32.totalorder %s174, %s176
    %p183 = scmp.eq.s32.totalorder %s19, 1
    %p184 = por %p182, %p183
    %p185 = scmp.ne.s32.totalorder %s176, %s177
    %p186 = scmp.eq.s32.totalorder %s19, 0
    %p187 = por %p185, %p186
    %p188 = scmp.ne.s32.totalorder %s176, %s177
    %p189 = scmp.eq.s32.totalorder %s20, 1
    %p190 = por %p188, %p189
    %p192 = scmp.ne.s32.totalorder %s177, %s191
    %p193 = scmp.eq.s32.totalorder %s20, 0
    %p194 = por %p192, %p193
    %s195 = ssub.s32 %s14, %s21
    %p196 = scmp.eq.s32.totalorder %s195, 0
    %s198 = sadd.s32 %s197, 1
    %s199 = scalar_select %p196, %s197, %s198
    %p202 = pneg %p196
    %p203 = scmp.eq.s32.totalorder %s14, 1
    %p204 = por %p202, %p203
    %p205 = scmp.ne.s32.totalorder %s197, %s200
    %p206 = scmp.eq.s32.totalorder %s14, 0
    %p207 = por %p205, %p206
    %p208 = scmp.ne.s32.totalorder %s197, %s200
    %p209 = scmp.eq.s32.totalorder %s19, 1
    %p210 = por %p208, %p209
    %p211 = scmp.ne.s32.totalorder %s200, %s201
    %p212 = scmp.eq.s32.totalorder %s19, 0
    %p213 = por %p211, %p212
    %p214 = scmp.ne.s32.totalorder %s200, %s201
    %p215 = scmp.eq.s32.totalorder %s20, 1
    %p216 = por %p214, %p215
    %p218 = scmp.ne.s32.totalorder %s201, %s217
    %p219 = scmp.eq.s32.totalorder %s20, 0
    %p220 = por %p218, %p219
    %p221 = scmp.le.s32.totalorder 1, %s14
    %p222 = scmp.lt.s32.totalorder %s14, 3
    %p223 = pnand %p221, %p222
    %p224 = pneg %p223
    // Predicated region
    $region9: #{swin_forward.13} parent=5 // pred_check
      _
    $region10: #{swin_forward.13} parent=5 // pred_check_branch
      %226 = sbr.rel (%p223) target = $region12
    $region11: #{swin_forward.13} parent=5 // pred_region
      %s227 = ssub.s32 %s14, 1
      // Predicated region
      $region13: #{swin_forward.13} parent=11 // pred_check
        %p228 = pneg %p61
      $region14: #{swin_forward.13} parent=11 // pred_check_branch
        %230 = sbr.rel (%p228) target = $region16
      $region15: #{swin_forward.13} parent=11 // pred_region
        _
      $region16: #{swin_forward.13} parent=11 // pred_fallthru
        _
      // Predicated region
      $region17: #{swin_forward.13} parent=11 // pred_check
        %p231 = pneg %p82
      $region18: #{swin_forward.13} parent=11 // pred_check_branch
        %233 = sbr.rel (%p231) target = $region20
      $region19: #{swin_forward.13} parent=11 // pred_region
        _
      $region20: #{swin_forward.13} parent=11 // pred_fallthru
        _
      // Predicated region
      $region21: #{swin_forward.13} parent=11 // pred_check
        %p234 = pneg %p103
      $region22: #{swin_forward.13} parent=11 // pred_check_branch
        %236 = sbr.rel (%p234) target = $region24
      $region23: #{swin_forward.13} parent=11 // pred_region
        _
      $region24: #{swin_forward.13} parent=11 // pred_fallthru
        _
      // Predicated region
      $region25: #{swin_forward.13} parent=11 // pred_check
        %p237 = pneg %p124
      $region26: #{swin_forward.13} parent=11 // pred_check_branch
        %239 = sbr.rel (%p237) target = $region28
      $region27: #{swin_forward.13} parent=11 // pred_region
        _
      $region28: #{swin_forward.13} parent=11 // pred_fallthru
        _
      // Predicated region
      $region29: #{swin_forward.13} parent=11 // pred_check
        %p240 = pneg %p145
      $region30: #{swin_forward.13} parent=11 // pred_check_branch
        %242 = sbr.rel (%p240) target = $region32
      $region31: #{swin_forward.13} parent=11 // pred_region
        _
      $region32: #{swin_forward.13} parent=11 // pred_fallthru
        _
      // Predicated region
      $region33: #{swin_forward.13} parent=11 // pred_check
        %p243 = pneg %p166
      $region34: #{swin_forward.13} parent=11 // pred_check_branch
        %245 = sbr.rel (%p243) target = $region36
      $region35: #{swin_forward.13} parent=11 // pred_region
        _
      $region36: #{swin_forward.13} parent=11 // pred_fallthru
        _
      // Predicated region
      $region37: #{swin_forward.13} parent=11 // pred_check
        %p246 = pneg %p187
      $region38: #{swin_forward.13} parent=11 // pred_check_branch
        %248 = sbr.rel (%p246) target = $region40
      $region39: #{swin_forward.13} parent=11 // pred_region
        _
      $region40: #{swin_forward.13} parent=11 // pred_fallthru
        _
    $region12: #{swin_forward.13} parent=5 // pred_fallthru
      _
    %p249 = scmp.lt.s32.totalorder %s14, 2
    // Predicated region
    $region41: #{swin_forward.13} parent=5 // pred_check
      %p250 = pneg %p249
    $region42: #{swin_forward.13} parent=5 // pred_check_branch
      %252 = sbr.rel (%p250) target = $region44
    $region43: #{swin_forward.13} parent=5 // pred_region
      // Predicated region
      $region45: #{swin_forward.13} parent=43 // pred_check
        %p253 = pneg %p34
      $region46: #{swin_forward.13} parent=43 // pred_check_branch
        %255 = sbr.rel (%p253) target = $region48
      $region47: #{swin_forward.13} parent=43 // pred_region
        %s256 = smul.u32 4, %s14
        %p257 = scmp.lt.s32.totalorder %s256, 7
        %s258 = scalar_select %p257, %s256, 7
        %s259 = smul.addr %s258, 2
        %s260 = smul.addr %s259, 4
        %s261 = scalar_lea.vmem %s0, %s260
        %s262 = smul.u32 4, %s14
      $region48: #{swin_forward.13} parent=43 // pred_fallthru
        _
    $region44: #{swin_forward.13} parent=5 // pred_fallthru
      _
    %p263 = scmp.le.s32.totalorder 1, %s14
    %p264 = scmp.lt.s32.totalorder %s14, 3
    %p265 = pnand %p263, %p264
    %p266 = pneg %p265
    // Predicated region
    $region49: #{swin_forward.13} parent=5 // pred_check
      _
    $region50: #{swin_forward.13} parent=5 // pred_check_branch
      %268 = sbr.rel (%p265) target = $region52
    $region51: #{swin_forward.13} parent=5 // pred_region
      %s269 = ssub.s32 %s14, 1
      %s270 = smul.u32 4, %s19
      %p271 = scmp.lt.s32.totalorder %s270, 7
      %s272 = scalar_select %p271, %s270, 7
      %s273 = smul.addr %s272, 2
      %s274 = smul.addr %s273, 4
      %s275 = scalar_lea.vmem %s0, %s274
      %p276 = pneg %p40
      %p277 = pneg %p37
      %p278 = pneg %p61
      %p279 = pneg %p58
      %p280 = pneg %p82
      %p281 = pneg %p79
      %p282 = pneg %p103
      %p283 = pneg %p100
      %p284 = pneg %p124
      %p285 = pneg %p121
      %p286 = pneg %p145
      %p287 = pneg %p142
      %p288 = pneg %p166
      %p289 = pneg %p163
      %p290 = pneg %p187
      %p291 = pneg %p184
      %p292 = pneg %p213
      %p293 = pneg %p210
      %s294 = smul.u32 4, %s19
      %p295 = scmp.lt.s32.totalorder %s294, 7
      %s296 = scalar_select %p295, %s294, 7
      %s297 = smul.addr %s296, 2
      %s298 = smul.addr %s297, 4
      %s299 = scalar_lea.vmem %s8, %s298
      %s300 = smul.u32 4, %s19
      %p301 = scmp.lt.s32.totalorder %s300, 7
      %s302 = scalar_select %p301, %s300, 7
      %s303 = smul.addr %s302, 2
      %s304 = smul.addr %s303, 4
      %s305 = scalar_lea.vmem %s0, %s304
      %s306 = smul.u32 4, %s19
      %s307 = smul.u32 4, %s19
      %p308 = scmp.lt.s32.totalorder %s307, 7
      %s309 = scalar_select %p308, %s307, 7
      %s310 = smul.addr %s309, 2
      %s311 = smul.addr %s310, 4
      %s312 = scalar_lea.vmem %s8, %s311
      %s313 = smul.u32 4, %s19
      %v315 = vld [vmem:[%s305] sm:$0xf]
      %v316 = vld [vmem:[%s305 + $0x4] sm:$0xf]
      %v317 = vld [vmem:[%s305 + $0x8] sm:$0xf]
      %v318 = vld [vmem:[%s305 + $0xc] sm:$0xf]
      %v319 = vld [vmem:[%s305 + $0x10] sm:$0xf]
      %v320 = vld [vmem:[%s305 + $0x14] sm:$0xf]
      %v321 = vld [vmem:[%s305 + $0x18] sm:$0xf]
      %v322 = vld [vmem:[%s305 + $0x1c] sm:$0xf]
      %v323 = vunpack.c.l.bf16 %v315
      %v324 = vunpack.c.l.bf16 %v316
      %v325 = vunpack.c.l.bf16 %v317
      %v326 = vunpack.c.l.bf16 %v318
      %v327 = vunpack.c.l.bf16 %v319
      %v328 = vunpack.c.l.bf16 %v320
      %v329 = vunpack.c.l.bf16 %v321
      %v330 = vunpack.c.l.bf16 %v322
      %v331 = vld [vmem:[%s2] sm:$0x1]
      %v332 = vld [vmem:[%s3] sm:$0x1]
      %vm333 = vcmask 261120
      %v334 = vsel %vm333, %v323, 0.0
      %335 = vadd.xlane.f32.xlu0 %v334
      %v336 = vpop.xlane.xlu0 %335
      %v337 = vsel %vm333, %v324, 0.0
      %338 = vadd.xlane.f32.xlu0 %v337
      %v339 = vpop.xlane.xlu0 %338
      %v340 = vsel %vm333, %v325, 0.0
      %341 = vadd.xlane.f32.xlu0 %v340
      %v342 = vpop.xlane.xlu0 %341
      %v343 = vsel %vm333, %v326, 0.0
      %344 = vadd.xlane.f32.xlu0 %v343
      %v345 = vpop.xlane.xlu0 %344
      %v346 = vsel %vm333, %v327, 0.0
      %347 = vadd.xlane.f32.xlu0 %v346
      %v348 = vpop.xlane.xlu0 %347
      %v349 = vsel %vm333, %v328, 0.0
      %350 = vadd.xlane.f32.xlu0 %v349
      %v351 = vpop.xlane.xlu0 %350
      %v352 = vsel %vm333, %v329, 0.0
      %353 = vadd.xlane.f32.xlu0 %v352
      %v354 = vpop.xlane.xlu0 %353
      %v355 = vsel %vm333, %v330, 0.0
      %356 = vadd.xlane.f32.xlu0 %v355
      %v357 = vpop.xlane.xlu0 %356
      %v358 = vrcp.pop 32.0
      %v359 = vmul.f32 32.0, %v358
      %v360 = vsub.f32 1.0, %v359
      %v361 = vmul.f32 %v358, %v360
      %v362 = vadd.f32 %v358, %v361
      %vm363 = vweird.f32 %v358
      %v364 = vsel %vm363, %v358, %v362
      %v365 = vmul.f32 %v336, %v364
      %v366 = vmul.f32 %v339, %v364
      %v367 = vmul.f32 %v342, %v364
      %v368 = vmul.f32 %v345, %v364
      %v369 = vmul.f32 %v348, %v364
      %v370 = vmul.f32 %v351, %v364
      %v371 = vmul.f32 %v354, %v364
      %v372 = vmul.f32 %v357, %v364
      %v373 = vsub.f32 %v323, %v365
      %v374 = vsub.f32 %v324, %v366
      %v375 = vsub.f32 %v325, %v367
      %v376 = vsub.f32 %v326, %v368
      %v377 = vsub.f32 %v327, %v369
      %v378 = vsub.f32 %v328, %v370
      %v379 = vsub.f32 %v329, %v371
      %v380 = vsub.f32 %v330, %v372
      %v381 = vmul.f32 %v373, %v373
      %v382 = vmul.f32 %v374, %v374
      %v383 = vmul.f32 %v375, %v375
      %v384 = vmul.f32 %v376, %v376
      %v385 = vmul.f32 %v377, %v377
      %v386 = vmul.f32 %v378, %v378
      %v387 = vmul.f32 %v379, %v379
      %v388 = vmul.f32 %v380, %v380
      %v389 = vsel %vm333, %v381, 0.0
      %390 = vadd.xlane.f32.xlu0 %v389
      %v391 = vpop.xlane.xlu0 %390
      %v392 = vsel %vm333, %v382, 0.0
      %393 = vadd.xlane.f32.xlu0 %v392
      %v394 = vpop.xlane.xlu0 %393
      %v395 = vsel %vm333, %v383, 0.0
      %396 = vadd.xlane.f32.xlu0 %v395
      %v397 = vpop.xlane.xlu0 %396
      %v398 = vsel %vm333, %v384, 0.0
      %399 = vadd.xlane.f32.xlu0 %v398
      %v400 = vpop.xlane.xlu0 %399
      %v401 = vsel %vm333, %v385, 0.0
      %402 = vadd.xlane.f32.xlu0 %v401
      %v403 = vpop.xlane.xlu0 %402
      %v404 = vsel %vm333, %v386, 0.0
      %405 = vadd.xlane.f32.xlu0 %v404
      %v406 = vpop.xlane.xlu0 %405
      %v407 = vsel %vm333, %v387, 0.0
      %408 = vadd.xlane.f32.xlu0 %v407
      %v409 = vpop.xlane.xlu0 %408
      %v410 = vsel %vm333, %v388, 0.0
      %411 = vadd.xlane.f32.xlu0 %v410
      %v412 = vpop.xlane.xlu0 %411
      %v413 = vmul.f32 %v391, %v364
      %v414 = vmul.f32 %v394, %v364
      %v415 = vmul.f32 %v397, %v364
      %v416 = vmul.f32 %v400, %v364
      %v417 = vmul.f32 %v403, %v364
      %v418 = vmul.f32 %v406, %v364
      %v419 = vmul.f32 %v409, %v364
      %v420 = vmul.f32 %v412, %v364
      %v421 = vadd.f32 %v413, 1e-05
      %v422 = vadd.f32 %v414, 1e-05
      %v423 = vadd.f32 %v415, 1e-05
      %v424 = vadd.f32 %v416, 1e-05
      %v425 = vadd.f32 %v417, 1e-05
      %v426 = vadd.f32 %v418, 1e-05
      %v427 = vadd.f32 %v419, 1e-05
      %v428 = vadd.f32 %v420, 1e-05
      %v429 = vrsqrt.pop %v421
      %v430 = vmul.f32 %v429, %v421
      %v431 = vmul.f32 %v430, %v429
      %v432 = vmul.f32 0.5, %v431
      %v433 = vsub.f32 1.5, %v432
      %v434 = vmul.f32 %v429, %v433
      %vm435 = vweird.f32 %v421
      %vm436 = vweird.f32 %v429
      %vm437 = vmor %vm435, %vm436
      %v438 = vsel %vm437, %v429, %v434
      %v439 = vrsqrt.pop %v422
      %v440 = vmul.f32 %v439, %v422
      %v441 = vmul.f32 %v440, %v439
      %v442 = vmul.f32 0.5, %v441
      %v443 = vsub.f32 1.5, %v442
      %v444 = vmul.f32 %v439, %v443
      %vm445 = vweird.f32 %v422
      %vm446 = vweird.f32 %v439
      %vm447 = vmor %vm445, %vm446
      %v448 = vsel %vm447, %v439, %v444
      %v449 = vrsqrt.pop %v423
      %v450 = vmul.f32 %v449, %v423
      %v451 = vmul.f32 %v450, %v449
      %v452 = vmul.f32 0.5, %v451
      %v453 = vsub.f32 1.5, %v452
      %v454 = vmul.f32 %v449, %v453
      %vm455 = vweird.f32 %v423
      %vm456 = vweird.f32 %v449
      %vm457 = vmor %vm455, %vm456
      %v458 = vsel %vm457, %v449, %v454
      %v459 = vrsqrt.pop %v424
      %v460 = vmul.f32 %v459, %v424
      %v461 = vmul.f32 %v460, %v459
      %v462 = vmul.f32 0.5, %v461
      %v463 = vsub.f32 1.5, %v462
      %v464 = vmul.f32 %v459, %v463
      %vm465 = vweird.f32 %v424
      %vm466 = vweird.f32 %v459
      %vm467 = vmor %vm465, %vm466
      %v468 = vsel %vm467, %v459, %v464
      %v469 = vrsqrt.pop %v425
      %v470 = vmul.f32 %v469, %v425
      %v471 = vmul.f32 %v470, %v469
      %v472 = vmul.f32 0.5, %v471
      %v473 = vsub.f32 1.5, %v472
      %v474 = vmul.f32 %v469, %v473
      %vm475 = vweird.f32 %v425
      %vm476 = vweird.f32 %v469
      %vm477 = vmor %vm475, %vm476
      %v478 = vsel %vm477, %v469, %v474
      %v479 = vrsqrt.pop %v426
      %v480 = vmul.f32 %v479, %v426
      %v481 = vmul.f32 %v480, %v479
      %v482 = vmul.f32 0.5, %v481
      %v483 = vsub.f32 1.5, %v482
      %v484 = vmul.f32 %v479, %v483
      %vm485 = vweird.f32 %v426
      %vm486 = vweird.f32 %v479
      %vm487 = vmor %vm485, %vm486
      %v488 = vsel %vm487, %v479, %v484
      %v489 = vrsqrt.pop %v427
      %v490 = vmul.f32 %v489, %v427
      %v491 = vmul.f32 %v490, %v489
      %v492 = vmul.f32 0.5, %v491
      %v493 = vsub.f32 1.5, %v492
      %v494 = vmul.f32 %v489, %v493
      %vm495 = vweird.f32 %v427
      %vm496 = vweird.f32 %v489
      %vm497 = vmor %vm495, %vm496
      %v498 = vsel %vm497, %v489, %v494
      %v499 = vrsqrt.pop %v428
      %v500 = vmul.f32 %v499, %v428
      %v501 = vmul.f32 %v500, %v499
      %v502 = vmul.f32 0.5, %v501
      %v503 = vsub.f32 1.5, %v502
      %v504 = vmul.f32 %v499, %v503
      %vm505 = vweird.f32 %v428
      %vm506 = vweird.f32 %v499
      %vm507 = vmor %vm505, %vm506
      %v508 = vsel %vm507, %v499, %v504
      %v509 = vmul.f32 %v373, %v438
      %v510 = vmul.f32 %v374, %v448
      %v511 = vmul.f32 %v375, %v458
      %v512 = vmul.f32 %v376, %v468
      %v513 = vmul.f32 %v377, %v478
      %v514 = vmul.f32 %v378, %v488
      %v515 = vmul.f32 %v379, %v498
      %v516 = vmul.f32 %v380, %v508
      %v518 = vperm.slane %v331, 0
      %v520 = vmul.f32 %v509, %v518
      %v521 = vmul.f32 %v510, %v518
      %v522 = vmul.f32 %v511, %v518
      %v523 = vmul.f32 %v512, %v518
      %v524 = vmul.f32 %v513, %v518
      %v525 = vmul.f32 %v514, %v518
      %v526 = vmul.f32 %v515, %v518
      %v527 = vmul.f32 %v516, %v518
      %v529 = vperm.slane %v332, 0
      %v531 = vadd.f32 %v520, %v529
      %v532 = vadd.f32 %v521, %v529
      %v533 = vadd.f32 %v522, %v529
      %v534 = vadd.f32 %v523, %v529
      %v535 = vadd.f32 %v524, %v529
      %v536 = vadd.f32 %v525, %v529
      %v537 = vadd.f32 %v526, %v529
      %v538 = vadd.f32 %v527, %v529
      %v539 = vld [vmem:[%s1] sm:$0xff]
      %v540 = vld [vmem:[%s1 + $0x8] sm:$0xff]
      %v541 = vld [vmem:[%s1 + $0x10] sm:$0xff]
      %v542 = vld [vmem:[%s1 + $0x18] sm:$0xff]
      %v543 = vld [vmem:[%s1 + $0x20] sm:$0xff]
      %v544 = vld [vmem:[%s1 + $0x28] sm:$0xff]
      %v545 = vld [vmem:[%s1 + $0x30] sm:$0xff]
      %v546 = vld [vmem:[%s1 + $0x38] sm:$0xff]
      %v547 = vld [vmem:[%s1 + $0x40] sm:$0xff]
      %v548 = vld [vmem:[%s1 + $0x48] sm:$0xff]
      %v549 = vld [vmem:[%s1 + $0x50] sm:$0xff]
      %v550 = vld [vmem:[%s1 + $0x58] sm:$0xff]
      %v551 = vld [vmem:[%s1 + $0x60] sm:$0xff]
      %v552 = vld [vmem:[%s1 + $0x68] sm:$0xff]
      %v553 = vld [vmem:[%s1 + $0x70] sm:$0xff]
      %v554 = vld [vmem:[%s1 + $0x78] sm:$0xff]
      %v555 = vld [vmem:[%s4] sm:$0xf]
      %v556 = vld [vmem:[%s4 + $0x4] sm:$0xf]
      %v557 = vld [vmem:[%s4 + $0x8] sm:$0xf]
      %v558 = vld [vmem:[%s4 + $0xc] sm:$0xf]
      %v559 = vld [vmem:[%s5] sm:$0x1]
      %v560 = vld [vmem:[%s6] sm:$0xf]
      %v561 = vld [vmem:[%s6 + $0x4] sm:$0xf]
      %v562 = vld [vmem:[%s6 + $0x8] sm:$0xf]
      %v563 = vld [vmem:[%s6 + $0xc] sm:$0xf]
      %v564 = vld [vmem:[%s7] sm:$0x1]
      %v565 = vpack.c.bf16 %v532, %v531
      %v566 = vpack.c.bf16 %v534, %v533
      %v567 = vpack.c.bf16 %v536, %v535
      %v568 = vpack.c.bf16 %v538, %v537
      %v570 = vperm.slane %v559, 0
      %v576 = vunpack.c.l.b16 %v555
      %v577 = vunpack.c.l.b16 %v556
      %v578 = vunpack.c.l.b16 %v557
      %v579 = vunpack.c.l.b16 %v558
      %v580 = vpack.c.b16 %v577, %v576
      %v581 = vpack.c.b16 %v579, %v578
      %v585 = vsel %vm333, %v565, 0
      %v588 = vsel %vm333, %v566, 0
      %v591 = vsel %vm333, %v567, 0
      %v594 = vsel %vm333, %v568, 0
      %596 = vmatpush.bf16.msra.mxu0 0
      %597 = vmatpush.bf16.msra.mxu0 0
      %598 = vmatpush.bf16.msra.mxu0 0
      %599 = vmatpush.bf16.msra.mxu0 0
      %600 = vmatpush.bf16.msra.mxu0 0
      %601 = vmatpush.bf16.msra.mxu0 0
      %602 = vmatpush.bf16.msra.mxu0 %v581
      %603 = vmatpush.bf16.msra.mxu0 %v580
      %604 = vmatmul.bf16.gmra.mxu0 %v585
      %v605 = vpop.f32.mrf.mxu0
      %v606 = vadd.f32 %v570, %v605
      %v607 = vpop.f32.mrf.mxu0
      %v608 = vadd.f32 %v570, %v607
      %609 = vmatmul.bf16.gmra.mxu0 %v588
      %v610 = vpop.f32.mrf.mxu0
      %v611 = vadd.f32 %v570, %v610
      %v612 = vpop.f32.mrf.mxu0
      %v613 = vadd.f32 %v570, %v612
      %614 = vmatmul.bf16.gmra.mxu0 %v591
      %v615 = vpop.f32.mrf.mxu0
      %v616 = vadd.f32 %v570, %v615
      %v617 = vpop.f32.mrf.mxu0
      %v618 = vadd.f32 %v570, %v617
      %619 = vmatmul.bf16.gmra.mxu0 %v594
      %v620 = vpop.f32.mrf.mxu0
      %v621 = vadd.f32 %v570, %v620
      %v622 = vpop.f32.mrf.mxu0
      %v623 = vadd.f32 %v570, %v622
      %624 = vdwg.mxu0
      %v625 = vmul.f32 %v606, 0.25
      %v626 = vmul.f32 %v608, 0.25
      %v627 = vmul.f32 %v611, 0.25
      %v628 = vmul.f32 %v613, 0.25
      %v629 = vmul.f32 %v616, 0.25
      %v630 = vmul.f32 %v618, 0.25
      %v631 = vmul.f32 %v621, 0.25
      %v632 = vmul.f32 %v623, 0.25
      %v633 = vpack.c.bf16 %v625, %v625
      %v634 = vpack.c.bf16 %v626, %v626
      %v635 = vpack.c.bf16 %v627, %v627
      %v636 = vpack.c.bf16 %v628, %v628
      %v637 = vpack.c.bf16 %v629, %v629
      %v638 = vpack.c.bf16 %v630, %v630
      %v639 = vpack.c.bf16 %v631, %v631
      %v640 = vpack.c.bf16 %v632, %v632
      %v641 = vpack.c.bf16 %v606, %v606
      %v642 = vpack.c.bf16 %v608, %v608
      %v643 = vpack.c.bf16 %v611, %v611
      %v644 = vpack.c.bf16 %v613, %v613
      %v645 = vpack.c.bf16 %v616, %v616
      %v646 = vpack.c.bf16 %v618, %v618
      %v647 = vpack.c.bf16 %v621, %v621
      %v648 = vpack.c.bf16 %v623, %v623
      %v651 = vunpack.c.l.b16 %v633
      %v652 = vunpack.c.l.b16 %v634
      %v653 = vpack.c.b16 %v652, %v651
      %v656 = vunpack.c.l.b16 %v641
      %v657 = vunpack.c.l.b16 %v642
      %v658 = vpack.c.b16 %v657, %v656
      %659 = vrot.lane.b32.xlu0 %v658, 96
      %v660 = vpop.permute.xlu0 %659
      %vm661 = vcmask 130048
      %v663 = vsel %vm661, %v653, 0
      %v666 = vsel %vm661, %v660, 0
      %668 = vmatpush.bf16.xpose.msra.mxu0 0
      %669 = vmatpush.bf16.xpose.msra.mxu0 0
      %670 = vmatpush.bf16.xpose.msra.mxu0 0
      %671 = vmatpush.bf16.xpose.msra.mxu0 0
      %672 = vmatpush.bf16.xpose.msra.mxu0 0
      %673 = vmatpush.bf16.xpose.msra.mxu0 0
      %674 = vmatpush.bf16.xpose.msra.mxu0 0
      %675 = vmatpush.bf16.xpose.msra.mxu0 %v666
      %676 = vmatmul.bf16.gmra.mxu0 %v663
      %v677 = vpop.f32.mrf.mxu0
      %v678 = vadd.f32 %v539, %v677
      %v679 = vpop.f32.mrf.mxu0
      %v680 = vadd.f32 %v540, %v679
      %681 = vdwg.mxu0
      %v684 = vunpack.c.l.b16 %v635
      %v685 = vunpack.c.l.b16 %v636
      %v686 = vpack.c.b16 %v685, %v684
      %v689 = vunpack.c.l.b16 %v643
      %v690 = vunpack.c.l.b16 %v644
      %v691 = vpack.c.b16 %v690, %v689
      %692 = vrot.lane.b32.xlu0 %v691, 96
      %v693 = vpop.permute.xlu0 %692
      %v695 = vsel %vm661, %v686, 0
      %v698 = vsel %vm661, %v693, 0
      %700 = vmatpush.bf16.xpose.msra.mxu0 0
      %701 = vmatpush.bf16.xpose.msra.mxu0 0
      %702 = vmatpush.bf16.xpose.msra.mxu0 0
      %703 = vmatpush.bf16.xpose.msra.mxu0 0
      %704 = vmatpush.bf16.xpose.msra.mxu0 0
      %705 = vmatpush.bf16.xpose.msra.mxu0 0
      %706 = vmatpush.bf16.xpose.msra.mxu0 0
      %707 = vmatpush.bf16.xpose.msra.mxu0 %v698
      %708 = vmatmul.bf16.gmra.mxu0 %v695
      %v709 = vpop.f32.mrf.mxu0
      %v710 = vadd.f32 %v543, %v709
      %v711 = vpop.f32.mrf.mxu0
      %v712 = vadd.f32 %v544, %v711
      %713 = vdwg.mxu0
      %v716 = vunpack.c.l.b16 %v637
      %v717 = vunpack.c.l.b16 %v638
      %v718 = vpack.c.b16 %v717, %v716
      %v721 = vunpack.c.l.b16 %v645
      %v722 = vunpack.c.l.b16 %v646
      %v723 = vpack.c.b16 %v722, %v721
      %724 = vrot.lane.b32.xlu0 %v723, 96
      %v725 = vpop.permute.xlu0 %724
      %v727 = vsel %vm661, %v718, 0
      %v730 = vsel %vm661, %v725, 0
      %732 = vmatpush.bf16.xpose.msra.mxu0 0
      %733 = vmatpush.bf16.xpose.msra.mxu0 0
      %734 = vmatpush.bf16.xpose.msra.mxu0 0
      %735 = vmatpush.bf16.xpose.msra.mxu0 0
      %736 = vmatpush.bf16.xpose.msra.mxu0 0
      %737 = vmatpush.bf16.xpose.msra.mxu0 0
      %738 = vmatpush.bf16.xpose.msra.mxu0 0
      %739 = vmatpush.bf16.xpose.msra.mxu0 %v730
      %740 = vmatmul.bf16.gmra.mxu0 %v727
      %v741 = vpop.f32.mrf.mxu0
      %v742 = vadd.f32 %v547, %v741
      %v743 = vpop.f32.mrf.mxu0
      %v744 = vadd.f32 %v548, %v743
      %745 = vdwg.mxu0
      %v748 = vunpack.c.l.b16 %v639
      %v749 = vunpack.c.l.b16 %v640
      %v750 = vpack.c.b16 %v749, %v748
      %v753 = vunpack.c.l.b16 %v647
      %v754 = vunpack.c.l.b16 %v648
      %v755 = vpack.c.b16 %v754, %v753
      %756 = vrot.lane.b32.xlu0 %v755, 96
      %v757 = vpop.permute.xlu0 %756
      %v759 = vsel %vm661, %v750, 0
      %v762 = vsel %vm661, %v757, 0
      %764 = vmatpush.bf16.xpose.msra.mxu0 0
      %765 = vmatpush.bf16.xpose.msra.mxu0 0
      %766 = vmatpush.bf16.xpose.msra.mxu0 0
      %767 = vmatpush.bf16.xpose.msra.mxu0 0
      %768 = vmatpush.bf16.xpose.msra.mxu0 0
      %769 = vmatpush.bf16.xpose.msra.mxu0 0
      %770 = vmatpush.bf16.xpose.msra.mxu0 0
      %771 = vmatpush.bf16.xpose.msra.mxu0 %v762
      %772 = vmatmul.bf16.gmra.mxu0 %v759
      %v773 = vpop.f32.mrf.mxu0
      %v774 = vadd.f32 %v551, %v773
      %v775 = vpop.f32.mrf.mxu0
      %v776 = vadd.f32 %v552, %v775
      %777 = vdwg.mxu0
      %v778 = vsel %vm661, %v678, -inf
      %779 = vmax.xlane.f32.xlu0 %v778
      %v780 = vpop.xlane.xlu0 %779
      %v781 = vsel %vm661, %v680, -inf
      %782 = vmax.xlane.f32.xlu0 %v781
      %v783 = vpop.xlane.xlu0 %782
      %v784 = vsel %vm661, %v710, -inf
      %785 = vmax.xlane.f32.xlu0 %v784
      %v786 = vpop.xlane.xlu0 %785
      %v787 = vsel %vm661, %v712, -inf
      %788 = vmax.xlane.f32.xlu0 %v787
      %v789 = vpop.xlane.xlu0 %788
      %v790 = vsel %vm661, %v742, -inf
      %791 = vmax.xlane.f32.xlu0 %v790
      %v792 = vpop.xlane.xlu0 %791
      %v793 = vsel %vm661, %v744, -inf
      %794 = vmax.xlane.f32.xlu0 %v793
      %v795 = vpop.xlane.xlu0 %794
      %v796 = vsel %vm661, %v774, -inf
      %797 = vmax.xlane.f32.xlu0 %v796
      %v798 = vpop.xlane.xlu0 %797
      %v799 = vsel %vm661, %v776, -inf
      %800 = vmax.xlane.f32.xlu0 %v799
      %v801 = vpop.xlane.xlu0 %800
      %v802 = vsub.f32 %v678, %v780
      %v803 = vsub.f32 %v680, %v783
      %v804 = vsub.f32 %v710, %v786
      %v805 = vsub.f32 %v712, %v789
      %v806 = vsub.f32 %v742, %v792
      %v807 = vsub.f32 %v744, %v795
      %v808 = vsub.f32 %v774, %v798
      %v809 = vsub.f32 %v776, %v801
      %v810 = vmul.f32 %v802, 1.442695
      %v811 = vpow.pop %v810
      %v812 = vmul.f32 %v803, 1.442695
      %v813 = vpow.pop %v812
      %v814 = vmul.f32 %v804, 1.442695
      %v815 = vpow.pop %v814
      %v816 = vmul.f32 %v805, 1.442695
      %v817 = vpow.pop %v816
      %v818 = vmul.f32 %v806, 1.442695
      %v819 = vpow.pop %v818
      %v820 = vmul.f32 %v807, 1.442695
      %v821 = vpow.pop %v820
      %v822 = vmul.f32 %v808, 1.442695
      %v823 = vpow.pop %v822
      %v824 = vmul.f32 %v809, 1.442695
      %v825 = vpow.pop %v824
      %v826 = vsel %vm661, %v811, 0.0
      %827 = vadd.xlane.f32.xlu0 %v826
      %v828 = vpop.xlane.xlu0 %827
      %v829 = vsel %vm661, %v813, 0.0
      %830 = vadd.xlane.f32.xlu0 %v829
      %v831 = vpop.xlane.xlu0 %830
      %v832 = vsel %vm661, %v815, 0.0
      %833 = vadd.xlane.f32.xlu0 %v832
      %v834 = vpop.xlane.xlu0 %833
      %v835 = vsel %vm661, %v817, 0.0
      %836 = vadd.xlane.f32.xlu0 %v835
      %v837 = vpop.xlane.xlu0 %836
      %v838 = vsel %vm661, %v819, 0.0
      %839 = vadd.xlane.f32.xlu0 %v838
      %v840 = vpop.xlane.xlu0 %839
      %v841 = vsel %vm661, %v821, 0.0
      %842 = vadd.xlane.f32.xlu0 %v841
      %v843 = vpop.xlane.xlu0 %842
      %v844 = vsel %vm661, %v823, 0.0
      %845 = vadd.xlane.f32.xlu0 %v844
      %v846 = vpop.xlane.xlu0 %845
      %v847 = vsel %vm661, %v825, 0.0
      %848 = vadd.xlane.f32.xlu0 %v847
      %v849 = vpop.xlane.xlu0 %848
      %v850 = vrcp.pop %v828
      %v851 = vrcp.pop %v831
      %v852 = vrcp.pop %v834
      %v853 = vrcp.pop %v837
      %v854 = vrcp.pop %v840
      %v855 = vrcp.pop %v843
      %v856 = vrcp.pop %v846
      %v857 = vrcp.pop %v849
      %v858 = vmul.f32 %v811, %v850
      %v859 = vmul.f32 %v813, %v851
      %v860 = vmul.f32 %v815, %v852
      %v861 = vmul.f32 %v817, %v853
      %v862 = vmul.f32 %v819, %v854
      %v863 = vmul.f32 %v821, %v855
      %v864 = vmul.f32 %v823, %v856
      %v865 = vmul.f32 %v825, %v857
      %v866 = vpack.c.bf16 %v858, %v858
      %v867 = vpack.c.bf16 %v859, %v859
      %v868 = vpack.c.bf16 %v860, %v860
      %v869 = vpack.c.bf16 %v861, %v861
      %v870 = vpack.c.bf16 %v862, %v862
      %v871 = vpack.c.bf16 %v863, %v863
      %v872 = vpack.c.bf16 %v864, %v864
      %v873 = vpack.c.bf16 %v865, %v865
      %v876 = vunpack.c.l.b16 %v866
      %v877 = vunpack.c.l.b16 %v867
      %v878 = vpack.c.b16 %v877, %v876
      %879 = vrot.lane.b32.xlu0 %v658, 64
      %v880 = vpop.permute.xlu0 %879
      %v883 = vsel %vm661, %v878, 0
      %885 = vmatpush.bf16.msra.mxu0 0
      %886 = vmatpush.bf16.msra.mxu0 0
      %887 = vmatpush.bf16.msra.mxu0 0
      %888 = vmatpush.bf16.msra.mxu0 0
      %889 = vmatpush.bf16.msra.mxu0 0
      %890 = vmatpush.bf16.msra.mxu0 0
      %891 = vmatpush.bf16.msra.mxu0 0
      %892 = vmatpush.bf16.msra.mxu0 %v880
      %893 = vmatmul.bf16.gmra.mxu0 %v883
      %v894 = vpop.f32.mrf.mxu0
      %v895 = vadd.f32 0.0, %v894
      %v896 = vpop.f32.mrf.mxu0
      %v897 = vadd.f32 0.0, %v896
      %898 = vdwg.mxu0
      %v901 = vunpack.c.l.b16 %v868
      %v902 = vunpack.c.l.b16 %v869
      %v903 = vpack.c.b16 %v902, %v901
      %904 = vrot.lane.b32.xlu0 %v691, 64
      %v905 = vpop.permute.xlu0 %904
      %v908 = vsel %vm661, %v903, 0
      %910 = vmatpush.bf16.msra.mxu0 0
      %911 = vmatpush.bf16.msra.mxu0 0
      %912 = vmatpush.bf16.msra.mxu0 0
      %913 = vmatpush.bf16.msra.mxu0 0
      %914 = vmatpush.bf16.msra.mxu0 0
      %915 = vmatpush.bf16.msra.mxu0 0
      %916 = vmatpush.bf16.msra.mxu0 0
      %917 = vmatpush.bf16.msra.mxu0 %v905
      %918 = vmatmul.bf16.gmra.mxu0 %v908
      %v919 = vpop.f32.mrf.mxu0
      %v920 = vadd.f32 0.0, %v919
      %v921 = vpop.f32.mrf.mxu0
      %v922 = vadd.f32 0.0, %v921
      %923 = vdwg.mxu0
      %v926 = vunpack.c.l.b16 %v870
      %v927 = vunpack.c.l.b16 %v871
      %v928 = vpack.c.b16 %v927, %v926
      %929 = vrot.lane.b32.xlu0 %v723, 64
      %v930 = vpop.permute.xlu0 %929
      %v933 = vsel %vm661, %v928, 0
      %935 = vmatpush.bf16.msra.mxu0 0
      %936 = vmatpush.bf16.msra.mxu0 0
      %937 = vmatpush.bf16.msra.mxu0 0
      %938 = vmatpush.bf16.msra.mxu0 0
      %939 = vmatpush.bf16.msra.mxu0 0
      %940 = vmatpush.bf16.msra.mxu0 0
      %941 = vmatpush.bf16.msra.mxu0 0
      %942 = vmatpush.bf16.msra.mxu0 %v930
      %943 = vmatmul.bf16.gmra.mxu0 %v933
      %v944 = vpop.f32.mrf.mxu0
      %v945 = vadd.f32 0.0, %v944
      %v946 = vpop.f32.mrf.mxu0
      %v947 = vadd.f32 0.0, %v946
      %948 = vdwg.mxu0
      %v951 = vunpack.c.l.b16 %v872
      %v952 = vunpack.c.l.b16 %v873
      %v953 = vpack.c.b16 %v952, %v951
      %954 = vrot.lane.b32.xlu0 %v755, 64
      %v955 = vpop.permute.xlu0 %954
      %v958 = vsel %vm661, %v953, 0
      %960 = vmatpush.bf16.msra.mxu0 0
      %961 = vmatpush.bf16.msra.mxu0 0
      %962 = vmatpush.bf16.msra.mxu0 0
      %963 = vmatpush.bf16.msra.mxu0 0
      %964 = vmatpush.bf16.msra.mxu0 0
      %965 = vmatpush.bf16.msra.mxu0 0
      %966 = vmatpush.bf16.msra.mxu0 0
      %967 = vmatpush.bf16.msra.mxu0 %v955
      %968 = vmatmul.bf16.gmra.mxu0 %v958
      %v969 = vpop.f32.mrf.mxu0
      %v970 = vadd.f32 0.0, %v969
      %v971 = vpop.f32.mrf.mxu0
      %v972 = vadd.f32 0.0, %v971
      %973 = vdwg.mxu0
      %v974 = vpack.c.bf16 %v897, %v895
      %v975 = vpack.c.bf16 %v922, %v920
      %v976 = vpack.c.bf16 %v947, %v945
      %v977 = vpack.c.bf16 %v972, %v970
      %978 = vrot.lane.b32.xlu0 %v653, 112
      %v979 = vpop.permute.xlu0 %978
      %980 = vrot.lane.b32.xlu0 %v658, 80
      %v981 = vpop.permute.xlu0 %980
      %v983 = vsel %vm661, %v979, 0
      %v986 = vsel %vm661, %v981, 0
      %988 = vmatpush.bf16.xpose.msra.mxu0 0
      %989 = vmatpush.bf16.xpose.msra.mxu0 0
      %990 = vmatpush.bf16.xpose.msra.mxu0 0
      %991 = vmatpush.bf16.xpose.msra.mxu0 0
      %992 = vmatpush.bf16.xpose.msra.mxu0 0
      %993 = vmatpush.bf16.xpose.msra.mxu0 0
      %994 = vmatpush.bf16.xpose.msra.mxu0 0
      %995 = vmatpush.bf16.xpose.msra.mxu0 %v986
      %996 = vmatmul.bf16.gmra.mxu0 %v983
      %v997 = vpop.f32.mrf.mxu0
      %v998 = vadd.f32 %v541, %v997
      %v999 = vpop.f32.mrf.mxu0
      %v1000 = vadd.f32 %v542, %v999
      %1001 = vdwg.mxu0
      %1002 = vrot.lane.b32.xlu0 %v686, 112
      %v1003 = vpop.permute.xlu0 %1002
      %1004 = vrot.lane.b32.xlu0 %v691, 80
      %v1005 = vpop.permute.xlu0 %1004
      %v1007 = vsel %vm661, %v1003, 0
      %v1010 = vsel %vm661, %v1005, 0
      %1012 = vmatpush.bf16.xpose.msra.mxu0 0
      %1013 = vmatpush.bf16.xpose.msra.mxu0 0
      %1014 = vmatpush.bf16.xpose.msra.mxu0 0
      %1015 = vmatpush.bf16.xpose.msra.mxu0 0
      %1016 = vmatpush.bf16.xpose.msra.mxu0 0
      %1017 = vmatpush.bf16.xpose.msra.mxu0 0
      %1018 = vmatpush.bf16.xpose.msra.mxu0 0
      %1019 = vmatpush.bf16.xpose.msra.mxu0 %v1010
      %1020 = vmatmul.bf16.gmra.mxu0 %v1007
      %v1021 = vpop.f32.mrf.mxu0
      %v1022 = vadd.f32 %v545, %v1021
      %v1023 = vpop.f32.mrf.mxu0
      %v1024 = vadd.f32 %v546, %v1023
      %1025 = vdwg.mxu0
      %1026 = vrot.lane.b32.xlu0 %v718, 112
      %v1027 = vpop.permute.xlu0 %1026
      %1028 = vrot.lane.b32.xlu0 %v723, 80
      %v1029 = vpop.permute.xlu0 %1028
      %v1031 = vsel %vm661, %v1027, 0
      %v1034 = vsel %vm661, %v1029, 0
      %1036 = vmatpush.bf16.xpose.msra.mxu0 0
      %1037 = vmatpush.bf16.xpose.msra.mxu0 0
      %1038 = vmatpush.bf16.xpose.msra.mxu0 0
      %1039 = vmatpush.bf16.xpose.msra.mxu0 0
      %1040 = vmatpush.bf16.xpose.msra.mxu0 0
      %1041 = vmatpush.bf16.xpose.msra.mxu0 0
      %1042 = vmatpush.bf16.xpose.msra.mxu0 0
      %1043 = vmatpush.bf16.xpose.msra.mxu0 %v1034
      %1044 = vmatmul.bf16.gmra.mxu0 %v1031
      %v1045 = vpop.f32.mrf.mxu0
      %v1046 = vadd.f32 %v549, %v1045
      %v1047 = vpop.f32.mrf.mxu0
      %v1048 = vadd.f32 %v550, %v1047
      %1049 = vdwg.mxu0
      %1050 = vrot.lane.b32.xlu0 %v750, 112
      %v1051 = vpop.permute.xlu0 %1050
      %1052 = vrot.lane.b32.xlu0 %v755, 80
      %v1053 = vpop.permute.xlu0 %1052
      %v1055 = vsel %vm661, %v1051, 0
      %v1058 = vsel %vm661, %v1053, 0
      %1060 = vmatpush.bf16.xpose.msra.mxu0 0
      %1061 = vmatpush.bf16.xpose.msra.mxu0 0
      %1062 = vmatpush.bf16.xpose.msra.mxu0 0
      %1063 = vmatpush.bf16.xpose.msra.mxu0 0
      %1064 = vmatpush.bf16.xpose.msra.mxu0 0
      %1065 = vmatpush.bf16.xpose.msra.mxu0 0
      %1066 = vmatpush.bf16.xpose.msra.mxu0 0
      %1067 = vmatpush.bf16.xpose.msra.mxu0 %v1058
      %1068 = vmatmul.bf16.gmra.mxu0 %v1055
      %v1069 = vpop.f32.mrf.mxu0
      %v1070 = vadd.f32 %v553, %v1069
      %v1071 = vpop.f32.mrf.mxu0
      %v1072 = vadd.f32 %v554, %v1071
      %1073 = vdwg.mxu0
      %v1074 = vsel %vm661, %v998, -inf
      %1075 = vmax.xlane.f32.xlu0 %v1074
      %v1076 = vpop.xlane.xlu0 %1075
      %v1077 = vsel %vm661, %v1000, -inf
      %1078 = vmax.xlane.f32.xlu0 %v1077
      %v1079 = vpop.xlane.xlu0 %1078
      %v1080 = vsel %vm661, %v1022, -inf
      %1081 = vmax.xlane.f32.xlu0 %v1080
      %v1082 = vpop.xlane.xlu0 %1081
      %v1083 = vsel %vm661, %v1024, -inf
      %1084 = vmax.xlane.f32.xlu0 %v1083
      %v1085 = vpop.xlane.xlu0 %1084
      %v1086 = vsel %vm661, %v1046, -inf
      %1087 = vmax.xlane.f32.xlu0 %v1086
      %v1088 = vpop.xlane.xlu0 %1087
      %v1089 = vsel %vm661, %v1048, -inf
      %1090 = vmax.xlane.f32.xlu0 %v1089
      %v1091 = vpop.xlane.xlu0 %1090
      %v1092 = vsel %vm661, %v1070, -inf
      %1093 = vmax.xlane.f32.xlu0 %v1092
      %v1094 = vpop.xlane.xlu0 %1093
      %v1095 = vsel %vm661, %v1072, -inf
      %1096 = vmax.xlane.f32.xlu0 %v1095
      %v1097 = vpop.xlane.xlu0 %1096
      %v1098 = vsub.f32 %v998, %v1076
      %v1099 = vsub.f32 %v1000, %v1079
      %v1100 = vsub.f32 %v1022, %v1082
      %v1101 = vsub.f32 %v1024, %v1085
      %v1102 = vsub.f32 %v1046, %v1088
      %v1103 = vsub.f32 %v1048, %v1091
      %v1104 = vsub.f32 %v1070, %v1094
      %v1105 = vsub.f32 %v1072, %v1097
      %v1106 = vmul.f32 %v1098, 1.442695
      %v1107 = vpow.pop %v1106
      %v1108 = vmul.f32 %v1099, 1.442695
      %v1109 = vpow.pop %v1108
      %v1110 = vmul.f32 %v1100, 1.442695
      %v1111 = vpow.pop %v1110
      %v1112 = vmul.f32 %v1101, 1.442695
      %v1113 = vpow.pop %v1112
      %v1114 = vmul.f32 %v1102, 1.442695
      %v1115 = vpow.pop %v1114
      %v1116 = vmul.f32 %v1103, 1.442695
      %v1117 = vpow.pop %v1116
      %v1118 = vmul.f32 %v1104, 1.442695
      %v1119 = vpow.pop %v1118
      %v1120 = vmul.f32 %v1105, 1.442695
      %v1121 = vpow.pop %v1120
      %v1122 = vsel %vm661, %v1107, 0.0
      %1123 = vadd.xlane.f32.xlu0 %v1122
      %v1124 = vpop.xlane.xlu0 %1123
      %v1125 = vsel %vm661, %v1109, 0.0
      %1126 = vadd.xlane.f32.xlu0 %v1125
      %v1127 = vpop.xlane.xlu0 %1126
      %v1128 = vsel %vm661, %v1111, 0.0
      %1129 = vadd.xlane.f32.xlu0 %v1128
      %v1130 = vpop.xlane.xlu0 %1129
      %v1131 = vsel %vm661, %v1113, 0.0
      %1132 = vadd.xlane.f32.xlu0 %v1131
      %v1133 = vpop.xlane.xlu0 %1132
      %v1134 = vsel %vm661, %v1115, 0.0
      %1135 = vadd.xlane.f32.xlu0 %v1134
      %v1136 = vpop.xlane.xlu0 %1135
      %v1137 = vsel %vm661, %v1117, 0.0
      %1138 = vadd.xlane.f32.xlu0 %v1137
      %v1139 = vpop.xlane.xlu0 %1138
      %v1140 = vsel %vm661, %v1119, 0.0
      %1141 = vadd.xlane.f32.xlu0 %v1140
      %v1142 = vpop.xlane.xlu0 %1141
      %v1143 = vsel %vm661, %v1121, 0.0
      %1144 = vadd.xlane.f32.xlu0 %v1143
      %v1145 = vpop.xlane.xlu0 %1144
      %v1146 = vrcp.pop %v1124
      %v1147 = vrcp.pop %v1127
      %v1148 = vrcp.pop %v1130
      %v1149 = vrcp.pop %v1133
      %v1150 = vrcp.pop %v1136
      %v1151 = vrcp.pop %v1139
      %v1152 = vrcp.pop %v1142
      %v1153 = vrcp.pop %v1145
      %v1154 = vmul.f32 %v1107, %v1146
      %v1155 = vmul.f32 %v1109, %v1147
      %v1156 = vmul.f32 %v1111, %v1148
      %v1157 = vmul.f32 %v1113, %v1149
      %v1158 = vmul.f32 %v1115, %v1150
      %v1159 = vmul.f32 %v1117, %v1151
      %v1160 = vmul.f32 %v1119, %v1152
      %v1161 = vmul.f32 %v1121, %v1153
      %v1162 = vpack.c.bf16 %v1154, %v1154
      %v1163 = vpack.c.bf16 %v1155, %v1155
      %v1164 = vpack.c.bf16 %v1156, %v1156
      %v1165 = vpack.c.bf16 %v1157, %v1157
      %v1166 = vpack.c.bf16 %v1158, %v1158
      %v1167 = vpack.c.bf16 %v1159, %v1159
      %v1168 = vpack.c.bf16 %v1160, %v1160
      %v1169 = vpack.c.bf16 %v1161, %v1161
      %v1172 = vunpack.c.l.b16 %v1162
      %v1173 = vunpack.c.l.b16 %v1163
      %v1174 = vpack.c.b16 %v1173, %v1172
      %1175 = vrot.lane.b32.xlu0 %v658, 48
      %v1176 = vpop.permute.xlu0 %1175
      %v1179 = vsel %vm661, %v1174, 0
      %1181 = vmatpush.bf16.msra.mxu0 0
      %1182 = vmatpush.bf16.msra.mxu0 0
      %1183 = vmatpush.bf16.msra.mxu0 0
      %1184 = vmatpush.bf16.msra.mxu0 0
      %1185 = vmatpush.bf16.msra.mxu0 0
      %1186 = vmatpush.bf16.msra.mxu0 0
      %1187 = vmatpush.bf16.msra.mxu0 0
      %1188 = vmatpush.bf16.msra.mxu0 %v1176
      %1189 = vmatmul.bf16.gmra.mxu0 %v1179
      %v1190 = vpop.f32.mrf.mxu0
      %v1191 = vadd.f32 0.0, %v1190
      %v1192 = vpop.f32.mrf.mxu0
      %v1193 = vadd.f32 0.0, %v1192
      %1194 = vdwg.mxu0
      %v1197 = vunpack.c.l.b16 %v1164
      %v1198 = vunpack.c.l.b16 %v1165
      %v1199 = vpack.c.b16 %v1198, %v1197
      %1200 = vrot.lane.b32.xlu0 %v691, 48
      %v1201 = vpop.permute.xlu0 %1200
      %v1204 = vsel %vm661, %v1199, 0
      %1206 = vmatpush.bf16.msra.mxu0 0
      %1207 = vmatpush.bf16.msra.mxu0 0
      %1208 = vmatpush.bf16.msra.mxu0 0
      %1209 = vmatpush.bf16.msra.mxu0 0
      %1210 = vmatpush.bf16.msra.mxu0 0
      %1211 = vmatpush.bf16.msra.mxu0 0
      %1212 = vmatpush.bf16.msra.mxu0 0
      %1213 = vmatpush.bf16.msra.mxu0 %v1201
      %1214 = vmatmul.bf16.gmra.mxu0 %v1204
      %v1215 = vpop.f32.mrf.mxu0
      %v1216 = vadd.f32 0.0, %v1215
      %v1217 = vpop.f32.mrf.mxu0
      %v1218 = vadd.f32 0.0, %v1217
      %1219 = vdwg.mxu0
      %v1222 = vunpack.c.l.b16 %v1166
      %v1223 = vunpack.c.l.b16 %v1167
      %v1224 = vpack.c.b16 %v1223, %v1222
      %1225 = vrot.lane.b32.xlu0 %v723, 48
      %v1226 = vpop.permute.xlu0 %1225
      %v1229 = vsel %vm661, %v1224, 0
      %1231 = vmatpush.bf16.msra.mxu0 0
      %1232 = vmatpush.bf16.msra.mxu0 0
      %1233 = vmatpush.bf16.msra.mxu0 0
      %1234 = vmatpush.bf16.msra.mxu0 0
      %1235 = vmatpush.bf16.msra.mxu0 0
      %1236 = vmatpush.bf16.msra.mxu0 0
      %1237 = vmatpush.bf16.msra.mxu0 0
      %1238 = vmatpush.bf16.msra.mxu0 %v1226
      %1239 = vmatmul.bf16.gmra.mxu0 %v1229
      %v1240 = vpop.f32.mrf.mxu0
      %v1241 = vadd.f32 0.0, %v1240
      %v1242 = vpop.f32.mrf.mxu0
      %v1243 = vadd.f32 0.0, %v1242
      %1244 = vdwg.mxu0
      %v1247 = vunpack.c.l.b16 %v1168
      %v1248 = vunpack.c.l.b16 %v1169
      %v1249 = vpack.c.b16 %v1248, %v1247
      %1250 = vrot.lane.b32.xlu0 %v755, 48
      %v1251 = vpop.permute.xlu0 %1250
      %v1254 = vsel %vm661, %v1249, 0
      %1256 = vmatpush.bf16.msra.mxu0 0
      %1257 = vmatpush.bf16.msra.mxu0 0
      %1258 = vmatpush.bf16.msra.mxu0 0
      %1259 = vmatpush.bf16.msra.mxu0 0
      %1260 = vmatpush.bf16.msra.mxu0 0
      %1261 = vmatpush.bf16.msra.mxu0 0
      %1262 = vmatpush.bf16.msra.mxu0 0
      %1263 = vmatpush.bf16.msra.mxu0 %v1251
      %1264 = vmatmul.bf16.gmra.mxu0 %v1254
      %v1265 = vpop.f32.mrf.mxu0
      %v1266 = vadd.f32 0.0, %v1265
      %v1267 = vpop.f32.mrf.mxu0
      %v1268 = vadd.f32 0.0, %v1267
      %1269 = vdwg.mxu0
      %v1270 = vpack.c.bf16 %v1193, %v1191
      %v1271 = vpack.c.bf16 %v1218, %v1216
      %v1272 = vpack.c.bf16 %v1243, %v1241
      %v1273 = vpack.c.bf16 %v1268, %v1266
      %v1276 = vunpack.c.l.b16 %v562
      %v1277 = vunpack.c.l.b16 %v563
      %v1278 = vpack.c.b16 %v1277, %v1276
      %v1281 = vsel %vm661, %v1270, 0
      %v1284 = vsel %vm661, %v1271, 0
      %v1287 = vsel %vm661, %v1272, 0
      %v1290 = vsel %vm661, %v1273, 0
      %1292 = vmatpush.bf16.msra.mxu0 0
      %1293 = vmatpush.bf16.msra.mxu0 0
      %1294 = vmatpush.bf16.msra.mxu0 0
      %1295 = vmatpush.bf16.msra.mxu0 0
      %1296 = vmatpush.bf16.msra.mxu0 0
      %1297 = vmatpush.bf16.msra.mxu0 0
      %1298 = vmatpush.bf16.msra.mxu0 0
      %1299 = vmatpush.bf16.msra.mxu0 %v1278
      %1300 = vmatmul.bf16.gmra.mxu0 %v1281
      %v1301 = vpop.f32.mrf.mxu0
      %v1302 = vadd.f32 0.0, %v1301
      %v1303 = vpop.f32.mrf.mxu0
      %v1304 = vadd.f32 0.0, %v1303
      %1305 = vmatmul.bf16.gmra.mxu0 %v1284
      %v1306 = vpop.f32.mrf.mxu0
      %v1307 = vadd.f32 0.0, %v1306
      %v1308 = vpop.f32.mrf.mxu0
      %v1309 = vadd.f32 0.0, %v1308
      %1310 = vmatmul.bf16.gmra.mxu0 %v1287
      %v1311 = vpop.f32.mrf.mxu0
      %v1312 = vadd.f32 0.0, %v1311
      %v1313 = vpop.f32.mrf.mxu0
      %v1314 = vadd.f32 0.0, %v1313
      %1315 = vmatmul.bf16.gmra.mxu0 %v1290
      %v1316 = vpop.f32.mrf.mxu0
      %v1317 = vadd.f32 0.0, %v1316
      %v1318 = vpop.f32.mrf.mxu0
      %v1319 = vadd.f32 0.0, %v1318
      %1320 = vdwg.mxu0
      %v1323 = vunpack.c.l.b16 %v560
      %v1324 = vunpack.c.l.b16 %v561
      %v1325 = vpack.c.b16 %v1324, %v1323
      %v1328 = vsel %vm661, %v974, 0
      %v1331 = vsel %vm661, %v975, 0
      %v1334 = vsel %vm661, %v976, 0
      %v1337 = vsel %vm661, %v977, 0
      %1339 = vmatpush.bf16.msra.mxu0 0
      %1340 = vmatpush.bf16.msra.mxu0 0
      %1341 = vmatpush.bf16.msra.mxu0 0
      %1342 = vmatpush.bf16.msra.mxu0 0
      %1343 = vmatpush.bf16.msra.mxu0 0
      %1344 = vmatpush.bf16.msra.mxu0 0
      %1345 = vmatpush.bf16.msra.mxu0 0
      %1346 = vmatpush.bf16.msra.mxu0 %v1325
      %1347 = vmatmul.bf16.gmra.mxu0 %v1328
      %v1348 = vpop.f32.mrf.mxu0
      %v1349 = vadd.f32 %v1302, %v1348
      %v1350 = vpop.f32.mrf.mxu0
      %v1351 = vadd.f32 %v1304, %v1350
      %1352 = vmatmul.bf16.gmra.mxu0 %v1331
      %v1353 = vpop.f32.mrf.mxu0
      %v1354 = vadd.f32 %v1307, %v1353
      %v1355 = vpop.f32.mrf.mxu0
      %v1356 = vadd.f32 %v1309, %v1355
      %1357 = vmatmul.bf16.gmra.mxu0 %v1334
      %v1358 = vpop.f32.mrf.mxu0
      %v1359 = vadd.f32 %v1312, %v1358
      %v1360 = vpop.f32.mrf.mxu0
      %v1361 = vadd.f32 %v1314, %v1360
      %1362 = vmatmul.bf16.gmra.mxu0 %v1337
      %v1363 = vpop.f32.mrf.mxu0
      %v1364 = vadd.f32 %v1317, %v1363
      %v1365 = vpop.f32.mrf.mxu0
      %v1366 = vadd.f32 %v1319, %v1365
      %1367 = vdwg.mxu0
      %v1369 = vperm.slane %v564, 0
      %v1371 = vadd.f32 %v1349, %v1369
      %v1372 = vadd.f32 %v1351, %v1369
      %v1373 = vadd.f32 %v1354, %v1369
      %v1374 = vadd.f32 %v1356, %v1369
      %v1375 = vadd.f32 %v1359, %v1369
      %v1376 = vadd.f32 %v1361, %v1369
      %v1377 = vadd.f32 %v1364, %v1369
      %v1378 = vadd.f32 %v1366, %v1369
      %v1379 = vpack.c.bf16 %v1371, %v1371
      %v1380 = vpack.c.bf16 %v1372, %v1372
      %v1381 = vpack.c.bf16 %v1373, %v1373
      %v1382 = vpack.c.bf16 %v1374, %v1374
      %v1383 = vpack.c.bf16 %v1375, %v1375
      %v1384 = vpack.c.bf16 %v1376, %v1376
      %v1385 = vpack.c.bf16 %v1377, %v1377
      %v1386 = vpack.c.bf16 %v1378, %v1378
      %vm1387 = vcmask 257024
      %1388 = vst.msk [vmem:[%s312] sm:$0xf] %vm1387, %v1379
      %1389 = vst.msk [vmem:[%s312 + $0x4] sm:$0xf] %vm1387, %v1380
      %1390 = vst.msk [vmem:[%s312 + $0x8] sm:$0xf] %vm1387, %v1381
      %1391 = vst.msk [vmem:[%s312 + $0xc] sm:$0xf] %vm1387, %v1382
      %1392 = vst.msk [vmem:[%s312 + $0x10] sm:$0xf] %vm1387, %v1383
      %1393 = vst.msk [vmem:[%s312 + $0x14] sm:$0xf] %vm1387, %v1384
      %1394 = vst.msk [vmem:[%s312 + $0x18] sm:$0xf] %vm1387, %v1385
      %1395 = vst.msk [vmem:[%s312 + $0x1c] sm:$0xf] %vm1387, %v1386
      %s1396 = smul.u32 4, %s19
      %p1397 = scmp.lt.s32.totalorder %s1396, 7
      %s1398 = scalar_select %p1397, %s1396, 7
      %s1399 = smul.addr %s1398, 2
      %s1400 = smul.addr %s1399, 4
      %s1401 = scalar_lea.vmem %s8, %s1400
      // Predicated region
      $region53: #{swin_forward.13} parent=51 // pred_check
        %p1402 = pneg %p210
      $region54: #{swin_forward.13} parent=51 // pred_check_branch
        %1404 = sbr.rel (%p1402) target = $region56
      $region55: #{swin_forward.13} parent=51 // pred_region
        %s1405 = smul.u32 4, %s19
      $region56: #{swin_forward.13} parent=51 // pred_fallthru
        _
    $region52: #{swin_forward.13} parent=5 // pred_fallthru
      _
    %p1406 = scmp.le.s32.totalorder 2, %s14
    // Predicated region
    $region57: #{swin_forward.13} parent=5 // pred_check
      %p1407 = pneg %p1406
    $region58: #{swin_forward.13} parent=5 // pred_check_branch
      %1409 = sbr.rel (%p1407) target = $region60
    $region59: #{swin_forward.13} parent=5 // pred_region
      %s1410 = ssub.s32 %s14, 2
      // Predicated region
      $region61: #{swin_forward.13} parent=59 // pred_check
        %p1411 = pneg %p216
      $region62: #{swin_forward.13} parent=59 // pred_check_branch
        %1413 = sbr.rel (%p1411) target = $region64
      $region63: #{swin_forward.13} parent=59 // pred_region
        %s1414 = smul.u32 4, %s20
        %p1415 = scmp.lt.s32.totalorder %s1414, 7
        %s1416 = scalar_select %p1415, %s1414, 7
        %s1417 = smul.addr %s1416, 2
        %s1418 = smul.addr %s1417, 4
        %s1419 = scalar_lea.vmem %s8, %s1418
      $region64: #{swin_forward.13} parent=59 // pred_fallthru
        _
    $region60: #{swin_forward.13} parent=5 // pred_fallthru
      _
  $region6: #{swin_forward.13} parent=0 // loop_footer
    %s18 = sadd.s32 1, %s14
  $region7: #{swin_forward.13} parent=0 // loop_footer_branch
    %13 = sbr.rel target = $region3
  $region8: #{swin_forward.13} parent=0 // loop_exit
    _

// kernel: swin_forward.15
$region0: #{swin_forward.15}
  #allocation0 [shape = 'u32[]', space=smem, size = 0x4, offset = 0x4, fixed_abs, tag = 'smem constant byte address 0x4 - core index']
  #allocation1 [shape = 'u32[72,128]{1,0:T(1,128)}', space=vmem, size = 0x9000, scoped, tag = 'internal scratch']
  %s0 = inlined_call_operand.vmem [shape: bf16[32,128], index: 0, kind: input, shape index: {}]
  %s1 = inlined_call_operand.vmem [shape: f32[1,128], index: 1, kind: input, shape index: {}]
  %s2 = inlined_call_operand.vmem [shape: f32[1,128], index: 2, kind: input, shape index: {}]
  %s3 = inlined_call_operand.vmem [shape: bf16[128,64], index: 3, kind: input, shape index: {}]
  %s4 = inlined_call_operand.vmem [shape: bf16[32,64], index: 4, kind: output, shape index: {}]
  %s5 = sld [smem:[#allocation0]]
  $region49: #{swin_forward.15} parent=0
    _
  %s7 = ssub.s32 1, %s5
  %s8 = scalar_select 0, %s7, %s5
  loop: start=0, step=1, limit=4
  $region2: #{swin_forward.15} parent=0 // loop_pre_header
    _
  $region3: #{swin_forward.15} parent=0 // loop_header
    %s10 = sphi 0, %s14
    %p11 = scmp.ge.s32.totalorder %s10, 4
    %s20 = sphi 0, %s22
    %s23 = sphi 0, %s20
    %s24 = sphi 0, %s23
    %s40 = sphi 0, %s24
    %s44 = sphi 0, %s44
    %s46 = sphi 0, %s44
    %s47 = sphi 0, %s46
    %s61 = sphi 0, %s47
    %s65 = sphi 0, %s65
    %s67 = sphi 0, %s65
    %s68 = sphi 0, %s67
    %s82 = sphi 0, %s68
    %s86 = sphi 0, %s86
    %s88 = sphi 0, %s86
    %s89 = sphi 0, %s88
    %s103 = sphi 0, %s89
    %s109 = sphi 0, %s111
    %s112 = sphi 0, %s109
    %s113 = sphi 0, %s112
    %s129 = sphi 0, %s113
  $region4: #{swin_forward.15} parent=0 // loop_header_branch
    %13 = sbr.rel (%p11) target = $region8
  $region5: #{swin_forward.15} parent=0 // loop_body
    %s15 = ssub.s32 %s10, 1
    %s16 = ssub.s32 %s10, 2
    %s17 = sadd.s32 %s10, 1
    %s18 = ssub.s32 %s10, %s17
    %p19 = scmp.eq.s32.totalorder %s18, 0
    %s21 = sadd.s32 %s20, 1
    %s22 = scalar_select %p19, %s20, %s21
    %p25 = pneg %p19
    %p26 = scmp.eq.s32.totalorder %s10, 1
    %p27 = por %p25, %p26
    %p28 = scmp.ne.s32.totalorder %s20, %s23
    %p29 = scmp.eq.s32.totalorder %s10, 0
    %p30 = por %p28, %p29
    %p31 = scmp.ne.s32.totalorder %s20, %s23
    %p32 = scmp.eq.s32.totalorder %s15, 1
    %p33 = por %p31, %p32
    %p34 = scmp.ne.s32.totalorder %s23, %s24
    %p35 = scmp.eq.s32.totalorder %s15, 0
    %p36 = por %p34, %p35
    %p37 = scmp.ne.s32.totalorder %s23, %s24
    %p38 = scmp.eq.s32.totalorder %s16, 1
    %p39 = por %p37, %p38
    %p41 = scmp.ne.s32.totalorder %s24, %s40
    %p42 = scmp.eq.s32.totalorder %s16, 0
    %p43 = por %p41, %p42
    %s45 = sadd.s32 %s44, 1
    %p48 = scmp.eq.s32.totalorder %s10, 1
    %p49 = scmp.ne.s32.totalorder %s44, %s46
    %p50 = scmp.eq.s32.totalorder %s10, 0
    %p51 = por %p49, %p50
    %p52 = scmp.ne.s32.totalorder %s44, %s46
    %p53 = scmp.eq.s32.totalorder %s15, 1
    %p54 = por %p52, %p53
    %p55 = scmp.ne.s32.totalorder %s46, %s47
    %p56 = scmp.eq.s32.totalorder %s15, 0
    %p57 = por %p55, %p56
    %p58 = scmp.ne.s32.totalorder %s46, %s47
    %p59 = scmp.eq.s32.totalorder %s16, 1
    %p60 = por %p58, %p59
    %p62 = scmp.ne.s32.totalorder %s47, %s61
    %p63 = scmp.eq.s32.totalorder %s16, 0
    %p64 = por %p62, %p63
    %s66 = sadd.s32 %s65, 1
    %p69 = scmp.eq.s32.totalorder %s10, 1
    %p70 = scmp.ne.s32.totalorder %s65, %s67
    %p71 = scmp.eq.s32.totalorder %s10, 0
    %p72 = por %p70, %p71
    %p73 = scmp.ne.s32.totalorder %s65, %s67
    %p74 = scmp.eq.s32.totalorder %s15, 1
    %p75 = por %p73, %p74
    %p76 = scmp.ne.s32.totalorder %s67, %s68
    %p77 = scmp.eq.s32.totalorder %s15, 0
    %p78 = por %p76, %p77
    %p79 = scmp.ne.s32.totalorder %s67, %s68
    %p80 = scmp.eq.s32.totalorder %s16, 1
    %p81 = por %p79, %p80
    %p83 = scmp.ne.s32.totalorder %s68, %s82
    %p84 = scmp.eq.s32.totalorder %s16, 0
    %p85 = por %p83, %p84
    %s87 = sadd.s32 %s86, 1
    %p90 = scmp.eq.s32.totalorder %s10, 1
    %p91 = scmp.ne.s32.totalorder %s86, %s88
    %p92 = scmp.eq.s32.totalorder %s10, 0
    %p93 = por %p91, %p92
    %p94 = scmp.ne.s32.totalorder %s86, %s88
    %p95 = scmp.eq.s32.totalorder %s15, 1
    %p96 = por %p94, %p95
    %p97 = scmp.ne.s32.totalorder %s88, %s89
    %p98 = scmp.eq.s32.totalorder %s15, 0
    %p99 = por %p97, %p98
    %p100 = scmp.ne.s32.totalorder %s88, %s89
    %p101 = scmp.eq.s32.totalorder %s16, 1
    %p102 = por %p100, %p101
    %p104 = scmp.ne.s32.totalorder %s89, %s103
    %p105 = scmp.eq.s32.totalorder %s16, 0
    %p106 = por %p104, %p105
    %s107 = ssub.s32 %s10, %s17
    %p108 = scmp.eq.s32.totalorder %s107, 0
    %s110 = sadd.s32 %s109, 1
    %s111 = scalar_select %p108, %s109, %s110
    %p114 = pneg %p108
    %p115 = scmp.eq.s32.totalorder %s10, 1
    %p116 = por %p114, %p115
    %p117 = scmp.ne.s32.totalorder %s109, %s112
    %p118 = scmp.eq.s32.totalorder %s10, 0
    %p119 = por %p117, %p118
    %p120 = scmp.ne.s32.totalorder %s109, %s112
    %p121 = scmp.eq.s32.totalorder %s15, 1
    %p122 = por %p120, %p121
    %p123 = scmp.ne.s32.totalorder %s112, %s113
    %p124 = scmp.eq.s32.totalorder %s15, 0
    %p125 = por %p123, %p124
    %p126 = scmp.ne.s32.totalorder %s112, %s113
    %p127 = scmp.eq.s32.totalorder %s16, 1
    %p128 = por %p126, %p127
    %p130 = scmp.ne.s32.totalorder %s113, %s129
    %p131 = scmp.eq.s32.totalorder %s16, 0
    %p132 = por %p130, %p131
    %p133 = scmp.le.s32.totalorder 1, %s10
    %p134 = scmp.lt.s32.totalorder %s10, 3
    %p135 = pnand %p133, %p134
    %p136 = pneg %p135
    // Predicated region
    $region9: #{swin_forward.15} parent=5 // pred_check
      _
    $region10: #{swin_forward.15} parent=5 // pred_check_branch
      %138 = sbr.rel (%p135) target = $region12
    $region11: #{swin_forward.15} parent=5 // pred_region
      %s139 = ssub.s32 %s10, 1
      // Predicated region
      $region13: #{swin_forward.15} parent=11 // pred_check
        %p140 = pneg %p57
      $region14: #{swin_forward.15} parent=11 // pred_check_branch
        %142 = sbr.rel (%p140) target = $region16
      $region15: #{swin_forward.15} parent=11 // pred_region
        _
      $region16: #{swin_forward.15} parent=11 // pred_fallthru
        _
      // Predicated region
      $region17: #{swin_forward.15} parent=11 // pred_check
        %p143 = pneg %p78
      $region18: #{swin_forward.15} parent=11 // pred_check_branch
        %145 = sbr.rel (%p143) target = $region20
      $region19: #{swin_forward.15} parent=11 // pred_region
        _
      $region20: #{swin_forward.15} parent=11 // pred_fallthru
        _
      // Predicated region
      $region21: #{swin_forward.15} parent=11 // pred_check
        %p146 = pneg %p99
      $region22: #{swin_forward.15} parent=11 // pred_check_branch
        %148 = sbr.rel (%p146) target = $region24
      $region23: #{swin_forward.15} parent=11 // pred_region
        _
      $region24: #{swin_forward.15} parent=11 // pred_fallthru
        _
    $region12: #{swin_forward.15} parent=5 // pred_fallthru
      _
    %p149 = scmp.lt.s32.totalorder %s10, 2
    // Predicated region
    $region25: #{swin_forward.15} parent=5 // pred_check
      %p150 = pneg %p149
    $region26: #{swin_forward.15} parent=5 // pred_check_branch
      %152 = sbr.rel (%p150) target = $region28
    $region27: #{swin_forward.15} parent=5 // pred_region
      // Predicated region
      $region29: #{swin_forward.15} parent=27 // pred_check
        %p153 = pneg %p30
      $region30: #{swin_forward.15} parent=27 // pred_check_branch
        %155 = sbr.rel (%p153) target = $region32
      $region31: #{swin_forward.15} parent=27 // pred_region
        %s156 = smul.u32 2, %s10
        %p157 = scmp.lt.s32.totalorder %s156, 3
        %s158 = scalar_select %p157, %s156, 3
        %s159 = smul.addr %s158, 4
        %s160 = scalar_lea.vmem %s0, %s159
        %s161 = smul.u32 2, %s10
      $region32: #{swin_forward.15} parent=27 // pred_fallthru
        _
    $region28: #{swin_forward.15} parent=5 // pred_fallthru
      _
    %p162 = scmp.le.s32.totalorder 1, %s10
    %p163 = scmp.lt.s32.totalorder %s10, 3
    %p164 = pnand %p162, %p163
    %p165 = pneg %p164
    // Predicated region
    $region33: #{swin_forward.15} parent=5 // pred_check
      _
    $region34: #{swin_forward.15} parent=5 // pred_check_branch
      %167 = sbr.rel (%p164) target = $region36
    $region35: #{swin_forward.15} parent=5 // pred_region
      %s168 = ssub.s32 %s10, 1
      %s169 = smul.u32 2, %s15
      %p170 = scmp.lt.s32.totalorder %s169, 3
      %s171 = scalar_select %p170, %s169, 3
      %s172 = smul.addr %s171, 4
      %s173 = scalar_lea.vmem %s0, %s172
      %p174 = pneg %p36
      %p175 = pneg %p33
      %p176 = pneg %p57
      %p177 = pneg %p54
      %p178 = pneg %p78
      %p179 = pneg %p75
      %p180 = pneg %p99
      %p181 = pneg %p96
      %p182 = pneg %p125
      %p183 = pneg %p122
      %s184 = smul.u32 2, %s15
      %p185 = scmp.lt.s32.totalorder %s184, 3
      %s186 = scalar_select %p185, %s184, 3
      %s187 = smul.addr %s186, 4
      %s188 = scalar_lea.vmem %s4, %s187
      %s189 = smul.u32 2, %s15
      %p190 = scmp.lt.s32.totalorder %s189, 3
      %s191 = scalar_select %p190, %s189, 3
      %s192 = smul.addr %s191, 4
      %s193 = scalar_lea.vmem %s0, %s192
      %s194 = smul.u32 2, %s15
      %s195 = smul.u32 2, %s15
      %p196 = scmp.lt.s32.totalorder %s195, 3
      %s197 = scalar_select %p196, %s195, 3
      %s198 = smul.addr %s197, 4
      %s199 = scalar_lea.vmem %s4, %s198
      %s200 = smul.u32 2, %s15
      %v201 = vld [vmem:[%s193] sm:$0xf]
      %v202 = vld [vmem:[%s193 + $0x4] sm:$0xf]
      %v203 = vunpack.c.l.bf16 %v201
      %v204 = vunpack.c.l.bf16 %v202
      %v205 = vld [vmem:[%s1] sm:$0x1]
      %v206 = vld [vmem:[%s2] sm:$0x1]
      %207 = vadd.xlane.f32.xlu0 %v203
      %v208 = vpop.xlane.xlu0 %207
      %209 = vadd.xlane.f32.xlu0 %v204
      %v210 = vpop.xlane.xlu0 %209
      %v211 = vrcp.pop 128.0
      %v212 = vmul.f32 128.0, %v211
      %v213 = vsub.f32 1.0, %v212
      %v214 = vmul.f32 %v211, %v213
      %v215 = vadd.f32 %v211, %v214
      %vm216 = vweird.f32 %v211
      %v217 = vsel %vm216, %v211, %v215
      %v218 = vmul.f32 %v208, %v217
      %v219 = vmul.f32 %v210, %v217
      %v220 = vsub.f32 %v203, %v218
      %v221 = vsub.f32 %v204, %v219
      %v222 = vmul.f32 %v220, %v220
      %v223 = vmul.f32 %v221, %v221
      %224 = vadd.xlane.f32.xlu0 %v222
      %v225 = vpop.xlane.xlu0 %224
      %226 = vadd.xlane.f32.xlu0 %v223
      %v227 = vpop.xlane.xlu0 %226
      %v228 = vmul.f32 %v225, %v217
      %v229 = vmul.f32 %v227, %v217
      %v230 = vadd.f32 %v228, 1e-05
      %v231 = vadd.f32 %v229, 1e-05
      %v232 = vrsqrt.pop %v230
      %v233 = vmul.f32 %v232, %v230
      %v234 = vmul.f32 %v233, %v232
      %v235 = vmul.f32 0.5, %v234
      %v236 = vsub.f32 1.5, %v235
      %v237 = vmul.f32 %v232, %v236
      %vm238 = vweird.f32 %v230
      %vm239 = vweird.f32 %v232
      %vm240 = vmor %vm238, %vm239
      %v241 = vsel %vm240, %v232, %v237
      %v242 = vrsqrt.pop %v231
      %v243 = vmul.f32 %v242, %v231
      %v244 = vmul.f32 %v243, %v242
      %v245 = vmul.f32 0.5, %v244
      %v246 = vsub.f32 1.5, %v245
      %v247 = vmul.f32 %v242, %v246
      %vm248 = vweird.f32 %v231
      %vm249 = vweird.f32 %v242
      %vm250 = vmor %vm248, %vm249
      %v251 = vsel %vm250, %v242, %v247
      %v252 = vmul.f32 %v220, %v241
      %v253 = vmul.f32 %v221, %v251
      %v255 = vperm.slane %v205, 0
      %v257 = vmul.f32 %v252, %v255
      %v258 = vmul.f32 %v253, %v255
      %v260 = vperm.slane %v206, 0
      %v262 = vadd.f32 %v257, %v260
      %v263 = vadd.f32 %v258, %v260
      %v264 = vld [vmem:[%s3] sm:$0xf]
      %v265 = vld [vmem:[%s3 + $0x4] sm:$0xf]
      %v266 = vld [vmem:[%s3 + $0x8] sm:$0xf]
      %v267 = vld [vmem:[%s3 + $0xc] sm:$0xf]
      %v268 = vld [vmem:[%s3 + $0x10] sm:$0xf]
      %v269 = vld [vmem:[%s3 + $0x14] sm:$0xf]
      %v270 = vld [vmem:[%s3 + $0x18] sm:$0xf]
      %v271 = vld [vmem:[%s3 + $0x1c] sm:$0xf]
      %v272 = vld [vmem:[%s3 + $0x20] sm:$0xf]
      %v273 = vld [vmem:[%s3 + $0x24] sm:$0xf]
      %v274 = vld [vmem:[%s3 + $0x28] sm:$0xf]
      %v275 = vld [vmem:[%s3 + $0x2c] sm:$0xf]
      %v276 = vld [vmem:[%s3 + $0x30] sm:$0xf]
      %v277 = vld [vmem:[%s3 + $0x34] sm:$0xf]
      %v278 = vld [vmem:[%s3 + $0x38] sm:$0xf]
      %v279 = vld [vmem:[%s3 + $0x3c] sm:$0xf]
      %v280 = vpack.c.bf16 %v263, %v262
      %v297 = vunpack.c.l.b16 %v264
      %v298 = vunpack.c.l.b16 %v265
      %v299 = vunpack.c.l.b16 %v266
      %v300 = vunpack.c.l.b16 %v267
      %v301 = vunpack.c.l.b16 %v268
      %v302 = vunpack.c.l.b16 %v269
      %v303 = vunpack.c.l.b16 %v270
      %v304 = vunpack.c.l.b16 %v271
      %v305 = vunpack.c.l.b16 %v272
      %v306 = vunpack.c.l.b16 %v273
      %v307 = vunpack.c.l.b16 %v274
      %v308 = vunpack.c.l.b16 %v275
      %v309 = vunpack.c.l.b16 %v276
      %v310 = vunpack.c.l.b16 %v277
      %v311 = vunpack.c.l.b16 %v278
      %v312 = vunpack.c.l.b16 %v279
      %v313 = vpack.c.b16 %v298, %v297
      %v314 = vpack.c.b16 %v300, %v299
      %v315 = vpack.c.b16 %v302, %v301
      %v316 = vpack.c.b16 %v304, %v303
      %v317 = vpack.c.b16 %v306, %v305
      %v318 = vpack.c.b16 %v308, %v307
      %v319 = vpack.c.b16 %v310, %v309
      %v320 = vpack.c.b16 %v312, %v311
      %329 = vmatpush.bf16.msra.mxu0 %v320
      %330 = vmatpush.bf16.msra.mxu0 %v319
      %331 = vmatpush.bf16.msra.mxu0 %v318
      %332 = vmatpush.bf16.msra.mxu0 %v317
      %333 = vmatpush.bf16.msra.mxu0 %v316
      %334 = vmatpush.bf16.msra.mxu0 %v315
      %335 = vmatpush.bf16.msra.mxu0 %v314
      %336 = vmatpush.bf16.msra.mxu0 %v313
      %337 = vmatmul.bf16.gmra.mxu0 %v280
      %v338 = vpop.f32.mrf.mxu0
      %v339 = vadd.f32 0.0, %v338
      %v340 = vpop.f32.mrf.mxu0
      %v341 = vadd.f32 0.0, %v340
      %342 = vdwg.mxu0
      %v343 = vpack.c.bf16 %v339, %v339
      %v344 = vpack.c.bf16 %v341, %v341
      %vm345 = vcmask 519168
      %346 = vst.msk [vmem:[%s199] sm:$0xf] %vm345, %v343
      %347 = vst.msk [vmem:[%s199 + $0x4] sm:$0xf] %vm345, %v344
      %s348 = smul.u32 2, %s15
      %p349 = scmp.lt.s32.totalorder %s348, 3
      %s350 = scalar_select %p349, %s348, 3
      %s351 = smul.addr %s350, 4
      %s352 = scalar_lea.vmem %s4, %s351
      // Predicated region
      $region37: #{swin_forward.15} parent=35 // pred_check
        %p353 = pneg %p122
      $region38: #{swin_forward.15} parent=35 // pred_check_branch
        %355 = sbr.rel (%p353) target = $region40
      $region39: #{swin_forward.15} parent=35 // pred_region
        %s356 = smul.u32 2, %s15
      $region40: #{swin_forward.15} parent=35 // pred_fallthru
        _
    $region36: #{swin_forward.15} parent=5 // pred_fallthru
      _
    %p357 = scmp.le.s32.totalorder 2, %s10
    // Predicated region
    $region41: #{swin_forward.15} parent=5 // pred_check
      %p358 = pneg %p357
    $region42: #{swin_forward.15} parent=5 // pred_check_branch
      %360 = sbr.rel (%p358) target = $region44
    $region43: #{swin_forward.15} parent=5 // pred_region
      %s361 = ssub.s32 %s10, 2
      // Predicated region
      $region45: #{swin_forward.15} parent=43 // pred_check
        %p362 = pneg %p128
      $region46: #{swin_forward.15} parent=43 // pred_check_branch
        %364 = sbr.rel (%p362) target = $region48
      $region47: #{swin_forward.15} parent=43 // pred_region
        %s365 = smul.u32 2, %s16
        %p366 = scmp.lt.s32.totalorder %s365, 3
        %s367 = scalar_select %p366, %s365, 3
        %s368 = smul.addr %s367, 4
        %s369 = scalar_lea.vmem %s4, %s368
      $region48: #{swin_forward.15} parent=43 // pred_fallthru
        _
    $region44: #{swin_forward.15} parent=5 // pred_fallthru
      _
  $region6: #{swin_forward.15} parent=0 // loop_footer
    %s14 = sadd.s32 1, %s10
  $region7: #{swin_forward.15} parent=0 // loop_footer_branch
    %9 = sbr.rel target = $region3
  $region8: #{swin_forward.15} parent=0 // loop_exit
    _

// kernel: swin_forward.17
$region0: #{swin_forward.17}
  #allocation0 [shape = 'u32[]', space=smem, size = 0x4, offset = 0x4, fixed_abs, tag = 'smem constant byte address 0x4 - core index']
  #allocation1 [shape = 'u32[72,128]{1,0:T(1,128)}', space=vmem, size = 0x9000, scoped, tag = 'internal scratch']
  %s0 = inlined_call_operand.vmem [shape: bf16[32,64], index: 0, kind: input, shape index: {}]
  %s1 = inlined_call_operand.vmem [shape: bf16[32,64], index: 1, kind: input, shape index: {}]
  %s2 = inlined_call_operand.vmem [shape: f32[1,64], index: 2, kind: input, shape index: {}]
  %s3 = inlined_call_operand.vmem [shape: f32[1,64], index: 3, kind: input, shape index: {}]
  %s4 = inlined_call_operand.vmem [shape: bf16[64,256], index: 4, kind: input, shape index: {}]
  %s5 = inlined_call_operand.vmem [shape: f32[1,256], index: 5, kind: input, shape index: {}]
  %s6 = inlined_call_operand.vmem [shape: bf16[256,64], index: 6, kind: input, shape index: {}]
  %s7 = inlined_call_operand.vmem [shape: f32[1,64], index: 7, kind: input, shape index: {}]
  %s8 = inlined_call_operand.vmem [shape: bf16[32,64], index: 8, kind: output, shape index: {}]
  %s9 = sld [smem:[#allocation0]]
  $region65: #{swin_forward.17} parent=0
    _
  %s11 = ssub.s32 1, %s9
  %s12 = scalar_select 0, %s11, %s9
  loop: start=0, step=1, limit=4
  $region2: #{swin_forward.17} parent=0 // loop_pre_header
    _
  $region3: #{swin_forward.17} parent=0 // loop_header
    %s14 = sphi 0, %s18
    %p15 = scmp.ge.s32.totalorder %s14, 4
    %s24 = sphi 0, %s26
    %s27 = sphi 0, %s24
    %s28 = sphi 0, %s27
    %s44 = sphi 0, %s28
    %s50 = sphi 0, %s52
    %s53 = sphi 0, %s50
    %s54 = sphi 0, %s53
    %s70 = sphi 0, %s54
    %s74 = sphi 0, %s74
    %s76 = sphi 0, %s74
    %s77 = sphi 0, %s76
    %s91 = sphi 0, %s77
    %s95 = sphi 0, %s95
    %s97 = sphi 0, %s95
    %s98 = sphi 0, %s97
    %s112 = sphi 0, %s98
    %s116 = sphi 0, %s116
    %s118 = sphi 0, %s116
    %s119 = sphi 0, %s118
    %s133 = sphi 0, %s119
    %s137 = sphi 0, %s137
    %s139 = sphi 0, %s137
    %s140 = sphi 0, %s139
    %s154 = sphi 0, %s140
    %s158 = sphi 0, %s158
    %s160 = sphi 0, %s158
    %s161 = sphi 0, %s160
    %s175 = sphi 0, %s161
    %s179 = sphi 0, %s179
    %s181 = sphi 0, %s179
    %s182 = sphi 0, %s181
    %s196 = sphi 0, %s182
    %s202 = sphi 0, %s204
    %s205 = sphi 0, %s202
    %s206 = sphi 0, %s205
    %s222 = sphi 0, %s206
  $region4: #{swin_forward.17} parent=0 // loop_header_branch
    %17 = sbr.rel (%p15) target = $region8
  $region5: #{swin_forward.17} parent=0 // loop_body
    %s19 = ssub.s32 %s14, 1
    %s20 = ssub.s32 %s14, 2
    %s21 = sadd.s32 %s14, 1
    %s22 = ssub.s32 %s14, %s21
    %p23 = scmp.eq.s32.totalorder %s22, 0
    %s25 = sadd.s32 %s24, 1
    %s26 = scalar_select %p23, %s24, %s25
    %p29 = pneg %p23
    %p30 = scmp.eq.s32.totalorder %s14, 1
    %p31 = por %p29, %p30
    %p32 = scmp.ne.s32.totalorder %s24, %s27
    %p33 = scmp.eq.s32.totalorder %s14, 0
    %p34 = por %p32, %p33
    %p35 = scmp.ne.s32.totalorder %s24, %s27
    %p36 = scmp.eq.s32.totalorder %s19, 1
    %p37 = por %p35, %p36
    %p38 = scmp.ne.s32.totalorder %s27, %s28
    %p39 = scmp.eq.s32.totalorder %s19, 0
    %p40 = por %p38, %p39
    %p41 = scmp.ne.s32.totalorder %s27, %s28
    %p42 = scmp.eq.s32.totalorder %s20, 1
    %p43 = por %p41, %p42
    %p45 = scmp.ne.s32.totalorder %s28, %s44
    %p46 = scmp.eq.s32.totalorder %s20, 0
    %p47 = por %p45, %p46
    %s48 = ssub.s32 %s14, %s21
    %p49 = scmp.eq.s32.totalorder %s48, 0
    %s51 = sadd.s32 %s50, 1
    %s52 = scalar_select %p49, %s50, %s51
    %p55 = pneg %p49
    %p56 = scmp.eq.s32.totalorder %s14, 1
    %p57 = por %p55, %p56
    %p58 = scmp.ne.s32.totalorder %s50, %s53
    %p59 = scmp.eq.s32.totalorder %s14, 0
    %p60 = por %p58, %p59
    %p61 = scmp.ne.s32.totalorder %s50, %s53
    %p62 = scmp.eq.s32.totalorder %s19, 1
    %p63 = por %p61, %p62
    %p64 = scmp.ne.s32.totalorder %s53, %s54
    %p65 = scmp.eq.s32.totalorder %s19, 0
    %p66 = por %p64, %p65
    %p67 = scmp.ne.s32.totalorder %s53, %s54
    %p68 = scmp.eq.s32.totalorder %s20, 1
    %p69 = por %p67, %p68
    %p71 = scmp.ne.s32.totalorder %s54, %s70
    %p72 = scmp.eq.s32.totalorder %s20, 0
    %p73 = por %p71, %p72
    %s75 = sadd.s32 %s74, 1
    %p78 = scmp.eq.s32.totalorder %s14, 1
    %p79 = scmp.ne.s32.totalorder %s74, %s76
    %p80 = scmp.eq.s32.totalorder %s14, 0
    %p81 = por %p79, %p80
    %p82 = scmp.ne.s32.totalorder %s74, %s76
    %p83 = scmp.eq.s32.totalorder %s19, 1
    %p84 = por %p82, %p83
    %p85 = scmp.ne.s32.totalorder %s76, %s77
    %p86 = scmp.eq.s32.totalorder %s19, 0
    %p87 = por %p85, %p86
    %p88 = scmp.ne.s32.totalorder %s76, %s77
    %p89 = scmp.eq.s32.totalorder %s20, 1
    %p90 = por %p88, %p89
    %p92 = scmp.ne.s32.totalorder %s77, %s91
    %p93 = scmp.eq.s32.totalorder %s20, 0
    %p94 = por %p92, %p93
    %s96 = sadd.s32 %s95, 1
    %p99 = scmp.eq.s32.totalorder %s14, 1
    %p100 = scmp.ne.s32.totalorder %s95, %s97
    %p101 = scmp.eq.s32.totalorder %s14, 0
    %p102 = por %p100, %p101
    %p103 = scmp.ne.s32.totalorder %s95, %s97
    %p104 = scmp.eq.s32.totalorder %s19, 1
    %p105 = por %p103, %p104
    %p106 = scmp.ne.s32.totalorder %s97, %s98
    %p107 = scmp.eq.s32.totalorder %s19, 0
    %p108 = por %p106, %p107
    %p109 = scmp.ne.s32.totalorder %s97, %s98
    %p110 = scmp.eq.s32.totalorder %s20, 1
    %p111 = por %p109, %p110
    %p113 = scmp.ne.s32.totalorder %s98, %s112
    %p114 = scmp.eq.s32.totalorder %s20, 0
    %p115 = por %p113, %p114
    %s117 = sadd.s32 %s116, 1
    %p120 = scmp.eq.s32.totalorder %s14, 1
    %p121 = scmp.ne.s32.totalorder %s116, %s118
    %p122 = scmp.eq.s32.totalorder %s14, 0
    %p123 = por %p121, %p122
    %p124 = scmp.ne.s32.totalorder %s116, %s118
    %p125 = scmp.eq.s32.totalorder %s19, 1
    %p126 = por %p124, %p125
    %p127 = scmp.ne.s32.totalorder %s118, %s119
    %p128 = scmp.eq.s32.totalorder %s19, 0
    %p129 = por %p127, %p128
    %p130 = scmp.ne.s32.totalorder %s118, %s119
    %p131 = scmp.eq.s32.totalorder %s20, 1
    %p132 = por %p130, %p131
    %p134 = scmp.ne.s32.totalorder %s119, %s133
    %p135 = scmp.eq.s32.totalorder %s20, 0
    %p136 = por %p134, %p135
    %s138 = sadd.s32 %s137, 1
    %p141 = scmp.eq.s32.totalorder %s14, 1
    %p142 = scmp.ne.s32.totalorder %s137, %s139
    %p143 = scmp.eq.s32.totalorder %s14, 0
    %p144 = por %p142, %p143
    %p145 = scmp.ne.s32.totalorder %s137, %s139
    %p146 = scmp.eq.s32.totalorder %s19, 1
    %p147 = por %p145, %p146
    %p148 = scmp.ne.s32.totalorder %s139, %s140
    %p149 = scmp.eq.s32.totalorder %s19, 0
    %p150 = por %p148, %p149
    %p151 = scmp.ne.s32.totalorder %s139, %s140
    %p152 = scmp.eq.s32.totalorder %s20, 1
    %p153 = por %p151, %p152
    %p155 = scmp.ne.s32.totalorder %s140, %s154
    %p156 = scmp.eq.s32.totalorder %s20, 0
    %p157 = por %p155, %p156
    %s159 = sadd.s32 %s158, 1
    %p162 = scmp.eq.s32.totalorder %s14, 1
    %p163 = scmp.ne.s32.totalorder %s158, %s160
    %p164 = scmp.eq.s32.totalorder %s14, 0
    %p165 = por %p163, %p164
    %p166 = scmp.ne.s32.totalorder %s158, %s160
    %p167 = scmp.eq.s32.totalorder %s19, 1
    %p168 = por %p166, %p167
    %p169 = scmp.ne.s32.totalorder %s160, %s161
    %p170 = scmp.eq.s32.totalorder %s19, 0
    %p171 = por %p169, %p170
    %p172 = scmp.ne.s32.totalorder %s160, %s161
    %p173 = scmp.eq.s32.totalorder %s20, 1
    %p174 = por %p172, %p173
    %p176 = scmp.ne.s32.totalorder %s161, %s175
    %p177 = scmp.eq.s32.totalorder %s20, 0
    %p178 = por %p176, %p177
    %s180 = sadd.s32 %s179, 1
    %p183 = scmp.eq.s32.totalorder %s14, 1
    %p184 = scmp.ne.s32.totalorder %s179, %s181
    %p185 = scmp.eq.s32.totalorder %s14, 0
    %p186 = por %p184, %p185
    %p187 = scmp.ne.s32.totalorder %s179, %s181
    %p188 = scmp.eq.s32.totalorder %s19, 1
    %p189 = por %p187, %p188
    %p190 = scmp.ne.s32.totalorder %s181, %s182
    %p191 = scmp.eq.s32.totalorder %s19, 0
    %p192 = por %p190, %p191
    %p193 = scmp.ne.s32.totalorder %s181, %s182
    %p194 = scmp.eq.s32.totalorder %s20, 1
    %p195 = por %p193, %p194
    %p197 = scmp.ne.s32.totalorder %s182, %s196
    %p198 = scmp.eq.s32.totalorder %s20, 0
    %p199 = por %p197, %p198
    %s200 = ssub.s32 %s14, %s21
    %p201 = scmp.eq.s32.totalorder %s200, 0
    %s203 = sadd.s32 %s202, 1
    %s204 = scalar_select %p201, %s202, %s203
    %p207 = pneg %p201
    %p208 = scmp.eq.s32.totalorder %s14, 1
    %p209 = por %p207, %p208
    %p210 = scmp.ne.s32.totalorder %s202, %s205
    %p211 = scmp.eq.s32.totalorder %s14, 0
    %p212 = por %p210, %p211
    %p213 = scmp.ne.s32.totalorder %s202, %s205
    %p214 = scmp.eq.s32.totalorder %s19, 1
    %p215 = por %p213, %p214
    %p216 = scmp.ne.s32.totalorder %s205, %s206
    %p217 = scmp.eq.s32.totalorder %s19, 0
    %p218 = por %p216, %p217
    %p219 = scmp.ne.s32.totalorder %s205, %s206
    %p220 = scmp.eq.s32.totalorder %s20, 1
    %p221 = por %p219, %p220
    %p223 = scmp.ne.s32.totalorder %s206, %s222
    %p224 = scmp.eq.s32.totalorder %s20, 0
    %p225 = por %p223, %p224
    %p226 = scmp.le.s32.totalorder 1, %s14
    %p227 = scmp.lt.s32.totalorder %s14, 3
    %p228 = pnand %p226, %p227
    %p229 = pneg %p228
    // Predicated region
    $region9: #{swin_forward.17} parent=5 // pred_check
      _
    $region10: #{swin_forward.17} parent=5 // pred_check_branch
      %231 = sbr.rel (%p228) target = $region12
    $region11: #{swin_forward.17} parent=5 // pred_region
      %s232 = ssub.s32 %s14, 1
      // Predicated region
      $region13: #{swin_forward.17} parent=11 // pred_check
        %p233 = pneg %p87
      $region14: #{swin_forward.17} parent=11 // pred_check_branch
        %235 = sbr.rel (%p233) target = $region16
      $region15: #{swin_forward.17} parent=11 // pred_region
        _
      $region16: #{swin_forward.17} parent=11 // pred_fallthru
        _
      // Predicated region
      $region17: #{swin_forward.17} parent=11 // pred_check
        %p236 = pneg %p108
      $region18: #{swin_forward.17} parent=11 // pred_check_branch
        %238 = sbr.rel (%p236) target = $region20
      $region19: #{swin_forward.17} parent=11 // pred_region
        _
      $region20: #{swin_forward.17} parent=11 // pred_fallthru
        _
      // Predicated region
      $region21: #{swin_forward.17} parent=11 // pred_check
        %p239 = pneg %p129
      $region22: #{swin_forward.17} parent=11 // pred_check_branch
        %241 = sbr.rel (%p239) target = $region24
      $region23: #{swin_forward.17} parent=11 // pred_region
        _
      $region24: #{swin_forward.17} parent=11 // pred_fallthru
        _
      // Predicated region
      $region25: #{swin_forward.17} parent=11 // pred_check
        %p242 = pneg %p150
      $region26: #{swin_forward.17} parent=11 // pred_check_branch
        %244 = sbr.rel (%p242) target = $region28
      $region27: #{swin_forward.17} parent=11 // pred_region
        _
      $region28: #{swin_forward.17} parent=11 // pred_fallthru
        _
      // Predicated region
      $region29: #{swin_forward.17} parent=11 // pred_check
        %p245 = pneg %p171
      $region30: #{swin_forward.17} parent=11 // pred_check_branch
        %247 = sbr.rel (%p245) target = $region32
      $region31: #{swin_forward.17} parent=11 // pred_region
        _
      $region32: #{swin_forward.17} parent=11 // pred_fallthru
        _
      // Predicated region
      $region33: #{swin_forward.17} parent=11 // pred_check
        %p248 = pneg %p192
      $region34: #{swin_forward.17} parent=11 // pred_check_branch
        %250 = sbr.rel (%p248) target = $region36
      $region35: #{swin_forward.17} parent=11 // pred_region
        _
      $region36: #{swin_forward.17} parent=11 // pred_fallthru
        _
    $region12: #{swin_forward.17} parent=5 // pred_fallthru
      _
    %p251 = scmp.lt.s32.totalorder %s14, 2
    // Predicated region
    $region37: #{swin_forward.17} parent=5 // pred_check
      %p252 = pneg %p251
    $region38: #{swin_forward.17} parent=5 // pred_check_branch
      %254 = sbr.rel (%p252) target = $region40
    $region39: #{swin_forward.17} parent=5 // pred_region
      // Predicated region
      $region41: #{swin_forward.17} parent=39 // pred_check
        %p255 = pneg %p34
      $region42: #{swin_forward.17} parent=39 // pred_check_branch
        %257 = sbr.rel (%p255) target = $region44
      $region43: #{swin_forward.17} parent=39 // pred_region
        %s258 = smul.u32 2, %s14
        %p259 = scmp.lt.s32.totalorder %s258, 3
        %s260 = scalar_select %p259, %s258, 3
        %s261 = smul.addr %s260, 4
        %s262 = scalar_lea.vmem %s0, %s261
        %s263 = smul.u32 2, %s14
      $region44: #{swin_forward.17} parent=39 // pred_fallthru
        _
      // Predicated region
      $region45: #{swin_forward.17} parent=39 // pred_check
        %p264 = pneg %p60
      $region46: #{swin_forward.17} parent=39 // pred_check_branch
        %266 = sbr.rel (%p264) target = $region48
      $region47: #{swin_forward.17} parent=39 // pred_region
        %s267 = smul.u32 2, %s14
        %p268 = scmp.lt.s32.totalorder %s267, 3
        %s269 = scalar_select %p268, %s267, 3
        %s270 = smul.addr %s269, 4
        %s271 = scalar_lea.vmem %s1, %s270
        %s272 = smul.u32 2, %s14
      $region48: #{swin_forward.17} parent=39 // pred_fallthru
        _
    $region40: #{swin_forward.17} parent=5 // pred_fallthru
      _
    %p273 = scmp.le.s32.totalorder 1, %s14
    %p274 = scmp.lt.s32.totalorder %s14, 3
    %p275 = pnand %p273, %p274
    %p276 = pneg %p275
    // Predicated region
    $region49: #{swin_forward.17} parent=5 // pred_check
      _
    $region50: #{swin_forward.17} parent=5 // pred_check_branch
      %278 = sbr.rel (%p275) target = $region52
    $region51: #{swin_forward.17} parent=5 // pred_region
      %s279 = ssub.s32 %s14, 1
      %s280 = smul.u32 2, %s19
      %p281 = scmp.lt.s32.totalorder %s280, 3
      %s282 = scalar_select %p281, %s280, 3
      %s283 = smul.addr %s282, 4
      %s284 = scalar_lea.vmem %s0, %s283
      %p285 = pneg %p40
      %p286 = pneg %p37
      %s287 = smul.u32 2, %s19
      %p288 = scmp.lt.s32.totalorder %s287, 3
      %s289 = scalar_select %p288, %s287, 3
      %s290 = smul.addr %s289, 4
      %s291 = scalar_lea.vmem %s1, %s290
      %p292 = pneg %p66
      %p293 = pneg %p63
      %p294 = pneg %p87
      %p295 = pneg %p84
      %p296 = pneg %p108
      %p297 = pneg %p105
      %p298 = pneg %p129
      %p299 = pneg %p126
      %p300 = pneg %p150
      %p301 = pneg %p147
      %p302 = pneg %p171
      %p303 = pneg %p168
      %p304 = pneg %p192
      %p305 = pneg %p189
      %p306 = pneg %p218
      %p307 = pneg %p215
      %s308 = smul.u32 2, %s19
      %p309 = scmp.lt.s32.totalorder %s308, 3
      %s310 = scalar_select %p309, %s308, 3
      %s311 = smul.addr %s310, 4
      %s312 = scalar_lea.vmem %s8, %s311
      %s313 = smul.u32 2, %s19
      %p314 = scmp.lt.s32.totalorder %s313, 3
      %s315 = scalar_select %p314, %s313, 3
      %s316 = smul.addr %s315, 4
      %s317 = scalar_lea.vmem %s0, %s316
      %s318 = smul.u32 2, %s19
      %s319 = smul.u32 2, %s19
      %p320 = scmp.lt.s32.totalorder %s319, 3
      %s321 = scalar_select %p320, %s319, 3
      %s322 = smul.addr %s321, 4
      %s323 = scalar_lea.vmem %s1, %s322
      %s324 = smul.u32 2, %s19
      %s325 = smul.u32 2, %s19
      %p326 = scmp.lt.s32.totalorder %s325, 3
      %s327 = scalar_select %p326, %s325, 3
      %s328 = smul.addr %s327, 4
      %s329 = scalar_lea.vmem %s8, %s328
      %s330 = smul.u32 2, %s19
      %v332 = vld [vmem:[%s317] sm:$0xf]
      %v333 = vld [vmem:[%s317 + $0x4] sm:$0xf]
      %v334 = vunpack.c.l.bf16 %v332
      %v335 = vunpack.c.l.bf16 %v333
      %v336 = vld [vmem:[%s323] sm:$0xf]
      %v337 = vld [vmem:[%s323 + $0x4] sm:$0xf]
      %v338 = vunpack.c.l.bf16 %v336
      %v339 = vunpack.c.l.bf16 %v337
      %v340 = vadd.f32 %v334, %v338
      %v341 = vadd.f32 %v335, %v339
      %v342 = vld [vmem:[%s2] sm:$0x1]
      %v343 = vld [vmem:[%s3] sm:$0x1]
      %vm344 = vcmask 523264
      %v345 = vsel %vm344, %v340, 0.0
      %346 = vadd.xlane.f32.xlu0 %v345
      %v347 = vpop.xlane.xlu0 %346
      %v348 = vsel %vm344, %v341, 0.0
      %349 = vadd.xlane.f32.xlu0 %v348
      %v350 = vpop.xlane.xlu0 %349
      %v351 = vrcp.pop 64.0
      %v352 = vmul.f32 64.0, %v351
      %v353 = vsub.f32 1.0, %v352
      %v354 = vmul.f32 %v351, %v353
      %v355 = vadd.f32 %v351, %v354
      %vm356 = vweird.f32 %v351
      %v357 = vsel %vm356, %v351, %v355
      %v358 = vmul.f32 %v347, %v357
      %v359 = vmul.f32 %v350, %v357
      %v360 = vsub.f32 %v340, %v358
      %v361 = vsub.f32 %v341, %v359
      %v362 = vmul.f32 %v360, %v360
      %v363 = vmul.f32 %v361, %v361
      %v364 = vsel %vm344, %v362, 0.0
      %365 = vadd.xlane.f32.xlu0 %v364
      %v366 = vpop.xlane.xlu0 %365
      %v367 = vsel %vm344, %v363, 0.0
      %368 = vadd.xlane.f32.xlu0 %v367
      %v369 = vpop.xlane.xlu0 %368
      %v370 = vmul.f32 %v366, %v357
      %v371 = vmul.f32 %v369, %v357
      %v372 = vadd.f32 %v370, 1e-05
      %v373 = vadd.f32 %v371, 1e-05
      %v374 = vrsqrt.pop %v372
      %v375 = vmul.f32 %v374, %v372
      %v376 = vmul.f32 %v375, %v374
      %v377 = vmul.f32 0.5, %v376
      %v378 = vsub.f32 1.5, %v377
      %v379 = vmul.f32 %v374, %v378
      %vm380 = vweird.f32 %v372
      %vm381 = vweird.f32 %v374
      %vm382 = vmor %vm380, %vm381
      %v383 = vsel %vm382, %v374, %v379
      %v384 = vrsqrt.pop %v373
      %v385 = vmul.f32 %v384, %v373
      %v386 = vmul.f32 %v385, %v384
      %v387 = vmul.f32 0.5, %v386
      %v388 = vsub.f32 1.5, %v387
      %v389 = vmul.f32 %v384, %v388
      %vm390 = vweird.f32 %v373
      %vm391 = vweird.f32 %v384
      %vm392 = vmor %vm390, %vm391
      %v393 = vsel %vm392, %v384, %v389
      %v394 = vmul.f32 %v360, %v383
      %v395 = vmul.f32 %v361, %v393
      %v397 = vperm.slane %v342, 0
      %v399 = vmul.f32 %v394, %v397
      %v400 = vmul.f32 %v395, %v397
      %v402 = vperm.slane %v343, 0
      %v404 = vadd.f32 %v399, %v402
      %v405 = vadd.f32 %v400, %v402
      %v406 = vld [vmem:[%s4] sm:$0xff]
      %v407 = vld [vmem:[%s4 + $0x8] sm:$0xff]
      %v408 = vld [vmem:[%s4 + $0x10] sm:$0xff]
      %v409 = vld [vmem:[%s4 + $0x18] sm:$0xff]
      %v410 = vld [vmem:[%s4 + $0x20] sm:$0xff]
      %v411 = vld [vmem:[%s4 + $0x28] sm:$0xff]
      %v412 = vld [vmem:[%s4 + $0x30] sm:$0xff]
      %v413 = vld [vmem:[%s4 + $0x38] sm:$0xff]
      %v414 = vpack.c.bf16 %v405, %v404
      %v415 = vld [vmem:[%s5] sm:$0x3]
      %v417 = vperm.slane %v415, 0
      %v418 = vperm.slane %v415, 1
      %v429 = vunpack.c.l.b16 %v406
      %v430 = vunpack.c.h.b16 %v406
      %v431 = vunpack.c.l.b16 %v407
      %v432 = vunpack.c.h.b16 %v407
      %v433 = vunpack.c.l.b16 %v408
      %v434 = vunpack.c.h.b16 %v408
      %v435 = vunpack.c.l.b16 %v409
      %v436 = vunpack.c.h.b16 %v409
      %v437 = vunpack.c.l.b16 %v410
      %v438 = vunpack.c.h.b16 %v410
      %v439 = vunpack.c.l.b16 %v411
      %v440 = vunpack.c.h.b16 %v411
      %v441 = vunpack.c.l.b16 %v412
      %v442 = vunpack.c.h.b16 %v412
      %v443 = vunpack.c.l.b16 %v413
      %v444 = vunpack.c.h.b16 %v413
      %v445 = vpack.c.b16 %v431, %v429
      %v446 = vpack.c.b16 %v432, %v430
      %v447 = vpack.c.b16 %v435, %v433
      %v448 = vpack.c.b16 %v436, %v434
      %v449 = vpack.c.b16 %v439, %v437
      %v450 = vpack.c.b16 %v440, %v438
      %v451 = vpack.c.b16 %v443, %v441
      %v452 = vpack.c.b16 %v444, %v442
      %v462 = vsel %vm344, %v414, 0
      %464 = vmatpush.bf16.msra.mxu0 0
      %465 = vmatpush.bf16.msra.mxu0 0
      %466 = vmatpush.bf16.msra.mxu0 0
      %467 = vmatpush.bf16.msra.mxu0 0
      %468 = vmatpush.bf16.msra.mxu0 %v451
      %469 = vmatpush.bf16.msra.mxu0 %v449
      %470 = vmatpush.bf16.msra.mxu0 %v447
      %471 = vmatpush.bf16.msra.mxu0 %v445
      %472 = vmatmul.bf16.gmra.mxu0 %v462
      %v473 = vpop.f32.mrf.mxu0
      %v474 = vadd.f32 %v417, %v473
      %v475 = vpop.f32.mrf.mxu0
      %v476 = vadd.f32 %v417, %v475
      %477 = vdwg.mxu0
      %478 = vmatpush.bf16.msra.mxu0 0
      %479 = vmatpush.bf16.msra.mxu0 0
      %480 = vmatpush.bf16.msra.mxu0 0
      %481 = vmatpush.bf16.msra.mxu0 0
      %482 = vmatpush.bf16.msra.mxu0 %v452
      %483 = vmatpush.bf16.msra.mxu0 %v450
      %484 = vmatpush.bf16.msra.mxu0 %v448
      %485 = vmatpush.bf16.msra.mxu0 %v446
      %486 = vmatmul.bf16.gmra.mxu0 %v462
      %v487 = vpop.f32.mrf.mxu0
      %v488 = vadd.f32 %v418, %v487
      %v489 = vpop.f32.mrf.mxu0
      %v490 = vadd.f32 %v418, %v489
      %491 = vdwg.mxu0
      %v492 = vmul.f32 %v474, 0.5
      %v493 = vmul.f32 %v488, 0.5
      %v494 = vmul.f32 %v476, 0.5
      %v495 = vmul.f32 %v490, 0.5
      %v496 = vmul.f32 %v474, 0.70710677
      %v497 = vmul.f32 %v488, 0.70710677
      %v498 = vmul.f32 %v476, 0.70710677
      %v499 = vmul.f32 %v490, 0.70710677
      %v500 = vand.u32 2147483647, %v496
      %v501 = vand.u32 2147483647, %v497
      %v502 = vand.u32 2147483647, %v498
      %v503 = vand.u32 2147483647, %v499
      %v504 = vmul.f32 %v500, 0.3275911
      %v505 = vmul.f32 %v501, 0.3275911
      %v506 = vmul.f32 %v502, 0.3275911
      %v507 = vmul.f32 %v503, 0.3275911
      %v508 = vadd.f32 %v504, 1.0
      %v509 = vadd.f32 %v505, 1.0
      %v510 = vadd.f32 %v506, 1.0
      %v511 = vadd.f32 %v507, 1.0
      %v512 = vrcp.pop %v508
      %v513 = vmul.f32 %v508, %v512
      %v514 = vsub.f32 1.0, %v513
      %v515 = vmul.f32 %v512, %v514
      %v516 = vadd.f32 %v512, %v515
      %vm517 = vweird.f32 %v508
      %vm518 = vweird.f32 %v512
      %vm519 = vmor %vm517, %vm518
      %v520 = vsel %vm519, %v512, %v516
      %v521 = vand.u32 2147483647, %v508
      %vm522 = vcmp.eq.f32.partialorder %v521, 8.507059e+37
      %v523 = vand.u32 %v508, 2147483648
      %v524 = vor.u32 1.1754944e-38, %v523
      %v525 = vsel %vm522, %v524, %v520
      %v526 = vmul.f32 1.0, %v525
      %v527 = vrcp.pop %v509
      %v528 = vmul.f32 %v509, %v527
      %v529 = vsub.f32 1.0, %v528
      %v530 = vmul.f32 %v527, %v529
      %v531 = vadd.f32 %v527, %v530
      %vm532 = vweird.f32 %v509
      %vm533 = vweird.f32 %v527
      %vm534 = vmor %vm532, %vm533
      %v535 = vsel %vm534, %v527, %v531
      %v536 = vand.u32 2147483647, %v509
      %vm537 = vcmp.eq.f32.partialorder %v536, 8.507059e+37
      %v538 = vand.u32 %v509, 2147483648
      %v539 = vor.u32 1.1754944e-38, %v538
      %v540 = vsel %vm537, %v539, %v535
      %v541 = vmul.f32 1.0, %v540
      %v542 = vrcp.pop %v510
      %v543 = vmul.f32 %v510, %v542
      %v544 = vsub.f32 1.0, %v543
      %v545 = vmul.f32 %v542, %v544
      %v546 = vadd.f32 %v542, %v545
      %vm547 = vweird.f32 %v510
      %vm548 = vweird.f32 %v542
      %vm549 = vmor %vm547, %vm548
      %v550 = vsel %vm549, %v542, %v546
      %v551 = vand.u32 2147483647, %v510
      %vm552 = vcmp.eq.f32.partialorder %v551, 8.507059e+37
      %v553 = vand.u32 %v510, 2147483648
      %v554 = vor.u32 1.1754944e-38, %v553
      %v555 = vsel %vm552, %v554, %v550
      %v556 = vmul.f32 1.0, %v555
      %v557 = vrcp.pop %v511
      %v558 = vmul.f32 %v511, %v557
      %v559 = vsub.f32 1.0, %v558
      %v560 = vmul.f32 %v557, %v559
      %v561 = vadd.f32 %v557, %v560
      %vm562 = vweird.f32 %v511
      %vm563 = vweird.f32 %v557
      %vm564 = vmor %vm562, %vm563
      %v565 = vsel %vm564, %v557, %v561
      %v566 = vand.u32 2147483647, %v511
      %vm567 = vcmp.eq.f32.partialorder %v566, 8.507059e+37
      %v568 = vand.u32 %v511, 2147483648
      %v569 = vor.u32 1.1754944e-38, %v568
      %v570 = vsel %vm567, %v569, %v565
      %v571 = vmul.f32 1.0, %v570
      %v572 = vmul.f32 %v526, 1.0614054
      %v573 = vmul.f32 %v541, 1.0614054
      %v574 = vmul.f32 %v556, 1.0614054
      %v575 = vmul.f32 %v571, 1.0614054
      %v576 = vsub.f32 %v572, 1.4531521
      %v577 = vsub.f32 %v573, 1.4531521
      %v578 = vsub.f32 %v574, 1.4531521
      %v579 = vsub.f32 %v575, 1.4531521
      %v580 = vmul.f32 %v576, %v526
      %v581 = vmul.f32 %v577, %v541
      %v582 = vmul.f32 %v578, %v556
      %v583 = vmul.f32 %v579, %v571
      %v584 = vadd.f32 %v580, 1.4214138
      %v585 = vadd.f32 %v581, 1.4214138
      %v586 = vadd.f32 %v582, 1.4214138
      %v587 = vadd.f32 %v583, 1.4214138
      %v588 = vmul.f32 %v584, %v526
      %v589 = vmul.f32 %v585, %v541
      %v590 = vmul.f32 %v586, %v556
      %v591 = vmul.f32 %v587, %v571
      %v592 = vsub.f32 %v588, 0.28449672
      %v593 = vsub.f32 %v589, 0.28449672
      %v594 = vsub.f32 %v590, 0.28449672
      %v595 = vsub.f32 %v591, 0.28449672
      %v596 = vmul.f32 %v592, %v526
      %v597 = vmul.f32 %v593, %v541
      %v598 = vmul.f32 %v594, %v556
      %v599 = vmul.f32 %v595, %v571
      %v600 = vadd.f32 %v596, 0.2548296
      %v601 = vadd.f32 %v597, 0.2548296
      %v602 = vadd.f32 %v598, 0.2548296
      %v603 = vadd.f32 %v599, 0.2548296
      %v604 = vmul.f32 %v600, %v526
      %v605 = vmul.f32 %v601, %v541
      %v606 = vmul.f32 %v602, %v556
      %v607 = vmul.f32 %v603, %v571
      %v608 = vsub.f32 0.0, %v500
      %v609 = vsub.f32 0.0, %v501
      %v610 = vsub.f32 0.0, %v502
      %v611 = vsub.f32 0.0, %v503
      %v612 = vmul.f32 %v608, %v500
      %v613 = vmul.f32 %v609, %v501
      %v614 = vmul.f32 %v610, %v502
      %v615 = vmul.f32 %v611, %v503
      %v616 = vmul.f32 %v612, 1.442695
      %v617 = vpow.pop %v616
      %v618 = vmul.f32 %v613, 1.442695
      %v619 = vpow.pop %v618
      %v620 = vmul.f32 %v614, 1.442695
      %v621 = vpow.pop %v620
      %v622 = vmul.f32 %v615, 1.442695
      %v623 = vpow.pop %v622
      %v624 = vmul.f32 %v604, %v617
      %v625 = vmul.f32 %v605, %v619
      %v626 = vmul.f32 %v606, %v621
      %v627 = vmul.f32 %v607, %v623
      %v628 = vsub.f32 1.0, %v624
      %v629 = vsub.f32 1.0, %v625
      %v630 = vsub.f32 1.0, %v626
      %v631 = vsub.f32 1.0, %v627
      %vm632 = vcmp.ge.f32.partialorder %v496, 0.0
      %vm633 = vcmp.ge.f32.partialorder %v497, 0.0
      %vm634 = vcmp.ge.f32.partialorder %v498, 0.0
      %vm635 = vcmp.ge.f32.partialorder %v499, 0.0
      %v636 = vsub.f32 0.0, %v628
      %v637 = vsub.f32 0.0, %v629
      %v638 = vsub.f32 0.0, %v630
      %v639 = vsub.f32 0.0, %v631
      %v640 = vsel %vm632, %v628, %v636
      %v641 = vsel %vm633, %v629, %v637
      %v642 = vsel %vm634, %v630, %v638
      %v643 = vsel %vm635, %v631, %v639
      %v644 = vadd.f32 %v640, 1.0
      %v645 = vadd.f32 %v641, 1.0
      %v646 = vadd.f32 %v642, 1.0
      %v647 = vadd.f32 %v643, 1.0
      %v648 = vmul.f32 %v492, %v644
      %v649 = vmul.f32 %v493, %v645
      %v650 = vmul.f32 %v494, %v646
      %v651 = vmul.f32 %v495, %v647
      %v652 = vld [vmem:[%s6] sm:$0xf]
      %v653 = vld [vmem:[%s6 + $0x4] sm:$0xf]
      %v654 = vld [vmem:[%s6 + $0x8] sm:$0xf]
      %v655 = vld [vmem:[%s6 + $0xc] sm:$0xf]
      %v656 = vld [vmem:[%s6 + $0x10] sm:$0xf]
      %v657 = vld [vmem:[%s6 + $0x14] sm:$0xf]
      %v658 = vld [vmem:[%s6 + $0x18] sm:$0xf]
      %v659 = vld [vmem:[%s6 + $0x1c] sm:$0xf]
      %v660 = vld [vmem:[%s6 + $0x20] sm:$0xf]
      %v661 = vld [vmem:[%s6 + $0x24] sm:$0xf]
      %v662 = vld [vmem:[%s6 + $0x28] sm:$0xf]
      %v663 = vld [vmem:[%s6 + $0x2c] sm:$0xf]
      %v664 = vld [vmem:[%s6 + $0x30] sm:$0xf]
      %v665 = vld [vmem:[%s6 + $0x34] sm:$0xf]
      %v666 = vld [vmem:[%s6 + $0x38] sm:$0xf]
      %v667 = vld [vmem:[%s6 + $0x3c] sm:$0xf]
      %v668 = vld [vmem:[%s6 + $0x40] sm:$0xf]
      %v669 = vld [vmem:[%s6 + $0x44] sm:$0xf]
      %v670 = vld [vmem:[%s6 + $0x48] sm:$0xf]
      %v671 = vld [vmem:[%s6 + $0x4c] sm:$0xf]
      %v672 = vld [vmem:[%s6 + $0x50] sm:$0xf]
      %v673 = vld [vmem:[%s6 + $0x54] sm:$0xf]
      %v674 = vld [vmem:[%s6 + $0x58] sm:$0xf]
      %v675 = vld [vmem:[%s6 + $0x5c] sm:$0xf]
      %v676 = vld [vmem:[%s6 + $0x60] sm:$0xf]
      %v677 = vld [vmem:[%s6 + $0x64] sm:$0xf]
      %v678 = vld [vmem:[%s6 + $0x68] sm:$0xf]
      %v679 = vld [vmem:[%s6 + $0x6c] sm:$0xf]
      %v680 = vld [vmem:[%s6 + $0x70] sm:$0xf]
      %v681 = vld [vmem:[%s6 + $0x74] sm:$0xf]
      %v682 = vld [vmem:[%s6 + $0x78] sm:$0xf]
      %v683 = vld [vmem:[%s6 + $0x7c] sm:$0xf]
      %v684 = vpack.c.bf16 %v650, %v648
      %v685 = vpack.c.bf16 %v651, %v649
      %v686 = vld [vmem:[%s7] sm:$0x1]
      %v688 = vperm.slane %v686, 0
      %v722 = vunpack.c.l.b16 %v652
      %v723 = vunpack.c.l.b16 %v653
      %v724 = vunpack.c.l.b16 %v654
      %v725 = vunpack.c.l.b16 %v655
      %v726 = vunpack.c.l.b16 %v656
      %v727 = vunpack.c.l.b16 %v657
      %v728 = vunpack.c.l.b16 %v658
      %v729 = vunpack.c.l.b16 %v659
      %v730 = vunpack.c.l.b16 %v660
      %v731 = vunpack.c.l.b16 %v661
      %v732 = vunpack.c.l.b16 %v662
      %v733 = vunpack.c.l.b16 %v663
      %v734 = vunpack.c.l.b16 %v664
      %v735 = vunpack.c.l.b16 %v665
      %v736 = vunpack.c.l.b16 %v666
      %v737 = vunpack.c.l.b16 %v667
      %v738 = vunpack.c.l.b16 %v668
      %v739 = vunpack.c.l.b16 %v669
      %v740 = vunpack.c.l.b16 %v670
      %v741 = vunpack.c.l.b16 %v671
      %v742 = vunpack.c.l.b16 %v672
      %v743 = vunpack.c.l.b16 %v673
      %v744 = vunpack.c.l.b16 %v674
      %v745 = vunpack.c.l.b16 %v675
      %v746 = vunpack.c.l.b16 %v676
      %v747 = vunpack.c.l.b16 %v677
      %v748 = vunpack.c.l.b16 %v678
      %v749 = vunpack.c.l.b16 %v679
      %v750 = vunpack.c.l.b16 %v680
      %v751 = vunpack.c.l.b16 %v681
      %v752 = vunpack.c.l.b16 %v682
      %v753 = vunpack.c.l.b16 %v683
      %v754 = vpack.c.b16 %v723, %v722
      %v755 = vpack.c.b16 %v725, %v724
      %v756 = vpack.c.b16 %v727, %v726
      %v757 = vpack.c.b16 %v729, %v728
      %v758 = vpack.c.b16 %v731, %v730
      %v759 = vpack.c.b16 %v733, %v732
      %v760 = vpack.c.b16 %v735, %v734
      %v761 = vpack.c.b16 %v737, %v736
      %v762 = vpack.c.b16 %v739, %v738
      %v763 = vpack.c.b16 %v741, %v740
      %v764 = vpack.c.b16 %v743, %v742
      %v765 = vpack.c.b16 %v745, %v744
      %v766 = vpack.c.b16 %v747, %v746
      %v767 = vpack.c.b16 %v749, %v748
      %v768 = vpack.c.b16 %v751, %v750
      %v769 = vpack.c.b16 %v753, %v752
      %786 = vmatpush.bf16.msra.mxu0 %v761
      %787 = vmatpush.bf16.msra.mxu0 %v760
      %788 = vmatpush.bf16.msra.mxu0 %v759
      %789 = vmatpush.bf16.msra.mxu0 %v758
      %790 = vmatpush.bf16.msra.mxu0 %v757
      %791 = vmatpush.bf16.msra.mxu0 %v756
      %792 = vmatpush.bf16.msra.mxu0 %v755
      %793 = vmatpush.bf16.msra.mxu0 %v754
      %794 = vmatmul.bf16.gmra.mxu0 %v684
      %v795 = vpop.f32.mrf.mxu0
      %v796 = vadd.f32 %v688, %v795
      %v797 = vpop.f32.mrf.mxu0
      %v798 = vadd.f32 %v688, %v797
      %799 = vdwg.mxu0
      %800 = vmatpush.bf16.msra.mxu0 %v769
      %801 = vmatpush.bf16.msra.mxu0 %v768
      %802 = vmatpush.bf16.msra.mxu0 %v767
      %803 = vmatpush.bf16.msra.mxu0 %v766
      %804 = vmatpush.bf16.msra.mxu0 %v765
      %805 = vmatpush.bf16.msra.mxu0 %v764
      %806 = vmatpush.bf16.msra.mxu0 %v763
      %807 = vmatpush.bf16.msra.mxu0 %v762
      %808 = vmatmul.bf16.gmra.mxu0 %v685
      %v809 = vpop.f32.mrf.mxu0
      %v810 = vadd.f32 %v796, %v809
      %v811 = vpop.f32.mrf.mxu0
      %v812 = vadd.f32 %v798, %v811
      %813 = vdwg.mxu0
      %v814 = vadd.f32 %v810, %v340
      %v815 = vadd.f32 %v812, %v341
      %v816 = vpack.c.bf16 %v814, %v814
      %v817 = vpack.c.bf16 %v815, %v815
      %vm818 = vcmask 519168
      %819 = vst.msk [vmem:[%s329] sm:$0xf] %vm818, %v816
      %820 = vst.msk [vmem:[%s329 + $0x4] sm:$0xf] %vm818, %v817
      %s821 = smul.u32 2, %s19
      %p822 = scmp.lt.s32.totalorder %s821, 3
      %s823 = scalar_select %p822, %s821, 3
      %s824 = smul.addr %s823, 4
      %s825 = scalar_lea.vmem %s8, %s824
      // Predicated region
      $region53: #{swin_forward.17} parent=51 // pred_check
        %p826 = pneg %p215
      $region54: #{swin_forward.17} parent=51 // pred_check_branch
        %828 = sbr.rel (%p826) target = $region56
      $region55: #{swin_forward.17} parent=51 // pred_region
        %s829 = smul.u32 2, %s19
      $region56: #{swin_forward.17} parent=51 // pred_fallthru
        _
    $region52: #{swin_forward.17} parent=5 // pred_fallthru
      _
    %p830 = scmp.le.s32.totalorder 2, %s14
    // Predicated region
    $region57: #{swin_forward.17} parent=5 // pred_check
      %p831 = pneg %p830
    $region58: #{swin_forward.17} parent=5 // pred_check_branch
      %833 = sbr.rel (%p831) target = $region60
    $region59: #{swin_forward.17} parent=5 // pred_region
      %s834 = ssub.s32 %s14, 2
      // Predicated region
      $region61: #{swin_forward.17} parent=59 // pred_check
        %p835 = pneg %p221
      $region62: #{swin_forward.17} parent=59 // pred_check_branch
        %837 = sbr.rel (%p835) target = $region64
      $region63: #{swin_forward.17} parent=59 // pred_region
        %s838 = smul.u32 2, %s20
        %p839 = scmp.lt.s32.totalorder %s838, 3
        %s840 = scalar_select %p839, %s838, 3
        %s841 = smul.addr %s840, 4
        %s842 = scalar_lea.vmem %s8, %s841
      $region64: #{swin_forward.17} parent=59 // pred_fallthru
        _
    $region60: #{swin_forward.17} parent=5 // pred_fallthru
      _
  $region6: #{swin_forward.17} parent=0 // loop_footer
    %s18 = sadd.s32 1, %s14
  $region7: #{swin_forward.17} parent=0 // loop_footer_branch
    %13 = sbr.rel target = $region3
  $region8: #{swin_forward.17} parent=0 // loop_exit
    _

// kernel: swin_forward.16
$region0: #{swin_forward.16}
  #allocation0 [shape = 'u32[]', space=smem, size = 0x4, offset = 0x4, fixed_abs, tag = 'smem constant byte address 0x4 - core index']
  #allocation1 [shape = 'u32[72,128]{1,0:T(1,128)}', space=vmem, size = 0x9000, scoped, tag = 'internal scratch']
  %s0 = inlined_call_operand.vmem [shape: bf16[2,16,64], index: 0, kind: input, shape index: {}]
  %s1 = inlined_call_operand.vmem [shape: f32[1,4,16,16], index: 1, kind: input, shape index: {}]
  %s2 = inlined_call_operand.vmem [shape: f32[1,64], index: 2, kind: input, shape index: {}]
  %s3 = inlined_call_operand.vmem [shape: f32[1,64], index: 3, kind: input, shape index: {}]
  %s4 = inlined_call_operand.vmem [shape: bf16[64,192], index: 4, kind: input, shape index: {}]
  %s5 = inlined_call_operand.vmem [shape: f32[1,192], index: 5, kind: input, shape index: {}]
  %s6 = inlined_call_operand.vmem [shape: bf16[64,64], index: 6, kind: input, shape index: {}]
  %s7 = inlined_call_operand.vmem [shape: f32[1,64], index: 7, kind: input, shape index: {}]
  %s8 = inlined_call_operand.vmem [shape: bf16[2,16,64], index: 8, kind: output, shape index: {}]
  %s9 = sld [smem:[#allocation0]]
  $region65: #{swin_forward.16} parent=0
    _
  %s11 = ssub.s32 1, %s9
  %s12 = scalar_select 0, %s11, %s9
  loop: start=0, step=1, limit=4
  $region2: #{swin_forward.16} parent=0 // loop_pre_header
    _
  $region3: #{swin_forward.16} parent=0 // loop_header
    %s14 = sphi 0, %s18
    %p15 = scmp.ge.s32.totalorder %s14, 4
    %s24 = sphi 0, %s26
    %s27 = sphi 0, %s24
    %s28 = sphi 0, %s27
    %s44 = sphi 0, %s28
    %s48 = sphi 0, %s48
    %s50 = sphi 0, %s48
    %s51 = sphi 0, %s50
    %s65 = sphi 0, %s51
    %s69 = sphi 0, %s69
    %s71 = sphi 0, %s69
    %s72 = sphi 0, %s71
    %s86 = sphi 0, %s72
    %s90 = sphi 0, %s90
    %s92 = sphi 0, %s90
    %s93 = sphi 0, %s92
    %s107 = sphi 0, %s93
    %s111 = sphi 0, %s111
    %s113 = sphi 0, %s111
    %s114 = sphi 0, %s113
    %s128 = sphi 0, %s114
    %s132 = sphi 0, %s132
    %s134 = sphi 0, %s132
    %s135 = sphi 0, %s134
    %s149 = sphi 0, %s135
    %s153 = sphi 0, %s153
    %s155 = sphi 0, %s153
    %s156 = sphi 0, %s155
    %s170 = sphi 0, %s156
    %s174 = sphi 0, %s174
    %s176 = sphi 0, %s174
    %s177 = sphi 0, %s176
    %s191 = sphi 0, %s177
    %s197 = sphi 0, %s199
    %s200 = sphi 0, %s197
    %s201 = sphi 0, %s200
    %s217 = sphi 0, %s201
  $region4: #{swin_forward.16} parent=0 // loop_header_branch
    %17 = sbr.rel (%p15) target = $region8
  $region5: #{swin_forward.16} parent=0 // loop_body
    %s19 = ssub.s32 %s14, 1
    %s20 = ssub.s32 %s14, 2
    %s21 = sadd.s32 %s14, 1
    %s22 = ssub.s32 %s14, %s21
    %p23 = scmp.eq.s32.totalorder %s22, 0
    %s25 = sadd.s32 %s24, 1
    %s26 = scalar_select %p23, %s24, %s25
    %p29 = pneg %p23
    %p30 = scmp.eq.s32.totalorder %s14, 1
    %p31 = por %p29, %p30
    %p32 = scmp.ne.s32.totalorder %s24, %s27
    %p33 = scmp.eq.s32.totalorder %s14, 0
    %p34 = por %p32, %p33
    %p35 = scmp.ne.s32.totalorder %s24, %s27
    %p36 = scmp.eq.s32.totalorder %s19, 1
    %p37 = por %p35, %p36
    %p38 = scmp.ne.s32.totalorder %s27, %s28
    %p39 = scmp.eq.s32.totalorder %s19, 0
    %p40 = por %p38, %p39
    %p41 = scmp.ne.s32.totalorder %s27, %s28
    %p42 = scmp.eq.s32.totalorder %s20, 1
    %p43 = por %p41, %p42
    %p45 = scmp.ne.s32.totalorder %s28, %s44
    %p46 = scmp.eq.s32.totalorder %s20, 0
    %p47 = por %p45, %p46
    %s49 = sadd.s32 %s48, 1
    %p52 = scmp.eq.s32.totalorder %s14, 1
    %p53 = scmp.ne.s32.totalorder %s48, %s50
    %p54 = scmp.eq.s32.totalorder %s14, 0
    %p55 = por %p53, %p54
    %p56 = scmp.ne.s32.totalorder %s48, %s50
    %p57 = scmp.eq.s32.totalorder %s19, 1
    %p58 = por %p56, %p57
    %p59 = scmp.ne.s32.totalorder %s50, %s51
    %p60 = scmp.eq.s32.totalorder %s19, 0
    %p61 = por %p59, %p60
    %p62 = scmp.ne.s32.totalorder %s50, %s51
    %p63 = scmp.eq.s32.totalorder %s20, 1
    %p64 = por %p62, %p63
    %p66 = scmp.ne.s32.totalorder %s51, %s65
    %p67 = scmp.eq.s32.totalorder %s20, 0
    %p68 = por %p66, %p67
    %s70 = sadd.s32 %s69, 1
    %p73 = scmp.eq.s32.totalorder %s14, 1
    %p74 = scmp.ne.s32.totalorder %s69, %s71
    %p75 = scmp.eq.s32.totalorder %s14, 0
    %p76 = por %p74, %p75
    %p77 = scmp.ne.s32.totalorder %s69, %s71
    %p78 = scmp.eq.s32.totalorder %s19, 1
    %p79 = por %p77, %p78
    %p80 = scmp.ne.s32.totalorder %s71, %s72
    %p81 = scmp.eq.s32.totalorder %s19, 0
    %p82 = por %p80, %p81
    %p83 = scmp.ne.s32.totalorder %s71, %s72
    %p84 = scmp.eq.s32.totalorder %s20, 1
    %p85 = por %p83, %p84
    %p87 = scmp.ne.s32.totalorder %s72, %s86
    %p88 = scmp.eq.s32.totalorder %s20, 0
    %p89 = por %p87, %p88
    %s91 = sadd.s32 %s90, 1
    %p94 = scmp.eq.s32.totalorder %s14, 1
    %p95 = scmp.ne.s32.totalorder %s90, %s92
    %p96 = scmp.eq.s32.totalorder %s14, 0
    %p97 = por %p95, %p96
    %p98 = scmp.ne.s32.totalorder %s90, %s92
    %p99 = scmp.eq.s32.totalorder %s19, 1
    %p100 = por %p98, %p99
    %p101 = scmp.ne.s32.totalorder %s92, %s93
    %p102 = scmp.eq.s32.totalorder %s19, 0
    %p103 = por %p101, %p102
    %p104 = scmp.ne.s32.totalorder %s92, %s93
    %p105 = scmp.eq.s32.totalorder %s20, 1
    %p106 = por %p104, %p105
    %p108 = scmp.ne.s32.totalorder %s93, %s107
    %p109 = scmp.eq.s32.totalorder %s20, 0
    %p110 = por %p108, %p109
    %s112 = sadd.s32 %s111, 1
    %p115 = scmp.eq.s32.totalorder %s14, 1
    %p116 = scmp.ne.s32.totalorder %s111, %s113
    %p117 = scmp.eq.s32.totalorder %s14, 0
    %p118 = por %p116, %p117
    %p119 = scmp.ne.s32.totalorder %s111, %s113
    %p120 = scmp.eq.s32.totalorder %s19, 1
    %p121 = por %p119, %p120
    %p122 = scmp.ne.s32.totalorder %s113, %s114
    %p123 = scmp.eq.s32.totalorder %s19, 0
    %p124 = por %p122, %p123
    %p125 = scmp.ne.s32.totalorder %s113, %s114
    %p126 = scmp.eq.s32.totalorder %s20, 1
    %p127 = por %p125, %p126
    %p129 = scmp.ne.s32.totalorder %s114, %s128
    %p130 = scmp.eq.s32.totalorder %s20, 0
    %p131 = por %p129, %p130
    %s133 = sadd.s32 %s132, 1
    %p136 = scmp.eq.s32.totalorder %s14, 1
    %p137 = scmp.ne.s32.totalorder %s132, %s134
    %p138 = scmp.eq.s32.totalorder %s14, 0
    %p139 = por %p137, %p138
    %p140 = scmp.ne.s32.totalorder %s132, %s134
    %p141 = scmp.eq.s32.totalorder %s19, 1
    %p142 = por %p140, %p141
    %p143 = scmp.ne.s32.totalorder %s134, %s135
    %p144 = scmp.eq.s32.totalorder %s19, 0
    %p145 = por %p143, %p144
    %p146 = scmp.ne.s32.totalorder %s134, %s135
    %p147 = scmp.eq.s32.totalorder %s20, 1
    %p148 = por %p146, %p147
    %p150 = scmp.ne.s32.totalorder %s135, %s149
    %p151 = scmp.eq.s32.totalorder %s20, 0
    %p152 = por %p150, %p151
    %s154 = sadd.s32 %s153, 1
    %p157 = scmp.eq.s32.totalorder %s14, 1
    %p158 = scmp.ne.s32.totalorder %s153, %s155
    %p159 = scmp.eq.s32.totalorder %s14, 0
    %p160 = por %p158, %p159
    %p161 = scmp.ne.s32.totalorder %s153, %s155
    %p162 = scmp.eq.s32.totalorder %s19, 1
    %p163 = por %p161, %p162
    %p164 = scmp.ne.s32.totalorder %s155, %s156
    %p165 = scmp.eq.s32.totalorder %s19, 0
    %p166 = por %p164, %p165
    %p167 = scmp.ne.s32.totalorder %s155, %s156
    %p168 = scmp.eq.s32.totalorder %s20, 1
    %p169 = por %p167, %p168
    %p171 = scmp.ne.s32.totalorder %s156, %s170
    %p172 = scmp.eq.s32.totalorder %s20, 0
    %p173 = por %p171, %p172
    %s175 = sadd.s32 %s174, 1
    %p178 = scmp.eq.s32.totalorder %s14, 1
    %p179 = scmp.ne.s32.totalorder %s174, %s176
    %p180 = scmp.eq.s32.totalorder %s14, 0
    %p181 = por %p179, %p180
    %p182 = scmp.ne.s32.totalorder %s174, %s176
    %p183 = scmp.eq.s32.totalorder %s19, 1
    %p184 = por %p182, %p183
    %p185 = scmp.ne.s32.totalorder %s176, %s177
    %p186 = scmp.eq.s32.totalorder %s19, 0
    %p187 = por %p185, %p186
    %p188 = scmp.ne.s32.totalorder %s176, %s177
    %p189 = scmp.eq.s32.totalorder %s20, 1
    %p190 = por %p188, %p189
    %p192 = scmp.ne.s32.totalorder %s177, %s191
    %p193 = scmp.eq.s32.totalorder %s20, 0
    %p194 = por %p192, %p193
    %s195 = ssub.s32 %s14, %s21
    %p196 = scmp.eq.s32.totalorder %s195, 0
    %s198 = sadd.s32 %s197, 1
    %s199 = scalar_select %p196, %s197, %s198
    %p202 = pneg %p196
    %p203 = scmp.eq.s32.totalorder %s14, 1
    %p204 = por %p202, %p203
    %p205 = scmp.ne.s32.totalorder %s197, %s200
    %p206 = scmp.eq.s32.totalorder %s14, 0
    %p207 = por %p205, %p206
    %p208 = scmp.ne.s32.totalorder %s197, %s200
    %p209 = scmp.eq.s32.totalorder %s19, 1
    %p210 = por %p208, %p209
    %p211 = scmp.ne.s32.totalorder %s200, %s201
    %p212 = scmp.eq.s32.totalorder %s19, 0
    %p213 = por %p211, %p212
    %p214 = scmp.ne.s32.totalorder %s200, %s201
    %p215 = scmp.eq.s32.totalorder %s20, 1
    %p216 = por %p214, %p215
    %p218 = scmp.ne.s32.totalorder %s201, %s217
    %p219 = scmp.eq.s32.totalorder %s20, 0
    %p220 = por %p218, %p219
    %p221 = scmp.le.s32.totalorder 1, %s14
    %p222 = scmp.lt.s32.totalorder %s14, 3
    %p223 = pnand %p221, %p222
    %p224 = pneg %p223
    // Predicated region
    $region9: #{swin_forward.16} parent=5 // pred_check
      _
    $region10: #{swin_forward.16} parent=5 // pred_check_branch
      %226 = sbr.rel (%p223) target = $region12
    $region11: #{swin_forward.16} parent=5 // pred_region
      %s227 = ssub.s32 %s14, 1
      // Predicated region
      $region13: #{swin_forward.16} parent=11 // pred_check
        %p228 = pneg %p61
      $region14: #{swin_forward.16} parent=11 // pred_check_branch
        %230 = sbr.rel (%p228) target = $region16
      $region15: #{swin_forward.16} parent=11 // pred_region
        _
      $region16: #{swin_forward.16} parent=11 // pred_fallthru
        _
      // Predicated region
      $region17: #{swin_forward.16} parent=11 // pred_check
        %p231 = pneg %p82
      $region18: #{swin_forward.16} parent=11 // pred_check_branch
        %233 = sbr.rel (%p231) target = $region20
      $region19: #{swin_forward.16} parent=11 // pred_region
        _
      $region20: #{swin_forward.16} parent=11 // pred_fallthru
        _
      // Predicated region
      $region21: #{swin_forward.16} parent=11 // pred_check
        %p234 = pneg %p103
      $region22: #{swin_forward.16} parent=11 // pred_check_branch
        %236 = sbr.rel (%p234) target = $region24
      $region23: #{swin_forward.16} parent=11 // pred_region
        _
      $region24: #{swin_forward.16} parent=11 // pred_fallthru
        _
      // Predicated region
      $region25: #{swin_forward.16} parent=11 // pred_check
        %p237 = pneg %p124
      $region26: #{swin_forward.16} parent=11 // pred_check_branch
        %239 = sbr.rel (%p237) target = $region28
      $region27: #{swin_forward.16} parent=11 // pred_region
        _
      $region28: #{swin_forward.16} parent=11 // pred_fallthru
        _
      // Predicated region
      $region29: #{swin_forward.16} parent=11 // pred_check
        %p240 = pneg %p145
      $region30: #{swin_forward.16} parent=11 // pred_check_branch
        %242 = sbr.rel (%p240) target = $region32
      $region31: #{swin_forward.16} parent=11 // pred_region
        _
      $region32: #{swin_forward.16} parent=11 // pred_fallthru
        _
      // Predicated region
      $region33: #{swin_forward.16} parent=11 // pred_check
        %p243 = pneg %p166
      $region34: #{swin_forward.16} parent=11 // pred_check_branch
        %245 = sbr.rel (%p243) target = $region36
      $region35: #{swin_forward.16} parent=11 // pred_region
        _
      $region36: #{swin_forward.16} parent=11 // pred_fallthru
        _
      // Predicated region
      $region37: #{swin_forward.16} parent=11 // pred_check
        %p246 = pneg %p187
      $region38: #{swin_forward.16} parent=11 // pred_check_branch
        %248 = sbr.rel (%p246) target = $region40
      $region39: #{swin_forward.16} parent=11 // pred_region
        _
      $region40: #{swin_forward.16} parent=11 // pred_fallthru
        _
    $region12: #{swin_forward.16} parent=5 // pred_fallthru
      _
    %p249 = scmp.lt.s32.totalorder %s14, 2
    // Predicated region
    $region41: #{swin_forward.16} parent=5 // pred_check
      %p250 = pneg %p249
    $region42: #{swin_forward.16} parent=5 // pred_check_branch
      %252 = sbr.rel (%p250) target = $region44
    $region43: #{swin_forward.16} parent=5 // pred_region
      // Predicated region
      $region45: #{swin_forward.16} parent=43 // pred_check
        %p253 = pneg %p34
      $region46: #{swin_forward.16} parent=43 // pred_check_branch
        %255 = sbr.rel (%p253) target = $region48
      $region47: #{swin_forward.16} parent=43 // pred_region
        %p256 = scmp.lt.s32.totalorder %s14, 1
        %s257 = scalar_select %p256, %s14, 1
        %s258 = smul.addr %s257, 2
        %s259 = smul.addr %s258, 4
        %s260 = scalar_lea.vmem %s0, %s259
      $region48: #{swin_forward.16} parent=43 // pred_fallthru
        _
    $region44: #{swin_forward.16} parent=5 // pred_fallthru
      _
    %p261 = scmp.le.s32.totalorder 1, %s14
    %p262 = scmp.lt.s32.totalorder %s14, 3
    %p263 = pnand %p261, %p262
    %p264 = pneg %p263
    // Predicated region
    $region49: #{swin_forward.16} parent=5 // pred_check
      _
    $region50: #{swin_forward.16} parent=5 // pred_check_branch
      %266 = sbr.rel (%p263) target = $region52
    $region51: #{swin_forward.16} parent=5 // pred_region
      %s267 = ssub.s32 %s14, 1
      %p268 = scmp.lt.s32.totalorder %s19, 1
      %s269 = scalar_select %p268, %s19, 1
      %s270 = smul.addr %s269, 2
      %s271 = smul.addr %s270, 4
      %s272 = scalar_lea.vmem %s0, %s271
      %p273 = pneg %p40
      %p274 = pneg %p37
      %p275 = pneg %p61
      %p276 = pneg %p58
      %p277 = pneg %p82
      %p278 = pneg %p79
      %p279 = pneg %p103
      %p280 = pneg %p100
      %p281 = pneg %p124
      %p282 = pneg %p121
      %p283 = pneg %p145
      %p284 = pneg %p142
      %p285 = pneg %p166
      %p286 = pneg %p163
      %p287 = pneg %p187
      %p288 = pneg %p184
      %p289 = pneg %p213
      %p290 = pneg %p210
      %p291 = scmp.lt.s32.totalorder %s19, 1
      %s292 = scalar_select %p291, %s19, 1
      %s293 = smul.addr %s292, 2
      %s294 = smul.addr %s293, 4
      %s295 = scalar_lea.vmem %s8, %s294
      %p296 = scmp.lt.s32.totalorder %s19, 1
      %s297 = scalar_select %p296, %s19, 1
      %s298 = smul.addr %s297, 2
      %s299 = smul.addr %s298, 4
      %s300 = scalar_lea.vmem %s0, %s299
      %p301 = scmp.lt.s32.totalorder %s19, 1
      %s302 = scalar_select %p301, %s19, 1
      %s303 = smul.addr %s302, 2
      %s304 = smul.addr %s303, 4
      %s305 = scalar_lea.vmem %s8, %s304
      %v307 = vld [vmem:[%s300] sm:$0xf]
      %v308 = vld [vmem:[%s300 + $0x4] sm:$0xf]
      %v309 = vunpack.c.l.bf16 %v307
      %v310 = vunpack.c.l.bf16 %v308
      %v311 = vld [vmem:[%s2] sm:$0x1]
      %v312 = vld [vmem:[%s3] sm:$0x1]
      %vm313 = vcmask 523264
      %v314 = vsel %vm313, %v309, 0.0
      %315 = vadd.xlane.f32.xlu0 %v314
      %v316 = vpop.xlane.xlu0 %315
      %v317 = vsel %vm313, %v310, 0.0
      %318 = vadd.xlane.f32.xlu0 %v317
      %v319 = vpop.xlane.xlu0 %318
      %v320 = vrcp.pop 64.0
      %v321 = vmul.f32 64.0, %v320
      %v322 = vsub.f32 1.0, %v321
      %v323 = vmul.f32 %v320, %v322
      %v324 = vadd.f32 %v320, %v323
      %vm325 = vweird.f32 %v320
      %v326 = vsel %vm325, %v320, %v324
      %v327 = vmul.f32 %v316, %v326
      %v328 = vmul.f32 %v319, %v326
      %v329 = vsub.f32 %v309, %v327
      %v330 = vsub.f32 %v310, %v328
      %v331 = vmul.f32 %v329, %v329
      %v332 = vmul.f32 %v330, %v330
      %v333 = vsel %vm313, %v331, 0.0
      %334 = vadd.xlane.f32.xlu0 %v333
      %v335 = vpop.xlane.xlu0 %334
      %v336 = vsel %vm313, %v332, 0.0
      %337 = vadd.xlane.f32.xlu0 %v336
      %v338 = vpop.xlane.xlu0 %337
      %v339 = vmul.f32 %v335, %v326
      %v340 = vmul.f32 %v338, %v326
      %v341 = vadd.f32 %v339, 1e-05
      %v342 = vadd.f32 %v340, 1e-05
      %v343 = vrsqrt.pop %v341
      %v344 = vmul.f32 %v343, %v341
      %v345 = vmul.f32 %v344, %v343
      %v346 = vmul.f32 0.5, %v345
      %v347 = vsub.f32 1.5, %v346
      %v348 = vmul.f32 %v343, %v347
      %vm349 = vweird.f32 %v341
      %vm350 = vweird.f32 %v343
      %vm351 = vmor %vm349, %vm350
      %v352 = vsel %vm351, %v343, %v348
      %v353 = vrsqrt.pop %v342
      %v354 = vmul.f32 %v353, %v342
      %v355 = vmul.f32 %v354, %v353
      %v356 = vmul.f32 0.5, %v355
      %v357 = vsub.f32 1.5, %v356
      %v358 = vmul.f32 %v353, %v357
      %vm359 = vweird.f32 %v342
      %vm360 = vweird.f32 %v353
      %vm361 = vmor %vm359, %vm360
      %v362 = vsel %vm361, %v353, %v358
      %v363 = vmul.f32 %v329, %v352
      %v364 = vmul.f32 %v330, %v362
      %v366 = vperm.slane %v311, 0
      %v368 = vmul.f32 %v363, %v366
      %v369 = vmul.f32 %v364, %v366
      %v371 = vperm.slane %v312, 0
      %v373 = vadd.f32 %v368, %v371
      %v374 = vadd.f32 %v369, %v371
      %v375 = vld [vmem:[%s1] sm:$0xff]
      %v376 = vld [vmem:[%s1 + $0x8] sm:$0xff]
      %v377 = vld [vmem:[%s1 + $0x10] sm:$0xff]
      %v378 = vld [vmem:[%s1 + $0x18] sm:$0xff]
      %v379 = vld [vmem:[%s1 + $0x20] sm:$0xff]
      %v380 = vld [vmem:[%s1 + $0x28] sm:$0xff]
      %v381 = vld [vmem:[%s1 + $0x30] sm:$0xff]
      %v382 = vld [vmem:[%s1 + $0x38] sm:$0xff]
      %v383 = vld [vmem:[%s4] sm:$0xff]
      %v384 = vld [vmem:[%s4 + $0x8] sm:$0xff]
      %v385 = vld [vmem:[%s4 + $0x10] sm:$0xff]
      %v386 = vld [vmem:[%s4 + $0x18] sm:$0xff]
      %v387 = vld [vmem:[%s4 + $0x20] sm:$0xff]
      %v388 = vld [vmem:[%s4 + $0x28] sm:$0xff]
      %v389 = vld [vmem:[%s4 + $0x30] sm:$0xff]
      %v390 = vld [vmem:[%s4 + $0x38] sm:$0xff]
      %v391 = vld [vmem:[%s5] sm:$0x3]
      %v392 = vld [vmem:[%s6] sm:$0xf]
      %v393 = vld [vmem:[%s6 + $0x4] sm:$0xf]
      %v394 = vld [vmem:[%s6 + $0x8] sm:$0xf]
      %v395 = vld [vmem:[%s6 + $0xc] sm:$0xf]
      %v396 = vld [vmem:[%s6 + $0x10] sm:$0xf]
      %v397 = vld [vmem:[%s6 + $0x14] sm:$0xf]
      %v398 = vld [vmem:[%s6 + $0x18] sm:$0xf]
      %v399 = vld [vmem:[%s6 + $0x1c] sm:$0xf]
      %v400 = vld [vmem:[%s7] sm:$0x1]
      %v401 = vpack.c.bf16 %v374, %v373
      %v403 = vperm.slane %v391, 0
      %v404 = vperm.slane %v391, 1
      %v415 = vunpack.c.l.b16 %v383
      %v416 = vunpack.c.h.b16 %v383
      %v417 = vunpack.c.l.b16 %v384
      %v418 = vunpack.c.h.b16 %v384
      %v419 = vunpack.c.l.b16 %v385
      %v420 = vunpack.c.h.b16 %v385
      %v421 = vunpack.c.l.b16 %v386
      %v422 = vunpack.c.h.b16 %v386
      %v423 = vunpack.c.l.b16 %v387
      %v424 = vunpack.c.h.b16 %v387
      %v425 = vunpack.c.l.b16 %v388
      %v426 = vunpack.c.h.b16 %v388
      %v427 = vunpack.c.l.b16 %v389
      %v428 = vunpack.c.h.b16 %v389
      %v429 = vunpack.c.l.b16 %v390
      %v430 = vunpack.c.h.b16 %v390
      %v431 = vpack.c.b16 %v417, %v415
      %v432 = vpack.c.b16 %v418, %v416
      %v433 = vpack.c.b16 %v421, %v419
      %v434 = vpack.c.b16 %v422, %v420
      %v435 = vpack.c.b16 %v425, %v423
      %v436 = vpack.c.b16 %v426, %v424
      %v437 = vpack.c.b16 %v429, %v427
      %v438 = vpack.c.b16 %v430, %v428
      %v448 = vsel %vm313, %v401, 0
      %450 = vmatpush.bf16.msra.mxu0 0
      %451 = vmatpush.bf16.msra.mxu0 0
      %452 = vmatpush.bf16.msra.mxu0 0
      %453 = vmatpush.bf16.msra.mxu0 0
      %454 = vmatpush.bf16.msra.mxu0 %v437
      %455 = vmatpush.bf16.msra.mxu0 %v435
      %456 = vmatpush.bf16.msra.mxu0 %v433
      %457 = vmatpush.bf16.msra.mxu0 %v431
      %458 = vmatmul.bf16.gmra.mxu0 %v448
      %v459 = vpop.f32.mrf.mxu0
      %v460 = vadd.f32 %v403, %v459
      %v461 = vpop.f32.mrf.mxu0
      %v462 = vadd.f32 %v403, %v461
      %463 = vdwg.mxu0
      %464 = vmatpush.bf16.msra.mxu0 0
      %465 = vmatpush.bf16.msra.mxu0 0
      %466 = vmatpush.bf16.msra.mxu0 0
      %467 = vmatpush.bf16.msra.mxu0 0
      %468 = vmatpush.bf16.msra.mxu0 %v438
      %469 = vmatpush.bf16.msra.mxu0 %v436
      %470 = vmatpush.bf16.msra.mxu0 %v434
      %471 = vmatpush.bf16.msra.mxu0 %v432
      %472 = vmatmul.bf16.gmra.mxu0 %v448
      %v473 = vpop.f32.mrf.mxu0
      %v474 = vadd.f32 %v404, %v473
      %v475 = vpop.f32.mrf.mxu0
      %v476 = vadd.f32 %v404, %v475
      %477 = vdwg.mxu0
      %v478 = vmul.f32 %v460, 0.25
      %v479 = vmul.f32 %v462, 0.25
      %v480 = vpack.c.bf16 %v478, %v478
      %v481 = vpack.c.bf16 %v479, %v479
      %v482 = vpack.c.bf16 %v460, %v460
      %v483 = vpack.c.bf16 %v462, %v462
      %v486 = vunpack.c.l.b16 %v480
      %v487 = vunpack.c.l.b16 %v481
      %v488 = vpack.c.b16 %v487, %v486
      %v491 = vunpack.c.l.b16 %v482
      %v492 = vunpack.c.l.b16 %v483
      %v493 = vpack.c.b16 %v492, %v491
      %494 = vrot.lane.b32.xlu0 %v493, 64
      %v495 = vpop.permute.xlu0 %494
      %vm496 = vcmask 130048
      %v498 = vsel %vm496, %v488, 0
      %v501 = vsel %vm496, %v495, 0
      %503 = vmatpush.bf16.xpose.msra.mxu0 0
      %504 = vmatpush.bf16.xpose.msra.mxu0 0
      %505 = vmatpush.bf16.xpose.msra.mxu0 0
      %506 = vmatpush.bf16.xpose.msra.mxu0 0
      %507 = vmatpush.bf16.xpose.msra.mxu0 0
      %508 = vmatpush.bf16.xpose.msra.mxu0 0
      %509 = vmatpush.bf16.xpose.msra.mxu0 0
      %510 = vmatpush.bf16.xpose.msra.mxu0 %v501
      %511 = vmatmul.bf16.gmra.mxu0 %v498
      %v512 = vpop.f32.mrf.mxu0
      %v513 = vadd.f32 %v375, %v512
      %v514 = vpop.f32.mrf.mxu0
      %v515 = vadd.f32 %v376, %v514
      %516 = vdwg.mxu0
      %v517 = vsel %vm496, %v513, -inf
      %518 = vmax.xlane.f32.xlu0 %v517
      %v519 = vpop.xlane.xlu0 %518
      %v520 = vsel %vm496, %v515, -inf
      %521 = vmax.xlane.f32.xlu0 %v520
      %v522 = vpop.xlane.xlu0 %521
      %v523 = vsub.f32 %v513, %v519
      %v524 = vsub.f32 %v515, %v522
      %v525 = vmul.f32 %v523, 1.442695
      %v526 = vpow.pop %v525
      %v527 = vmul.f32 %v524, 1.442695
      %v528 = vpow.pop %v527
      %v529 = vsel %vm496, %v526, 0.0
      %530 = vadd.xlane.f32.xlu0 %v529
      %v531 = vpop.xlane.xlu0 %530
      %v532 = vsel %vm496, %v528, 0.0
      %533 = vadd.xlane.f32.xlu0 %v532
      %v534 = vpop.xlane.xlu0 %533
      %v535 = vrcp.pop %v531
      %v536 = vrcp.pop %v534
      %v537 = vmul.f32 %v526, %v535
      %v538 = vmul.f32 %v528, %v536
      %v539 = vpack.c.bf16 %v537, %v537
      %v540 = vpack.c.bf16 %v538, %v538
      %v541 = vpack.c.bf16 %v474, %v474
      %v542 = vpack.c.bf16 %v476, %v476
      %v545 = vunpack.c.l.b16 %v539
      %v546 = vunpack.c.l.b16 %v540
      %v547 = vpack.c.b16 %v546, %v545
      %v550 = vunpack.c.l.b16 %v541
      %v551 = vunpack.c.l.b16 %v542
      %v552 = vpack.c.b16 %v551, %v550
      %v555 = vsel %vm496, %v547, 0
      %557 = vmatpush.bf16.msra.mxu0 0
      %558 = vmatpush.bf16.msra.mxu0 0
      %559 = vmatpush.bf16.msra.mxu0 0
      %560 = vmatpush.bf16.msra.mxu0 0
      %561 = vmatpush.bf16.msra.mxu0 0
      %562 = vmatpush.bf16.msra.mxu0 0
      %563 = vmatpush.bf16.msra.mxu0 0
      %564 = vmatpush.bf16.msra.mxu0 %v552
      %565 = vmatmul.bf16.gmra.mxu0 %v555
      %v566 = vpop.f32.mrf.mxu0
      %v567 = vadd.f32 0.0, %v566
      %v568 = vpop.f32.mrf.mxu0
      %v569 = vadd.f32 0.0, %v568
      %570 = vdwg.mxu0
      %v571 = vpack.c.bf16 %v569, %v567
      %572 = vrot.lane.b32.xlu0 %v488, 112
      %v573 = vpop.permute.xlu0 %572
      %574 = vrot.lane.b32.xlu0 %v493, 48
      %v575 = vpop.permute.xlu0 %574
      %v577 = vsel %vm496, %v573, 0
      %v580 = vsel %vm496, %v575, 0
      %582 = vmatpush.bf16.xpose.msra.mxu0 0
      %583 = vmatpush.bf16.xpose.msra.mxu0 0
      %584 = vmatpush.bf16.xpose.msra.mxu0 0
      %585 = vmatpush.bf16.xpose.msra.mxu0 0
      %586 = vmatpush.bf16.xpose.msra.mxu0 0
      %587 = vmatpush.bf16.xpose.msra.mxu0 0
      %588 = vmatpush.bf16.xpose.msra.mxu0 0
      %589 = vmatpush.bf16.xpose.msra.mxu0 %v580
      %590 = vmatmul.bf16.gmra.mxu0 %v577
      %v591 = vpop.f32.mrf.mxu0
      %v592 = vadd.f32 %v377, %v591
      %v593 = vpop.f32.mrf.mxu0
      %v594 = vadd.f32 %v378, %v593
      %595 = vdwg.mxu0
      %v596 = vsel %vm496, %v592, -inf
      %597 = vmax.xlane.f32.xlu0 %v596
      %v598 = vpop.xlane.xlu0 %597
      %v599 = vsel %vm496, %v594, -inf
      %600 = vmax.xlane.f32.xlu0 %v599
      %v601 = vpop.xlane.xlu0 %600
      %v602 = vsub.f32 %v592, %v598
      %v603 = vsub.f32 %v594, %v601
      %v604 = vmul.f32 %v602, 1.442695
      %v605 = vpow.pop %v604
      %v606 = vmul.f32 %v603, 1.442695
      %v607 = vpow.pop %v606
      %v608 = vsel %vm496, %v605, 0.0
      %609 = vadd.xlane.f32.xlu0 %v608
      %v610 = vpop.xlane.xlu0 %609
      %v611 = vsel %vm496, %v607, 0.0
      %612 = vadd.xlane.f32.xlu0 %v611
      %v613 = vpop.xlane.xlu0 %612
      %v614 = vrcp.pop %v610
      %v615 = vrcp.pop %v613
      %v616 = vmul.f32 %v605, %v614
      %v617 = vmul.f32 %v607, %v615
      %v618 = vpack.c.bf16 %v616, %v616
      %v619 = vpack.c.bf16 %v617, %v617
      %v622 = vunpack.c.l.b16 %v618
      %v623 = vunpack.c.l.b16 %v619
      %v624 = vpack.c.b16 %v623, %v622
      %625 = vrot.lane.b32.xlu0 %v552, 112
      %v626 = vpop.permute.xlu0 %625
      %v629 = vsel %vm496, %v624, 0
      %631 = vmatpush.bf16.msra.mxu0 0
      %632 = vmatpush.bf16.msra.mxu0 0
      %633 = vmatpush.bf16.msra.mxu0 0
      %634 = vmatpush.bf16.msra.mxu0 0
      %635 = vmatpush.bf16.msra.mxu0 0
      %636 = vmatpush.bf16.msra.mxu0 0
      %637 = vmatpush.bf16.msra.mxu0 0
      %638 = vmatpush.bf16.msra.mxu0 %v626
      %639 = vmatmul.bf16.gmra.mxu0 %v629
      %v640 = vpop.f32.mrf.mxu0
      %v641 = vadd.f32 0.0, %v640
      %v642 = vpop.f32.mrf.mxu0
      %v643 = vadd.f32 0.0, %v642
      %644 = vdwg.mxu0
      %v645 = vpack.c.bf16 %v643, %v641
      %v648 = vunpack.c.l.b16 %v394
      %v649 = vunpack.c.l.b16 %v395
      %v650 = vpack.c.b16 %v649, %v648
      %v653 = vsel %vm496, %v645, 0
      %655 = vmatpush.bf16.msra.mxu0 0
      %656 = vmatpush.bf16.msra.mxu0 0
      %657 = vmatpush.bf16.msra.mxu0 0
      %658 = vmatpush.bf16.msra.mxu0 0
      %659 = vmatpush.bf16.msra.mxu0 0
      %660 = vmatpush.bf16.msra.mxu0 0
      %661 = vmatpush.bf16.msra.mxu0 0
      %662 = vmatpush.bf16.msra.mxu0 %v650
      %663 = vmatmul.bf16.gmra.mxu0 %v653
      %v664 = vpop.f32.mrf.mxu0
      %v665 = vadd.f32 0.0, %v664
      %v666 = vpop.f32.mrf.mxu0
      %v667 = vadd.f32 0.0, %v666
      %668 = vdwg.mxu0
      %v671 = vunpack.c.l.b16 %v392
      %v672 = vunpack.c.l.b16 %v393
      %v673 = vpack.c.b16 %v672, %v671
      %v676 = vsel %vm496, %v571, 0
      %678 = vmatpush.bf16.msra.mxu0 0
      %679 = vmatpush.bf16.msra.mxu0 0
      %680 = vmatpush.bf16.msra.mxu0 0
      %681 = vmatpush.bf16.msra.mxu0 0
      %682 = vmatpush.bf16.msra.mxu0 0
      %683 = vmatpush.bf16.msra.mxu0 0
      %684 = vmatpush.bf16.msra.mxu0 0
      %685 = vmatpush.bf16.msra.mxu0 %v673
      %686 = vmatmul.bf16.gmra.mxu0 %v676
      %v687 = vpop.f32.mrf.mxu0
      %v688 = vadd.f32 %v665, %v687
      %v689 = vpop.f32.mrf.mxu0
      %v690 = vadd.f32 %v667, %v689
      %691 = vdwg.mxu0
      %692 = vrot.lane.b32.xlu0 %v488, 96
      %v693 = vpop.permute.xlu0 %692
      %694 = vrot.lane.b32.xlu0 %v493, 32
      %v695 = vpop.permute.xlu0 %694
      %v697 = vsel %vm496, %v693, 0
      %v700 = vsel %vm496, %v695, 0
      %702 = vmatpush.bf16.xpose.msra.mxu0 0
      %703 = vmatpush.bf16.xpose.msra.mxu0 0
      %704 = vmatpush.bf16.xpose.msra.mxu0 0
      %705 = vmatpush.bf16.xpose.msra.mxu0 0
      %706 = vmatpush.bf16.xpose.msra.mxu0 0
      %707 = vmatpush.bf16.xpose.msra.mxu0 0
      %708 = vmatpush.bf16.xpose.msra.mxu0 0
      %709 = vmatpush.bf16.xpose.msra.mxu0 %v700
      %710 = vmatmul.bf16.gmra.mxu0 %v697
      %v711 = vpop.f32.mrf.mxu0
      %v712 = vadd.f32 %v379, %v711
      %v713 = vpop.f32.mrf.mxu0
      %v714 = vadd.f32 %v380, %v713
      %715 = vdwg.mxu0
      %v716 = vsel %vm496, %v712, -inf
      %717 = vmax.xlane.f32.xlu0 %v716
      %v718 = vpop.xlane.xlu0 %717
      %v719 = vsel %vm496, %v714, -inf
      %720 = vmax.xlane.f32.xlu0 %v719
      %v721 = vpop.xlane.xlu0 %720
      %v722 = vsub.f32 %v712, %v718
      %v723 = vsub.f32 %v714, %v721
      %v724 = vmul.f32 %v722, 1.442695
      %v725 = vpow.pop %v724
      %v726 = vmul.f32 %v723, 1.442695
      %v727 = vpow.pop %v726
      %v728 = vsel %vm496, %v725, 0.0
      %729 = vadd.xlane.f32.xlu0 %v728
      %v730 = vpop.xlane.xlu0 %729
      %v731 = vsel %vm496, %v727, 0.0
      %732 = vadd.xlane.f32.xlu0 %v731
      %v733 = vpop.xlane.xlu0 %732
      %v734 = vrcp.pop %v730
      %v735 = vrcp.pop %v733
      %v736 = vmul.f32 %v725, %v734
      %v737 = vmul.f32 %v727, %v735
      %v738 = vpack.c.bf16 %v736, %v736
      %v739 = vpack.c.bf16 %v737, %v737
      %v742 = vunpack.c.l.b16 %v738
      %v743 = vunpack.c.l.b16 %v739
      %v744 = vpack.c.b16 %v743, %v742
      %745 = vrot.lane.b32.xlu0 %v552, 96
      %v746 = vpop.permute.xlu0 %745
      %v749 = vsel %vm496, %v744, 0
      %751 = vmatpush.bf16.msra.mxu0 0
      %752 = vmatpush.bf16.msra.mxu0 0
      %753 = vmatpush.bf16.msra.mxu0 0
      %754 = vmatpush.bf16.msra.mxu0 0
      %755 = vmatpush.bf16.msra.mxu0 0
      %756 = vmatpush.bf16.msra.mxu0 0
      %757 = vmatpush.bf16.msra.mxu0 0
      %758 = vmatpush.bf16.msra.mxu0 %v746
      %759 = vmatmul.bf16.gmra.mxu0 %v749
      %v760 = vpop.f32.mrf.mxu0
      %v761 = vadd.f32 0.0, %v760
      %v762 = vpop.f32.mrf.mxu0
      %v763 = vadd.f32 0.0, %v762
      %764 = vdwg.mxu0
      %v765 = vpack.c.bf16 %v763, %v761
      %v768 = vunpack.c.l.b16 %v396
      %v769 = vunpack.c.l.b16 %v397
      %v770 = vpack.c.b16 %v769, %v768
      %v773 = vsel %vm496, %v765, 0
      %775 = vmatpush.bf16.msra.mxu0 0
      %776 = vmatpush.bf16.msra.mxu0 0
      %777 = vmatpush.bf16.msra.mxu0 0
      %778 = vmatpush.bf16.msra.mxu0 0
      %779 = vmatpush.bf16.msra.mxu0 0
      %780 = vmatpush.bf16.msra.mxu0 0
      %781 = vmatpush.bf16.msra.mxu0 0
      %782 = vmatpush.bf16.msra.mxu0 %v770
      %783 = vmatmul.bf16.gmra.mxu0 %v773
      %v784 = vpop.f32.mrf.mxu0
      %v785 = vadd.f32 0.0, %v784
      %v786 = vpop.f32.mrf.mxu0
      %v787 = vadd.f32 0.0, %v786
      %788 = vdwg.mxu0
      %v789 = vadd.f32 %v688, %v785
      %v790 = vadd.f32 %v690, %v787
      %791 = vrot.lane.b32.xlu0 %v488, 80
      %v792 = vpop.permute.xlu0 %791
      %793 = vrot.lane.b32.xlu0 %v493, 16
      %v794 = vpop.permute.xlu0 %793
      %v796 = vsel %vm496, %v792, 0
      %v799 = vsel %vm496, %v794, 0
      %801 = vmatpush.bf16.xpose.msra.mxu0 0
      %802 = vmatpush.bf16.xpose.msra.mxu0 0
      %803 = vmatpush.bf16.xpose.msra.mxu0 0
      %804 = vmatpush.bf16.xpose.msra.mxu0 0
      %805 = vmatpush.bf16.xpose.msra.mxu0 0
      %806 = vmatpush.bf16.xpose.msra.mxu0 0
      %807 = vmatpush.bf16.xpose.msra.mxu0 0
      %808 = vmatpush.bf16.xpose.msra.mxu0 %v799
      %809 = vmatmul.bf16.gmra.mxu0 %v796
      %v810 = vpop.f32.mrf.mxu0
      %v811 = vadd.f32 %v381, %v810
      %v812 = vpop.f32.mrf.mxu0
      %v813 = vadd.f32 %v382, %v812
      %814 = vdwg.mxu0
      %v815 = vsel %vm496, %v811, -inf
      %816 = vmax.xlane.f32.xlu0 %v815
      %v817 = vpop.xlane.xlu0 %816
      %v818 = vsel %vm496, %v813, -inf
      %819 = vmax.xlane.f32.xlu0 %v818
      %v820 = vpop.xlane.xlu0 %819
      %v821 = vsub.f32 %v811, %v817
      %v822 = vsub.f32 %v813, %v820
      %v823 = vmul.f32 %v821, 1.442695
      %v824 = vpow.pop %v823
      %v825 = vmul.f32 %v822, 1.442695
      %v826 = vpow.pop %v825
      %v827 = vsel %vm496, %v824, 0.0
      %828 = vadd.xlane.f32.xlu0 %v827
      %v829 = vpop.xlane.xlu0 %828
      %v830 = vsel %vm496, %v826, 0.0
      %831 = vadd.xlane.f32.xlu0 %v830
      %v832 = vpop.xlane.xlu0 %831
      %v833 = vrcp.pop %v829
      %v834 = vrcp.pop %v832
      %v835 = vmul.f32 %v824, %v833
      %v836 = vmul.f32 %v826, %v834
      %v837 = vpack.c.bf16 %v835, %v835
      %v838 = vpack.c.bf16 %v836, %v836
      %v841 = vunpack.c.l.b16 %v837
      %v842 = vunpack.c.l.b16 %v838
      %v843 = vpack.c.b16 %v842, %v841
      %844 = vrot.lane.b32.xlu0 %v552, 80
      %v845 = vpop.permute.xlu0 %844
      %v848 = vsel %vm496, %v843, 0
      %850 = vmatpush.bf16.msra.mxu0 0
      %851 = vmatpush.bf16.msra.mxu0 0
      %852 = vmatpush.bf16.msra.mxu0 0
      %853 = vmatpush.bf16.msra.mxu0 0
      %854 = vmatpush.bf16.msra.mxu0 0
      %855 = vmatpush.bf16.msra.mxu0 0
      %856 = vmatpush.bf16.msra.mxu0 0
      %857 = vmatpush.bf16.msra.mxu0 %v845
      %858 = vmatmul.bf16.gmra.mxu0 %v848
      %v859 = vpop.f32.mrf.mxu0
      %v860 = vadd.f32 0.0, %v859
      %v861 = vpop.f32.mrf.mxu0
      %v862 = vadd.f32 0.0, %v861
      %863 = vdwg.mxu0
      %v864 = vpack.c.bf16 %v862, %v860
      %v867 = vunpack.c.l.b16 %v398
      %v868 = vunpack.c.l.b16 %v399
      %v869 = vpack.c.b16 %v868, %v867
      %v872 = vsel %vm496, %v864, 0
      %874 = vmatpush.bf16.msra.mxu0 0
      %875 = vmatpush.bf16.msra.mxu0 0
      %876 = vmatpush.bf16.msra.mxu0 0
      %877 = vmatpush.bf16.msra.mxu0 0
      %878 = vmatpush.bf16.msra.mxu0 0
      %879 = vmatpush.bf16.msra.mxu0 0
      %880 = vmatpush.bf16.msra.mxu0 0
      %881 = vmatpush.bf16.msra.mxu0 %v869
      %882 = vmatmul.bf16.gmra.mxu0 %v872
      %v883 = vpop.f32.mrf.mxu0
      %v884 = vadd.f32 0.0, %v883
      %v885 = vpop.f32.mrf.mxu0
      %v886 = vadd.f32 0.0, %v885
      %887 = vdwg.mxu0
      %v888 = vadd.f32 %v789, %v884
      %v889 = vadd.f32 %v790, %v886
      %v891 = vperm.slane %v400, 0
      %v893 = vadd.f32 %v888, %v891
      %v894 = vadd.f32 %v889, %v891
      %v895 = vpack.c.bf16 %v893, %v893
      %v896 = vpack.c.bf16 %v894, %v894
      %vm897 = vcmask 519168
      %898 = vst.msk [vmem:[%s305] sm:$0xf] %vm897, %v895
      %899 = vst.msk [vmem:[%s305 + $0x4] sm:$0xf] %vm897, %v896
      %p900 = scmp.lt.s32.totalorder %s19, 1
      %s901 = scalar_select %p900, %s19, 1
      %s902 = smul.addr %s901, 2
      %s903 = smul.addr %s902, 4
      %s904 = scalar_lea.vmem %s8, %s903
      // Predicated region
      $region53: #{swin_forward.16} parent=51 // pred_check
        %p905 = pneg %p210
      $region54: #{swin_forward.16} parent=51 // pred_check_branch
        %907 = sbr.rel (%p905) target = $region56
      $region55: #{swin_forward.16} parent=51 // pred_region
        _
      $region56: #{swin_forward.16} parent=51 // pred_fallthru
        _
    $region52: #{swin_forward.16} parent=5 // pred_fallthru
      _
    %p908 = scmp.le.s32.totalorder 2, %s14
    // Predicated region
    $region57: #{swin_forward.16} parent=5 // pred_check
      %p909 = pneg %p908
    $region58: #{swin_forward.16} parent=5 // pred_check_branch
      %911 = sbr.rel (%p909) target = $region60
    $region59: #{swin_forward.16} parent=5 // pred_region
      %s912 = ssub.s32 %s14, 2
      // Predicated region
      $region61: #{swin_forward.16} parent=59 // pred_check
        %p913 = pneg %p216
      $region62: #{swin_forward.16} parent=59 // pred_check_branch
        %915 = sbr.rel (%p913) target = $region64
      $region63: #{swin_forward.16} parent=59 // pred_region
        %p916 = scmp.lt.s32.totalorder %s20, 1
        %s917 = scalar_select %p916, %s20, 1
        %s918 = smul.addr %s917, 2
        %s919 = smul.addr %s918, 4
        %s920 = scalar_lea.vmem %s8, %s919
      $region64: #{swin_forward.16} parent=59 // pred_fallthru
        _
    $region60: #{swin_forward.16} parent=5 // pred_fallthru
      _
  $region6: #{swin_forward.16} parent=0 // loop_footer
    %s18 = sadd.s32 1, %s14
  $region7: #{swin_forward.16} parent=0 // loop_footer_branch
    %13 = sbr.rel target = $region3
  $region8: #{swin_forward.16} parent=0 // loop_exit
    _

</llo_original>
